<compile_context>
chip_gen: v6e
topology: v6e:2x2x1
jax: 0.10.0
libtpu: 0.0.40
codegen_flags: <defaults>
</compile_context>

<pallas_src>
import jax
import jax.numpy as jnp
import numpy as np
from jax.experimental import pallas as pl
from jax.experimental.pallas import tpu as pltpu

_LANE = 128


def _round_up(x, m):
    return (x + m - 1) // m * m


# ----------------------------------------------------------------------------
# Pallas kernel: fused conv1+bn1+relu -> conv2+bn2(+residual)+relu, one image
# ----------------------------------------------------------------------------
def _basic_block_kernel(x_ref, w1_ref, w2_ref, b1_ref, b2_ref, r_ref, o_ref,
                        y1_ref):
    # x_ref : (1, H+2, W+2, Cp) bf16   padded input image
    # w*_ref: (3, 3, Cp, Cp)    bf16   BN-scale-folded weights, (kh,kw,ci,co)
    # b*_ref: (1, Cp)           f32    folded BN bias
    # r_ref : (1, H, W, Cp)     f32    residual
    # o_ref : (1, H, W, Cp)     f32    output
    # y1_ref: (H+2, W+2, Cp)    bf16   VMEM scratch for the intermediate act.
    Hp, Wp, Cp = y1_ref.shape
    H, W = Hp - 2, Wp - 2

    # ---- stage 1: y1 = relu(conv1(x) * s1 + b1)  (im2col fused, 9 taps) ----
    acc = jnp.zeros((H * W, Cp), jnp.float32)
    for kh in range(3):
        for kw in range(3):
            patch = x_ref[0, kh:kh + H, kw:kw + W, :].reshape(H * W, Cp)
            acc += jnp.dot(patch, w1_ref[kh, kw],
                           preferred_element_type=jnp.float32)
    y1 = jnp.maximum(acc + b1_ref[...], 0.0)

    # keep y1 in VMEM with a zero 1-pixel border (conv2's SAME padding)
    y1_ref[...] = jnp.zeros_like(y1_ref)
    y1_ref[1:H + 1, 1:W + 1, :] = y1.reshape(H, W, Cp).astype(y1_ref.dtype)

    # ---- stage 2: out = relu(conv2(y1) * s2 + b2 + residual) ---------------
    acc2 = jnp.zeros((H * W, Cp), jnp.float32)
    for kh in range(3):
        for kw in range(3):
            patch = y1_ref[kh:kh + H, kw:kw + W, :].reshape(H * W, Cp)
            acc2 += jnp.dot(patch, w2_ref[kh, kw],
                            preferred_element_type=jnp.float32)
    out = acc2 + b2_ref[...] + r_ref[...].reshape(H * W, Cp)
    out = jnp.maximum(out, 0.0)
    o_ref[...] = out.reshape(1, H, W, Cp).astype(o_ref.dtype)


# ----------------------------------------------------------------------------
# Parameter preparation (BN folding) + wrapper
# ----------------------------------------------------------------------------
def _fold_bn(conv_w, bn_w, bn_b, bn_rm, bn_rv, eps=1e-5):
    """Fold FrozenBatchNorm2d into the conv weights.

    conv_w: (Cout, Cin, 3, 3)  ->  w: (3, 3, Cin, Cout) (scale folded), bias: (Cout,)
    """
    scale = bn_w * jax.lax.rsqrt(bn_rv + eps)
    bias = bn_b - bn_rm * scale
    w = jnp.transpose(conv_w, (2, 3, 1, 0)) * scale[None, None, None, :]
    return w, bias


def basic_block_forward(x_nchw, params, residual_nchw=None):
    """Reproduces BasicBlock.forward (stride=1, dilation=1), NCHW in/out."""
    if residual_nchw is None:
        residual_nchw = x_nchw

    x = jnp.transpose(x_nchw, (0, 2, 3, 1)).astype(jnp.float32)          # NHWC
    res = jnp.transpose(residual_nchw, (0, 2, 3, 1)).astype(jnp.float32)

    N, H, W, Cin = x.shape
    Cout = params["conv1_w"].shape[0]
    assert params["conv2_w"].shape[0] == Cout
    assert res.shape[-1] == Cout, "residual channels must equal planes"

    Cp = _round_up(max(Cin, Cout), _LANE)          # lane-dense channel width

    w1, b1 = _fold_bn(params["conv1_w"], params["bn1_w"], params["bn1_b"],
                      params["bn1_rm"], params["bn1_rv"])
    w2, b2 = _fold_bn(params["conv2_w"], params["bn2_w"], params["bn2_b"],
                      params["bn2_rm"], params["bn2_rv"])

    # pad channels to Cp; bf16 for the MXU streams, f32 for bias/residual
    w1p = jnp.zeros((3, 3, Cp, Cp), jnp.float32).at[:, :, :Cin, :Cout].set(w1)
    w2p = jnp.zeros((3, 3, Cp, Cp), jnp.float32).at[:, :, :Cout, :Cout].set(w2)
    w1p = w1p.astype(jnp.bfloat16)
    w2p = w2p.astype(jnp.bfloat16)
    b1p = jnp.zeros((1, Cp), jnp.float32).at[0, :Cout].set(b1)
    b2p = jnp.zeros((1, Cp), jnp.float32).at[0, :Cout].set(b2)

    # +1 pixel spatial halo for conv1 (SAME padding), channels -> Cp
    x_pad = jnp.pad(x, ((0, 0), (1, 1), (1, 1), (0, Cp - Cin))).astype(jnp.bfloat16)
    res_p = jnp.pad(res, ((0, 0), (0, 0), (0, 0), (0, Cp - Cout)))       # f32

    flops = 2 * 2 * 9 * N * H * W * Cp * Cp       # two 3x3 convs
    bytes_accessed = (x_pad.size * 2 + w1p.size * 2 + w2p.size * 2 +
                      res_p.size * 4 + N * H * W * Cp * 4)
    cost = pl.CostEstimate(flops=flops, transcendentals=0,
                           bytes_accessed=bytes_accessed)

    out_p = pl.pallas_call(
        _basic_block_kernel,
        out_shape=jax.ShapeDtypeStruct((N, H, W, Cp), jnp.float32),
        grid=(N,),
        in_specs=[
            pl.BlockSpec((1, H + 2, W + 2, Cp), lambda n: (n, 0, 0, 0)),  # x
            pl.BlockSpec((3, 3, Cp, Cp), lambda n: (0, 0, 0, 0)),         # w1
            pl.BlockSpec((3, 3, Cp, Cp), lambda n: (0, 0, 0, 0)),         # w2
            pl.BlockSpec((1, Cp), lambda n: (0, 0)),                      # b1
            pl.BlockSpec((1, Cp), lambda n: (0, 0)),                      # b2
            pl.BlockSpec((1, H, W, Cp), lambda n: (n, 0, 0, 0)),          # res
        ],
        out_specs=pl.BlockSpec((1, H, W, Cp), lambda n: (n, 0, 0, 0)),
        scratch_shapes=[pltpu.VMEM((H + 2, W + 2, Cp), jnp.bfloat16)],    # y1
        compiler_params=pltpu.CompilerParams(
            dimension_semantics=("parallel",)),
        cost_estimate=cost,
    )(x_pad, w1p, w2p, b1p, b2p, res_p)

    out = out_p[..., :Cout]                        # drop lane padding
    return jnp.transpose(out, (0, 3, 1, 2))        # NCHW


# ----------------------------------------------------------------------------
# Pure-JAX references for verification
# ----------------------------------------------------------------------------
def _conv3x3(x_nhwc, w_hwio, **kw):
    return jax.lax.conv_general_dilated(
        x_nhwc, w_hwio, window_strides=(1, 1), padding="SAME",
        dimension_numbers=("NHWC", "HWIO", "NHWC"), **kw)


def _reference_f32(x_nchw, params, residual_nchw=None):
    """Module-faithful full-f32 reference."""
    if residual_nchw is None:
        residual_nchw = x_nchw
    x = jnp.transpose(x_nchw, (0, 2, 3, 1)).astype(jnp.float32)
    res = jnp.transpose(residual_nchw, (0, 2, 3, 1)).astype(jnp.float32)

    def bn(y, w, b, rm, rv, eps=1e-5):
        scale = w * jax.lax.rsqrt(rv + eps)
        return y * scale + (b - rm * scale)

    y = _conv3x3(x, jnp.transpose(params["conv1_w"], (2, 3, 1, 0)))
    y = jnp.maximum(bn(y, params["bn1_w"], params["bn1_b"],
                       params["bn1_rm"], params["bn1_rv"]), 0.0)
    y = _conv3x3(y, jnp.transpose(params["conv2_w"], (2, 3, 1, 0)))
    y = bn(y, params["bn2_w"], params["bn2_b"],
           params["bn2_rm"], params["bn2_rv"]) + res
    return jnp.transpose(jnp.maximum(y, 0.0), (0, 3, 1, 2))


def _reference_bf16(x_nchw, params, residual_nchw=None):
    """Precision-matched reference: BN folded, bf16 conv inputs, f32 accum."""
    if residual_nchw is None:
        residual_nchw = x_nchw
    x = jnp.transpose(x_nchw, (0, 2, 3, 1)).astype(jnp.float32)
    res = jnp.transpose(residual_nchw, (0, 2, 3, 1)).astype(jnp.float32)
    w1, b1 = _fold_bn(params["conv1_w"], params["bn1_w"], params["bn1_b"],
                      params["bn1_rm"], params["bn1_rv"])
    w2, b2 = _fold_bn(params["conv2_w"], params["bn2_w"], params["bn2_b"],
                      params["bn2_rm"], params["bn2_rv"])
    y = _conv3x3(x.astype(jnp.bfloat16), w1.astype(jnp.bfloat16),
                 preferred_element_type=jnp.float32)
    y = jnp.maximum(y + b1, 0.0)
    y = _conv3x3(y.astype(jnp.bfloat16), w2.astype(jnp.bfloat16),
                 preferred_element_type=jnp.float32)
    y = jnp.maximum(y + b2 + res, 0.0)
    return jnp.transpose(y, (0, 3, 1, 2))


# ----------------------------------------------------------------------------
# Main
# ----------------------------------------------------------------------------
if __name__ == "__main__":
    key = jax.random.PRNGKey(0)
    N, C, H, W = 2, 4, 16, 16          # inplanes == planes == 4, stride=1
    keys = jax.random.split(key, 8)

    x = jax.random.normal(keys[0], (N, C, H, W), dtype=jnp.float32)

    params = {
        "conv1_w": 0.1 * jax.random.normal(keys[1], (C, C, 3, 3), jnp.float32),
        "conv2_w": 0.1 * jax.random.normal(keys[2], (C, C, 3, 3), jnp.float32),
        # FrozenBatchNorm2d buffers (deterministic, slightly non-trivial)
        "bn1_w": 1.0 + 0.1 * jax.random.normal(keys[3], (C,), jnp.float32),
        "bn1_b": 0.1 * jax.random.normal(keys[4], (C,), jnp.float32),
        "bn1_rm": 0.1 * jax.random.normal(keys[5], (C,), jnp.float32),
        "bn1_rv": 1.0 + 0.1 * jax.random.uniform(keys[6], (C,), jnp.float32),
        "bn2_w": jnp.ones((C,), jnp.float32),
        "bn2_b": jnp.zeros((C,), jnp.float32),
        "bn2_rm": jnp.zeros((C,), jnp.float32),
        "bn2_rv": jnp.ones((C,), jnp.float32),
    }

    fwd = jax.jit(basic_block_forward)
    out = jax.block_until_ready(fwd(x, params))
    assert out.shape == (N, C, H, W)

    # tight check vs. a precision-matched (bf16 MXU inputs, f32 accum) reference
    ref_bf16 = jax.block_until_ready(_reference_bf16(x, params))
    np.testing.assert_allclose(np.asarray(out), np.asarray(ref_bf16),
                               rtol=1e-4, atol=1e-4)

    # sanity check vs. the full-f32 PyTorch module semantics
    ref_f32 = jax.block_until_ready(_reference_f32(x, params))
    np.testing.assert_allclose(np.asarray(out), np.asarray(ref_f32),
                               rtol=5e-2, atol=5e-2)

    print("KERNEL_OK")
</pallas_src>

<mosaic_0001>
module attributes {stable_mosaic.version = 11 : i64} {
  func.func @_basic_block_kernel(%arg0: i32, %arg1: memref<1x18x18x128xbf16, #tpu.memory_space<vmem>>, %arg2: memref<3x3x128x128xbf16, #tpu.memory_space<vmem>>, %arg3: memref<3x3x128x128xbf16, #tpu.memory_space<vmem>>, %arg4: memref<1x128xf32, #tpu.memory_space<vmem>>, %arg5: memref<1x128xf32, #tpu.memory_space<vmem>>, %arg6: memref<1x16x16x128xf32, #tpu.memory_space<vmem>>, %arg7: memref<1x16x16x128xf32, #tpu.memory_space<vmem>>, %arg8: memref<18x18x128xbf16, #tpu.memory_space<vmem>>) attributes {dimension_semantics = [#tpu.dimension_semantics<parallel>], iteration_bounds = array<i64: 2>, scalar_prefetch = 0 : i64, scratch_operands = 1 : i64, tpu.core_type = #tpu.core_type<tc>, window_params = [{transform_indices = @transform_0, window_bounds = array<i64: 1, 18, 18, 128>}, {pipeline_mode = #tpu.pipeline_mode<synchronous>, transform_indices = @transform_1, window_bounds = array<i64: 3, 3, 128, 128>}, {pipeline_mode = #tpu.pipeline_mode<synchronous>, transform_indices = @transform_2, window_bounds = array<i64: 3, 3, 128, 128>}, {pipeline_mode = #tpu.pipeline_mode<synchronous>, transform_indices = @transform_3, window_bounds = array<i64: 1, 128>}, {pipeline_mode = #tpu.pipeline_mode<synchronous>, transform_indices = @transform_4, window_bounds = array<i64: 1, 128>}, {transform_indices = @transform_5, window_bounds = array<i64: 1, 16, 16, 128>}, {transform_indices = @transform_6, window_bounds = array<i64: 1, 16, 16, 128>}]} {
    %cst = arith.constant 0.000000e+00 : f32
    %0 = vector.broadcast %cst : f32 to vector<256x128xf32>
    %c0 = arith.constant 0 : index
    %c0_0 = arith.constant 0 : index
    %c0_1 = arith.constant 0 : index
    %c0_2 = arith.constant 0 : index
    %1 = vector.load %arg1[%c0, %c0_0, %c0_1, %c0_2] : memref<1x18x18x128xbf16, #tpu.memory_space<vmem>>, vector<1x16x16x128xbf16>
    %2 = vector.shape_cast %1 : vector<1x16x16x128xbf16> to vector<16x16x128xbf16>
    %3 = vector.shape_cast %2 : vector<16x16x128xbf16> to vector<256x128xbf16>
    %c0_3 = arith.constant 0 : index
    %c0_4 = arith.constant 0 : index
    %c0_5 = arith.constant 0 : index
    %c0_6 = arith.constant 0 : index
    %4 = vector.load %arg2[%c0_3, %c0_4, %c0_5, %c0_6] : memref<3x3x128x128xbf16, #tpu.memory_space<vmem>>, vector<1x1x128x128xbf16>
    %5 = vector.shape_cast %4 : vector<1x1x128x128xbf16> to vector<128x128xbf16>
    %cst_7 = arith.constant dense<0.000000e+00> : vector<256x128xf32>
    %6 = tpu.matmul %3, %5, %cst_7 {dimension_numbers = #tpu.dot_dimension_numbers<[1], [0], [0], [1], [0, 0, 1, 1], [], []>} : vector<256x128xbf16>, vector<128x128xbf16>, vector<256x128xf32> -> vector<256x128xf32>
    %7 = arith.addf %0, %6 : vector<256x128xf32>
    %c0_8 = arith.constant 0 : index
    %c0_9 = arith.constant 0 : index
    %c1 = arith.constant 1 : index
    %c0_10 = arith.constant 0 : index
    %8 = vector.load %arg1[%c0_8, %c0_9, %c1, %c0_10] : memref<1x18x18x128xbf16, #tpu.memory_space<vmem>>, vector<1x16x16x128xbf16>
    %9 = vector.shape_cast %8 : vector<1x16x16x128xbf16> to vector<16x16x128xbf16>
    %10 = vector.shape_cast %9 : vector<16x16x128xbf16> to vector<256x128xbf16>
    %c0_11 = arith.constant 0 : index
    %c1_12 = arith.constant 1 : index
    %c0_13 = arith.constant 0 : index
    %c0_14 = arith.constant 0 : index
    %11 = vector.load %arg2[%c0_11, %c1_12, %c0_13, %c0_14] : memref<3x3x128x128xbf16, #tpu.memory_space<vmem>>, vector<1x1x128x128xbf16>
    %12 = vector.shape_cast %11 : vector<1x1x128x128xbf16> to vector<128x128xbf16>
    %cst_15 = arith.constant dense<0.000000e+00> : vector<256x128xf32>
    %13 = tpu.matmul %10, %12, %cst_15 {dimension_numbers = #tpu.dot_dimension_numbers<[1], [0], [0], [1], [0, 0, 1, 1], [], []>} : vector<256x128xbf16>, vector<128x128xbf16>, vector<256x128xf32> -> vector<256x128xf32>
    %14 = arith.addf %7, %13 : vector<256x128xf32>
    %c0_16 = arith.constant 0 : index
    %c0_17 = arith.constant 0 : index
    %c2 = arith.constant 2 : index
    %c0_18 = arith.constant 0 : index
    %15 = vector.load %arg1[%c0_16, %c0_17, %c2, %c0_18] : memref<1x18x18x128xbf16, #tpu.memory_space<vmem>>, vector<1x16x16x128xbf16>
    %16 = vector.shape_cast %15 : vector<1x16x16x128xbf16> to vector<16x16x128xbf16>
    %17 = vector.shape_cast %16 : vector<16x16x128xbf16> to vector<256x128xbf16>
    %c0_19 = arith.constant 0 : index
    %c2_20 = arith.constant 2 : index
    %c0_21 = arith.constant 0 : index
    %c0_22 = arith.constant 0 : index
    %18 = vector.load %arg2[%c0_19, %c2_20, %c0_21, %c0_22] : memref<3x3x128x128xbf16, #tpu.memory_space<vmem>>, vector<1x1x128x128xbf16>
    %19 = vector.shape_cast %18 : vector<1x1x128x128xbf16> to vector<128x128xbf16>
    %cst_23 = arith.constant dense<0.000000e+00> : vector<256x128xf32>
    %20 = tpu.matmul %17, %19, %cst_23 {dimension_numbers = #tpu.dot_dimension_numbers<[1], [0], [0], [1], [0, 0, 1, 1], [], []>} : vector<256x128xbf16>, vector<128x128xbf16>, vector<256x128xf32> -> vector<256x128xf32>
    %21 = arith.addf %14, %20 : vector<256x128xf32>
    %c0_24 = arith.constant 0 : index
    %c1_25 = arith.constant 1 : index
    %c0_26 = arith.constant 0 : index
    %c0_27 = arith.constant 0 : index
    %22 = vector.load %arg1[%c0_24, %c1_25, %c0_26, %c0_27] : memref<1x18x18x128xbf16, #tpu.memory_space<vmem>>, vector<1x16x16x128xbf16>
    %23 = vector.shape_cast %22 : vector<1x16x16x128xbf16> to vector<16x16x128xbf16>
    %24 = vector.shape_cast %23 : vector<16x16x128xbf16> to vector<256x128xbf16>
    %c1_28 = arith.constant 1 : index
    %c0_29 = arith.constant 0 : index
    %c0_30 = arith.constant 0 : index
    %c0_31 = arith.constant 0 : index
    %25 = vector.load %arg2[%c1_28, %c0_29, %c0_30, %c0_31] : memref<3x3x128x128xbf16, #tpu.memory_space<vmem>>, vector<1x1x128x128xbf16>
    %26 = vector.shape_cast %25 : vector<1x1x128x128xbf16> to vector<128x128xbf16>
    %cst_32 = arith.constant dense<0.000000e+00> : vector<256x128xf32>
    %27 = tpu.matmul %24, %26, %cst_32 {dimension_numbers = #tpu.dot_dimension_numbers<[1], [0], [0], [1], [0, 0, 1, 1], [], []>} : vector<256x128xbf16>, vector<128x128xbf16>, vector<256x128xf32> -> vector<256x128xf32>
    %28 = arith.addf %21, %27 : vector<256x128xf32>
    %c0_33 = arith.constant 0 : index
    %c1_34 = arith.constant 1 : index
    %c1_35 = arith.constant 1 : index
    %c0_36 = arith.constant 0 : index
    %29 = vector.load %arg1[%c0_33, %c1_34, %c1_35, %c0_36] : memref<1x18x18x128xbf16, #tpu.memory_space<vmem>>, vector<1x16x16x128xbf16>
    %30 = vector.shape_cast %29 : vector<1x16x16x128xbf16> to vector<16x16x128xbf16>
    %31 = vector.shape_cast %30 : vector<16x16x128xbf16> to vector<256x128xbf16>
    %c1_37 = arith.constant 1 : index
    %c1_38 = arith.constant 1 : index
    %c0_39 = arith.constant 0 : index
    %c0_40 = arith.constant 0 : index
    %32 = vector.load %arg2[%c1_37, %c1_38, %c0_39, %c0_40] : memref<3x3x128x128xbf16, #tpu.memory_space<vmem>>, vector<1x1x128x128xbf16>
    %33 = vector.shape_cast %32 : vector<1x1x128x128xbf16> to vector<128x128xbf16>
    %cst_41 = arith.constant dense<0.000000e+00> : vector<256x128xf32>
    %34 = tpu.matmul %31, %33, %cst_41 {dimension_numbers = #tpu.dot_dimension_numbers<[1], [0], [0], [1], [0, 0, 1, 1], [], []>} : vector<256x128xbf16>, vector<128x128xbf16>, vector<256x128xf32> -> vector<256x128xf32>
    %35 = arith.addf %28, %34 : vector<256x128xf32>
    %c0_42 = arith.constant 0 : index
    %c1_43 = arith.constant 1 : index
    %c2_44 = arith.constant 2 : index
    %c0_45 = arith.constant 0 : index
    %36 = vector.load %arg1[%c0_42, %c1_43, %c2_44, %c0_45] : memref<1x18x18x128xbf16, #tpu.memory_space<vmem>>, vector<1x16x16x128xbf16>
    %37 = vector.shape_cast %36 : vector<1x16x16x128xbf16> to vector<16x16x128xbf16>
    %38 = vector.shape_cast %37 : vector<16x16x128xbf16> to vector<256x128xbf16>
    %c1_46 = arith.constant 1 : index
    %c2_47 = arith.constant 2 : index
    %c0_48 = arith.constant 0 : index
    %c0_49 = arith.constant 0 : index
    %39 = vector.load %arg2[%c1_46, %c2_47, %c0_48, %c0_49] : memref<3x3x128x128xbf16, #tpu.memory_space<vmem>>, vector<1x1x128x128xbf16>
    %40 = vector.shape_cast %39 : vector<1x1x128x128xbf16> to vector<128x128xbf16>
    %cst_50 = arith.constant dense<0.000000e+00> : vector<256x128xf32>
    %41 = tpu.matmul %38, %40, %cst_50 {dimension_numbers = #tpu.dot_dimension_numbers<[1], [0], [0], [1], [0, 0, 1, 1], [], []>} : vector<256x128xbf16>, vector<128x128xbf16>, vector<256x128xf32> -> vector<256x128xf32>
    %42 = arith.addf %35, %41 : vector<256x128xf32>
    %c0_51 = arith.constant 0 : index
    %c2_52 = arith.constant 2 : index
    %c0_53 = arith.constant 0 : index
    %c0_54 = arith.constant 0 : index
    %43 = vector.load %arg1[%c0_51, %c2_52, %c0_53, %c0_54] : memref<1x18x18x128xbf16, #tpu.memory_space<vmem>>, vector<1x16x16x128xbf16>
    %44 = vector.shape_cast %43 : vector<1x16x16x128xbf16> to vector<16x16x128xbf16>
    %45 = vector.shape_cast %44 : vector<16x16x128xbf16> to vector<256x128xbf16>
    %c2_55 = arith.constant 2 : index
    %c0_56 = arith.constant 0 : index
    %c0_57 = arith.constant 0 : index
    %c0_58 = arith.constant 0 : index
    %46 = vector.load %arg2[%c2_55, %c0_56, %c0_57, %c0_58] : memref<3x3x128x128xbf16, #tpu.memory_space<vmem>>, vector<1x1x128x128xbf16>
    %47 = vector.shape_cast %46 : vector<1x1x128x128xbf16> to vector<128x128xbf16>
    %cst_59 = arith.constant dense<0.000000e+00> : vector<256x128xf32>
    %48 = tpu.matmul %45, %47, %cst_59 {dimension_numbers = #tpu.dot_dimension_numbers<[1], [0], [0], [1], [0, 0, 1, 1], [], []>} : vector<256x128xbf16>, vector<128x128xbf16>, vector<256x128xf32> -> vector<256x128xf32>
    %49 = arith.addf %42, %48 : vector<256x128xf32>
    %c0_60 = arith.constant 0 : index
    %c2_61 = arith.constant 2 : index
    %c1_62 = arith.constant 1 : index
    %c0_63 = arith.constant 0 : index
    %50 = vector.load %arg1[%c0_60, %c2_61, %c1_62, %c0_63] : memref<1x18x18x128xbf16, #tpu.memory_space<vmem>>, vector<1x16x16x128xbf16>
    %51 = vector.shape_cast %50 : vector<1x16x16x128xbf16> to vector<16x16x128xbf16>
    %52 = vector.shape_cast %51 : vector<16x16x128xbf16> to vector<256x128xbf16>
    %c2_64 = arith.constant 2 : index
    %c1_65 = arith.constant 1 : index
    %c0_66 = arith.constant 0 : index
    %c0_67 = arith.constant 0 : index
    %53 = vector.load %arg2[%c2_64, %c1_65, %c0_66, %c0_67] : memref<3x3x128x128xbf16, #tpu.memory_space<vmem>>, vector<1x1x128x128xbf16>
    %54 = vector.shape_cast %53 : vector<1x1x128x128xbf16> to vector<128x128xbf16>
    %cst_68 = arith.constant dense<0.000000e+00> : vector<256x128xf32>
    %55 = tpu.matmul %52, %54, %cst_68 {dimension_numbers = #tpu.dot_dimension_numbers<[1], [0], [0], [1], [0, 0, 1, 1], [], []>} : vector<256x128xbf16>, vector<128x128xbf16>, vector<256x128xf32> -> vector<256x128xf32>
    %56 = arith.addf %49, %55 : vector<256x128xf32>
    %c0_69 = arith.constant 0 : index
    %c2_70 = arith.constant 2 : index
    %c2_71 = arith.constant 2 : index
    %c0_72 = arith.constant 0 : index
    %57 = vector.load %arg1[%c0_69, %c2_70, %c2_71, %c0_72] : memref<1x18x18x128xbf16, #tpu.memory_space<vmem>>, vector<1x16x16x128xbf16>
    %58 = vector.shape_cast %57 : vector<1x16x16x128xbf16> to vector<16x16x128xbf16>
    %59 = vector.shape_cast %58 : vector<16x16x128xbf16> to vector<256x128xbf16>
    %c2_73 = arith.constant 2 : index
    %c2_74 = arith.constant 2 : index
    %c0_75 = arith.constant 0 : index
    %c0_76 = arith.constant 0 : index
    %60 = vector.load %arg2[%c2_73, %c2_74, %c0_75, %c0_76] : memref<3x3x128x128xbf16, #tpu.memory_space<vmem>>, vector<1x1x128x128xbf16>
    %61 = vector.shape_cast %60 : vector<1x1x128x128xbf16> to vector<128x128xbf16>
    %cst_77 = arith.constant dense<0.000000e+00> : vector<256x128xf32>
    %62 = tpu.matmul %59, %61, %cst_77 {dimension_numbers = #tpu.dot_dimension_numbers<[1], [0], [0], [1], [0, 0, 1, 1], [], []>} : vector<256x128xbf16>, vector<128x128xbf16>, vector<256x128xf32> -> vector<256x128xf32>
    %63 = arith.addf %56, %62 : vector<256x128xf32>
    %c0_78 = arith.constant 0 : index
    %c0_79 = arith.constant 0 : index
    %64 = vector.load %arg4[%c0_78, %c0_79] : memref<1x128xf32, #tpu.memory_space<vmem>>, vector<1x128xf32>
    %65 = vector.broadcast %64 : vector<1x128xf32> to vector<256x128xf32>
    %66 = arith.addf %63, %65 : vector<256x128xf32>
    %cst_80 = arith.constant 0.000000e+00 : f32
    %67 = vector.broadcast %cst_80 : f32 to vector<256x128xf32>
    %68 = arith.maximumf %66, %67 : vector<256x128xf32>
    %cst_81 = arith.constant 0.000000e+00 : bf16
    %69 = vector.broadcast %cst_81 : bf16 to vector<18x18x128xbf16>
    %c0_82 = arith.constant 0 : index
    %c0_83 = arith.constant 0 : index
    %c0_84 = arith.constant 0 : index
    %70 = vector.load %arg8[%c0_82, %c0_83, %c0_84] : memref<18x18x128xbf16, #tpu.memory_space<vmem>>, vector<18x18x128xbf16>
    tpu.vector_store %arg8[%c0_82, %c0_83, %c0_84], %69 {strides = array<i32>} : memref<18x18x128xbf16, #tpu.memory_space<vmem>>, vector<18x18x128xbf16>,
    %71 = vector.shape_cast %68 : vector<256x128xf32> to vector<16x16x128xf32>
    %72 = arith.truncf %71 : vector<16x16x128xf32> to vector<16x16x128xbf16>
    %c1_85 = arith.constant 1 : index
    %c1_86 = arith.constant 1 : index
    %c0_87 = arith.constant 0 : index
    %73 = vector.load %arg8[%c1_85, %c1_86, %c0_87] : memref<18x18x128xbf16, #tpu.memory_space<vmem>>, vector<16x16x128xbf16>
    tpu.vector_store %arg8[%c1_85, %c1_86, %c0_87], %72 {strides = array<i32>} : memref<18x18x128xbf16, #tpu.memory_space<vmem>>, vector<16x16x128xbf16>,
    %cst_88 = arith.constant 0.000000e+00 : f32
    %74 = vector.broadcast %cst_88 : f32 to vector<256x128xf32>
    %c0_89 = arith.constant 0 : index
    %c0_90 = arith.constant 0 : index
    %c0_91 = arith.constant 0 : index
    %75 = vector.load %arg8[%c0_89, %c0_90, %c0_91] : memref<18x18x128xbf16, #tpu.memory_space<vmem>>, vector<16x16x128xbf16>
    %76 = vector.shape_cast %75 : vector<16x16x128xbf16> to vector<256x128xbf16>
    %c0_92 = arith.constant 0 : index
    %c0_93 = arith.constant 0 : index
    %c0_94 = arith.constant 0 : index
    %c0_95 = arith.constant 0 : index
    %77 = vector.load %arg3[%c0_92, %c0_93, %c0_94, %c0_95] : memref<3x3x128x128xbf16, #tpu.memory_space<vmem>>, vector<1x1x128x128xbf16>
    %78 = vector.shape_cast %77 : vector<1x1x128x128xbf16> to vector<128x128xbf16>
    %cst_96 = arith.constant dense<0.000000e+00> : vector<256x128xf32>
    %79 = tpu.matmul %76, %78, %cst_96 {dimension_numbers = #tpu.dot_dimension_numbers<[1], [0], [0], [1], [0, 0, 1, 1], [], []>} : vector<256x128xbf16>, vector<128x128xbf16>, vector<256x128xf32> -> vector<256x128xf32>
    %80 = arith.addf %74, %79 : vector<256x128xf32>
    %c0_97 = arith.constant 0 : index
    %c1_98 = arith.constant 1 : index
    %c0_99 = arith.constant 0 : index
    %81 = vector.load %arg8[%c0_97, %c1_98, %c0_99] : memref<18x18x128xbf16, #tpu.memory_space<vmem>>, vector<16x16x128xbf16>
    %82 = vector.shape_cast %81 : vector<16x16x128xbf16> to vector<256x128xbf16>
    %c0_100 = arith.constant 0 : index
    %c1_101 = arith.constant 1 : index
    %c0_102 = arith.constant 0 : index
    %c0_103 = arith.constant 0 : index
    %83 = vector.load %arg3[%c0_100, %c1_101, %c0_102, %c0_103] : memref<3x3x128x128xbf16, #tpu.memory_space<vmem>>, vector<1x1x128x128xbf16>
    %84 = vector.shape_cast %83 : vector<1x1x128x128xbf16> to vector<128x128xbf16>
    %cst_104 = arith.constant dense<0.000000e+00> : vector<256x128xf32>
    %85 = tpu.matmul %82, %84, %cst_104 {dimension_numbers = #tpu.dot_dimension_numbers<[1], [0], [0], [1], [0, 0, 1, 1], [], []>} : vector<256x128xbf16>, vector<128x128xbf16>, vector<256x128xf32> -> vector<256x128xf32>
    %86 = arith.addf %80, %85 : vector<256x128xf32>
    %c0_105 = arith.constant 0 : index
    %c2_106 = arith.constant 2 : index
    %c0_107 = arith.constant 0 : index
    %87 = vector.load %arg8[%c0_105, %c2_106, %c0_107] : memref<18x18x128xbf16, #tpu.memory_space<vmem>>, vector<16x16x128xbf16>
    %88 = vector.shape_cast %87 : vector<16x16x128xbf16> to vector<256x128xbf16>
    %c0_108 = arith.constant 0 : index
    %c2_109 = arith.constant 2 : index
    %c0_110 = arith.constant 0 : index
    %c0_111 = arith.constant 0 : index
    %89 = vector.load %arg3[%c0_108, %c2_109, %c0_110, %c0_111] : memref<3x3x128x128xbf16, #tpu.memory_space<vmem>>, vector<1x1x128x128xbf16>
    %90 = vector.shape_cast %89 : vector<1x1x128x128xbf16> to vector<128x128xbf16>
    %cst_112 = arith.constant dense<0.000000e+00> : vector<256x128xf32>
    %91 = tpu.matmul %88, %90, %cst_112 {dimension_numbers = #tpu.dot_dimension_numbers<[1], [0], [0], [1], [0, 0, 1, 1], [], []>} : vector<256x128xbf16>, vector<128x128xbf16>, vector<256x128xf32> -> vector<256x128xf32>
    %92 = arith.addf %86, %91 : vector<256x128xf32>
    %c1_113 = arith.constant 1 : index
    %c0_114 = arith.constant 0 : index
    %c0_115 = arith.constant 0 : index
    %93 = vector.load %arg8[%c1_113, %c0_114, %c0_115] : memref<18x18x128xbf16, #tpu.memory_space<vmem>>, vector<16x16x128xbf16>
    %94 = vector.shape_cast %93 : vector<16x16x128xbf16> to vector<256x128xbf16>
    %c1_116 = arith.constant 1 : index
    %c0_117 = arith.constant 0 : index
    %c0_118 = arith.constant 0 : index
    %c0_119 = arith.constant 0 : index
    %95 = vector.load %arg3[%c1_116, %c0_117, %c0_118, %c0_119] : memref<3x3x128x128xbf16, #tpu.memory_space<vmem>>, vector<1x1x128x128xbf16>
    %96 = vector.shape_cast %95 : vector<1x1x128x128xbf16> to vector<128x128xbf16>
    %cst_120 = arith.constant dense<0.000000e+00> : vector<256x128xf32>
    %97 = tpu.matmul %94, %96, %cst_120 {dimension_numbers = #tpu.dot_dimension_numbers<[1], [0], [0], [1], [0, 0, 1, 1], [], []>} : vector<256x128xbf16>, vector<128x128xbf16>, vector<256x128xf32> -> vector<256x128xf32>
    %98 = arith.addf %92, %97 : vector<256x128xf32>
    %c1_121 = arith.constant 1 : index
    %c1_122 = arith.constant 1 : index
    %c0_123 = arith.constant 0 : index
    %99 = vector.load %arg8[%c1_121, %c1_122, %c0_123] : memref<18x18x128xbf16, #tpu.memory_space<vmem>>, vector<16x16x128xbf16>
    %100 = vector.shape_cast %99 : vector<16x16x128xbf16> to vector<256x128xbf16>
    %c1_124 = arith.constant 1 : index
    %c1_125 = arith.constant 1 : index
    %c0_126 = arith.constant 0 : index
    %c0_127 = arith.constant 0 : index
    %101 = vector.load %arg3[%c1_124, %c1_125, %c0_126, %c0_127] : memref<3x3x128x128xbf16, #tpu.memory_space<vmem>>, vector<1x1x128x128xbf16>
    %102 = vector.shape_cast %101 : vector<1x1x128x128xbf16> to vector<128x128xbf16>
    %cst_128 = arith.constant dense<0.000000e+00> : vector<256x128xf32>
    %103 = tpu.matmul %100, %102, %cst_128 {dimension_numbers = #tpu.dot_dimension_numbers<[1], [0], [0], [1], [0, 0, 1, 1], [], []>} : vector<256x128xbf16>, vector<128x128xbf16>, vector<256x128xf32> -> vector<256x128xf32>
    %104 = arith.addf %98, %103 : vector<256x128xf32>
    %c1_129 = arith.constant 1 : index
    %c2_130 = arith.constant 2 : index
    %c0_131 = arith.constant 0 : index
    %105 = vector.load %arg8[%c1_129, %c2_130, %c0_131] : memref<18x18x128xbf16, #tpu.memory_space<vmem>>, vector<16x16x128xbf16>
    %106 = vector.shape_cast %105 : vector<16x16x128xbf16> to vector<256x128xbf16>
    %c1_132 = arith.constant 1 : index
    %c2_133 = arith.constant 2 : index
    %c0_134 = arith.constant 0 : index
    %c0_135 = arith.constant 0 : index
    %107 = vector.load %arg3[%c1_132, %c2_133, %c0_134, %c0_135] : memref<3x3x128x128xbf16, #tpu.memory_space<vmem>>, vector<1x1x128x128xbf16>
    %108 = vector.shape_cast %107 : vector<1x1x128x128xbf16> to vector<128x128xbf16>
    %cst_136 = arith.constant dense<0.000000e+00> : vector<256x128xf32>
    %109 = tpu.matmul %106, %108, %cst_136 {dimension_numbers = #tpu.dot_dimension_numbers<[1], [0], [0], [1], [0, 0, 1, 1], [], []>} : vector<256x128xbf16>, vector<128x128xbf16>, vector<256x128xf32> -> vector<256x128xf32>
    %110 = arith.addf %104, %109 : vector<256x128xf32>
    %c2_137 = arith.constant 2 : index
    %c0_138 = arith.constant 0 : index
    %c0_139 = arith.constant 0 : index
    %111 = vector.load %arg8[%c2_137, %c0_138, %c0_139] : memref<18x18x128xbf16, #tpu.memory_space<vmem>>, vector<16x16x128xbf16>
    %112 = vector.shape_cast %111 : vector<16x16x128xbf16> to vector<256x128xbf16>
    %c2_140 = arith.constant 2 : index
    %c0_141 = arith.constant 0 : index
    %c0_142 = arith.constant 0 : index
    %c0_143 = arith.constant 0 : index
    %113 = vector.load %arg3[%c2_140, %c0_141, %c0_142, %c0_143] : memref<3x3x128x128xbf16, #tpu.memory_space<vmem>>, vector<1x1x128x128xbf16>
    %114 = vector.shape_cast %113 : vector<1x1x128x128xbf16> to vector<128x128xbf16>
    %cst_144 = arith.constant dense<0.000000e+00> : vector<256x128xf32>
    %115 = tpu.matmul %112, %114, %cst_144 {dimension_numbers = #tpu.dot_dimension_numbers<[1], [0], [0], [1], [0, 0, 1, 1], [], []>} : vector<256x128xbf16>, vector<128x128xbf16>, vector<256x128xf32> -> vector<256x128xf32>
    %116 = arith.addf %110, %115 : vector<256x128xf32>
    %c2_145 = arith.constant 2 : index
    %c1_146 = arith.constant 1 : index
    %c0_147 = arith.constant 0 : index
    %117 = vector.load %arg8[%c2_145, %c1_146, %c0_147] : memref<18x18x128xbf16, #tpu.memory_space<vmem>>, vector<16x16x128xbf16>
    %118 = vector.shape_cast %117 : vector<16x16x128xbf16> to vector<256x128xbf16>
    %c2_148 = arith.constant 2 : index
    %c1_149 = arith.constant 1 : index
    %c0_150 = arith.constant 0 : index
    %c0_151 = arith.constant 0 : index
    %119 = vector.load %arg3[%c2_148, %c1_149, %c0_150, %c0_151] : memref<3x3x128x128xbf16, #tpu.memory_space<vmem>>, vector<1x1x128x128xbf16>
    %120 = vector.shape_cast %119 : vector<1x1x128x128xbf16> to vector<128x128xbf16>
    %cst_152 = arith.constant dense<0.000000e+00> : vector<256x128xf32>
    %121 = tpu.matmul %118, %120, %cst_152 {dimension_numbers = #tpu.dot_dimension_numbers<[1], [0], [0], [1], [0, 0, 1, 1], [], []>} : vector<256x128xbf16>, vector<128x128xbf16>, vector<256x128xf32> -> vector<256x128xf32>
    %122 = arith.addf %116, %121 : vector<256x128xf32>
    %c2_153 = arith.constant 2 : index
    %c2_154 = arith.constant 2 : index
    %c0_155 = arith.constant 0 : index
    %123 = vector.load %arg8[%c2_153, %c2_154, %c0_155] : memref<18x18x128xbf16, #tpu.memory_space<vmem>>, vector<16x16x128xbf16>
    %124 = vector.shape_cast %123 : vector<16x16x128xbf16> to vector<256x128xbf16>
    %c2_156 = arith.constant 2 : index
    %c2_157 = arith.constant 2 : index
    %c0_158 = arith.constant 0 : index
    %c0_159 = arith.constant 0 : index
    %125 = vector.load %arg3[%c2_156, %c2_157, %c0_158, %c0_159] : memref<3x3x128x128xbf16, #tpu.memory_space<vmem>>, vector<1x1x128x128xbf16>
    %126 = vector.shape_cast %125 : vector<1x1x128x128xbf16> to vector<128x128xbf16>
    %cst_160 = arith.constant dense<0.000000e+00> : vector<256x128xf32>
    %127 = tpu.matmul %124, %126, %cst_160 {dimension_numbers = #tpu.dot_dimension_numbers<[1], [0], [0], [1], [0, 0, 1, 1], [], []>} : vector<256x128xbf16>, vector<128x128xbf16>, vector<256x128xf32> -> vector<256x128xf32>
    %128 = arith.addf %122, %127 : vector<256x128xf32>
    %c0_161 = arith.constant 0 : index
    %c0_162 = arith.constant 0 : index
    %129 = vector.load %arg5[%c0_161, %c0_162] : memref<1x128xf32, #tpu.memory_space<vmem>>, vector<1x128xf32>
    %130 = vector.broadcast %129 : vector<1x128xf32> to vector<256x128xf32>
    %131 = arith.addf %128, %130 : vector<256x128xf32>
    %c0_163 = arith.constant 0 : index
    %c0_164 = arith.constant 0 : index
    %c0_165 = arith.constant 0 : index
    %c0_166 = arith.constant 0 : index
    %132 = vector.load %arg6[%c0_163, %c0_164, %c0_165, %c0_166] : memref<1x16x16x128xf32, #tpu.memory_space<vmem>>, vector<1x16x16x128xf32>
    %133 = vector.shape_cast %132 : vector<1x16x16x128xf32> to vector<256x128xf32>
    %134 = arith.addf %131, %133 : vector<256x128xf32>
    %cst_167 = arith.constant 0.000000e+00 : f32
    %135 = vector.broadcast %cst_167 : f32 to vector<256x128xf32>
    %136 = arith.maximumf %134, %135 : vector<256x128xf32>
    %137 = vector.shape_cast %136 : vector<256x128xf32> to vector<1x16x16x128xf32>
    %c0_168 = arith.constant 0 : index
    %c0_169 = arith.constant 0 : index
    %c0_170 = arith.constant 0 : index
    %c0_171 = arith.constant 0 : index
    %138 = vector.load %arg7[%c0_168, %c0_169, %c0_170, %c0_171] : memref<1x16x16x128xf32, #tpu.memory_space<vmem>>, vector<1x16x16x128xf32>
    tpu.vector_store %arg7[%c0_168, %c0_169, %c0_170, %c0_171], %137 {strides = array<i32>} : memref<1x16x16x128xf32, #tpu.memory_space<vmem>>, vector<1x16x16x128xf32>,
    return
  }
  func.func @transform_0(%arg0: i32) -> (i32, i32, i32, i32) {
    %c0_i32 = arith.constant 0 : i32
    %c0_i32_0 = arith.constant 0 : i32
    %c0_i32_1 = arith.constant 0 : i32
    %c0_i32_2 = arith.constant 0 : i32
    return %arg0, %c0_i32, %c0_i32_0, %c0_i32_1 : i32, i32, i32, i32
  }
  func.func @transform_1(%arg0: i32) -> (i32, i32, i32, i32) {
    %c0_i32 = arith.constant 0 : i32
    %c0_i32_0 = arith.constant 0 : i32
    %c0_i32_1 = arith.constant 0 : i32
    %c0_i32_2 = arith.constant 0 : i32
    %c0_i32_3 = arith.constant 0 : i32
    return %c0_i32, %c0_i32_0, %c0_i32_1, %c0_i32_2 : i32, i32, i32, i32
  }
  func.func @transform_2(%arg0: i32) -> (i32, i32, i32, i32) {
    %c0_i32 = arith.constant 0 : i32
    %c0_i32_0 = arith.constant 0 : i32
    %c0_i32_1 = arith.constant 0 : i32
    %c0_i32_2 = arith.constant 0 : i32
    %c0_i32_3 = arith.constant 0 : i32
    return %c0_i32, %c0_i32_0, %c0_i32_1, %c0_i32_2 : i32, i32, i32, i32
  }
  func.func @transform_3(%arg0: i32) -> (i32, i32) {
    %c0_i32 = arith.constant 0 : i32
    %c0_i32_0 = arith.constant 0 : i32
    %c0_i32_1 = arith.constant 0 : i32
    return %c0_i32, %c0_i32_0 : i32, i32
  }
  func.func @transform_4(%arg0: i32) -> (i32, i32) {
    %c0_i32 = arith.constant 0 : i32
    %c0_i32_0 = arith.constant 0 : i32
    %c0_i32_1 = arith.constant 0 : i32
    return %c0_i32, %c0_i32_0 : i32, i32
  }
  func.func @transform_5(%arg0: i32) -> (i32, i32, i32, i32) {
    %c0_i32 = arith.constant 0 : i32
    %c0_i32_0 = arith.constant 0 : i32
    %c0_i32_1 = arith.constant 0 : i32
    %c0_i32_2 = arith.constant 0 : i32
    return %arg0, %c0_i32, %c0_i32_0, %c0_i32_1 : i32, i32, i32, i32
  }
  func.func @transform_6(%arg0: i32) -> (i32, i32, i32, i32) {
    %c0_i32 = arith.constant 0 : i32
    %c0_i32_0 = arith.constant 0 : i32
    %c0_i32_1 = arith.constant 0 : i32
    %c0_i32_2 = arith.constant 0 : i32
    return %arg0, %c0_i32, %c0_i32_0, %c0_i32_1 : i32, i32, i32, i32
  }
}

</mosaic_0001>

<llo_original>
// kernel: basic_block_forward.1
$region0: #{basic_block_forward.1}
  #allocation0 [shape = 'u32[]', space=smem, size = 0x4, offset = 0x4, fixed_abs, tag = 'smem constant byte address 0x4 - core index']
  #allocation1 [shape = 'u32[144,128]{1,0:T(1,128)}', space=vmem, size = 0x12000, scoped, tag = 'internal scratch']
  #allocation2 [shape = 'bf16[18,18,128]{2,1,0:T(8,128)(2,1)}', space=vmem, size = 0x1b000, scoped, tag = 'scratch operand']
  %s0 = inlined_call_operand.vmem [shape: bf16[2,18,18,128], index: 0, kind: input, shape index: {}]
  %s1 = inlined_call_operand.vmem [shape: bf16[3,3,128,128], index: 1, kind: input, shape index: {}]
  %s2 = inlined_call_operand.vmem [shape: bf16[3,3,128,128], index: 2, kind: input, shape index: {}]
  %s3 = inlined_call_operand.vmem [shape: f32[1,128], index: 3, kind: input, shape index: {}]
  %s4 = inlined_call_operand.vmem [shape: f32[1,128], index: 4, kind: input, shape index: {}]
  %s5 = inlined_call_operand.vmem [shape: f32[2,16,16,128], index: 5, kind: input, shape index: {}]
  %s6 = inlined_call_operand.vmem [shape: f32[2,16,16,128], index: 6, kind: output, shape index: {}]
  %s7 = sld [smem:[#allocation0]]
  $region57: #{basic_block_forward.1} parent=0
    _
  %s9 = ssub.s32 1, %s7
  %s10 = scalar_select 0, %s9, %s7
  loop: start=0, step=1, limit=4
  $region2: #{basic_block_forward.1} parent=0 // loop_pre_header
    _
  $region3: #{basic_block_forward.1} parent=0 // loop_header
    %s12 = sphi 0, %s16
    %p13 = scmp.ge.s32.totalorder %s12, 4
    %s22 = sphi 0, %s24
    %s25 = sphi 0, %s22
    %s26 = sphi 0, %s25
    %s42 = sphi 0, %s26
    %s46 = sphi 0, %s46
    %s48 = sphi 0, %s46
    %s49 = sphi 0, %s48
    %s63 = sphi 0, %s49
    %s67 = sphi 0, %s67
    %s69 = sphi 0, %s67
    %s70 = sphi 0, %s69
    %s84 = sphi 0, %s70
    %s88 = sphi 0, %s88
    %s90 = sphi 0, %s88
    %s91 = sphi 0, %s90
    %s105 = sphi 0, %s91
    %s109 = sphi 0, %s109
    %s111 = sphi 0, %s109
    %s112 = sphi 0, %s111
    %s126 = sphi 0, %s112
    %s132 = sphi 0, %s134
    %s135 = sphi 0, %s132
    %s136 = sphi 0, %s135
    %s152 = sphi 0, %s136
    %s158 = sphi 0, %s160
    %s161 = sphi 0, %s158
    %s162 = sphi 0, %s161
    %s178 = sphi 0, %s162
  $region4: #{basic_block_forward.1} parent=0 // loop_header_branch
    %15 = sbr.rel (%p13) target = $region8
  $region5: #{basic_block_forward.1} parent=0 // loop_body
    %s17 = ssub.s32 %s12, 1
    %s18 = ssub.s32 %s12, 2
    %s19 = sadd.s32 %s12, 1
    %s20 = ssub.s32 %s12, %s19
    %p21 = scmp.eq.s32.totalorder %s20, 0
    %s23 = sadd.s32 %s22, 1
    %s24 = scalar_select %p21, %s22, %s23
    %p27 = pneg %p21
    %p28 = scmp.eq.s32.totalorder %s12, 1
    %p29 = por %p27, %p28
    %p30 = scmp.ne.s32.totalorder %s22, %s25
    %p31 = scmp.eq.s32.totalorder %s12, 0
    %p32 = por %p30, %p31
    %p33 = scmp.ne.s32.totalorder %s22, %s25
    %p34 = scmp.eq.s32.totalorder %s17, 1
    %p35 = por %p33, %p34
    %p36 = scmp.ne.s32.totalorder %s25, %s26
    %p37 = scmp.eq.s32.totalorder %s17, 0
    %p38 = por %p36, %p37
    %p39 = scmp.ne.s32.totalorder %s25, %s26
    %p40 = scmp.eq.s32.totalorder %s18, 1
    %p41 = por %p39, %p40
    %p43 = scmp.ne.s32.totalorder %s26, %s42
    %p44 = scmp.eq.s32.totalorder %s18, 0
    %p45 = por %p43, %p44
    %s47 = sadd.s32 %s46, 1
    %p50 = scmp.eq.s32.totalorder %s12, 1
    %p51 = scmp.ne.s32.totalorder %s46, %s48
    %p52 = scmp.eq.s32.totalorder %s12, 0
    %p53 = por %p51, %p52
    %p54 = scmp.ne.s32.totalorder %s46, %s48
    %p55 = scmp.eq.s32.totalorder %s17, 1
    %p56 = por %p54, %p55
    %p57 = scmp.ne.s32.totalorder %s48, %s49
    %p58 = scmp.eq.s32.totalorder %s17, 0
    %p59 = por %p57, %p58
    %p60 = scmp.ne.s32.totalorder %s48, %s49
    %p61 = scmp.eq.s32.totalorder %s18, 1
    %p62 = por %p60, %p61
    %p64 = scmp.ne.s32.totalorder %s49, %s63
    %p65 = scmp.eq.s32.totalorder %s18, 0
    %p66 = por %p64, %p65
    %s68 = sadd.s32 %s67, 1
    %p71 = scmp.eq.s32.totalorder %s12, 1
    %p72 = scmp.ne.s32.totalorder %s67, %s69
    %p73 = scmp.eq.s32.totalorder %s12, 0
    %p74 = por %p72, %p73
    %p75 = scmp.ne.s32.totalorder %s67, %s69
    %p76 = scmp.eq.s32.totalorder %s17, 1
    %p77 = por %p75, %p76
    %p78 = scmp.ne.s32.totalorder %s69, %s70
    %p79 = scmp.eq.s32.totalorder %s17, 0
    %p80 = por %p78, %p79
    %p81 = scmp.ne.s32.totalorder %s69, %s70
    %p82 = scmp.eq.s32.totalorder %s18, 1
    %p83 = por %p81, %p82
    %p85 = scmp.ne.s32.totalorder %s70, %s84
    %p86 = scmp.eq.s32.totalorder %s18, 0
    %p87 = por %p85, %p86
    %s89 = sadd.s32 %s88, 1
    %p92 = scmp.eq.s32.totalorder %s12, 1
    %p93 = scmp.ne.s32.totalorder %s88, %s90
    %p94 = scmp.eq.s32.totalorder %s12, 0
    %p95 = por %p93, %p94
    %p96 = scmp.ne.s32.totalorder %s88, %s90
    %p97 = scmp.eq.s32.totalorder %s17, 1
    %p98 = por %p96, %p97
    %p99 = scmp.ne.s32.totalorder %s90, %s91
    %p100 = scmp.eq.s32.totalorder %s17, 0
    %p101 = por %p99, %p100
    %p102 = scmp.ne.s32.totalorder %s90, %s91
    %p103 = scmp.eq.s32.totalorder %s18, 1
    %p104 = por %p102, %p103
    %p106 = scmp.ne.s32.totalorder %s91, %s105
    %p107 = scmp.eq.s32.totalorder %s18, 0
    %p108 = por %p106, %p107
    %s110 = sadd.s32 %s109, 1
    %p113 = scmp.eq.s32.totalorder %s12, 1
    %p114 = scmp.ne.s32.totalorder %s109, %s111
    %p115 = scmp.eq.s32.totalorder %s12, 0
    %p116 = por %p114, %p115
    %p117 = scmp.ne.s32.totalorder %s109, %s111
    %p118 = scmp.eq.s32.totalorder %s17, 1
    %p119 = por %p117, %p118
    %p120 = scmp.ne.s32.totalorder %s111, %s112
    %p121 = scmp.eq.s32.totalorder %s17, 0
    %p122 = por %p120, %p121
    %p123 = scmp.ne.s32.totalorder %s111, %s112
    %p124 = scmp.eq.s32.totalorder %s18, 1
    %p125 = por %p123, %p124
    %p127 = scmp.ne.s32.totalorder %s112, %s126
    %p128 = scmp.eq.s32.totalorder %s18, 0
    %p129 = por %p127, %p128
    %s130 = ssub.s32 %s12, %s19
    %p131 = scmp.eq.s32.totalorder %s130, 0
    %s133 = sadd.s32 %s132, 1
    %s134 = scalar_select %p131, %s132, %s133
    %p137 = pneg %p131
    %p138 = scmp.eq.s32.totalorder %s12, 1
    %p139 = por %p137, %p138
    %p140 = scmp.ne.s32.totalorder %s132, %s135
    %p141 = scmp.eq.s32.totalorder %s12, 0
    %p142 = por %p140, %p141
    %p143 = scmp.ne.s32.totalorder %s132, %s135
    %p144 = scmp.eq.s32.totalorder %s17, 1
    %p145 = por %p143, %p144
    %p146 = scmp.ne.s32.totalorder %s135, %s136
    %p147 = scmp.eq.s32.totalorder %s17, 0
    %p148 = por %p146, %p147
    %p149 = scmp.ne.s32.totalorder %s135, %s136
    %p150 = scmp.eq.s32.totalorder %s18, 1
    %p151 = por %p149, %p150
    %p153 = scmp.ne.s32.totalorder %s136, %s152
    %p154 = scmp.eq.s32.totalorder %s18, 0
    %p155 = por %p153, %p154
    %s156 = ssub.s32 %s12, %s19
    %p157 = scmp.eq.s32.totalorder %s156, 0
    %s159 = sadd.s32 %s158, 1
    %s160 = scalar_select %p157, %s158, %s159
    %p163 = pneg %p157
    %p164 = scmp.eq.s32.totalorder %s12, 1
    %p165 = por %p163, %p164
    %p166 = scmp.ne.s32.totalorder %s158, %s161
    %p167 = scmp.eq.s32.totalorder %s12, 0
    %p168 = por %p166, %p167
    %p169 = scmp.ne.s32.totalorder %s158, %s161
    %p170 = scmp.eq.s32.totalorder %s17, 1
    %p171 = por %p169, %p170
    %p172 = scmp.ne.s32.totalorder %s161, %s162
    %p173 = scmp.eq.s32.totalorder %s17, 0
    %p174 = por %p172, %p173
    %p175 = scmp.ne.s32.totalorder %s161, %s162
    %p176 = scmp.eq.s32.totalorder %s18, 1
    %p177 = por %p175, %p176
    %p179 = scmp.ne.s32.totalorder %s162, %s178
    %p180 = scmp.eq.s32.totalorder %s18, 0
    %p181 = por %p179, %p180
    %p182 = scmp.le.s32.totalorder 1, %s12
    %p183 = scmp.lt.s32.totalorder %s12, 3
    %p184 = pnand %p182, %p183
    %p185 = pneg %p184
    // Predicated region
    $region9: #{basic_block_forward.1} parent=5 // pred_check
      _
    $region10: #{basic_block_forward.1} parent=5 // pred_check_branch
      %187 = sbr.rel (%p184) target = $region12
    $region11: #{basic_block_forward.1} parent=5 // pred_region
      %s188 = ssub.s32 %s12, 1
      // Predicated region
      $region13: #{basic_block_forward.1} parent=11 // pred_check
        %p189 = pneg %p59
      $region14: #{basic_block_forward.1} parent=11 // pred_check_branch
        %191 = sbr.rel (%p189) target = $region16
      $region15: #{basic_block_forward.1} parent=11 // pred_region
        _
      $region16: #{basic_block_forward.1} parent=11 // pred_fallthru
        _
      // Predicated region
      $region17: #{basic_block_forward.1} parent=11 // pred_check
        %p192 = pneg %p80
      $region18: #{basic_block_forward.1} parent=11 // pred_check_branch
        %194 = sbr.rel (%p192) target = $region20
      $region19: #{basic_block_forward.1} parent=11 // pred_region
        _
      $region20: #{basic_block_forward.1} parent=11 // pred_fallthru
        _
      // Predicated region
      $region21: #{basic_block_forward.1} parent=11 // pred_check
        %p195 = pneg %p101
      $region22: #{basic_block_forward.1} parent=11 // pred_check_branch
        %197 = sbr.rel (%p195) target = $region24
      $region23: #{basic_block_forward.1} parent=11 // pred_region
        _
      $region24: #{basic_block_forward.1} parent=11 // pred_fallthru
        _
      // Predicated region
      $region25: #{basic_block_forward.1} parent=11 // pred_check
        %p198 = pneg %p122
      $region26: #{basic_block_forward.1} parent=11 // pred_check_branch
        %200 = sbr.rel (%p198) target = $region28
      $region27: #{basic_block_forward.1} parent=11 // pred_region
        _
      $region28: #{basic_block_forward.1} parent=11 // pred_fallthru
        _
    $region12: #{basic_block_forward.1} parent=5 // pred_fallthru
      _
    %p201 = scmp.lt.s32.totalorder %s12, 2
    // Predicated region
    $region29: #{basic_block_forward.1} parent=5 // pred_check
      %p202 = pneg %p201
    $region30: #{basic_block_forward.1} parent=5 // pred_check_branch
      %204 = sbr.rel (%p202) target = $region32
    $region31: #{basic_block_forward.1} parent=5 // pred_region
      // Predicated region
      $region33: #{basic_block_forward.1} parent=31 // pred_check
        %p205 = pneg %p32
      $region34: #{basic_block_forward.1} parent=31 // pred_check_branch
        %207 = sbr.rel (%p205) target = $region36
      $region35: #{basic_block_forward.1} parent=31 // pred_region
        %p208 = scmp.lt.s32.totalorder %s12, 1
        %s209 = scalar_select %p208, %s12, 1
        %s210 = smul.addr %s209, 54
        %s211 = smul.addr %s210, 4
        %s212 = scalar_lea.vmem %s0, %s211
      $region36: #{basic_block_forward.1} parent=31 // pred_fallthru
        _
      // Predicated region
      $region37: #{basic_block_forward.1} parent=31 // pred_check
        %p213 = pneg %p142
      $region38: #{basic_block_forward.1} parent=31 // pred_check_branch
        %215 = sbr.rel (%p213) target = $region40
      $region39: #{basic_block_forward.1} parent=31 // pred_region
        %p216 = scmp.lt.s32.totalorder %s12, 1
        %s217 = scalar_select %p216, %s12, 1
        %s218 = smul.addr %s217, 32
        %s219 = smul.addr %s218, 8
        %s220 = scalar_lea.vmem %s5, %s219
      $region40: #{basic_block_forward.1} parent=31 // pred_fallthru
        _
    $region32: #{basic_block_forward.1} parent=5 // pred_fallthru
      _
    %p221 = scmp.le.s32.totalorder 1, %s12
    %p222 = scmp.lt.s32.totalorder %s12, 3
    %p223 = pnand %p221, %p222
    %p224 = pneg %p223
    // Predicated region
    $region41: #{basic_block_forward.1} parent=5 // pred_check
      _
    $region42: #{basic_block_forward.1} parent=5 // pred_check_branch
      %226 = sbr.rel (%p223) target = $region44
    $region43: #{basic_block_forward.1} parent=5 // pred_region
      %s227 = ssub.s32 %s12, 1
      %p228 = scmp.lt.s32.totalorder %s17, 1
      %s229 = scalar_select %p228, %s17, 1
      %s230 = smul.addr %s229, 54
      %s231 = smul.addr %s230, 4
      %s232 = scalar_lea.vmem %s0, %s231
      %p233 = pneg %p38
      %p234 = pneg %p35
      %p235 = pneg %p59
      %p236 = pneg %p56
      %p237 = pneg %p80
      %p238 = pneg %p77
      %p239 = pneg %p101
      %p240 = pneg %p98
      %p241 = pneg %p122
      %p242 = pneg %p119
      %p243 = scmp.lt.s32.totalorder %s17, 1
      %s244 = scalar_select %p243, %s17, 1
      %s245 = smul.addr %s244, 32
      %s246 = smul.addr %s245, 8
      %s247 = scalar_lea.vmem %s5, %s246
      %p248 = pneg %p148
      %p249 = pneg %p145
      %p250 = pneg %p174
      %p251 = pneg %p171
      %p252 = scmp.lt.s32.totalorder %s17, 1
      %s253 = scalar_select %p252, %s17, 1
      %s254 = smul.addr %s253, 32
      %s255 = smul.addr %s254, 8
      %s256 = scalar_lea.vmem %s6, %s255
      %p257 = scmp.lt.s32.totalorder %s17, 1
      %s258 = scalar_select %p257, %s17, 1
      %s259 = smul.addr %s258, 54
      %s260 = smul.addr %s259, 4
      %s261 = scalar_lea.vmem %s0, %s260
      %p262 = scmp.lt.s32.totalorder %s17, 1
      %s263 = scalar_select %p262, %s17, 1
      %s264 = smul.addr %s263, 32
      %s265 = smul.addr %s264, 8
      %s266 = scalar_lea.vmem %s5, %s265
      %p267 = scmp.lt.s32.totalorder %s17, 1
      %s268 = scalar_select %p267, %s17, 1
      %s269 = smul.addr %s268, 32
      %s270 = smul.addr %s269, 8
      %s271 = scalar_lea.vmem %s6, %s270
      %v273 = vld [vmem:[%s261] sm:$0xf]
      %v274 = vld [vmem:[%s261 + $0x4] sm:$0xf]
      %v275 = vld [vmem:[%s261 + $0xc] sm:$0xf]
      %v276 = vld [vmem:[%s261 + $0x10] sm:$0xf]
      %v277 = vld [vmem:[%s261 + $0x18] sm:$0xf]
      %v278 = vld [vmem:[%s261 + $0x1c] sm:$0xf]
      %v279 = vld [vmem:[%s261 + $0x24] sm:$0xf]
      %v280 = vld [vmem:[%s261 + $0x28] sm:$0xf]
      %v281 = vld [vmem:[%s261 + $0x30] sm:$0xf]
      %v282 = vld [vmem:[%s261 + $0x34] sm:$0xf]
      %v283 = vld [vmem:[%s261 + $0x3c] sm:$0xf]
      %v284 = vld [vmem:[%s261 + $0x40] sm:$0xf]
      %v285 = vld [vmem:[%s261 + $0x48] sm:$0xf]
      %v286 = vld [vmem:[%s261 + $0x4c] sm:$0xf]
      %v287 = vld [vmem:[%s261 + $0x54] sm:$0xf]
      %v288 = vld [vmem:[%s261 + $0x58] sm:$0xf]
      %v289 = vld [vmem:[%s261 + $0x60] sm:$0xf]
      %v290 = vld [vmem:[%s261 + $0x64] sm:$0xf]
      %v291 = vld [vmem:[%s261 + $0x6c] sm:$0xf]
      %v292 = vld [vmem:[%s261 + $0x70] sm:$0xf]
      %v293 = vld [vmem:[%s261 + $0x78] sm:$0xf]
      %v294 = vld [vmem:[%s261 + $0x7c] sm:$0xf]
      %v295 = vld [vmem:[%s261 + $0x84] sm:$0xf]
      %v296 = vld [vmem:[%s261 + $0x88] sm:$0xf]
      %v297 = vld [vmem:[%s261 + $0x90] sm:$0xf]
      %v298 = vld [vmem:[%s261 + $0x94] sm:$0xf]
      %v299 = vld [vmem:[%s261 + $0x9c] sm:$0xf]
      %v300 = vld [vmem:[%s261 + $0xa0] sm:$0xf]
      %v301 = vld [vmem:[%s261 + $0xa8] sm:$0xf]
      %v302 = vld [vmem:[%s261 + $0xac] sm:$0xf]
      %v303 = vld [vmem:[%s261 + $0xb4] sm:$0xf]
      %v304 = vld [vmem:[%s261 + $0xb8] sm:$0xf]
      %v305 = vld [vmem:[%s1] sm:$0xf]
      %v306 = vld [vmem:[%s1 + $0x4] sm:$0xf]
      %v307 = vld [vmem:[%s1 + $0x8] sm:$0xf]
      %v308 = vld [vmem:[%s1 + $0xc] sm:$0xf]
      %v309 = vld [vmem:[%s1 + $0x10] sm:$0xf]
      %v310 = vld [vmem:[%s1 + $0x14] sm:$0xf]
      %v311 = vld [vmem:[%s1 + $0x18] sm:$0xf]
      %v312 = vld [vmem:[%s1 + $0x1c] sm:$0xf]
      %v313 = vld [vmem:[%s1 + $0x20] sm:$0xf]
      %v314 = vld [vmem:[%s1 + $0x24] sm:$0xf]
      %v315 = vld [vmem:[%s1 + $0x28] sm:$0xf]
      %v316 = vld [vmem:[%s1 + $0x2c] sm:$0xf]
      %v317 = vld [vmem:[%s1 + $0x30] sm:$0xf]
      %v318 = vld [vmem:[%s1 + $0x34] sm:$0xf]
      %v319 = vld [vmem:[%s1 + $0x38] sm:$0xf]
      %v320 = vld [vmem:[%s1 + $0x3c] sm:$0xf]
      %v321 = vld [vmem:[%s261 + $0x8] sm:$0x1]
      %v322 = vld [vmem:[%s261 + $0x14] sm:$0x1]
      %v323 = vld [vmem:[%s261 + $0x20] sm:$0x1]
      %v324 = vld [vmem:[%s261 + $0x2c] sm:$0x1]
      %v325 = vld [vmem:[%s261 + $0x38] sm:$0x1]
      %v326 = vld [vmem:[%s261 + $0x44] sm:$0x1]
      %v327 = vld [vmem:[%s261 + $0x50] sm:$0x1]
      %v328 = vld [vmem:[%s261 + $0x5c] sm:$0x1]
      %v329 = vld [vmem:[%s261 + $0x68] sm:$0x1]
      %v330 = vld [vmem:[%s261 + $0x74] sm:$0x1]
      %v331 = vld [vmem:[%s261 + $0x80] sm:$0x1]
      %v332 = vld [vmem:[%s261 + $0x8c] sm:$0x1]
      %v333 = vld [vmem:[%s261 + $0x98] sm:$0x1]
      %v334 = vld [vmem:[%s261 + $0xa4] sm:$0x1]
      %v335 = vld [vmem:[%s261 + $0xb0] sm:$0x1]
      %v336 = vld [vmem:[%s261 + $0xbc] sm:$0x1]
      %vm337 = vsmask.f32 3328
      %vm338 = vsmask.f32 7440
      %vm339 = vmor %vm337, %vm338
      %v341 = vshrl.u32 %v273, 16
      %v343 = vrot.slane %v341, 4
      %v344 = vshll.u32 %v273, 16
      %v346 = vrot.slane %v344, 5
      %v347 = vor.u32 %v343, %v346
      %v348 = vrot.slane %v347, 4
      %v350 = vshll.u32 %v274, 16
      %v352 = vrot.slane %v350, 5
      %v353 = vsel %vm339, %v348, %v352
      %v354 = vshrl.u32 %v274, 16
      %v356 = vrot.slane %v354, 4
      %v357 = vor.u32 %v356, %v352
      %v358 = vrot.slane %v357, 4
      %v360 = vshll.u32 %v321, 16
      %v362 = vrot.slane %v360, 5
      %v363 = vsel %vm339, %v358, %v362
      %v365 = vshrl.u32 %v275, 16
      %v367 = vrot.slane %v365, 4
      %v368 = vshll.u32 %v275, 16
      %v370 = vrot.slane %v368, 5
      %v371 = vor.u32 %v367, %v370
      %v372 = vrot.slane %v371, 4
      %v374 = vshll.u32 %v276, 16
      %v376 = vrot.slane %v374, 5
      %v377 = vsel %vm339, %v372, %v376
      %v378 = vshrl.u32 %v276, 16
      %v380 = vrot.slane %v378, 4
      %v381 = vor.u32 %v380, %v376
      %v382 = vrot.slane %v381, 4
      %v384 = vshll.u32 %v322, 16
      %v386 = vrot.slane %v384, 5
      %v387 = vsel %vm339, %v382, %v386
      %v389 = vshrl.u32 %v277, 16
      %v391 = vrot.slane %v389, 4
      %v392 = vshll.u32 %v277, 16
      %v394 = vrot.slane %v392, 5
      %v395 = vor.u32 %v391, %v394
      %v396 = vrot.slane %v395, 4
      %v398 = vshll.u32 %v278, 16
      %v400 = vrot.slane %v398, 5
      %v401 = vsel %vm339, %v396, %v400
      %v402 = vshrl.u32 %v278, 16
      %v404 = vrot.slane %v402, 4
      %v405 = vor.u32 %v404, %v400
      %v406 = vrot.slane %v405, 4
      %v408 = vshll.u32 %v323, 16
      %v410 = vrot.slane %v408, 5
      %v411 = vsel %vm339, %v406, %v410
      %v413 = vshrl.u32 %v279, 16
      %v415 = vrot.slane %v413, 4
      %v416 = vshll.u32 %v279, 16
      %v418 = vrot.slane %v416, 5
      %v419 = vor.u32 %v415, %v418
      %v420 = vrot.slane %v419, 4
      %v422 = vshll.u32 %v280, 16
      %v424 = vrot.slane %v422, 5
      %v425 = vsel %vm339, %v420, %v424
      %v426 = vshrl.u32 %v280, 16
      %v428 = vrot.slane %v426, 4
      %v429 = vor.u32 %v428, %v424
      %v430 = vrot.slane %v429, 4
      %v432 = vshll.u32 %v324, 16
      %v434 = vrot.slane %v432, 5
      %v435 = vsel %vm339, %v430, %v434
      %v437 = vshrl.u32 %v281, 16
      %v439 = vrot.slane %v437, 4
      %v440 = vshll.u32 %v281, 16
      %v442 = vrot.slane %v440, 5
      %v443 = vor.u32 %v439, %v442
      %v444 = vrot.slane %v443, 4
      %v446 = vshll.u32 %v282, 16
      %v448 = vrot.slane %v446, 5
      %v449 = vsel %vm339, %v444, %v448
      %v450 = vshrl.u32 %v282, 16
      %v452 = vrot.slane %v450, 4
      %v453 = vor.u32 %v452, %v448
      %v454 = vrot.slane %v453, 4
      %v456 = vshll.u32 %v325, 16
      %v458 = vrot.slane %v456, 5
      %v459 = vsel %vm339, %v454, %v458
      %v461 = vshrl.u32 %v283, 16
      %v463 = vrot.slane %v461, 4
      %v464 = vshll.u32 %v283, 16
      %v466 = vrot.slane %v464, 5
      %v467 = vor.u32 %v463, %v466
      %v468 = vrot.slane %v467, 4
      %v470 = vshll.u32 %v284, 16
      %v472 = vrot.slane %v470, 5
      %v473 = vsel %vm339, %v468, %v472
      %v474 = vshrl.u32 %v284, 16
      %v476 = vrot.slane %v474, 4
      %v477 = vor.u32 %v476, %v472
      %v478 = vrot.slane %v477, 4
      %v480 = vshll.u32 %v326, 16
      %v482 = vrot.slane %v480, 5
      %v483 = vsel %vm339, %v478, %v482
      %v485 = vshrl.u32 %v285, 16
      %v487 = vrot.slane %v485, 4
      %v488 = vshll.u32 %v285, 16
      %v490 = vrot.slane %v488, 5
      %v491 = vor.u32 %v487, %v490
      %v492 = vrot.slane %v491, 4
      %v494 = vshll.u32 %v286, 16
      %v496 = vrot.slane %v494, 5
      %v497 = vsel %vm339, %v492, %v496
      %v498 = vshrl.u32 %v286, 16
      %v500 = vrot.slane %v498, 4
      %v501 = vor.u32 %v500, %v496
      %v502 = vrot.slane %v501, 4
      %v504 = vshll.u32 %v327, 16
      %v506 = vrot.slane %v504, 5
      %v507 = vsel %vm339, %v502, %v506
      %v509 = vshrl.u32 %v287, 16
      %v511 = vrot.slane %v509, 4
      %v512 = vshll.u32 %v287, 16
      %v514 = vrot.slane %v512, 5
      %v515 = vor.u32 %v511, %v514
      %v516 = vrot.slane %v515, 4
      %v518 = vshll.u32 %v288, 16
      %v520 = vrot.slane %v518, 5
      %v521 = vsel %vm339, %v516, %v520
      %v522 = vshrl.u32 %v288, 16
      %v524 = vrot.slane %v522, 4
      %v525 = vor.u32 %v524, %v520
      %v526 = vrot.slane %v525, 4
      %v528 = vshll.u32 %v328, 16
      %v530 = vrot.slane %v528, 5
      %v531 = vsel %vm339, %v526, %v530
      %v533 = vshrl.u32 %v289, 16
      %v535 = vrot.slane %v533, 4
      %v536 = vshll.u32 %v289, 16
      %v538 = vrot.slane %v536, 5
      %v539 = vor.u32 %v535, %v538
      %v540 = vrot.slane %v539, 4
      %v542 = vshll.u32 %v290, 16
      %v544 = vrot.slane %v542, 5
      %v545 = vsel %vm339, %v540, %v544
      %v546 = vshrl.u32 %v290, 16
      %v548 = vrot.slane %v546, 4
      %v549 = vor.u32 %v548, %v544
      %v550 = vrot.slane %v549, 4
      %v552 = vshll.u32 %v329, 16
      %v554 = vrot.slane %v552, 5
      %v555 = vsel %vm339, %v550, %v554
      %v557 = vshrl.u32 %v291, 16
      %v559 = vrot.slane %v557, 4
      %v560 = vshll.u32 %v291, 16
      %v562 = vrot.slane %v560, 5
      %v563 = vor.u32 %v559, %v562
      %v564 = vrot.slane %v563, 4
      %v566 = vshll.u32 %v292, 16
      %v568 = vrot.slane %v566, 5
      %v569 = vsel %vm339, %v564, %v568
      %v570 = vshrl.u32 %v292, 16
      %v572 = vrot.slane %v570, 4
      %v573 = vor.u32 %v572, %v568
      %v574 = vrot.slane %v573, 4
      %v576 = vshll.u32 %v330, 16
      %v578 = vrot.slane %v576, 5
      %v579 = vsel %vm339, %v574, %v578
      %v581 = vshrl.u32 %v293, 16
      %v583 = vrot.slane %v581, 4
      %v584 = vshll.u32 %v293, 16
      %v586 = vrot.slane %v584, 5
      %v587 = vor.u32 %v583, %v586
      %v588 = vrot.slane %v587, 4
      %v590 = vshll.u32 %v294, 16
      %v592 = vrot.slane %v590, 5
      %v593 = vsel %vm339, %v588, %v592
      %v594 = vshrl.u32 %v294, 16
      %v596 = vrot.slane %v594, 4
      %v597 = vor.u32 %v596, %v592
      %v598 = vrot.slane %v597, 4
      %v600 = vshll.u32 %v331, 16
      %v602 = vrot.slane %v600, 5
      %v603 = vsel %vm339, %v598, %v602
      %v605 = vshrl.u32 %v295, 16
      %v607 = vrot.slane %v605, 4
      %v608 = vshll.u32 %v295, 16
      %v610 = vrot.slane %v608, 5
      %v611 = vor.u32 %v607, %v610
      %v612 = vrot.slane %v611, 4
      %v614 = vshll.u32 %v296, 16
      %v616 = vrot.slane %v614, 5
      %v617 = vsel %vm339, %v612, %v616
      %v618 = vshrl.u32 %v296, 16
      %v620 = vrot.slane %v618, 4
      %v621 = vor.u32 %v620, %v616
      %v622 = vrot.slane %v621, 4
      %v624 = vshll.u32 %v332, 16
      %v626 = vrot.slane %v624, 5
      %v627 = vsel %vm339, %v622, %v626
      %v629 = vshrl.u32 %v297, 16
      %v631 = vrot.slane %v629, 4
      %v632 = vshll.u32 %v297, 16
      %v634 = vrot.slane %v632, 5
      %v635 = vor.u32 %v631, %v634
      %v636 = vrot.slane %v635, 4
      %v638 = vshll.u32 %v298, 16
      %v640 = vrot.slane %v638, 5
      %v641 = vsel %vm339, %v636, %v640
      %v642 = vshrl.u32 %v298, 16
      %v644 = vrot.slane %v642, 4
      %v645 = vor.u32 %v644, %v640
      %v646 = vrot.slane %v645, 4
      %v648 = vshll.u32 %v333, 16
      %v650 = vrot.slane %v648, 5
      %v651 = vsel %vm339, %v646, %v650
      %v653 = vshrl.u32 %v299, 16
      %v655 = vrot.slane %v653, 4
      %v656 = vshll.u32 %v299, 16
      %v658 = vrot.slane %v656, 5
      %v659 = vor.u32 %v655, %v658
      %v660 = vrot.slane %v659, 4
      %v662 = vshll.u32 %v300, 16
      %v664 = vrot.slane %v662, 5
      %v665 = vsel %vm339, %v660, %v664
      %v666 = vshrl.u32 %v300, 16
      %v668 = vrot.slane %v666, 4
      %v669 = vor.u32 %v668, %v664
      %v670 = vrot.slane %v669, 4
      %v672 = vshll.u32 %v334, 16
      %v674 = vrot.slane %v672, 5
      %v675 = vsel %vm339, %v670, %v674
      %v677 = vshrl.u32 %v301, 16
      %v679 = vrot.slane %v677, 4
      %v680 = vshll.u32 %v301, 16
      %v682 = vrot.slane %v680, 5
      %v683 = vor.u32 %v679, %v682
      %v684 = vrot.slane %v683, 4
      %v686 = vshll.u32 %v302, 16
      %v688 = vrot.slane %v686, 5
      %v689 = vsel %vm339, %v684, %v688
      %v690 = vshrl.u32 %v302, 16
      %v692 = vrot.slane %v690, 4
      %v693 = vor.u32 %v692, %v688
      %v694 = vrot.slane %v693, 4
      %v696 = vshll.u32 %v335, 16
      %v698 = vrot.slane %v696, 5
      %v699 = vsel %vm339, %v694, %v698
      %v701 = vshrl.u32 %v303, 16
      %v703 = vrot.slane %v701, 4
      %v704 = vshll.u32 %v303, 16
      %v706 = vrot.slane %v704, 5
      %v707 = vor.u32 %v703, %v706
      %v708 = vrot.slane %v707, 4
      %v710 = vshll.u32 %v304, 16
      %v712 = vrot.slane %v710, 5
      %v713 = vsel %vm339, %v708, %v712
      %v714 = vshrl.u32 %v304, 16
      %v716 = vrot.slane %v714, 4
      %v717 = vor.u32 %v716, %v712
      %v718 = vrot.slane %v717, 4
      %v720 = vshll.u32 %v336, 16
      %v722 = vrot.slane %v720, 5
      %v723 = vsel %vm339, %v718, %v722
      %s724 = scalar_lea.vmem %s1, 64
      %v725 = vld [vmem:[%s724] sm:$0xf]
      %v726 = vld [vmem:[%s724 + $0x4] sm:$0xf]
      %v727 = vld [vmem:[%s724 + $0x8] sm:$0xf]
      %v728 = vld [vmem:[%s724 + $0xc] sm:$0xf]
      %v729 = vld [vmem:[%s724 + $0x10] sm:$0xf]
      %v730 = vld [vmem:[%s724 + $0x14] sm:$0xf]
      %v731 = vld [vmem:[%s724 + $0x18] sm:$0xf]
      %v732 = vld [vmem:[%s724 + $0x1c] sm:$0xf]
      %v733 = vld [vmem:[%s724 + $0x20] sm:$0xf]
      %v734 = vld [vmem:[%s724 + $0x24] sm:$0xf]
      %v735 = vld [vmem:[%s724 + $0x28] sm:$0xf]
      %v736 = vld [vmem:[%s724 + $0x2c] sm:$0xf]
      %v737 = vld [vmem:[%s724 + $0x30] sm:$0xf]
      %v738 = vld [vmem:[%s724 + $0x34] sm:$0xf]
      %v739 = vld [vmem:[%s724 + $0x38] sm:$0xf]
      %v740 = vld [vmem:[%s724 + $0x3c] sm:$0xf]
      %v741 = vunpack.c.l.b16 %v353
      %v742 = vunpack.c.l.b16 %v363
      %v743 = vunpack.c.l.b16 %v377
      %v744 = vunpack.c.l.b16 %v387
      %v745 = vunpack.c.l.b16 %v401
      %v746 = vunpack.c.l.b16 %v411
      %v747 = vunpack.c.l.b16 %v425
      %v748 = vunpack.c.l.b16 %v435
      %v749 = vunpack.c.l.b16 %v449
      %v750 = vunpack.c.l.b16 %v459
      %v751 = vunpack.c.l.b16 %v473
      %v752 = vunpack.c.l.b16 %v483
      %v753 = vunpack.c.l.b16 %v497
      %v754 = vunpack.c.l.b16 %v507
      %v755 = vunpack.c.l.b16 %v521
      %v756 = vunpack.c.l.b16 %v531
      %v757 = vunpack.c.l.b16 %v545
      %v758 = vunpack.c.l.b16 %v555
      %v759 = vunpack.c.l.b16 %v569
      %v760 = vunpack.c.l.b16 %v579
      %v761 = vunpack.c.l.b16 %v593
      %v762 = vunpack.c.l.b16 %v603
      %v763 = vunpack.c.l.b16 %v617
      %v764 = vunpack.c.l.b16 %v627
      %v765 = vunpack.c.l.b16 %v641
      %v766 = vunpack.c.l.b16 %v651
      %v767 = vunpack.c.l.b16 %v665
      %v768 = vunpack.c.l.b16 %v675
      %v769 = vunpack.c.l.b16 %v689
      %v770 = vunpack.c.l.b16 %v699
      %v771 = vunpack.c.l.b16 %v713
      %v772 = vunpack.c.l.b16 %v723
      %v773 = vpack.c.b16 %v742, %v741
      %v774 = vpack.c.b16 %v744, %v743
      %v775 = vpack.c.b16 %v746, %v745
      %v776 = vpack.c.b16 %v748, %v747
      %v777 = vpack.c.b16 %v750, %v749
      %v778 = vpack.c.b16 %v752, %v751
      %v779 = vpack.c.b16 %v754, %v753
      %v780 = vpack.c.b16 %v756, %v755
      %v781 = vpack.c.b16 %v758, %v757
      %v782 = vpack.c.b16 %v760, %v759
      %v783 = vpack.c.b16 %v762, %v761
      %v784 = vpack.c.b16 %v764, %v763
      %v785 = vpack.c.b16 %v766, %v765
      %v786 = vpack.c.b16 %v768, %v767
      %v787 = vpack.c.b16 %v770, %v769
      %v788 = vpack.c.b16 %v772, %v771
      %v821 = vunpack.c.l.b16 %v725
      %v822 = vunpack.c.l.b16 %v726
      %v823 = vunpack.c.l.b16 %v727
      %v824 = vunpack.c.l.b16 %v728
      %v825 = vunpack.c.l.b16 %v729
      %v826 = vunpack.c.l.b16 %v730
      %v827 = vunpack.c.l.b16 %v731
      %v828 = vunpack.c.l.b16 %v732
      %v829 = vunpack.c.l.b16 %v733
      %v830 = vunpack.c.l.b16 %v734
      %v831 = vunpack.c.l.b16 %v735
      %v832 = vunpack.c.l.b16 %v736
      %v833 = vunpack.c.l.b16 %v737
      %v834 = vunpack.c.l.b16 %v738
      %v835 = vunpack.c.l.b16 %v739
      %v836 = vunpack.c.l.b16 %v740
      %v837 = vpack.c.b16 %v822, %v821
      %v838 = vpack.c.b16 %v824, %v823
      %v839 = vpack.c.b16 %v826, %v825
      %v840 = vpack.c.b16 %v828, %v827
      %v841 = vpack.c.b16 %v830, %v829
      %v842 = vpack.c.b16 %v832, %v831
      %v843 = vpack.c.b16 %v834, %v833
      %v844 = vpack.c.b16 %v836, %v835
      %853 = vmatprep.subr.bf16.mxu0 0
      %854 = vmatpush1.bf16.msra.mxu0 %v844
      %855 = vmatprep.subr.bf16.mxu0 0
      %856 = vmatpush1.bf16.msra.mxu0 %v843
      %857 = vmatprep.subr.bf16.mxu0 0
      %858 = vmatpush1.bf16.msra.mxu0 %v842
      %859 = vmatprep.subr.bf16.mxu0 0
      %860 = vmatpush1.bf16.msra.mxu0 %v841
      %861 = vmatprep.subr.bf16.mxu0 0
      %862 = vmatpush1.bf16.msra.mxu0 %v840
      %863 = vmatprep.subr.bf16.mxu0 0
      %864 = vmatpush1.bf16.msra.mxu0 %v839
      %865 = vmatprep.subr.bf16.mxu0 0
      %866 = vmatpush1.bf16.msra.mxu0 %v838
      %867 = vmatprep.subr.bf16.mxu0 0
      %868 = vmatpush1.bf16.msra.mxu0 %v837
      %869 = vmatprep.subr.bf16.mxu0 0
      %870 = vmatpush2.bf16.msra.mxu0 0
      %871 = vmatprep.subr.bf16.mxu0 0
      %872 = vmatpush2.bf16.msra.mxu0 0
      %873 = vmatprep.subr.bf16.mxu0 0
      %874 = vmatpush2.bf16.msra.mxu0 0
      %875 = vmatprep.subr.bf16.mxu0 0
      %876 = vmatpush2.bf16.msra.mxu0 0
      %877 = vmatprep.subr.bf16.mxu0 0
      %878 = vmatpush2.bf16.msra.mxu0 0
      %879 = vmatprep.subr.bf16.mxu0 0
      %880 = vmatpush2.bf16.msra.mxu0 0
      %881 = vmatprep.subr.bf16.mxu0 0
      %882 = vmatpush2.bf16.msra.mxu0 0
      %883 = vmatprep.subr.bf16.mxu0 0
      %884 = vmatpush2.bf16.msra.mxu0 0
      %885 = vmatprep.mubr.bf16.mxu0 0
      %886 = vmatmul.mubr.bf16.gmra.mxu0 %v773
      %v887 = vpop.f32.mrf.mxu0
      %v888 = vadd.f32 0.0, %v887
      %v889 = vpop.f32.mrf.mxu0
      %v890 = vpop.f32.mrf.mxu0
      %v891 = vadd.f32 0.0, %v890
      %v892 = vpop.f32.mrf.mxu0
      %893 = vmatprep.mubr.bf16.mxu0 0
      %894 = vmatmul.mubr.bf16.gmra.mxu0 %v774
      %v895 = vpop.f32.mrf.mxu0
      %v896 = vadd.f32 0.0, %v895
      %v897 = vpop.f32.mrf.mxu0
      %v898 = vpop.f32.mrf.mxu0
      %v899 = vadd.f32 0.0, %v898
      %v900 = vpop.f32.mrf.mxu0
      %901 = vmatprep.mubr.bf16.mxu0 0
      %902 = vmatmul.mubr.bf16.gmra.mxu0 %v775
      %v903 = vpop.f32.mrf.mxu0
      %v904 = vadd.f32 0.0, %v903
      %v905 = vpop.f32.mrf.mxu0
      %v906 = vpop.f32.mrf.mxu0
      %v907 = vadd.f32 0.0, %v906
      %v908 = vpop.f32.mrf.mxu0
      %909 = vmatprep.mubr.bf16.mxu0 0
      %910 = vmatmul.mubr.bf16.gmra.mxu0 %v776
      %v911 = vpop.f32.mrf.mxu0
      %v912 = vadd.f32 0.0, %v911
      %v913 = vpop.f32.mrf.mxu0
      %v914 = vpop.f32.mrf.mxu0
      %v915 = vadd.f32 0.0, %v914
      %v916 = vpop.f32.mrf.mxu0
      %917 = vmatprep.mubr.bf16.mxu0 0
      %918 = vmatmul.mubr.bf16.gmra.mxu0 %v777
      %v919 = vpop.f32.mrf.mxu0
      %v920 = vadd.f32 0.0, %v919
      %v921 = vpop.f32.mrf.mxu0
      %v922 = vpop.f32.mrf.mxu0
      %v923 = vadd.f32 0.0, %v922
      %v924 = vpop.f32.mrf.mxu0
      %925 = vmatprep.mubr.bf16.mxu0 0
      %926 = vmatmul.mubr.bf16.gmra.mxu0 %v778
      %v927 = vpop.f32.mrf.mxu0
      %v928 = vadd.f32 0.0, %v927
      %v929 = vpop.f32.mrf.mxu0
      %v930 = vpop.f32.mrf.mxu0
      %v931 = vadd.f32 0.0, %v930
      %v932 = vpop.f32.mrf.mxu0
      %933 = vmatprep.mubr.bf16.mxu0 0
      %934 = vmatmul.mubr.bf16.gmra.mxu0 %v779
      %v935 = vpop.f32.mrf.mxu0
      %v936 = vadd.f32 0.0, %v935
      %v937 = vpop.f32.mrf.mxu0
      %v938 = vpop.f32.mrf.mxu0
      %v939 = vadd.f32 0.0, %v938
      %v940 = vpop.f32.mrf.mxu0
      %941 = vmatprep.mubr.bf16.mxu0 0
      %942 = vmatmul.mubr.bf16.gmra.mxu0 %v780
      %v943 = vpop.f32.mrf.mxu0
      %v944 = vadd.f32 0.0, %v943
      %v945 = vpop.f32.mrf.mxu0
      %v946 = vpop.f32.mrf.mxu0
      %v947 = vadd.f32 0.0, %v946
      %v948 = vpop.f32.mrf.mxu0
      %949 = vmatprep.mubr.bf16.mxu0 0
      %950 = vmatmul.mubr.bf16.gmra.mxu0 %v781
      %v951 = vpop.f32.mrf.mxu0
      %v952 = vadd.f32 0.0, %v951
      %v953 = vpop.f32.mrf.mxu0
      %v954 = vpop.f32.mrf.mxu0
      %v955 = vadd.f32 0.0, %v954
      %v956 = vpop.f32.mrf.mxu0
      %957 = vmatprep.mubr.bf16.mxu0 0
      %958 = vmatmul.mubr.bf16.gmra.mxu0 %v782
      %v959 = vpop.f32.mrf.mxu0
      %v960 = vadd.f32 0.0, %v959
      %v961 = vpop.f32.mrf.mxu0
      %v962 = vpop.f32.mrf.mxu0
      %v963 = vadd.f32 0.0, %v962
      %v964 = vpop.f32.mrf.mxu0
      %965 = vmatprep.mubr.bf16.mxu0 0
      %966 = vmatmul.mubr.bf16.gmra.mxu0 %v783
      %v967 = vpop.f32.mrf.mxu0
      %v968 = vadd.f32 0.0, %v967
      %v969 = vpop.f32.mrf.mxu0
      %v970 = vpop.f32.mrf.mxu0
      %v971 = vadd.f32 0.0, %v970
      %v972 = vpop.f32.mrf.mxu0
      %973 = vmatprep.mubr.bf16.mxu0 0
      %974 = vmatmul.mubr.bf16.gmra.mxu0 %v784
      %v975 = vpop.f32.mrf.mxu0
      %v976 = vadd.f32 0.0, %v975
      %v977 = vpop.f32.mrf.mxu0
      %v978 = vpop.f32.mrf.mxu0
      %v979 = vadd.f32 0.0, %v978
      %v980 = vpop.f32.mrf.mxu0
      %981 = vmatprep.mubr.bf16.mxu0 0
      %982 = vmatmul.mubr.bf16.gmra.mxu0 %v785
      %v983 = vpop.f32.mrf.mxu0
      %v984 = vadd.f32 0.0, %v983
      %v985 = vpop.f32.mrf.mxu0
      %v986 = vpop.f32.mrf.mxu0
      %v987 = vadd.f32 0.0, %v986
      %v988 = vpop.f32.mrf.mxu0
      %989 = vmatprep.mubr.bf16.mxu0 0
      %990 = vmatmul.mubr.bf16.gmra.mxu0 %v786
      %v991 = vpop.f32.mrf.mxu0
      %v992 = vadd.f32 0.0, %v991
      %v993 = vpop.f32.mrf.mxu0
      %v994 = vpop.f32.mrf.mxu0
      %v995 = vadd.f32 0.0, %v994
      %v996 = vpop.f32.mrf.mxu0
      %997 = vmatprep.mubr.bf16.mxu0 0
      %998 = vmatmul.mubr.bf16.gmra.mxu0 %v787
      %v999 = vpop.f32.mrf.mxu0
      %v1000 = vadd.f32 0.0, %v999
      %v1001 = vpop.f32.mrf.mxu0
      %v1002 = vpop.f32.mrf.mxu0
      %v1003 = vadd.f32 0.0, %v1002
      %v1004 = vpop.f32.mrf.mxu0
      %1005 = vmatprep.mubr.bf16.mxu0 0
      %1006 = vmatmul.mubr.bf16.gmra.mxu0 %v788
      %v1007 = vpop.f32.mrf.mxu0
      %v1008 = vadd.f32 0.0, %v1007
      %v1009 = vpop.f32.mrf.mxu0
      %v1010 = vpop.f32.mrf.mxu0
      %v1011 = vadd.f32 0.0, %v1010
      %v1012 = vpop.f32.mrf.mxu0
      %1013 = vdwg.mxu0
      %v1046 = vunpack.c.l.b16 %v273
      %v1047 = vunpack.c.l.b16 %v274
      %v1048 = vunpack.c.l.b16 %v275
      %v1049 = vunpack.c.l.b16 %v276
      %v1050 = vunpack.c.l.b16 %v277
      %v1051 = vunpack.c.l.b16 %v278
      %v1052 = vunpack.c.l.b16 %v279
      %v1053 = vunpack.c.l.b16 %v280
      %v1054 = vunpack.c.l.b16 %v281
      %v1055 = vunpack.c.l.b16 %v282
      %v1056 = vunpack.c.l.b16 %v283
      %v1057 = vunpack.c.l.b16 %v284
      %v1058 = vunpack.c.l.b16 %v285
      %v1059 = vunpack.c.l.b16 %v286
      %v1060 = vunpack.c.l.b16 %v287
      %v1061 = vunpack.c.l.b16 %v288
      %v1062 = vunpack.c.l.b16 %v289
      %v1063 = vunpack.c.l.b16 %v290
      %v1064 = vunpack.c.l.b16 %v291
      %v1065 = vunpack.c.l.b16 %v292
      %v1066 = vunpack.c.l.b16 %v293
      %v1067 = vunpack.c.l.b16 %v294
      %v1068 = vunpack.c.l.b16 %v295
      %v1069 = vunpack.c.l.b16 %v296
      %v1070 = vunpack.c.l.b16 %v297
      %v1071 = vunpack.c.l.b16 %v298
      %v1072 = vunpack.c.l.b16 %v299
      %v1073 = vunpack.c.l.b16 %v300
      %v1074 = vunpack.c.l.b16 %v301
      %v1075 = vunpack.c.l.b16 %v302
      %v1076 = vunpack.c.l.b16 %v303
      %v1077 = vunpack.c.l.b16 %v304
      %v1078 = vpack.c.b16 %v1047, %v1046
      %v1079 = vpack.c.b16 %v1049, %v1048
      %v1080 = vpack.c.b16 %v1051, %v1050
      %v1081 = vpack.c.b16 %v1053, %v1052
      %v1082 = vpack.c.b16 %v1055, %v1054
      %v1083 = vpack.c.b16 %v1057, %v1056
      %v1084 = vpack.c.b16 %v1059, %v1058
      %v1085 = vpack.c.b16 %v1061, %v1060
      %v1086 = vpack.c.b16 %v1063, %v1062
      %v1087 = vpack.c.b16 %v1065, %v1064
      %v1088 = vpack.c.b16 %v1067, %v1066
      %v1089 = vpack.c.b16 %v1069, %v1068
      %v1090 = vpack.c.b16 %v1071, %v1070
      %v1091 = vpack.c.b16 %v1073, %v1072
      %v1092 = vpack.c.b16 %v1075, %v1074
      %v1093 = vpack.c.b16 %v1077, %v1076
      %v1126 = vunpack.c.l.b16 %v305
      %v1127 = vunpack.c.l.b16 %v306
      %v1128 = vunpack.c.l.b16 %v307
      %v1129 = vunpack.c.l.b16 %v308
      %v1130 = vunpack.c.l.b16 %v309
      %v1131 = vunpack.c.l.b16 %v310
      %v1132 = vunpack.c.l.b16 %v311
      %v1133 = vunpack.c.l.b16 %v312
      %v1134 = vunpack.c.l.b16 %v313
      %v1135 = vunpack.c.l.b16 %v314
      %v1136 = vunpack.c.l.b16 %v315
      %v1137 = vunpack.c.l.b16 %v316
      %v1138 = vunpack.c.l.b16 %v317
      %v1139 = vunpack.c.l.b16 %v318
      %v1140 = vunpack.c.l.b16 %v319
      %v1141 = vunpack.c.l.b16 %v320
      %v1142 = vpack.c.b16 %v1127, %v1126
      %v1143 = vpack.c.b16 %v1129, %v1128
      %v1144 = vpack.c.b16 %v1131, %v1130
      %v1145 = vpack.c.b16 %v1133, %v1132
      %v1146 = vpack.c.b16 %v1135, %v1134
      %v1147 = vpack.c.b16 %v1137, %v1136
      %v1148 = vpack.c.b16 %v1139, %v1138
      %v1149 = vpack.c.b16 %v1141, %v1140
      %1158 = vmatprep.subr.bf16.mxu0 0
      %1159 = vmatpush1.bf16.msra.mxu0 %v1149
      %1160 = vmatprep.subr.bf16.mxu0 0
      %1161 = vmatpush1.bf16.msra.mxu0 %v1148
      %1162 = vmatprep.subr.bf16.mxu0 0
      %1163 = vmatpush1.bf16.msra.mxu0 %v1147
      %1164 = vmatprep.subr.bf16.mxu0 0
      %1165 = vmatpush1.bf16.msra.mxu0 %v1146
      %1166 = vmatprep.subr.bf16.mxu0 0
      %1167 = vmatpush1.bf16.msra.mxu0 %v1145
      %1168 = vmatprep.subr.bf16.mxu0 0
      %1169 = vmatpush1.bf16.msra.mxu0 %v1144
      %1170 = vmatprep.subr.bf16.mxu0 0
      %1171 = vmatpush1.bf16.msra.mxu0 %v1143
      %1172 = vmatprep.subr.bf16.mxu0 0
      %1173 = vmatpush1.bf16.msra.mxu0 %v1142
      %1174 = vmatprep.subr.bf16.mxu0 0
      %1175 = vmatpush2.bf16.msra.mxu0 0
      %1176 = vmatprep.subr.bf16.mxu0 0
      %1177 = vmatpush2.bf16.msra.mxu0 0
      %1178 = vmatprep.subr.bf16.mxu0 0
      %1179 = vmatpush2.bf16.msra.mxu0 0
      %1180 = vmatprep.subr.bf16.mxu0 0
      %1181 = vmatpush2.bf16.msra.mxu0 0
      %1182 = vmatprep.subr.bf16.mxu0 0
      %1183 = vmatpush2.bf16.msra.mxu0 0
      %1184 = vmatprep.subr.bf16.mxu0 0
      %1185 = vmatpush2.bf16.msra.mxu0 0
      %1186 = vmatprep.subr.bf16.mxu0 0
      %1187 = vmatpush2.bf16.msra.mxu0 0
      %1188 = vmatprep.subr.bf16.mxu0 0
      %1189 = vmatpush2.bf16.msra.mxu0 0
      %1190 = vmatprep.mubr.bf16.mxu0 0
      %1191 = vmatmul.mubr.bf16.gmra.mxu0 %v1078
      %v1192 = vpop.f32.mrf.mxu0
      %v1193 = vadd.f32 %v888, %v1192
      %v1194 = vpop.f32.mrf.mxu0
      %v1195 = vpop.f32.mrf.mxu0
      %v1196 = vadd.f32 %v891, %v1195
      %v1197 = vpop.f32.mrf.mxu0
      %1198 = vmatprep.mubr.bf16.mxu0 0
      %1199 = vmatmul.mubr.bf16.gmra.mxu0 %v1079
      %v1200 = vpop.f32.mrf.mxu0
      %v1201 = vadd.f32 %v896, %v1200
      %v1202 = vpop.f32.mrf.mxu0
      %v1203 = vpop.f32.mrf.mxu0
      %v1204 = vadd.f32 %v899, %v1203
      %v1205 = vpop.f32.mrf.mxu0
      %1206 = vmatprep.mubr.bf16.mxu0 0
      %1207 = vmatmul.mubr.bf16.gmra.mxu0 %v1080
      %v1208 = vpop.f32.mrf.mxu0
      %v1209 = vadd.f32 %v904, %v1208
      %v1210 = vpop.f32.mrf.mxu0
      %v1211 = vpop.f32.mrf.mxu0
      %v1212 = vadd.f32 %v907, %v1211
      %v1213 = vpop.f32.mrf.mxu0
      %1214 = vmatprep.mubr.bf16.mxu0 0
      %1215 = vmatmul.mubr.bf16.gmra.mxu0 %v1081
      %v1216 = vpop.f32.mrf.mxu0
      %v1217 = vadd.f32 %v912, %v1216
      %v1218 = vpop.f32.mrf.mxu0
      %v1219 = vpop.f32.mrf.mxu0
      %v1220 = vadd.f32 %v915, %v1219
      %v1221 = vpop.f32.mrf.mxu0
      %1222 = vmatprep.mubr.bf16.mxu0 0
      %1223 = vmatmul.mubr.bf16.gmra.mxu0 %v1082
      %v1224 = vpop.f32.mrf.mxu0
      %v1225 = vadd.f32 %v920, %v1224
      %v1226 = vpop.f32.mrf.mxu0
      %v1227 = vpop.f32.mrf.mxu0
      %v1228 = vadd.f32 %v923, %v1227
      %v1229 = vpop.f32.mrf.mxu0
      %1230 = vmatprep.mubr.bf16.mxu0 0
      %1231 = vmatmul.mubr.bf16.gmra.mxu0 %v1083
      %v1232 = vpop.f32.mrf.mxu0
      %v1233 = vadd.f32 %v928, %v1232
      %v1234 = vpop.f32.mrf.mxu0
      %v1235 = vpop.f32.mrf.mxu0
      %v1236 = vadd.f32 %v931, %v1235
      %v1237 = vpop.f32.mrf.mxu0
      %1238 = vmatprep.mubr.bf16.mxu0 0
      %1239 = vmatmul.mubr.bf16.gmra.mxu0 %v1084
      %v1240 = vpop.f32.mrf.mxu0
      %v1241 = vadd.f32 %v936, %v1240
      %v1242 = vpop.f32.mrf.mxu0
      %v1243 = vpop.f32.mrf.mxu0
      %v1244 = vadd.f32 %v939, %v1243
      %v1245 = vpop.f32.mrf.mxu0
      %1246 = vmatprep.mubr.bf16.mxu0 0
      %1247 = vmatmul.mubr.bf16.gmra.mxu0 %v1085
      %v1248 = vpop.f32.mrf.mxu0
      %v1249 = vadd.f32 %v944, %v1248
      %v1250 = vpop.f32.mrf.mxu0
      %v1251 = vpop.f32.mrf.mxu0
      %v1252 = vadd.f32 %v947, %v1251
      %v1253 = vpop.f32.mrf.mxu0
      %1254 = vmatprep.mubr.bf16.mxu0 0
      %1255 = vmatmul.mubr.bf16.gmra.mxu0 %v1086
      %v1256 = vpop.f32.mrf.mxu0
      %v1257 = vadd.f32 %v952, %v1256
      %v1258 = vpop.f32.mrf.mxu0
      %v1259 = vpop.f32.mrf.mxu0
      %v1260 = vadd.f32 %v955, %v1259
      %v1261 = vpop.f32.mrf.mxu0
      %1262 = vmatprep.mubr.bf16.mxu0 0
      %1263 = vmatmul.mubr.bf16.gmra.mxu0 %v1087
      %v1264 = vpop.f32.mrf.mxu0
      %v1265 = vadd.f32 %v960, %v1264
      %v1266 = vpop.f32.mrf.mxu0
      %v1267 = vpop.f32.mrf.mxu0
      %v1268 = vadd.f32 %v963, %v1267
      %v1269 = vpop.f32.mrf.mxu0
      %1270 = vmatprep.mubr.bf16.mxu0 0
      %1271 = vmatmul.mubr.bf16.gmra.mxu0 %v1088
      %v1272 = vpop.f32.mrf.mxu0
      %v1273 = vadd.f32 %v968, %v1272
      %v1274 = vpop.f32.mrf.mxu0
      %v1275 = vpop.f32.mrf.mxu0
      %v1276 = vadd.f32 %v971, %v1275
      %v1277 = vpop.f32.mrf.mxu0
      %1278 = vmatprep.mubr.bf16.mxu0 0
      %1279 = vmatmul.mubr.bf16.gmra.mxu0 %v1089
      %v1280 = vpop.f32.mrf.mxu0
      %v1281 = vadd.f32 %v976, %v1280
      %v1282 = vpop.f32.mrf.mxu0
      %v1283 = vpop.f32.mrf.mxu0
      %v1284 = vadd.f32 %v979, %v1283
      %v1285 = vpop.f32.mrf.mxu0
      %1286 = vmatprep.mubr.bf16.mxu0 0
      %1287 = vmatmul.mubr.bf16.gmra.mxu0 %v1090
      %v1288 = vpop.f32.mrf.mxu0
      %v1289 = vadd.f32 %v984, %v1288
      %v1290 = vpop.f32.mrf.mxu0
      %v1291 = vpop.f32.mrf.mxu0
      %v1292 = vadd.f32 %v987, %v1291
      %v1293 = vpop.f32.mrf.mxu0
      %1294 = vmatprep.mubr.bf16.mxu0 0
      %1295 = vmatmul.mubr.bf16.gmra.mxu0 %v1091
      %v1296 = vpop.f32.mrf.mxu0
      %v1297 = vadd.f32 %v992, %v1296
      %v1298 = vpop.f32.mrf.mxu0
      %v1299 = vpop.f32.mrf.mxu0
      %v1300 = vadd.f32 %v995, %v1299
      %v1301 = vpop.f32.mrf.mxu0
      %1302 = vmatprep.mubr.bf16.mxu0 0
      %1303 = vmatmul.mubr.bf16.gmra.mxu0 %v1092
      %v1304 = vpop.f32.mrf.mxu0
      %v1305 = vadd.f32 %v1000, %v1304
      %v1306 = vpop.f32.mrf.mxu0
      %v1307 = vpop.f32.mrf.mxu0
      %v1308 = vadd.f32 %v1003, %v1307
      %v1309 = vpop.f32.mrf.mxu0
      %1310 = vmatprep.mubr.bf16.mxu0 0
      %1311 = vmatmul.mubr.bf16.gmra.mxu0 %v1093
      %v1312 = vpop.f32.mrf.mxu0
      %v1313 = vadd.f32 %v1008, %v1312
      %v1314 = vpop.f32.mrf.mxu0
      %v1315 = vpop.f32.mrf.mxu0
      %v1316 = vadd.f32 %v1011, %v1315
      %v1317 = vpop.f32.mrf.mxu0
      %1318 = vdwg.mxu0
      %v1319 = vld [vmem:[%s261] sm:$0xe]
      %v1320 = vld [vmem:[%s261 + $0xc] sm:$0xe]
      %v1321 = vld [vmem:[%s261 + $0x18] sm:$0xe]
      %v1322 = vld [vmem:[%s261 + $0x24] sm:$0xe]
      %v1323 = vld [vmem:[%s261 + $0x30] sm:$0xe]
      %v1324 = vld [vmem:[%s261 + $0x3c] sm:$0xe]
      %v1325 = vld [vmem:[%s261 + $0x48] sm:$0xe]
      %v1326 = vld [vmem:[%s261 + $0x54] sm:$0xe]
      %v1327 = vld [vmem:[%s261 + $0x60] sm:$0xe]
      %v1328 = vld [vmem:[%s261 + $0x6c] sm:$0xe]
      %v1329 = vld [vmem:[%s261 + $0x78] sm:$0xe]
      %v1330 = vld [vmem:[%s261 + $0x84] sm:$0xe]
      %v1331 = vld [vmem:[%s261 + $0x90] sm:$0xe]
      %v1332 = vld [vmem:[%s261 + $0x9c] sm:$0xe]
      %v1333 = vld [vmem:[%s261 + $0xa8] sm:$0xe]
      %v1334 = vld [vmem:[%s261 + $0xb4] sm:$0xe]
      %vm1367 = vcmask 1042432
      %vm1368 = vcmask 1046532
      %vm1369 = vmor %vm1367, %vm1368
      %v1370 = vrot.slane %v1319, 5
      %v1371 = vrot.slane %v1370, 4
      %v1372 = vrot.slane %v274, 5
      %v1373 = vsel %vm1369, %v1371, %v1372
      %v1374 = vrot.slane %v1372, 4
      %v1375 = vrot.slane %v321, 5
      %v1376 = vsel %vm1369, %v1374, %v1375
      %v1377 = vrot.slane %v1320, 5
      %v1378 = vrot.slane %v1377, 4
      %v1379 = vrot.slane %v276, 5
      %v1380 = vsel %vm1369, %v1378, %v1379
      %v1381 = vrot.slane %v1379, 4
      %v1382 = vrot.slane %v322, 5
      %v1383 = vsel %vm1369, %v1381, %v1382
      %v1384 = vrot.slane %v1321, 5
      %v1385 = vrot.slane %v1384, 4
      %v1386 = vrot.slane %v278, 5
      %v1387 = vsel %vm1369, %v1385, %v1386
      %v1388 = vrot.slane %v1386, 4
      %v1389 = vrot.slane %v323, 5
      %v1390 = vsel %vm1369, %v1388, %v1389
      %v1391 = vrot.slane %v1322, 5
      %v1392 = vrot.slane %v1391, 4
      %v1393 = vrot.slane %v280, 5
      %v1394 = vsel %vm1369, %v1392, %v1393
      %v1395 = vrot.slane %v1393, 4
      %v1396 = vrot.slane %v324, 5
      %v1397 = vsel %vm1369, %v1395, %v1396
      %v1398 = vrot.slane %v1323, 5
      %v1399 = vrot.slane %v1398, 4
      %v1400 = vrot.slane %v282, 5
      %v1401 = vsel %vm1369, %v1399, %v1400
      %v1402 = vrot.slane %v1400, 4
      %v1403 = vrot.slane %v325, 5
      %v1404 = vsel %vm1369, %v1402, %v1403
      %v1405 = vrot.slane %v1324, 5
      %v1406 = vrot.slane %v1405, 4
      %v1407 = vrot.slane %v284, 5
      %v1408 = vsel %vm1369, %v1406, %v1407
      %v1409 = vrot.slane %v1407, 4
      %v1410 = vrot.slane %v326, 5
      %v1411 = vsel %vm1369, %v1409, %v1410
      %v1412 = vrot.slane %v1325, 5
      %v1413 = vrot.slane %v1412, 4
      %v1414 = vrot.slane %v286, 5
      %v1415 = vsel %vm1369, %v1413, %v1414
      %v1416 = vrot.slane %v1414, 4
      %v1417 = vrot.slane %v327, 5
      %v1418 = vsel %vm1369, %v1416, %v1417
      %v1419 = vrot.slane %v1326, 5
      %v1420 = vrot.slane %v1419, 4
      %v1421 = vrot.slane %v288, 5
      %v1422 = vsel %vm1369, %v1420, %v1421
      %v1423 = vrot.slane %v1421, 4
      %v1424 = vrot.slane %v328, 5
      %v1425 = vsel %vm1369, %v1423, %v1424
      %v1426 = vrot.slane %v1327, 5
      %v1427 = vrot.slane %v1426, 4
      %v1428 = vrot.slane %v290, 5
      %v1429 = vsel %vm1369, %v1427, %v1428
      %v1430 = vrot.slane %v1428, 4
      %v1431 = vrot.slane %v329, 5
      %v1432 = vsel %vm1369, %v1430, %v1431
      %v1433 = vrot.slane %v1328, 5
      %v1434 = vrot.slane %v1433, 4
      %v1435 = vrot.slane %v292, 5
      %v1436 = vsel %vm1369, %v1434, %v1435
      %v1437 = vrot.slane %v1435, 4
      %v1438 = vrot.slane %v330, 5
      %v1439 = vsel %vm1369, %v1437, %v1438
      %v1440 = vrot.slane %v1329, 5
      %v1441 = vrot.slane %v1440, 4
      %v1442 = vrot.slane %v294, 5
      %v1443 = vsel %vm1369, %v1441, %v1442
      %v1444 = vrot.slane %v1442, 4
      %v1445 = vrot.slane %v331, 5
      %v1446 = vsel %vm1369, %v1444, %v1445
      %v1447 = vrot.slane %v1330, 5
      %v1448 = vrot.slane %v1447, 4
      %v1449 = vrot.slane %v296, 5
      %v1450 = vsel %vm1369, %v1448, %v1449
      %v1451 = vrot.slane %v1449, 4
      %v1452 = vrot.slane %v332, 5
      %v1453 = vsel %vm1369, %v1451, %v1452
      %v1454 = vrot.slane %v1331, 5
      %v1455 = vrot.slane %v1454, 4
      %v1456 = vrot.slane %v298, 5
      %v1457 = vsel %vm1369, %v1455, %v1456
      %v1458 = vrot.slane %v1456, 4
      %v1459 = vrot.slane %v333, 5
      %v1460 = vsel %vm1369, %v1458, %v1459
      %v1461 = vrot.slane %v1332, 5
      %v1462 = vrot.slane %v1461, 4
      %v1463 = vrot.slane %v300, 5
      %v1464 = vsel %vm1369, %v1462, %v1463
      %v1465 = vrot.slane %v1463, 4
      %v1466 = vrot.slane %v334, 5
      %v1467 = vsel %vm1369, %v1465, %v1466
      %v1468 = vrot.slane %v1333, 5
      %v1469 = vrot.slane %v1468, 4
      %v1470 = vrot.slane %v302, 5
      %v1471 = vsel %vm1369, %v1469, %v1470
      %v1472 = vrot.slane %v1470, 4
      %v1473 = vrot.slane %v335, 5
      %v1474 = vsel %vm1369, %v1472, %v1473
      %v1475 = vrot.slane %v1334, 5
      %v1476 = vrot.slane %v1475, 4
      %v1477 = vrot.slane %v304, 5
      %v1478 = vsel %vm1369, %v1476, %v1477
      %v1479 = vrot.slane %v1477, 4
      %v1480 = vrot.slane %v336, 5
      %v1481 = vsel %vm1369, %v1479, %v1480
      %s1482 = scalar_lea.vmem %s1, 128
      %v1483 = vld [vmem:[%s1482] sm:$0xf]
      %v1484 = vld [vmem:[%s1482 + $0x4] sm:$0xf]
      %v1485 = vld [vmem:[%s1482 + $0x8] sm:$0xf]
      %v1486 = vld [vmem:[%s1482 + $0xc] sm:$0xf]
      %v1487 = vld [vmem:[%s1482 + $0x10] sm:$0xf]
      %v1488 = vld [vmem:[%s1482 + $0x14] sm:$0xf]
      %v1489 = vld [vmem:[%s1482 + $0x18] sm:$0xf]
      %v1490 = vld [vmem:[%s1482 + $0x1c] sm:$0xf]
      %v1491 = vld [vmem:[%s1482 + $0x20] sm:$0xf]
      %v1492 = vld [vmem:[%s1482 + $0x24] sm:$0xf]
      %v1493 = vld [vmem:[%s1482 + $0x28] sm:$0xf]
      %v1494 = vld [vmem:[%s1482 + $0x2c] sm:$0xf]
      %v1495 = vld [vmem:[%s1482 + $0x30] sm:$0xf]
      %v1496 = vld [vmem:[%s1482 + $0x34] sm:$0xf]
      %v1497 = vld [vmem:[%s1482 + $0x38] sm:$0xf]
      %v1498 = vld [vmem:[%s1482 + $0x3c] sm:$0xf]
      %v1499 = vunpack.c.l.b16 %v1373
      %v1500 = vunpack.c.l.b16 %v1376
      %v1501 = vunpack.c.l.b16 %v1380
      %v1502 = vunpack.c.l.b16 %v1383
      %v1503 = vunpack.c.l.b16 %v1387
      %v1504 = vunpack.c.l.b16 %v1390
      %v1505 = vunpack.c.l.b16 %v1394
      %v1506 = vunpack.c.l.b16 %v1397
      %v1507 = vunpack.c.l.b16 %v1401
      %v1508 = vunpack.c.l.b16 %v1404
      %v1509 = vunpack.c.l.b16 %v1408
      %v1510 = vunpack.c.l.b16 %v1411
      %v1511 = vunpack.c.l.b16 %v1415
      %v1512 = vunpack.c.l.b16 %v1418
      %v1513 = vunpack.c.l.b16 %v1422
      %v1514 = vunpack.c.l.b16 %v1425
      %v1515 = vunpack.c.l.b16 %v1429
      %v1516 = vunpack.c.l.b16 %v1432
      %v1517 = vunpack.c.l.b16 %v1436
      %v1518 = vunpack.c.l.b16 %v1439
      %v1519 = vunpack.c.l.b16 %v1443
      %v1520 = vunpack.c.l.b16 %v1446
      %v1521 = vunpack.c.l.b16 %v1450
      %v1522 = vunpack.c.l.b16 %v1453
      %v1523 = vunpack.c.l.b16 %v1457
      %v1524 = vunpack.c.l.b16 %v1460
      %v1525 = vunpack.c.l.b16 %v1464
      %v1526 = vunpack.c.l.b16 %v1467
      %v1527 = vunpack.c.l.b16 %v1471
      %v1528 = vunpack.c.l.b16 %v1474
      %v1529 = vunpack.c.l.b16 %v1478
      %v1530 = vunpack.c.l.b16 %v1481
      %v1531 = vpack.c.b16 %v1500, %v1499
      %v1532 = vpack.c.b16 %v1502, %v1501
      %v1533 = vpack.c.b16 %v1504, %v1503
      %v1534 = vpack.c.b16 %v1506, %v1505
      %v1535 = vpack.c.b16 %v1508, %v1507
      %v1536 = vpack.c.b16 %v1510, %v1509
      %v1537 = vpack.c.b16 %v1512, %v1511
      %v1538 = vpack.c.b16 %v1514, %v1513
      %v1539 = vpack.c.b16 %v1516, %v1515
      %v1540 = vpack.c.b16 %v1518, %v1517
      %v1541 = vpack.c.b16 %v1520, %v1519
      %v1542 = vpack.c.b16 %v1522, %v1521
      %v1543 = vpack.c.b16 %v1524, %v1523
      %v1544 = vpack.c.b16 %v1526, %v1525
      %v1545 = vpack.c.b16 %v1528, %v1527
      %v1546 = vpack.c.b16 %v1530, %v1529
      %v1579 = vunpack.c.l.b16 %v1483
      %v1580 = vunpack.c.l.b16 %v1484
      %v1581 = vunpack.c.l.b16 %v1485
      %v1582 = vunpack.c.l.b16 %v1486
      %v1583 = vunpack.c.l.b16 %v1487
      %v1584 = vunpack.c.l.b16 %v1488
      %v1585 = vunpack.c.l.b16 %v1489
      %v1586 = vunpack.c.l.b16 %v1490
      %v1587 = vunpack.c.l.b16 %v1491
      %v1588 = vunpack.c.l.b16 %v1492
      %v1589 = vunpack.c.l.b16 %v1493
      %v1590 = vunpack.c.l.b16 %v1494
      %v1591 = vunpack.c.l.b16 %v1495
      %v1592 = vunpack.c.l.b16 %v1496
      %v1593 = vunpack.c.l.b16 %v1497
      %v1594 = vunpack.c.l.b16 %v1498
      %v1595 = vpack.c.b16 %v1580, %v1579
      %v1596 = vpack.c.b16 %v1582, %v1581
      %v1597 = vpack.c.b16 %v1584, %v1583
      %v1598 = vpack.c.b16 %v1586, %v1585
      %v1599 = vpack.c.b16 %v1588, %v1587
      %v1600 = vpack.c.b16 %v1590, %v1589
      %v1601 = vpack.c.b16 %v1592, %v1591
      %v1602 = vpack.c.b16 %v1594, %v1593
      %1611 = vmatprep.subr.bf16.mxu0 0
      %1612 = vmatpush1.bf16.msra.mxu0 %v1602
      %1613 = vmatprep.subr.bf16.mxu0 0
      %1614 = vmatpush1.bf16.msra.mxu0 %v1601
      %1615 = vmatprep.subr.bf16.mxu0 0
      %1616 = vmatpush1.bf16.msra.mxu0 %v1600
      %1617 = vmatprep.subr.bf16.mxu0 0
      %1618 = vmatpush1.bf16.msra.mxu0 %v1599
      %1619 = vmatprep.subr.bf16.mxu0 0
      %1620 = vmatpush1.bf16.msra.mxu0 %v1598
      %1621 = vmatprep.subr.bf16.mxu0 0
      %1622 = vmatpush1.bf16.msra.mxu0 %v1597
      %1623 = vmatprep.subr.bf16.mxu0 0
      %1624 = vmatpush1.bf16.msra.mxu0 %v1596
      %1625 = vmatprep.subr.bf16.mxu0 0
      %1626 = vmatpush1.bf16.msra.mxu0 %v1595
      %1627 = vmatprep.subr.bf16.mxu0 0
      %1628 = vmatpush2.bf16.msra.mxu0 0
      %1629 = vmatprep.subr.bf16.mxu0 0
      %1630 = vmatpush2.bf16.msra.mxu0 0
      %1631 = vmatprep.subr.bf16.mxu0 0
      %1632 = vmatpush2.bf16.msra.mxu0 0
      %1633 = vmatprep.subr.bf16.mxu0 0
      %1634 = vmatpush2.bf16.msra.mxu0 0
      %1635 = vmatprep.subr.bf16.mxu0 0
      %1636 = vmatpush2.bf16.msra.mxu0 0
      %1637 = vmatprep.subr.bf16.mxu0 0
      %1638 = vmatpush2.bf16.msra.mxu0 0
      %1639 = vmatprep.subr.bf16.mxu0 0
      %1640 = vmatpush2.bf16.msra.mxu0 0
      %1641 = vmatprep.subr.bf16.mxu0 0
      %1642 = vmatpush2.bf16.msra.mxu0 0
      %1643 = vmatprep.mubr.bf16.mxu0 0
      %1644 = vmatmul.mubr.bf16.gmra.mxu0 %v1531
      %v1645 = vpop.f32.mrf.mxu0
      %v1646 = vadd.f32 0.0, %v1645
      %v1647 = vpop.f32.mrf.mxu0
      %v1648 = vpop.f32.mrf.mxu0
      %v1649 = vadd.f32 0.0, %v1648
      %v1650 = vpop.f32.mrf.mxu0
      %1651 = vmatprep.mubr.bf16.mxu0 0
      %1652 = vmatmul.mubr.bf16.gmra.mxu0 %v1532
      %v1653 = vpop.f32.mrf.mxu0
      %v1654 = vadd.f32 0.0, %v1653
      %v1655 = vpop.f32.mrf.mxu0
      %v1656 = vpop.f32.mrf.mxu0
      %v1657 = vadd.f32 0.0, %v1656
      %v1658 = vpop.f32.mrf.mxu0
      %1659 = vmatprep.mubr.bf16.mxu0 0
      %1660 = vmatmul.mubr.bf16.gmra.mxu0 %v1533
      %v1661 = vpop.f32.mrf.mxu0
      %v1662 = vadd.f32 0.0, %v1661
      %v1663 = vpop.f32.mrf.mxu0
      %v1664 = vpop.f32.mrf.mxu0
      %v1665 = vadd.f32 0.0, %v1664
      %v1666 = vpop.f32.mrf.mxu0
      %1667 = vmatprep.mubr.bf16.mxu0 0
      %1668 = vmatmul.mubr.bf16.gmra.mxu0 %v1534
      %v1669 = vpop.f32.mrf.mxu0
      %v1670 = vadd.f32 0.0, %v1669
      %v1671 = vpop.f32.mrf.mxu0
      %v1672 = vpop.f32.mrf.mxu0
      %v1673 = vadd.f32 0.0, %v1672
      %v1674 = vpop.f32.mrf.mxu0
      %1675 = vmatprep.mubr.bf16.mxu0 0
      %1676 = vmatmul.mubr.bf16.gmra.mxu0 %v1535
      %v1677 = vpop.f32.mrf.mxu0
      %v1678 = vadd.f32 0.0, %v1677
      %v1679 = vpop.f32.mrf.mxu0
      %v1680 = vpop.f32.mrf.mxu0
      %v1681 = vadd.f32 0.0, %v1680
      %v1682 = vpop.f32.mrf.mxu0
      %1683 = vmatprep.mubr.bf16.mxu0 0
      %1684 = vmatmul.mubr.bf16.gmra.mxu0 %v1536
      %v1685 = vpop.f32.mrf.mxu0
      %v1686 = vadd.f32 0.0, %v1685
      %v1687 = vpop.f32.mrf.mxu0
      %v1688 = vpop.f32.mrf.mxu0
      %v1689 = vadd.f32 0.0, %v1688
      %v1690 = vpop.f32.mrf.mxu0
      %1691 = vmatprep.mubr.bf16.mxu0 0
      %1692 = vmatmul.mubr.bf16.gmra.mxu0 %v1537
      %v1693 = vpop.f32.mrf.mxu0
      %v1694 = vadd.f32 0.0, %v1693
      %v1695 = vpop.f32.mrf.mxu0
      %v1696 = vpop.f32.mrf.mxu0
      %v1697 = vadd.f32 0.0, %v1696
      %v1698 = vpop.f32.mrf.mxu0
      %1699 = vmatprep.mubr.bf16.mxu0 0
      %1700 = vmatmul.mubr.bf16.gmra.mxu0 %v1538
      %v1701 = vpop.f32.mrf.mxu0
      %v1702 = vadd.f32 0.0, %v1701
      %v1703 = vpop.f32.mrf.mxu0
      %v1704 = vpop.f32.mrf.mxu0
      %v1705 = vadd.f32 0.0, %v1704
      %v1706 = vpop.f32.mrf.mxu0
      %1707 = vmatprep.mubr.bf16.mxu0 0
      %1708 = vmatmul.mubr.bf16.gmra.mxu0 %v1539
      %v1709 = vpop.f32.mrf.mxu0
      %v1710 = vadd.f32 0.0, %v1709
      %v1711 = vpop.f32.mrf.mxu0
      %v1712 = vpop.f32.mrf.mxu0
      %v1713 = vadd.f32 0.0, %v1712
      %v1714 = vpop.f32.mrf.mxu0
      %1715 = vmatprep.mubr.bf16.mxu0 0
      %1716 = vmatmul.mubr.bf16.gmra.mxu0 %v1540
      %v1717 = vpop.f32.mrf.mxu0
      %v1718 = vadd.f32 0.0, %v1717
      %v1719 = vpop.f32.mrf.mxu0
      %v1720 = vpop.f32.mrf.mxu0
      %v1721 = vadd.f32 0.0, %v1720
      %v1722 = vpop.f32.mrf.mxu0
      %1723 = vmatprep.mubr.bf16.mxu0 0
      %1724 = vmatmul.mubr.bf16.gmra.mxu0 %v1541
      %v1725 = vpop.f32.mrf.mxu0
      %v1726 = vadd.f32 0.0, %v1725
      %v1727 = vpop.f32.mrf.mxu0
      %v1728 = vpop.f32.mrf.mxu0
      %v1729 = vadd.f32 0.0, %v1728
      %v1730 = vpop.f32.mrf.mxu0
      %1731 = vmatprep.mubr.bf16.mxu0 0
      %1732 = vmatmul.mubr.bf16.gmra.mxu0 %v1542
      %v1733 = vpop.f32.mrf.mxu0
      %v1734 = vadd.f32 0.0, %v1733
      %v1735 = vpop.f32.mrf.mxu0
      %v1736 = vpop.f32.mrf.mxu0
      %v1737 = vadd.f32 0.0, %v1736
      %v1738 = vpop.f32.mrf.mxu0
      %1739 = vmatprep.mubr.bf16.mxu0 0
      %1740 = vmatmul.mubr.bf16.gmra.mxu0 %v1543
      %v1741 = vpop.f32.mrf.mxu0
      %v1742 = vadd.f32 0.0, %v1741
      %v1743 = vpop.f32.mrf.mxu0
      %v1744 = vpop.f32.mrf.mxu0
      %v1745 = vadd.f32 0.0, %v1744
      %v1746 = vpop.f32.mrf.mxu0
      %1747 = vmatprep.mubr.bf16.mxu0 0
      %1748 = vmatmul.mubr.bf16.gmra.mxu0 %v1544
      %v1749 = vpop.f32.mrf.mxu0
      %v1750 = vadd.f32 0.0, %v1749
      %v1751 = vpop.f32.mrf.mxu0
      %v1752 = vpop.f32.mrf.mxu0
      %v1753 = vadd.f32 0.0, %v1752
      %v1754 = vpop.f32.mrf.mxu0
      %1755 = vmatprep.mubr.bf16.mxu0 0
      %1756 = vmatmul.mubr.bf16.gmra.mxu0 %v1545
      %v1757 = vpop.f32.mrf.mxu0
      %v1758 = vadd.f32 0.0, %v1757
      %v1759 = vpop.f32.mrf.mxu0
      %v1760 = vpop.f32.mrf.mxu0
      %v1761 = vadd.f32 0.0, %v1760
      %v1762 = vpop.f32.mrf.mxu0
      %1763 = vmatprep.mubr.bf16.mxu0 0
      %1764 = vmatmul.mubr.bf16.gmra.mxu0 %v1546
      %v1765 = vpop.f32.mrf.mxu0
      %v1766 = vadd.f32 0.0, %v1765
      %v1767 = vpop.f32.mrf.mxu0
      %v1768 = vpop.f32.mrf.mxu0
      %v1769 = vadd.f32 0.0, %v1768
      %v1770 = vpop.f32.mrf.mxu0
      %1771 = vdwg.mxu0
      %v1772 = vadd.f32 %v1193, %v1646
      %v1773 = vadd.f32 %v1196, %v1649
      %v1774 = vadd.f32 %v1201, %v1654
      %v1775 = vadd.f32 %v1204, %v1657
      %v1776 = vadd.f32 %v1209, %v1662
      %v1777 = vadd.f32 %v1212, %v1665
      %v1778 = vadd.f32 %v1217, %v1670
      %v1779 = vadd.f32 %v1220, %v1673
      %v1780 = vadd.f32 %v1225, %v1678
      %v1781 = vadd.f32 %v1228, %v1681
      %v1782 = vadd.f32 %v1233, %v1686
      %v1783 = vadd.f32 %v1236, %v1689
      %v1784 = vadd.f32 %v1241, %v1694
      %v1785 = vadd.f32 %v1244, %v1697
      %v1786 = vadd.f32 %v1249, %v1702
      %v1787 = vadd.f32 %v1252, %v1705
      %v1788 = vadd.f32 %v1257, %v1710
      %v1789 = vadd.f32 %v1260, %v1713
      %v1790 = vadd.f32 %v1265, %v1718
      %v1791 = vadd.f32 %v1268, %v1721
      %v1792 = vadd.f32 %v1273, %v1726
      %v1793 = vadd.f32 %v1276, %v1729
      %v1794 = vadd.f32 %v1281, %v1734
      %v1795 = vadd.f32 %v1284, %v1737
      %v1796 = vadd.f32 %v1289, %v1742
      %v1797 = vadd.f32 %v1292, %v1745
      %v1798 = vadd.f32 %v1297, %v1750
      %v1799 = vadd.f32 %v1300, %v1753
      %v1800 = vadd.f32 %v1305, %v1758
      %v1801 = vadd.f32 %v1308, %v1761
      %v1802 = vadd.f32 %v1313, %v1766
      %v1803 = vadd.f32 %v1316, %v1769
      %s1804 = scalar_lea.vmem %s261, 12
      %v1805 = vld [vmem:[%s1804] sm:$0xf]
      %v1806 = vld [vmem:[%s1804 + $0x4] sm:$0xf]
      %v1807 = vld [vmem:[%s1804 + $0xc] sm:$0xf]
      %v1808 = vld [vmem:[%s1804 + $0x10] sm:$0xf]
      %v1809 = vld [vmem:[%s1804 + $0x18] sm:$0xf]
      %v1810 = vld [vmem:[%s1804 + $0x1c] sm:$0xf]
      %v1811 = vld [vmem:[%s1804 + $0x24] sm:$0xf]
      %v1812 = vld [vmem:[%s1804 + $0x28] sm:$0xf]
      %v1813 = vld [vmem:[%s1804 + $0x30] sm:$0xf]
      %v1814 = vld [vmem:[%s1804 + $0x34] sm:$0xf]
      %v1815 = vld [vmem:[%s1804 + $0x3c] sm:$0xf]
      %v1816 = vld [vmem:[%s1804 + $0x40] sm:$0xf]
      %v1817 = vld [vmem:[%s1804 + $0x48] sm:$0xf]
      %v1818 = vld [vmem:[%s1804 + $0x4c] sm:$0xf]
      %v1819 = vld [vmem:[%s1804 + $0x54] sm:$0xf]
      %v1820 = vld [vmem:[%s1804 + $0x58] sm:$0xf]
      %v1821 = vld [vmem:[%s1804 + $0x60] sm:$0xf]
      %v1822 = vld [vmem:[%s1804 + $0x64] sm:$0xf]
      %v1823 = vld [vmem:[%s1804 + $0x6c] sm:$0xf]
      %v1824 = vld [vmem:[%s1804 + $0x70] sm:$0xf]
      %v1825 = vld [vmem:[%s1804 + $0x78] sm:$0xf]
      %v1826 = vld [vmem:[%s1804 + $0x7c] sm:$0xf]
      %v1827 = vld [vmem:[%s1804 + $0x84] sm:$0xf]
      %v1828 = vld [vmem:[%s1804 + $0x88] sm:$0xf]
      %v1829 = vld [vmem:[%s1804 + $0x90] sm:$0xf]
      %v1830 = vld [vmem:[%s1804 + $0x94] sm:$0xf]
      %v1831 = vld [vmem:[%s1804 + $0x9c] sm:$0xf]
      %v1832 = vld [vmem:[%s1804 + $0xa0] sm:$0xf]
      %v1833 = vld [vmem:[%s1804 + $0xa8] sm:$0xf]
      %v1834 = vld [vmem:[%s1804 + $0xac] sm:$0xf]
      %v1835 = vld [vmem:[%s1804 + $0xb4] sm:$0xf]
      %v1836 = vld [vmem:[%s1804 + $0xb8] sm:$0xf]
      %s1837 = scalar_lea.vmem %s1, 192
      %v1838 = vld [vmem:[%s1837] sm:$0xf]
      %v1839 = vld [vmem:[%s1837 + $0x4] sm:$0xf]
      %v1840 = vld [vmem:[%s1837 + $0x8] sm:$0xf]
      %v1841 = vld [vmem:[%s1837 + $0xc] sm:$0xf]
      %v1842 = vld [vmem:[%s1837 + $0x10] sm:$0xf]
      %v1843 = vld [vmem:[%s1837 + $0x14] sm:$0xf]
      %v1844 = vld [vmem:[%s1837 + $0x18] sm:$0xf]
      %v1845 = vld [vmem:[%s1837 + $0x1c] sm:$0xf]
      %v1846 = vld [vmem:[%s1837 + $0x20] sm:$0xf]
      %v1847 = vld [vmem:[%s1837 + $0x24] sm:$0xf]
      %v1848 = vld [vmem:[%s1837 + $0x28] sm:$0xf]
      %v1849 = vld [vmem:[%s1837 + $0x2c] sm:$0xf]
      %v1850 = vld [vmem:[%s1837 + $0x30] sm:$0xf]
      %v1851 = vld [vmem:[%s1837 + $0x34] sm:$0xf]
      %v1852 = vld [vmem:[%s1837 + $0x38] sm:$0xf]
      %v1853 = vld [vmem:[%s1837 + $0x3c] sm:$0xf]
      %v1886 = vunpack.c.l.b16 %v1805
      %v1887 = vunpack.c.l.b16 %v1806
      %v1888 = vunpack.c.l.b16 %v1807
      %v1889 = vunpack.c.l.b16 %v1808
      %v1890 = vunpack.c.l.b16 %v1809
      %v1891 = vunpack.c.l.b16 %v1810
      %v1892 = vunpack.c.l.b16 %v1811
      %v1893 = vunpack.c.l.b16 %v1812
      %v1894 = vunpack.c.l.b16 %v1813
      %v1895 = vunpack.c.l.b16 %v1814
      %v1896 = vunpack.c.l.b16 %v1815
      %v1897 = vunpack.c.l.b16 %v1816
      %v1898 = vunpack.c.l.b16 %v1817
      %v1899 = vunpack.c.l.b16 %v1818
      %v1900 = vunpack.c.l.b16 %v1819
      %v1901 = vunpack.c.l.b16 %v1820
      %v1902 = vunpack.c.l.b16 %v1821
      %v1903 = vunpack.c.l.b16 %v1822
      %v1904 = vunpack.c.l.b16 %v1823
      %v1905 = vunpack.c.l.b16 %v1824
      %v1906 = vunpack.c.l.b16 %v1825
      %v1907 = vunpack.c.l.b16 %v1826
      %v1908 = vunpack.c.l.b16 %v1827
      %v1909 = vunpack.c.l.b16 %v1828
      %v1910 = vunpack.c.l.b16 %v1829
      %v1911 = vunpack.c.l.b16 %v1830
      %v1912 = vunpack.c.l.b16 %v1831
      %v1913 = vunpack.c.l.b16 %v1832
      %v1914 = vunpack.c.l.b16 %v1833
      %v1915 = vunpack.c.l.b16 %v1834
      %v1916 = vunpack.c.l.b16 %v1835
      %v1917 = vunpack.c.l.b16 %v1836
      %v1918 = vpack.c.b16 %v1887, %v1886
      %v1919 = vpack.c.b16 %v1889, %v1888
      %v1920 = vpack.c.b16 %v1891, %v1890
      %v1921 = vpack.c.b16 %v1893, %v1892
      %v1922 = vpack.c.b16 %v1895, %v1894
      %v1923 = vpack.c.b16 %v1897, %v1896
      %v1924 = vpack.c.b16 %v1899, %v1898
      %v1925 = vpack.c.b16 %v1901, %v1900
      %v1926 = vpack.c.b16 %v1903, %v1902
      %v1927 = vpack.c.b16 %v1905, %v1904
      %v1928 = vpack.c.b16 %v1907, %v1906
      %v1929 = vpack.c.b16 %v1909, %v1908
      %v1930 = vpack.c.b16 %v1911, %v1910
      %v1931 = vpack.c.b16 %v1913, %v1912
      %v1932 = vpack.c.b16 %v1915, %v1914
      %v1933 = vpack.c.b16 %v1917, %v1916
      %v1966 = vunpack.c.l.b16 %v1838
      %v1967 = vunpack.c.l.b16 %v1839
      %v1968 = vunpack.c.l.b16 %v1840
      %v1969 = vunpack.c.l.b16 %v1841
      %v1970 = vunpack.c.l.b16 %v1842
      %v1971 = vunpack.c.l.b16 %v1843
      %v1972 = vunpack.c.l.b16 %v1844
      %v1973 = vunpack.c.l.b16 %v1845
      %v1974 = vunpack.c.l.b16 %v1846
      %v1975 = vunpack.c.l.b16 %v1847
      %v1976 = vunpack.c.l.b16 %v1848
      %v1977 = vunpack.c.l.b16 %v1849
      %v1978 = vunpack.c.l.b16 %v1850
      %v1979 = vunpack.c.l.b16 %v1851
      %v1980 = vunpack.c.l.b16 %v1852
      %v1981 = vunpack.c.l.b16 %v1853
      %v1982 = vpack.c.b16 %v1967, %v1966
      %v1983 = vpack.c.b16 %v1969, %v1968
      %v1984 = vpack.c.b16 %v1971, %v1970
      %v1985 = vpack.c.b16 %v1973, %v1972
      %v1986 = vpack.c.b16 %v1975, %v1974
      %v1987 = vpack.c.b16 %v1977, %v1976
      %v1988 = vpack.c.b16 %v1979, %v1978
      %v1989 = vpack.c.b16 %v1981, %v1980
      %1998 = vmatprep.subr.bf16.mxu0 0
      %1999 = vmatpush1.bf16.msra.mxu0 %v1989
      %2000 = vmatprep.subr.bf16.mxu0 0
      %2001 = vmatpush1.bf16.msra.mxu0 %v1988
      %2002 = vmatprep.subr.bf16.mxu0 0
      %2003 = vmatpush1.bf16.msra.mxu0 %v1987
      %2004 = vmatprep.subr.bf16.mxu0 0
      %2005 = vmatpush1.bf16.msra.mxu0 %v1986
      %2006 = vmatprep.subr.bf16.mxu0 0
      %2007 = vmatpush1.bf16.msra.mxu0 %v1985
      %2008 = vmatprep.subr.bf16.mxu0 0
      %2009 = vmatpush1.bf16.msra.mxu0 %v1984
      %2010 = vmatprep.subr.bf16.mxu0 0
      %2011 = vmatpush1.bf16.msra.mxu0 %v1983
      %2012 = vmatprep.subr.bf16.mxu0 0
      %2013 = vmatpush1.bf16.msra.mxu0 %v1982
      %2014 = vmatprep.subr.bf16.mxu0 0
      %2015 = vmatpush2.bf16.msra.mxu0 0
      %2016 = vmatprep.subr.bf16.mxu0 0
      %2017 = vmatpush2.bf16.msra.mxu0 0
      %2018 = vmatprep.subr.bf16.mxu0 0
      %2019 = vmatpush2.bf16.msra.mxu0 0
      %2020 = vmatprep.subr.bf16.mxu0 0
      %2021 = vmatpush2.bf16.msra.mxu0 0
      %2022 = vmatprep.subr.bf16.mxu0 0
      %2023 = vmatpush2.bf16.msra.mxu0 0
      %2024 = vmatprep.subr.bf16.mxu0 0
      %2025 = vmatpush2.bf16.msra.mxu0 0
      %2026 = vmatprep.subr.bf16.mxu0 0
      %2027 = vmatpush2.bf16.msra.mxu0 0
      %2028 = vmatprep.subr.bf16.mxu0 0
      %2029 = vmatpush2.bf16.msra.mxu0 0
      %2030 = vmatprep.mubr.bf16.mxu0 0
      %2031 = vmatmul.mubr.bf16.gmra.mxu0 %v1918
      %v2032 = vpop.f32.mrf.mxu0
      %v2033 = vadd.f32 0.0, %v2032
      %v2034 = vpop.f32.mrf.mxu0
      %v2035 = vpop.f32.mrf.mxu0
      %v2036 = vadd.f32 0.0, %v2035
      %v2037 = vpop.f32.mrf.mxu0
      %2038 = vmatprep.mubr.bf16.mxu0 0
      %2039 = vmatmul.mubr.bf16.gmra.mxu0 %v1919
      %v2040 = vpop.f32.mrf.mxu0
      %v2041 = vadd.f32 0.0, %v2040
      %v2042 = vpop.f32.mrf.mxu0
      %v2043 = vpop.f32.mrf.mxu0
      %v2044 = vadd.f32 0.0, %v2043
      %v2045 = vpop.f32.mrf.mxu0
      %2046 = vmatprep.mubr.bf16.mxu0 0
      %2047 = vmatmul.mubr.bf16.gmra.mxu0 %v1920
      %v2048 = vpop.f32.mrf.mxu0
      %v2049 = vadd.f32 0.0, %v2048
      %v2050 = vpop.f32.mrf.mxu0
      %v2051 = vpop.f32.mrf.mxu0
      %v2052 = vadd.f32 0.0, %v2051
      %v2053 = vpop.f32.mrf.mxu0
      %2054 = vmatprep.mubr.bf16.mxu0 0
      %2055 = vmatmul.mubr.bf16.gmra.mxu0 %v1921
      %v2056 = vpop.f32.mrf.mxu0
      %v2057 = vadd.f32 0.0, %v2056
      %v2058 = vpop.f32.mrf.mxu0
      %v2059 = vpop.f32.mrf.mxu0
      %v2060 = vadd.f32 0.0, %v2059
      %v2061 = vpop.f32.mrf.mxu0
      %2062 = vmatprep.mubr.bf16.mxu0 0
      %2063 = vmatmul.mubr.bf16.gmra.mxu0 %v1922
      %v2064 = vpop.f32.mrf.mxu0
      %v2065 = vadd.f32 0.0, %v2064
      %v2066 = vpop.f32.mrf.mxu0
      %v2067 = vpop.f32.mrf.mxu0
      %v2068 = vadd.f32 0.0, %v2067
      %v2069 = vpop.f32.mrf.mxu0
      %2070 = vmatprep.mubr.bf16.mxu0 0
      %2071 = vmatmul.mubr.bf16.gmra.mxu0 %v1923
      %v2072 = vpop.f32.mrf.mxu0
      %v2073 = vadd.f32 0.0, %v2072
      %v2074 = vpop.f32.mrf.mxu0
      %v2075 = vpop.f32.mrf.mxu0
      %v2076 = vadd.f32 0.0, %v2075
      %v2077 = vpop.f32.mrf.mxu0
      %2078 = vmatprep.mubr.bf16.mxu0 0
      %2079 = vmatmul.mubr.bf16.gmra.mxu0 %v1924
      %v2080 = vpop.f32.mrf.mxu0
      %v2081 = vadd.f32 0.0, %v2080
      %v2082 = vpop.f32.mrf.mxu0
      %v2083 = vpop.f32.mrf.mxu0
      %v2084 = vadd.f32 0.0, %v2083
      %v2085 = vpop.f32.mrf.mxu0
      %2086 = vmatprep.mubr.bf16.mxu0 0
      %2087 = vmatmul.mubr.bf16.gmra.mxu0 %v1925
      %v2088 = vpop.f32.mrf.mxu0
      %v2089 = vadd.f32 0.0, %v2088
      %v2090 = vpop.f32.mrf.mxu0
      %v2091 = vpop.f32.mrf.mxu0
      %v2092 = vadd.f32 0.0, %v2091
      %v2093 = vpop.f32.mrf.mxu0
      %2094 = vmatprep.mubr.bf16.mxu0 0
      %2095 = vmatmul.mubr.bf16.gmra.mxu0 %v1926
      %v2096 = vpop.f32.mrf.mxu0
      %v2097 = vadd.f32 0.0, %v2096
      %v2098 = vpop.f32.mrf.mxu0
      %v2099 = vpop.f32.mrf.mxu0
      %v2100 = vadd.f32 0.0, %v2099
      %v2101 = vpop.f32.mrf.mxu0
      %2102 = vmatprep.mubr.bf16.mxu0 0
      %2103 = vmatmul.mubr.bf16.gmra.mxu0 %v1927
      %v2104 = vpop.f32.mrf.mxu0
      %v2105 = vadd.f32 0.0, %v2104
      %v2106 = vpop.f32.mrf.mxu0
      %v2107 = vpop.f32.mrf.mxu0
      %v2108 = vadd.f32 0.0, %v2107
      %v2109 = vpop.f32.mrf.mxu0
      %2110 = vmatprep.mubr.bf16.mxu0 0
      %2111 = vmatmul.mubr.bf16.gmra.mxu0 %v1928
      %v2112 = vpop.f32.mrf.mxu0
      %v2113 = vadd.f32 0.0, %v2112
      %v2114 = vpop.f32.mrf.mxu0
      %v2115 = vpop.f32.mrf.mxu0
      %v2116 = vadd.f32 0.0, %v2115
      %v2117 = vpop.f32.mrf.mxu0
      %2118 = vmatprep.mubr.bf16.mxu0 0
      %2119 = vmatmul.mubr.bf16.gmra.mxu0 %v1929
      %v2120 = vpop.f32.mrf.mxu0
      %v2121 = vadd.f32 0.0, %v2120
      %v2122 = vpop.f32.mrf.mxu0
      %v2123 = vpop.f32.mrf.mxu0
      %v2124 = vadd.f32 0.0, %v2123
      %v2125 = vpop.f32.mrf.mxu0
      %2126 = vmatprep.mubr.bf16.mxu0 0
      %2127 = vmatmul.mubr.bf16.gmra.mxu0 %v1930
      %v2128 = vpop.f32.mrf.mxu0
      %v2129 = vadd.f32 0.0, %v2128
      %v2130 = vpop.f32.mrf.mxu0
      %v2131 = vpop.f32.mrf.mxu0
      %v2132 = vadd.f32 0.0, %v2131
      %v2133 = vpop.f32.mrf.mxu0
      %2134 = vmatprep.mubr.bf16.mxu0 0
      %2135 = vmatmul.mubr.bf16.gmra.mxu0 %v1931
      %v2136 = vpop.f32.mrf.mxu0
      %v2137 = vadd.f32 0.0, %v2136
      %v2138 = vpop.f32.mrf.mxu0
      %v2139 = vpop.f32.mrf.mxu0
      %v2140 = vadd.f32 0.0, %v2139
      %v2141 = vpop.f32.mrf.mxu0
      %2142 = vmatprep.mubr.bf16.mxu0 0
      %2143 = vmatmul.mubr.bf16.gmra.mxu0 %v1932
      %v2144 = vpop.f32.mrf.mxu0
      %v2145 = vadd.f32 0.0, %v2144
      %v2146 = vpop.f32.mrf.mxu0
      %v2147 = vpop.f32.mrf.mxu0
      %v2148 = vadd.f32 0.0, %v2147
      %v2149 = vpop.f32.mrf.mxu0
      %2150 = vmatprep.mubr.bf16.mxu0 0
      %2151 = vmatmul.mubr.bf16.gmra.mxu0 %v1933
      %v2152 = vpop.f32.mrf.mxu0
      %v2153 = vadd.f32 0.0, %v2152
      %v2154 = vpop.f32.mrf.mxu0
      %v2155 = vpop.f32.mrf.mxu0
      %v2156 = vadd.f32 0.0, %v2155
      %v2157 = vpop.f32.mrf.mxu0
      %2158 = vdwg.mxu0
      %v2159 = vadd.f32 %v1772, %v2033
      %v2160 = vadd.f32 %v1773, %v2036
      %v2161 = vadd.f32 %v1774, %v2041
      %v2162 = vadd.f32 %v1775, %v2044
      %v2163 = vadd.f32 %v1776, %v2049
      %v2164 = vadd.f32 %v1777, %v2052
      %v2165 = vadd.f32 %v1778, %v2057
      %v2166 = vadd.f32 %v1779, %v2060
      %v2167 = vadd.f32 %v1780, %v2065
      %v2168 = vadd.f32 %v1781, %v2068
      %v2169 = vadd.f32 %v1782, %v2073
      %v2170 = vadd.f32 %v1783, %v2076
      %v2171 = vadd.f32 %v1784, %v2081
      %v2172 = vadd.f32 %v1785, %v2084
      %v2173 = vadd.f32 %v1786, %v2089
      %v2174 = vadd.f32 %v1787, %v2092
      %v2175 = vadd.f32 %v1788, %v2097
      %v2176 = vadd.f32 %v1789, %v2100
      %v2177 = vadd.f32 %v1790, %v2105
      %v2178 = vadd.f32 %v1791, %v2108
      %v2179 = vadd.f32 %v1792, %v2113
      %v2180 = vadd.f32 %v1793, %v2116
      %v2181 = vadd.f32 %v1794, %v2121
      %v2182 = vadd.f32 %v1795, %v2124
      %v2183 = vadd.f32 %v1796, %v2129
      %v2184 = vadd.f32 %v1797, %v2132
      %v2185 = vadd.f32 %v1798, %v2137
      %v2186 = vadd.f32 %v1799, %v2140
      %v2187 = vadd.f32 %v1800, %v2145
      %v2188 = vadd.f32 %v1801, %v2148
      %v2189 = vadd.f32 %v1802, %v2153
      %v2190 = vadd.f32 %v1803, %v2156
      %v2191 = vld [vmem:[%s1804] sm:$0xf]
      %v2192 = vld [vmem:[%s1804 + $0x4] sm:$0xf]
      %v2193 = vld [vmem:[%s1804 + $0x8] sm:$0x1]
      %v2194 = vld [vmem:[%s1804 + $0xc] sm:$0xf]
      %v2195 = vld [vmem:[%s1804 + $0x10] sm:$0xf]
      %v2196 = vld [vmem:[%s1804 + $0x14] sm:$0x1]
      %v2197 = vld [vmem:[%s1804 + $0x18] sm:$0xf]
      %v2198 = vld [vmem:[%s1804 + $0x1c] sm:$0xf]
      %v2199 = vld [vmem:[%s1804 + $0x20] sm:$0x1]
      %v2200 = vld [vmem:[%s1804 + $0x24] sm:$0xf]
      %v2201 = vld [vmem:[%s1804 + $0x28] sm:$0xf]
      %v2202 = vld [vmem:[%s1804 + $0x2c] sm:$0x1]
      %v2203 = vld [vmem:[%s1804 + $0x30] sm:$0xf]
      %v2204 = vld [vmem:[%s1804 + $0x34] sm:$0xf]
      %v2205 = vld [vmem:[%s1804 + $0x38] sm:$0x1]
      %v2206 = vld [vmem:[%s1804 + $0x3c] sm:$0xf]
      %v2207 = vld [vmem:[%s1804 + $0x40] sm:$0xf]
      %v2208 = vld [vmem:[%s1804 + $0x44] sm:$0x1]
      %v2209 = vld [vmem:[%s1804 + $0x48] sm:$0xf]
      %v2210 = vld [vmem:[%s1804 + $0x4c] sm:$0xf]
      %v2211 = vld [vmem:[%s1804 + $0x50] sm:$0x1]
      %v2212 = vld [vmem:[%s1804 + $0x54] sm:$0xf]
      %v2213 = vld [vmem:[%s1804 + $0x58] sm:$0xf]
      %v2214 = vld [vmem:[%s1804 + $0x5c] sm:$0x1]
      %v2215 = vld [vmem:[%s1804 + $0x60] sm:$0xf]
      %v2216 = vld [vmem:[%s1804 + $0x64] sm:$0xf]
      %v2217 = vld [vmem:[%s1804 + $0x68] sm:$0x1]
      %v2218 = vld [vmem:[%s1804 + $0x6c] sm:$0xf]
      %v2219 = vld [vmem:[%s1804 + $0x70] sm:$0xf]
      %v2220 = vld [vmem:[%s1804 + $0x74] sm:$0x1]
      %v2221 = vld [vmem:[%s1804 + $0x78] sm:$0xf]
      %v2222 = vld [vmem:[%s1804 + $0x7c] sm:$0xf]
      %v2223 = vld [vmem:[%s1804 + $0x80] sm:$0x1]
      %v2224 = vld [vmem:[%s1804 + $0x84] sm:$0xf]
      %v2225 = vld [vmem:[%s1804 + $0x88] sm:$0xf]
      %v2226 = vld [vmem:[%s1804 + $0x8c] sm:$0x1]
      %v2227 = vld [vmem:[%s1804 + $0x90] sm:$0xf]
      %v2228 = vld [vmem:[%s1804 + $0x94] sm:$0xf]
      %v2229 = vld [vmem:[%s1804 + $0x98] sm:$0x1]
      %v2230 = vld [vmem:[%s1804 + $0x9c] sm:$0xf]
      %v2231 = vld [vmem:[%s1804 + $0xa0] sm:$0xf]
      %v2232 = vld [vmem:[%s1804 + $0xa4] sm:$0x1]
      %v2233 = vld [vmem:[%s1804 + $0xa8] sm:$0xf]
      %v2234 = vld [vmem:[%s1804 + $0xac] sm:$0xf]
      %v2235 = vld [vmem:[%s1804 + $0xb0] sm:$0x1]
      %v2236 = vld [vmem:[%s1804 + $0xb4] sm:$0xf]
      %v2237 = vld [vmem:[%s1804 + $0xb8] sm:$0xf]
      %v2238 = vld [vmem:[%s1804 + $0xbc] sm:$0x1]
      %v2240 = vshrl.u32 %v2191, 16
      %v2242 = vrot.slane %v2240, 4
      %v2243 = vshll.u32 %v2191, 16
      %v2245 = vrot.slane %v2243, 5
      %v2246 = vor.u32 %v2242, %v2245
      %v2247 = vrot.slane %v2246, 4
      %v2249 = vshll.u32 %v2192, 16
      %v2251 = vrot.slane %v2249, 5
      %v2252 = vsel %vm339, %v2247, %v2251
      %v2253 = vshrl.u32 %v2192, 16
      %v2255 = vrot.slane %v2253, 4
      %v2256 = vor.u32 %v2255, %v2251
      %v2257 = vrot.slane %v2256, 4
      %v2259 = vshll.u32 %v2193, 16
      %v2261 = vrot.slane %v2259, 5
      %v2262 = vsel %vm339, %v2257, %v2261
      %v2264 = vshrl.u32 %v2194, 16
      %v2266 = vrot.slane %v2264, 4
      %v2267 = vshll.u32 %v2194, 16
      %v2269 = vrot.slane %v2267, 5
      %v2270 = vor.u32 %v2266, %v2269
      %v2271 = vrot.slane %v2270, 4
      %v2273 = vshll.u32 %v2195, 16
      %v2275 = vrot.slane %v2273, 5
      %v2276 = vsel %vm339, %v2271, %v2275
      %v2277 = vshrl.u32 %v2195, 16
      %v2279 = vrot.slane %v2277, 4
      %v2280 = vor.u32 %v2279, %v2275
      %v2281 = vrot.slane %v2280, 4
      %v2283 = vshll.u32 %v2196, 16
      %v2285 = vrot.slane %v2283, 5
      %v2286 = vsel %vm339, %v2281, %v2285
      %v2288 = vshrl.u32 %v2197, 16
      %v2290 = vrot.slane %v2288, 4
      %v2291 = vshll.u32 %v2197, 16
      %v2293 = vrot.slane %v2291, 5
      %v2294 = vor.u32 %v2290, %v2293
      %v2295 = vrot.slane %v2294, 4
      %v2297 = vshll.u32 %v2198, 16
      %v2299 = vrot.slane %v2297, 5
      %v2300 = vsel %vm339, %v2295, %v2299
      %v2301 = vshrl.u32 %v2198, 16
      %v2303 = vrot.slane %v2301, 4
      %v2304 = vor.u32 %v2303, %v2299
      %v2305 = vrot.slane %v2304, 4
      %v2307 = vshll.u32 %v2199, 16
      %v2309 = vrot.slane %v2307, 5
      %v2310 = vsel %vm339, %v2305, %v2309
      %v2312 = vshrl.u32 %v2200, 16
      %v2314 = vrot.slane %v2312, 4
      %v2315 = vshll.u32 %v2200, 16
      %v2317 = vrot.slane %v2315, 5
      %v2318 = vor.u32 %v2314, %v2317
      %v2319 = vrot.slane %v2318, 4
      %v2321 = vshll.u32 %v2201, 16
      %v2323 = vrot.slane %v2321, 5
      %v2324 = vsel %vm339, %v2319, %v2323
      %v2325 = vshrl.u32 %v2201, 16
      %v2327 = vrot.slane %v2325, 4
      %v2328 = vor.u32 %v2327, %v2323
      %v2329 = vrot.slane %v2328, 4
      %v2331 = vshll.u32 %v2202, 16
      %v2333 = vrot.slane %v2331, 5
      %v2334 = vsel %vm339, %v2329, %v2333
      %v2336 = vshrl.u32 %v2203, 16
      %v2338 = vrot.slane %v2336, 4
      %v2339 = vshll.u32 %v2203, 16
      %v2341 = vrot.slane %v2339, 5
      %v2342 = vor.u32 %v2338, %v2341
      %v2343 = vrot.slane %v2342, 4
      %v2345 = vshll.u32 %v2204, 16
      %v2347 = vrot.slane %v2345, 5
      %v2348 = vsel %vm339, %v2343, %v2347
      %v2349 = vshrl.u32 %v2204, 16
      %v2351 = vrot.slane %v2349, 4
      %v2352 = vor.u32 %v2351, %v2347
      %v2353 = vrot.slane %v2352, 4
      %v2355 = vshll.u32 %v2205, 16
      %v2357 = vrot.slane %v2355, 5
      %v2358 = vsel %vm339, %v2353, %v2357
      %v2360 = vshrl.u32 %v2206, 16
      %v2362 = vrot.slane %v2360, 4
      %v2363 = vshll.u32 %v2206, 16
      %v2365 = vrot.slane %v2363, 5
      %v2366 = vor.u32 %v2362, %v2365
      %v2367 = vrot.slane %v2366, 4
      %v2369 = vshll.u32 %v2207, 16
      %v2371 = vrot.slane %v2369, 5
      %v2372 = vsel %vm339, %v2367, %v2371
      %v2373 = vshrl.u32 %v2207, 16
      %v2375 = vrot.slane %v2373, 4
      %v2376 = vor.u32 %v2375, %v2371
      %v2377 = vrot.slane %v2376, 4
      %v2379 = vshll.u32 %v2208, 16
      %v2381 = vrot.slane %v2379, 5
      %v2382 = vsel %vm339, %v2377, %v2381
      %v2384 = vshrl.u32 %v2209, 16
      %v2386 = vrot.slane %v2384, 4
      %v2387 = vshll.u32 %v2209, 16
      %v2389 = vrot.slane %v2387, 5
      %v2390 = vor.u32 %v2386, %v2389
      %v2391 = vrot.slane %v2390, 4
      %v2393 = vshll.u32 %v2210, 16
      %v2395 = vrot.slane %v2393, 5
      %v2396 = vsel %vm339, %v2391, %v2395
      %v2397 = vshrl.u32 %v2210, 16
      %v2399 = vrot.slane %v2397, 4
      %v2400 = vor.u32 %v2399, %v2395
      %v2401 = vrot.slane %v2400, 4
      %v2403 = vshll.u32 %v2211, 16
      %v2405 = vrot.slane %v2403, 5
      %v2406 = vsel %vm339, %v2401, %v2405
      %v2408 = vshrl.u32 %v2212, 16
      %v2410 = vrot.slane %v2408, 4
      %v2411 = vshll.u32 %v2212, 16
      %v2413 = vrot.slane %v2411, 5
      %v2414 = vor.u32 %v2410, %v2413
      %v2415 = vrot.slane %v2414, 4
      %v2417 = vshll.u32 %v2213, 16
      %v2419 = vrot.slane %v2417, 5
      %v2420 = vsel %vm339, %v2415, %v2419
      %v2421 = vshrl.u32 %v2213, 16
      %v2423 = vrot.slane %v2421, 4
      %v2424 = vor.u32 %v2423, %v2419
      %v2425 = vrot.slane %v2424, 4
      %v2427 = vshll.u32 %v2214, 16
      %v2429 = vrot.slane %v2427, 5
      %v2430 = vsel %vm339, %v2425, %v2429
      %v2432 = vshrl.u32 %v2215, 16
      %v2434 = vrot.slane %v2432, 4
      %v2435 = vshll.u32 %v2215, 16
      %v2437 = vrot.slane %v2435, 5
      %v2438 = vor.u32 %v2434, %v2437
      %v2439 = vrot.slane %v2438, 4
      %v2441 = vshll.u32 %v2216, 16
      %v2443 = vrot.slane %v2441, 5
      %v2444 = vsel %vm339, %v2439, %v2443
      %v2445 = vshrl.u32 %v2216, 16
      %v2447 = vrot.slane %v2445, 4
      %v2448 = vor.u32 %v2447, %v2443
      %v2449 = vrot.slane %v2448, 4
      %v2451 = vshll.u32 %v2217, 16
      %v2453 = vrot.slane %v2451, 5
      %v2454 = vsel %vm339, %v2449, %v2453
      %v2456 = vshrl.u32 %v2218, 16
      %v2458 = vrot.slane %v2456, 4
      %v2459 = vshll.u32 %v2218, 16
      %v2461 = vrot.slane %v2459, 5
      %v2462 = vor.u32 %v2458, %v2461
      %v2463 = vrot.slane %v2462, 4
      %v2465 = vshll.u32 %v2219, 16
      %v2467 = vrot.slane %v2465, 5
      %v2468 = vsel %vm339, %v2463, %v2467
      %v2469 = vshrl.u32 %v2219, 16
      %v2471 = vrot.slane %v2469, 4
      %v2472 = vor.u32 %v2471, %v2467
      %v2473 = vrot.slane %v2472, 4
      %v2475 = vshll.u32 %v2220, 16
      %v2477 = vrot.slane %v2475, 5
      %v2478 = vsel %vm339, %v2473, %v2477
      %v2480 = vshrl.u32 %v2221, 16
      %v2482 = vrot.slane %v2480, 4
      %v2483 = vshll.u32 %v2221, 16
      %v2485 = vrot.slane %v2483, 5
      %v2486 = vor.u32 %v2482, %v2485
      %v2487 = vrot.slane %v2486, 4
      %v2489 = vshll.u32 %v2222, 16
      %v2491 = vrot.slane %v2489, 5
      %v2492 = vsel %vm339, %v2487, %v2491
      %v2493 = vshrl.u32 %v2222, 16
      %v2495 = vrot.slane %v2493, 4
      %v2496 = vor.u32 %v2495, %v2491
      %v2497 = vrot.slane %v2496, 4
      %v2499 = vshll.u32 %v2223, 16
      %v2501 = vrot.slane %v2499, 5
      %v2502 = vsel %vm339, %v2497, %v2501
      %v2504 = vshrl.u32 %v2224, 16
      %v2506 = vrot.slane %v2504, 4
      %v2507 = vshll.u32 %v2224, 16
      %v2509 = vrot.slane %v2507, 5
      %v2510 = vor.u32 %v2506, %v2509
      %v2511 = vrot.slane %v2510, 4
      %v2513 = vshll.u32 %v2225, 16
      %v2515 = vrot.slane %v2513, 5
      %v2516 = vsel %vm339, %v2511, %v2515
      %v2517 = vshrl.u32 %v2225, 16
      %v2519 = vrot.slane %v2517, 4
      %v2520 = vor.u32 %v2519, %v2515
      %v2521 = vrot.slane %v2520, 4
      %v2523 = vshll.u32 %v2226, 16
      %v2525 = vrot.slane %v2523, 5
      %v2526 = vsel %vm339, %v2521, %v2525
      %v2528 = vshrl.u32 %v2227, 16
      %v2530 = vrot.slane %v2528, 4
      %v2531 = vshll.u32 %v2227, 16
      %v2533 = vrot.slane %v2531, 5
      %v2534 = vor.u32 %v2530, %v2533
      %v2535 = vrot.slane %v2534, 4
      %v2537 = vshll.u32 %v2228, 16
      %v2539 = vrot.slane %v2537, 5
      %v2540 = vsel %vm339, %v2535, %v2539
      %v2541 = vshrl.u32 %v2228, 16
      %v2543 = vrot.slane %v2541, 4
      %v2544 = vor.u32 %v2543, %v2539
      %v2545 = vrot.slane %v2544, 4
      %v2547 = vshll.u32 %v2229, 16
      %v2549 = vrot.slane %v2547, 5
      %v2550 = vsel %vm339, %v2545, %v2549
      %v2552 = vshrl.u32 %v2230, 16
      %v2554 = vrot.slane %v2552, 4
      %v2555 = vshll.u32 %v2230, 16
      %v2557 = vrot.slane %v2555, 5
      %v2558 = vor.u32 %v2554, %v2557
      %v2559 = vrot.slane %v2558, 4
      %v2561 = vshll.u32 %v2231, 16
      %v2563 = vrot.slane %v2561, 5
      %v2564 = vsel %vm339, %v2559, %v2563
      %v2565 = vshrl.u32 %v2231, 16
      %v2567 = vrot.slane %v2565, 4
      %v2568 = vor.u32 %v2567, %v2563
      %v2569 = vrot.slane %v2568, 4
      %v2571 = vshll.u32 %v2232, 16
      %v2573 = vrot.slane %v2571, 5
      %v2574 = vsel %vm339, %v2569, %v2573
      %v2576 = vshrl.u32 %v2233, 16
      %v2578 = vrot.slane %v2576, 4
      %v2579 = vshll.u32 %v2233, 16
      %v2581 = vrot.slane %v2579, 5
      %v2582 = vor.u32 %v2578, %v2581
      %v2583 = vrot.slane %v2582, 4
      %v2585 = vshll.u32 %v2234, 16
      %v2587 = vrot.slane %v2585, 5
      %v2588 = vsel %vm339, %v2583, %v2587
      %v2589 = vshrl.u32 %v2234, 16
      %v2591 = vrot.slane %v2589, 4
      %v2592 = vor.u32 %v2591, %v2587
      %v2593 = vrot.slane %v2592, 4
      %v2595 = vshll.u32 %v2235, 16
      %v2597 = vrot.slane %v2595, 5
      %v2598 = vsel %vm339, %v2593, %v2597
      %v2600 = vshrl.u32 %v2236, 16
      %v2602 = vrot.slane %v2600, 4
      %v2603 = vshll.u32 %v2236, 16
      %v2605 = vrot.slane %v2603, 5
      %v2606 = vor.u32 %v2602, %v2605
      %v2607 = vrot.slane %v2606, 4
      %v2609 = vshll.u32 %v2237, 16
      %v2611 = vrot.slane %v2609, 5
      %v2612 = vsel %vm339, %v2607, %v2611
      %v2613 = vshrl.u32 %v2237, 16
      %v2615 = vrot.slane %v2613, 4
      %v2616 = vor.u32 %v2615, %v2611
      %v2617 = vrot.slane %v2616, 4
      %v2619 = vshll.u32 %v2238, 16
      %v2621 = vrot.slane %v2619, 5
      %v2622 = vsel %vm339, %v2617, %v2621
      %s2623 = scalar_lea.vmem %s1, 256
      %v2624 = vld [vmem:[%s2623] sm:$0xf]
      %v2625 = vld [vmem:[%s2623 + $0x4] sm:$0xf]
      %v2626 = vld [vmem:[%s2623 + $0x8] sm:$0xf]
      %v2627 = vld [vmem:[%s2623 + $0xc] sm:$0xf]
      %v2628 = vld [vmem:[%s2623 + $0x10] sm:$0xf]
      %v2629 = vld [vmem:[%s2623 + $0x14] sm:$0xf]
      %v2630 = vld [vmem:[%s2623 + $0x18] sm:$0xf]
      %v2631 = vld [vmem:[%s2623 + $0x1c] sm:$0xf]
      %v2632 = vld [vmem:[%s2623 + $0x20] sm:$0xf]
      %v2633 = vld [vmem:[%s2623 + $0x24] sm:$0xf]
      %v2634 = vld [vmem:[%s2623 + $0x28] sm:$0xf]
      %v2635 = vld [vmem:[%s2623 + $0x2c] sm:$0xf]
      %v2636 = vld [vmem:[%s2623 + $0x30] sm:$0xf]
      %v2637 = vld [vmem:[%s2623 + $0x34] sm:$0xf]
      %v2638 = vld [vmem:[%s2623 + $0x38] sm:$0xf]
      %v2639 = vld [vmem:[%s2623 + $0x3c] sm:$0xf]
      %v2640 = vunpack.c.l.b16 %v2252
      %v2641 = vunpack.c.l.b16 %v2262
      %v2642 = vunpack.c.l.b16 %v2276
      %v2643 = vunpack.c.l.b16 %v2286
      %v2644 = vunpack.c.l.b16 %v2300
      %v2645 = vunpack.c.l.b16 %v2310
      %v2646 = vunpack.c.l.b16 %v2324
      %v2647 = vunpack.c.l.b16 %v2334
      %v2648 = vunpack.c.l.b16 %v2348
      %v2649 = vunpack.c.l.b16 %v2358
      %v2650 = vunpack.c.l.b16 %v2372
      %v2651 = vunpack.c.l.b16 %v2382
      %v2652 = vunpack.c.l.b16 %v2396
      %v2653 = vunpack.c.l.b16 %v2406
      %v2654 = vunpack.c.l.b16 %v2420
      %v2655 = vunpack.c.l.b16 %v2430
      %v2656 = vunpack.c.l.b16 %v2444
      %v2657 = vunpack.c.l.b16 %v2454
      %v2658 = vunpack.c.l.b16 %v2468
      %v2659 = vunpack.c.l.b16 %v2478
      %v2660 = vunpack.c.l.b16 %v2492
      %v2661 = vunpack.c.l.b16 %v2502
      %v2662 = vunpack.c.l.b16 %v2516
      %v2663 = vunpack.c.l.b16 %v2526
      %v2664 = vunpack.c.l.b16 %v2540
      %v2665 = vunpack.c.l.b16 %v2550
      %v2666 = vunpack.c.l.b16 %v2564
      %v2667 = vunpack.c.l.b16 %v2574
      %v2668 = vunpack.c.l.b16 %v2588
      %v2669 = vunpack.c.l.b16 %v2598
      %v2670 = vunpack.c.l.b16 %v2612
      %v2671 = vunpack.c.l.b16 %v2622
      %v2672 = vpack.c.b16 %v2641, %v2640
      %v2673 = vpack.c.b16 %v2643, %v2642
      %v2674 = vpack.c.b16 %v2645, %v2644
      %v2675 = vpack.c.b16 %v2647, %v2646
      %v2676 = vpack.c.b16 %v2649, %v2648
      %v2677 = vpack.c.b16 %v2651, %v2650
      %v2678 = vpack.c.b16 %v2653, %v2652
      %v2679 = vpack.c.b16 %v2655, %v2654
      %v2680 = vpack.c.b16 %v2657, %v2656
      %v2681 = vpack.c.b16 %v2659, %v2658
      %v2682 = vpack.c.b16 %v2661, %v2660
      %v2683 = vpack.c.b16 %v2663, %v2662
      %v2684 = vpack.c.b16 %v2665, %v2664
      %v2685 = vpack.c.b16 %v2667, %v2666
      %v2686 = vpack.c.b16 %v2669, %v2668
      %v2687 = vpack.c.b16 %v2671, %v2670
      %v2720 = vunpack.c.l.b16 %v2624
      %v2721 = vunpack.c.l.b16 %v2625
      %v2722 = vunpack.c.l.b16 %v2626
      %v2723 = vunpack.c.l.b16 %v2627
      %v2724 = vunpack.c.l.b16 %v2628
      %v2725 = vunpack.c.l.b16 %v2629
      %v2726 = vunpack.c.l.b16 %v2630
      %v2727 = vunpack.c.l.b16 %v2631
      %v2728 = vunpack.c.l.b16 %v2632
      %v2729 = vunpack.c.l.b16 %v2633
      %v2730 = vunpack.c.l.b16 %v2634
      %v2731 = vunpack.c.l.b16 %v2635
      %v2732 = vunpack.c.l.b16 %v2636
      %v2733 = vunpack.c.l.b16 %v2637
      %v2734 = vunpack.c.l.b16 %v2638
      %v2735 = vunpack.c.l.b16 %v2639
      %v2736 = vpack.c.b16 %v2721, %v2720
      %v2737 = vpack.c.b16 %v2723, %v2722
      %v2738 = vpack.c.b16 %v2725, %v2724
      %v2739 = vpack.c.b16 %v2727, %v2726
      %v2740 = vpack.c.b16 %v2729, %v2728
      %v2741 = vpack.c.b16 %v2731, %v2730
      %v2742 = vpack.c.b16 %v2733, %v2732
      %v2743 = vpack.c.b16 %v2735, %v2734
      %2752 = vmatprep.subr.bf16.mxu0 0
      %2753 = vmatpush1.bf16.msra.mxu0 %v2743
      %2754 = vmatprep.subr.bf16.mxu0 0
      %2755 = vmatpush1.bf16.msra.mxu0 %v2742
      %2756 = vmatprep.subr.bf16.mxu0 0
      %2757 = vmatpush1.bf16.msra.mxu0 %v2741
      %2758 = vmatprep.subr.bf16.mxu0 0
      %2759 = vmatpush1.bf16.msra.mxu0 %v2740
      %2760 = vmatprep.subr.bf16.mxu0 0
      %2761 = vmatpush1.bf16.msra.mxu0 %v2739
      %2762 = vmatprep.subr.bf16.mxu0 0
      %2763 = vmatpush1.bf16.msra.mxu0 %v2738
      %2764 = vmatprep.subr.bf16.mxu0 0
      %2765 = vmatpush1.bf16.msra.mxu0 %v2737
      %2766 = vmatprep.subr.bf16.mxu0 0
      %2767 = vmatpush1.bf16.msra.mxu0 %v2736
      %2768 = vmatprep.subr.bf16.mxu0 0
      %2769 = vmatpush2.bf16.msra.mxu0 0
      %2770 = vmatprep.subr.bf16.mxu0 0
      %2771 = vmatpush2.bf16.msra.mxu0 0
      %2772 = vmatprep.subr.bf16.mxu0 0
      %2773 = vmatpush2.bf16.msra.mxu0 0
      %2774 = vmatprep.subr.bf16.mxu0 0
      %2775 = vmatpush2.bf16.msra.mxu0 0
      %2776 = vmatprep.subr.bf16.mxu0 0
      %2777 = vmatpush2.bf16.msra.mxu0 0
      %2778 = vmatprep.subr.bf16.mxu0 0
      %2779 = vmatpush2.bf16.msra.mxu0 0
      %2780 = vmatprep.subr.bf16.mxu0 0
      %2781 = vmatpush2.bf16.msra.mxu0 0
      %2782 = vmatprep.subr.bf16.mxu0 0
      %2783 = vmatpush2.bf16.msra.mxu0 0
      %2784 = vmatprep.mubr.bf16.mxu0 0
      %2785 = vmatmul.mubr.bf16.gmra.mxu0 %v2672
      %v2786 = vpop.f32.mrf.mxu0
      %v2787 = vadd.f32 0.0, %v2786
      %v2788 = vpop.f32.mrf.mxu0
      %v2789 = vpop.f32.mrf.mxu0
      %v2790 = vadd.f32 0.0, %v2789
      %v2791 = vpop.f32.mrf.mxu0
      %2792 = vmatprep.mubr.bf16.mxu0 0
      %2793 = vmatmul.mubr.bf16.gmra.mxu0 %v2673
      %v2794 = vpop.f32.mrf.mxu0
      %v2795 = vadd.f32 0.0, %v2794
      %v2796 = vpop.f32.mrf.mxu0
      %v2797 = vpop.f32.mrf.mxu0
      %v2798 = vadd.f32 0.0, %v2797
      %v2799 = vpop.f32.mrf.mxu0
      %2800 = vmatprep.mubr.bf16.mxu0 0
      %2801 = vmatmul.mubr.bf16.gmra.mxu0 %v2674
      %v2802 = vpop.f32.mrf.mxu0
      %v2803 = vadd.f32 0.0, %v2802
      %v2804 = vpop.f32.mrf.mxu0
      %v2805 = vpop.f32.mrf.mxu0
      %v2806 = vadd.f32 0.0, %v2805
      %v2807 = vpop.f32.mrf.mxu0
      %2808 = vmatprep.mubr.bf16.mxu0 0
      %2809 = vmatmul.mubr.bf16.gmra.mxu0 %v2675
      %v2810 = vpop.f32.mrf.mxu0
      %v2811 = vadd.f32 0.0, %v2810
      %v2812 = vpop.f32.mrf.mxu0
      %v2813 = vpop.f32.mrf.mxu0
      %v2814 = vadd.f32 0.0, %v2813
      %v2815 = vpop.f32.mrf.mxu0
      %2816 = vmatprep.mubr.bf16.mxu0 0
      %2817 = vmatmul.mubr.bf16.gmra.mxu0 %v2676
      %v2818 = vpop.f32.mrf.mxu0
      %v2819 = vadd.f32 0.0, %v2818
      %v2820 = vpop.f32.mrf.mxu0
      %v2821 = vpop.f32.mrf.mxu0
      %v2822 = vadd.f32 0.0, %v2821
      %v2823 = vpop.f32.mrf.mxu0
      %2824 = vmatprep.mubr.bf16.mxu0 0
      %2825 = vmatmul.mubr.bf16.gmra.mxu0 %v2677
      %v2826 = vpop.f32.mrf.mxu0
      %v2827 = vadd.f32 0.0, %v2826
      %v2828 = vpop.f32.mrf.mxu0
      %v2829 = vpop.f32.mrf.mxu0
      %v2830 = vadd.f32 0.0, %v2829
      %v2831 = vpop.f32.mrf.mxu0
      %2832 = vmatprep.mubr.bf16.mxu0 0
      %2833 = vmatmul.mubr.bf16.gmra.mxu0 %v2678
      %v2834 = vpop.f32.mrf.mxu0
      %v2835 = vadd.f32 0.0, %v2834
      %v2836 = vpop.f32.mrf.mxu0
      %v2837 = vpop.f32.mrf.mxu0
      %v2838 = vadd.f32 0.0, %v2837
      %v2839 = vpop.f32.mrf.mxu0
      %2840 = vmatprep.mubr.bf16.mxu0 0
      %2841 = vmatmul.mubr.bf16.gmra.mxu0 %v2679
      %v2842 = vpop.f32.mrf.mxu0
      %v2843 = vadd.f32 0.0, %v2842
      %v2844 = vpop.f32.mrf.mxu0
      %v2845 = vpop.f32.mrf.mxu0
      %v2846 = vadd.f32 0.0, %v2845
      %v2847 = vpop.f32.mrf.mxu0
      %2848 = vmatprep.mubr.bf16.mxu0 0
      %2849 = vmatmul.mubr.bf16.gmra.mxu0 %v2680
      %v2850 = vpop.f32.mrf.mxu0
      %v2851 = vadd.f32 0.0, %v2850
      %v2852 = vpop.f32.mrf.mxu0
      %v2853 = vpop.f32.mrf.mxu0
      %v2854 = vadd.f32 0.0, %v2853
      %v2855 = vpop.f32.mrf.mxu0
      %2856 = vmatprep.mubr.bf16.mxu0 0
      %2857 = vmatmul.mubr.bf16.gmra.mxu0 %v2681
      %v2858 = vpop.f32.mrf.mxu0
      %v2859 = vadd.f32 0.0, %v2858
      %v2860 = vpop.f32.mrf.mxu0
      %v2861 = vpop.f32.mrf.mxu0
      %v2862 = vadd.f32 0.0, %v2861
      %v2863 = vpop.f32.mrf.mxu0
      %2864 = vmatprep.mubr.bf16.mxu0 0
      %2865 = vmatmul.mubr.bf16.gmra.mxu0 %v2682
      %v2866 = vpop.f32.mrf.mxu0
      %v2867 = vadd.f32 0.0, %v2866
      %v2868 = vpop.f32.mrf.mxu0
      %v2869 = vpop.f32.mrf.mxu0
      %v2870 = vadd.f32 0.0, %v2869
      %v2871 = vpop.f32.mrf.mxu0
      %2872 = vmatprep.mubr.bf16.mxu0 0
      %2873 = vmatmul.mubr.bf16.gmra.mxu0 %v2683
      %v2874 = vpop.f32.mrf.mxu0
      %v2875 = vadd.f32 0.0, %v2874
      %v2876 = vpop.f32.mrf.mxu0
      %v2877 = vpop.f32.mrf.mxu0
      %v2878 = vadd.f32 0.0, %v2877
      %v2879 = vpop.f32.mrf.mxu0
      %2880 = vmatprep.mubr.bf16.mxu0 0
      %2881 = vmatmul.mubr.bf16.gmra.mxu0 %v2684
      %v2882 = vpop.f32.mrf.mxu0
      %v2883 = vadd.f32 0.0, %v2882
      %v2884 = vpop.f32.mrf.mxu0
      %v2885 = vpop.f32.mrf.mxu0
      %v2886 = vadd.f32 0.0, %v2885
      %v2887 = vpop.f32.mrf.mxu0
      %2888 = vmatprep.mubr.bf16.mxu0 0
      %2889 = vmatmul.mubr.bf16.gmra.mxu0 %v2685
      %v2890 = vpop.f32.mrf.mxu0
      %v2891 = vadd.f32 0.0, %v2890
      %v2892 = vpop.f32.mrf.mxu0
      %v2893 = vpop.f32.mrf.mxu0
      %v2894 = vadd.f32 0.0, %v2893
      %v2895 = vpop.f32.mrf.mxu0
      %2896 = vmatprep.mubr.bf16.mxu0 0
      %2897 = vmatmul.mubr.bf16.gmra.mxu0 %v2686
      %v2898 = vpop.f32.mrf.mxu0
      %v2899 = vadd.f32 0.0, %v2898
      %v2900 = vpop.f32.mrf.mxu0
      %v2901 = vpop.f32.mrf.mxu0
      %v2902 = vadd.f32 0.0, %v2901
      %v2903 = vpop.f32.mrf.mxu0
      %2904 = vmatprep.mubr.bf16.mxu0 0
      %2905 = vmatmul.mubr.bf16.gmra.mxu0 %v2687
      %v2906 = vpop.f32.mrf.mxu0
      %v2907 = vadd.f32 0.0, %v2906
      %v2908 = vpop.f32.mrf.mxu0
      %v2909 = vpop.f32.mrf.mxu0
      %v2910 = vadd.f32 0.0, %v2909
      %v2911 = vpop.f32.mrf.mxu0
      %2912 = vdwg.mxu0
      %v2913 = vadd.f32 %v2159, %v2787
      %v2914 = vadd.f32 %v2160, %v2790
      %v2915 = vadd.f32 %v2161, %v2795
      %v2916 = vadd.f32 %v2162, %v2798
      %v2917 = vadd.f32 %v2163, %v2803
      %v2918 = vadd.f32 %v2164, %v2806
      %v2919 = vadd.f32 %v2165, %v2811
      %v2920 = vadd.f32 %v2166, %v2814
      %v2921 = vadd.f32 %v2167, %v2819
      %v2922 = vadd.f32 %v2168, %v2822
      %v2923 = vadd.f32 %v2169, %v2827
      %v2924 = vadd.f32 %v2170, %v2830
      %v2925 = vadd.f32 %v2171, %v2835
      %v2926 = vadd.f32 %v2172, %v2838
      %v2927 = vadd.f32 %v2173, %v2843
      %v2928 = vadd.f32 %v2174, %v2846
      %v2929 = vadd.f32 %v2175, %v2851
      %v2930 = vadd.f32 %v2176, %v2854
      %v2931 = vadd.f32 %v2177, %v2859
      %v2932 = vadd.f32 %v2178, %v2862
      %v2933 = vadd.f32 %v2179, %v2867
      %v2934 = vadd.f32 %v2180, %v2870
      %v2935 = vadd.f32 %v2181, %v2875
      %v2936 = vadd.f32 %v2182, %v2878
      %v2937 = vadd.f32 %v2183, %v2883
      %v2938 = vadd.f32 %v2184, %v2886
      %v2939 = vadd.f32 %v2185, %v2891
      %v2940 = vadd.f32 %v2186, %v2894
      %v2941 = vadd.f32 %v2187, %v2899
      %v2942 = vadd.f32 %v2188, %v2902
      %v2943 = vadd.f32 %v2189, %v2907
      %v2944 = vadd.f32 %v2190, %v2910
      %v2945 = vld [vmem:[%s1804] sm:$0xe]
      %v2946 = vld [vmem:[%s1804 + $0xc] sm:$0xe]
      %v2947 = vld [vmem:[%s1804 + $0x18] sm:$0xe]
      %v2948 = vld [vmem:[%s1804 + $0x24] sm:$0xe]
      %v2949 = vld [vmem:[%s1804 + $0x30] sm:$0xe]
      %v2950 = vld [vmem:[%s1804 + $0x3c] sm:$0xe]
      %v2951 = vld [vmem:[%s1804 + $0x48] sm:$0xe]
      %v2952 = vld [vmem:[%s1804 + $0x54] sm:$0xe]
      %v2953 = vld [vmem:[%s1804 + $0x60] sm:$0xe]
      %v2954 = vld [vmem:[%s1804 + $0x6c] sm:$0xe]
      %v2955 = vld [vmem:[%s1804 + $0x78] sm:$0xe]
      %v2956 = vld [vmem:[%s1804 + $0x84] sm:$0xe]
      %v2957 = vld [vmem:[%s1804 + $0x90] sm:$0xe]
      %v2958 = vld [vmem:[%s1804 + $0x9c] sm:$0xe]
      %v2959 = vld [vmem:[%s1804 + $0xa8] sm:$0xe]
      %v2960 = vld [vmem:[%s1804 + $0xb4] sm:$0xe]
      %v3009 = vrot.slane %v2945, 5
      %v3010 = vrot.slane %v3009, 4
      %v3011 = vrot.slane %v2192, 5
      %v3012 = vsel %vm1369, %v3010, %v3011
      %v3013 = vrot.slane %v3011, 4
      %v3014 = vrot.slane %v2193, 5
      %v3015 = vsel %vm1369, %v3013, %v3014
      %v3016 = vrot.slane %v2946, 5
      %v3017 = vrot.slane %v3016, 4
      %v3018 = vrot.slane %v2195, 5
      %v3019 = vsel %vm1369, %v3017, %v3018
      %v3020 = vrot.slane %v3018, 4
      %v3021 = vrot.slane %v2196, 5
      %v3022 = vsel %vm1369, %v3020, %v3021
      %v3023 = vrot.slane %v2947, 5
      %v3024 = vrot.slane %v3023, 4
      %v3025 = vrot.slane %v2198, 5
      %v3026 = vsel %vm1369, %v3024, %v3025
      %v3027 = vrot.slane %v3025, 4
      %v3028 = vrot.slane %v2199, 5
      %v3029 = vsel %vm1369, %v3027, %v3028
      %v3030 = vrot.slane %v2948, 5
      %v3031 = vrot.slane %v3030, 4
      %v3032 = vrot.slane %v2201, 5
      %v3033 = vsel %vm1369, %v3031, %v3032
      %v3034 = vrot.slane %v3032, 4
      %v3035 = vrot.slane %v2202, 5
      %v3036 = vsel %vm1369, %v3034, %v3035
      %v3037 = vrot.slane %v2949, 5
      %v3038 = vrot.slane %v3037, 4
      %v3039 = vrot.slane %v2204, 5
      %v3040 = vsel %vm1369, %v3038, %v3039
      %v3041 = vrot.slane %v3039, 4
      %v3042 = vrot.slane %v2205, 5
      %v3043 = vsel %vm1369, %v3041, %v3042
      %v3044 = vrot.slane %v2950, 5
      %v3045 = vrot.slane %v3044, 4
      %v3046 = vrot.slane %v2207, 5
      %v3047 = vsel %vm1369, %v3045, %v3046
      %v3048 = vrot.slane %v3046, 4
      %v3049 = vrot.slane %v2208, 5
      %v3050 = vsel %vm1369, %v3048, %v3049
      %v3051 = vrot.slane %v2951, 5
      %v3052 = vrot.slane %v3051, 4
      %v3053 = vrot.slane %v2210, 5
      %v3054 = vsel %vm1369, %v3052, %v3053
      %v3055 = vrot.slane %v3053, 4
      %v3056 = vrot.slane %v2211, 5
      %v3057 = vsel %vm1369, %v3055, %v3056
      %v3058 = vrot.slane %v2952, 5
      %v3059 = vrot.slane %v3058, 4
      %v3060 = vrot.slane %v2213, 5
      %v3061 = vsel %vm1369, %v3059, %v3060
      %v3062 = vrot.slane %v3060, 4
      %v3063 = vrot.slane %v2214, 5
      %v3064 = vsel %vm1369, %v3062, %v3063
      %v3065 = vrot.slane %v2953, 5
      %v3066 = vrot.slane %v3065, 4
      %v3067 = vrot.slane %v2216, 5
      %v3068 = vsel %vm1369, %v3066, %v3067
      %v3069 = vrot.slane %v3067, 4
      %v3070 = vrot.slane %v2217, 5
      %v3071 = vsel %vm1369, %v3069, %v3070
      %v3072 = vrot.slane %v2954, 5
      %v3073 = vrot.slane %v3072, 4
      %v3074 = vrot.slane %v2219, 5
      %v3075 = vsel %vm1369, %v3073, %v3074
      %v3076 = vrot.slane %v3074, 4
      %v3077 = vrot.slane %v2220, 5
      %v3078 = vsel %vm1369, %v3076, %v3077
      %v3079 = vrot.slane %v2955, 5
      %v3080 = vrot.slane %v3079, 4
      %v3081 = vrot.slane %v2222, 5
      %v3082 = vsel %vm1369, %v3080, %v3081
      %v3083 = vrot.slane %v3081, 4
      %v3084 = vrot.slane %v2223, 5
      %v3085 = vsel %vm1369, %v3083, %v3084
      %v3086 = vrot.slane %v2956, 5
      %v3087 = vrot.slane %v3086, 4
      %v3088 = vrot.slane %v2225, 5
      %v3089 = vsel %vm1369, %v3087, %v3088
      %v3090 = vrot.slane %v3088, 4
      %v3091 = vrot.slane %v2226, 5
      %v3092 = vsel %vm1369, %v3090, %v3091
      %v3093 = vrot.slane %v2957, 5
      %v3094 = vrot.slane %v3093, 4
      %v3095 = vrot.slane %v2228, 5
      %v3096 = vsel %vm1369, %v3094, %v3095
      %v3097 = vrot.slane %v3095, 4
      %v3098 = vrot.slane %v2229, 5
      %v3099 = vsel %vm1369, %v3097, %v3098
      %v3100 = vrot.slane %v2958, 5
      %v3101 = vrot.slane %v3100, 4
      %v3102 = vrot.slane %v2231, 5
      %v3103 = vsel %vm1369, %v3101, %v3102
      %v3104 = vrot.slane %v3102, 4
      %v3105 = vrot.slane %v2232, 5
      %v3106 = vsel %vm1369, %v3104, %v3105
      %v3107 = vrot.slane %v2959, 5
      %v3108 = vrot.slane %v3107, 4
      %v3109 = vrot.slane %v2234, 5
      %v3110 = vsel %vm1369, %v3108, %v3109
      %v3111 = vrot.slane %v3109, 4
      %v3112 = vrot.slane %v2235, 5
      %v3113 = vsel %vm1369, %v3111, %v3112
      %v3114 = vrot.slane %v2960, 5
      %v3115 = vrot.slane %v3114, 4
      %v3116 = vrot.slane %v2237, 5
      %v3117 = vsel %vm1369, %v3115, %v3116
      %v3118 = vrot.slane %v3116, 4
      %v3119 = vrot.slane %v2238, 5
      %v3120 = vsel %vm1369, %v3118, %v3119
      %s3121 = scalar_lea.vmem %s1, 320
      %v3122 = vld [vmem:[%s3121] sm:$0xf]
      %v3123 = vld [vmem:[%s3121 + $0x4] sm:$0xf]
      %v3124 = vld [vmem:[%s3121 + $0x8] sm:$0xf]
      %v3125 = vld [vmem:[%s3121 + $0xc] sm:$0xf]
      %v3126 = vld [vmem:[%s3121 + $0x10] sm:$0xf]
      %v3127 = vld [vmem:[%s3121 + $0x14] sm:$0xf]
      %v3128 = vld [vmem:[%s3121 + $0x18] sm:$0xf]
      %v3129 = vld [vmem:[%s3121 + $0x1c] sm:$0xf]
      %v3130 = vld [vmem:[%s3121 + $0x20] sm:$0xf]
      %v3131 = vld [vmem:[%s3121 + $0x24] sm:$0xf]
      %v3132 = vld [vmem:[%s3121 + $0x28] sm:$0xf]
      %v3133 = vld [vmem:[%s3121 + $0x2c] sm:$0xf]
      %v3134 = vld [vmem:[%s3121 + $0x30] sm:$0xf]
      %v3135 = vld [vmem:[%s3121 + $0x34] sm:$0xf]
      %v3136 = vld [vmem:[%s3121 + $0x38] sm:$0xf]
      %v3137 = vld [vmem:[%s3121 + $0x3c] sm:$0xf]
      %v3138 = vunpack.c.l.b16 %v3012
      %v3139 = vunpack.c.l.b16 %v3015
      %v3140 = vunpack.c.l.b16 %v3019
      %v3141 = vunpack.c.l.b16 %v3022
      %v3142 = vunpack.c.l.b16 %v3026
      %v3143 = vunpack.c.l.b16 %v3029
      %v3144 = vunpack.c.l.b16 %v3033
      %v3145 = vunpack.c.l.b16 %v3036
      %v3146 = vunpack.c.l.b16 %v3040
      %v3147 = vunpack.c.l.b16 %v3043
      %v3148 = vunpack.c.l.b16 %v3047
      %v3149 = vunpack.c.l.b16 %v3050
      %v3150 = vunpack.c.l.b16 %v3054
      %v3151 = vunpack.c.l.b16 %v3057
      %v3152 = vunpack.c.l.b16 %v3061
      %v3153 = vunpack.c.l.b16 %v3064
      %v3154 = vunpack.c.l.b16 %v3068
      %v3155 = vunpack.c.l.b16 %v3071
      %v3156 = vunpack.c.l.b16 %v3075
      %v3157 = vunpack.c.l.b16 %v3078
      %v3158 = vunpack.c.l.b16 %v3082
      %v3159 = vunpack.c.l.b16 %v3085
      %v3160 = vunpack.c.l.b16 %v3089
      %v3161 = vunpack.c.l.b16 %v3092
      %v3162 = vunpack.c.l.b16 %v3096
      %v3163 = vunpack.c.l.b16 %v3099
      %v3164 = vunpack.c.l.b16 %v3103
      %v3165 = vunpack.c.l.b16 %v3106
      %v3166 = vunpack.c.l.b16 %v3110
      %v3167 = vunpack.c.l.b16 %v3113
      %v3168 = vunpack.c.l.b16 %v3117
      %v3169 = vunpack.c.l.b16 %v3120
      %v3170 = vpack.c.b16 %v3139, %v3138
      %v3171 = vpack.c.b16 %v3141, %v3140
      %v3172 = vpack.c.b16 %v3143, %v3142
      %v3173 = vpack.c.b16 %v3145, %v3144
      %v3174 = vpack.c.b16 %v3147, %v3146
      %v3175 = vpack.c.b16 %v3149, %v3148
      %v3176 = vpack.c.b16 %v3151, %v3150
      %v3177 = vpack.c.b16 %v3153, %v3152
      %v3178 = vpack.c.b16 %v3155, %v3154
      %v3179 = vpack.c.b16 %v3157, %v3156
      %v3180 = vpack.c.b16 %v3159, %v3158
      %v3181 = vpack.c.b16 %v3161, %v3160
      %v3182 = vpack.c.b16 %v3163, %v3162
      %v3183 = vpack.c.b16 %v3165, %v3164
      %v3184 = vpack.c.b16 %v3167, %v3166
      %v3185 = vpack.c.b16 %v3169, %v3168
      %v3218 = vunpack.c.l.b16 %v3122
      %v3219 = vunpack.c.l.b16 %v3123
      %v3220 = vunpack.c.l.b16 %v3124
      %v3221 = vunpack.c.l.b16 %v3125
      %v3222 = vunpack.c.l.b16 %v3126
      %v3223 = vunpack.c.l.b16 %v3127
      %v3224 = vunpack.c.l.b16 %v3128
      %v3225 = vunpack.c.l.b16 %v3129
      %v3226 = vunpack.c.l.b16 %v3130
      %v3227 = vunpack.c.l.b16 %v3131
      %v3228 = vunpack.c.l.b16 %v3132
      %v3229 = vunpack.c.l.b16 %v3133
      %v3230 = vunpack.c.l.b16 %v3134
      %v3231 = vunpack.c.l.b16 %v3135
      %v3232 = vunpack.c.l.b16 %v3136
      %v3233 = vunpack.c.l.b16 %v3137
      %v3234 = vpack.c.b16 %v3219, %v3218
      %v3235 = vpack.c.b16 %v3221, %v3220
      %v3236 = vpack.c.b16 %v3223, %v3222
      %v3237 = vpack.c.b16 %v3225, %v3224
      %v3238 = vpack.c.b16 %v3227, %v3226
      %v3239 = vpack.c.b16 %v3229, %v3228
      %v3240 = vpack.c.b16 %v3231, %v3230
      %v3241 = vpack.c.b16 %v3233, %v3232
      %3250 = vmatprep.subr.bf16.mxu0 0
      %3251 = vmatpush1.bf16.msra.mxu0 %v3241
      %3252 = vmatprep.subr.bf16.mxu0 0
      %3253 = vmatpush1.bf16.msra.mxu0 %v3240
      %3254 = vmatprep.subr.bf16.mxu0 0
      %3255 = vmatpush1.bf16.msra.mxu0 %v3239
      %3256 = vmatprep.subr.bf16.mxu0 0
      %3257 = vmatpush1.bf16.msra.mxu0 %v3238
      %3258 = vmatprep.subr.bf16.mxu0 0
      %3259 = vmatpush1.bf16.msra.mxu0 %v3237
      %3260 = vmatprep.subr.bf16.mxu0 0
      %3261 = vmatpush1.bf16.msra.mxu0 %v3236
      %3262 = vmatprep.subr.bf16.mxu0 0
      %3263 = vmatpush1.bf16.msra.mxu0 %v3235
      %3264 = vmatprep.subr.bf16.mxu0 0
      %3265 = vmatpush1.bf16.msra.mxu0 %v3234
      %3266 = vmatprep.subr.bf16.mxu0 0
      %3267 = vmatpush2.bf16.msra.mxu0 0
      %3268 = vmatprep.subr.bf16.mxu0 0
      %3269 = vmatpush2.bf16.msra.mxu0 0
      %3270 = vmatprep.subr.bf16.mxu0 0
      %3271 = vmatpush2.bf16.msra.mxu0 0
      %3272 = vmatprep.subr.bf16.mxu0 0
      %3273 = vmatpush2.bf16.msra.mxu0 0
      %3274 = vmatprep.subr.bf16.mxu0 0
      %3275 = vmatpush2.bf16.msra.mxu0 0
      %3276 = vmatprep.subr.bf16.mxu0 0
      %3277 = vmatpush2.bf16.msra.mxu0 0
      %3278 = vmatprep.subr.bf16.mxu0 0
      %3279 = vmatpush2.bf16.msra.mxu0 0
      %3280 = vmatprep.subr.bf16.mxu0 0
      %3281 = vmatpush2.bf16.msra.mxu0 0
      %3282 = vmatprep.mubr.bf16.mxu0 0
      %3283 = vmatmul.mubr.bf16.gmra.mxu0 %v3170
      %v3284 = vpop.f32.mrf.mxu0
      %v3285 = vadd.f32 0.0, %v3284
      %v3286 = vpop.f32.mrf.mxu0
      %v3287 = vpop.f32.mrf.mxu0
      %v3288 = vadd.f32 0.0, %v3287
      %v3289 = vpop.f32.mrf.mxu0
      %3290 = vmatprep.mubr.bf16.mxu0 0
      %3291 = vmatmul.mubr.bf16.gmra.mxu0 %v3171
      %v3292 = vpop.f32.mrf.mxu0
      %v3293 = vadd.f32 0.0, %v3292
      %v3294 = vpop.f32.mrf.mxu0
      %v3295 = vpop.f32.mrf.mxu0
      %v3296 = vadd.f32 0.0, %v3295
      %v3297 = vpop.f32.mrf.mxu0
      %3298 = vmatprep.mubr.bf16.mxu0 0
      %3299 = vmatmul.mubr.bf16.gmra.mxu0 %v3172
      %v3300 = vpop.f32.mrf.mxu0
      %v3301 = vadd.f32 0.0, %v3300
      %v3302 = vpop.f32.mrf.mxu0
      %v3303 = vpop.f32.mrf.mxu0
      %v3304 = vadd.f32 0.0, %v3303
      %v3305 = vpop.f32.mrf.mxu0
      %3306 = vmatprep.mubr.bf16.mxu0 0
      %3307 = vmatmul.mubr.bf16.gmra.mxu0 %v3173
      %v3308 = vpop.f32.mrf.mxu0
      %v3309 = vadd.f32 0.0, %v3308
      %v3310 = vpop.f32.mrf.mxu0
      %v3311 = vpop.f32.mrf.mxu0
      %v3312 = vadd.f32 0.0, %v3311
      %v3313 = vpop.f32.mrf.mxu0
      %3314 = vmatprep.mubr.bf16.mxu0 0
      %3315 = vmatmul.mubr.bf16.gmra.mxu0 %v3174
      %v3316 = vpop.f32.mrf.mxu0
      %v3317 = vadd.f32 0.0, %v3316
      %v3318 = vpop.f32.mrf.mxu0
      %v3319 = vpop.f32.mrf.mxu0
      %v3320 = vadd.f32 0.0, %v3319
      %v3321 = vpop.f32.mrf.mxu0
      %3322 = vmatprep.mubr.bf16.mxu0 0
      %3323 = vmatmul.mubr.bf16.gmra.mxu0 %v3175
      %v3324 = vpop.f32.mrf.mxu0
      %v3325 = vadd.f32 0.0, %v3324
      %v3326 = vpop.f32.mrf.mxu0
      %v3327 = vpop.f32.mrf.mxu0
      %v3328 = vadd.f32 0.0, %v3327
      %v3329 = vpop.f32.mrf.mxu0
      %3330 = vmatprep.mubr.bf16.mxu0 0
      %3331 = vmatmul.mubr.bf16.gmra.mxu0 %v3176
      %v3332 = vpop.f32.mrf.mxu0
      %v3333 = vadd.f32 0.0, %v3332
      %v3334 = vpop.f32.mrf.mxu0
      %v3335 = vpop.f32.mrf.mxu0
      %v3336 = vadd.f32 0.0, %v3335
      %v3337 = vpop.f32.mrf.mxu0
      %3338 = vmatprep.mubr.bf16.mxu0 0
      %3339 = vmatmul.mubr.bf16.gmra.mxu0 %v3177
      %v3340 = vpop.f32.mrf.mxu0
      %v3341 = vadd.f32 0.0, %v3340
      %v3342 = vpop.f32.mrf.mxu0
      %v3343 = vpop.f32.mrf.mxu0
      %v3344 = vadd.f32 0.0, %v3343
      %v3345 = vpop.f32.mrf.mxu0
      %3346 = vmatprep.mubr.bf16.mxu0 0
      %3347 = vmatmul.mubr.bf16.gmra.mxu0 %v3178
      %v3348 = vpop.f32.mrf.mxu0
      %v3349 = vadd.f32 0.0, %v3348
      %v3350 = vpop.f32.mrf.mxu0
      %v3351 = vpop.f32.mrf.mxu0
      %v3352 = vadd.f32 0.0, %v3351
      %v3353 = vpop.f32.mrf.mxu0
      %3354 = vmatprep.mubr.bf16.mxu0 0
      %3355 = vmatmul.mubr.bf16.gmra.mxu0 %v3179
      %v3356 = vpop.f32.mrf.mxu0
      %v3357 = vadd.f32 0.0, %v3356
      %v3358 = vpop.f32.mrf.mxu0
      %v3359 = vpop.f32.mrf.mxu0
      %v3360 = vadd.f32 0.0, %v3359
      %v3361 = vpop.f32.mrf.mxu0
      %3362 = vmatprep.mubr.bf16.mxu0 0
      %3363 = vmatmul.mubr.bf16.gmra.mxu0 %v3180
      %v3364 = vpop.f32.mrf.mxu0
      %v3365 = vadd.f32 0.0, %v3364
      %v3366 = vpop.f32.mrf.mxu0
      %v3367 = vpop.f32.mrf.mxu0
      %v3368 = vadd.f32 0.0, %v3367
      %v3369 = vpop.f32.mrf.mxu0
      %3370 = vmatprep.mubr.bf16.mxu0 0
      %3371 = vmatmul.mubr.bf16.gmra.mxu0 %v3181
      %v3372 = vpop.f32.mrf.mxu0
      %v3373 = vadd.f32 0.0, %v3372
      %v3374 = vpop.f32.mrf.mxu0
      %v3375 = vpop.f32.mrf.mxu0
      %v3376 = vadd.f32 0.0, %v3375
      %v3377 = vpop.f32.mrf.mxu0
      %3378 = vmatprep.mubr.bf16.mxu0 0
      %3379 = vmatmul.mubr.bf16.gmra.mxu0 %v3182
      %v3380 = vpop.f32.mrf.mxu0
      %v3381 = vadd.f32 0.0, %v3380
      %v3382 = vpop.f32.mrf.mxu0
      %v3383 = vpop.f32.mrf.mxu0
      %v3384 = vadd.f32 0.0, %v3383
      %v3385 = vpop.f32.mrf.mxu0
      %3386 = vmatprep.mubr.bf16.mxu0 0
      %3387 = vmatmul.mubr.bf16.gmra.mxu0 %v3183
      %v3388 = vpop.f32.mrf.mxu0
      %v3389 = vadd.f32 0.0, %v3388
      %v3390 = vpop.f32.mrf.mxu0
      %v3391 = vpop.f32.mrf.mxu0
      %v3392 = vadd.f32 0.0, %v3391
      %v3393 = vpop.f32.mrf.mxu0
      %3394 = vmatprep.mubr.bf16.mxu0 0
      %3395 = vmatmul.mubr.bf16.gmra.mxu0 %v3184
      %v3396 = vpop.f32.mrf.mxu0
      %v3397 = vadd.f32 0.0, %v3396
      %v3398 = vpop.f32.mrf.mxu0
      %v3399 = vpop.f32.mrf.mxu0
      %v3400 = vadd.f32 0.0, %v3399
      %v3401 = vpop.f32.mrf.mxu0
      %3402 = vmatprep.mubr.bf16.mxu0 0
      %3403 = vmatmul.mubr.bf16.gmra.mxu0 %v3185
      %v3404 = vpop.f32.mrf.mxu0
      %v3405 = vadd.f32 0.0, %v3404
      %v3406 = vpop.f32.mrf.mxu0
      %v3407 = vpop.f32.mrf.mxu0
      %v3408 = vadd.f32 0.0, %v3407
      %v3409 = vpop.f32.mrf.mxu0
      %3410 = vdwg.mxu0
      %v3411 = vadd.f32 %v2913, %v3285
      %v3412 = vadd.f32 %v2914, %v3288
      %v3413 = vadd.f32 %v2915, %v3293
      %v3414 = vadd.f32 %v2916, %v3296
      %v3415 = vadd.f32 %v2917, %v3301
      %v3416 = vadd.f32 %v2918, %v3304
      %v3417 = vadd.f32 %v2919, %v3309
      %v3418 = vadd.f32 %v2920, %v3312
      %v3419 = vadd.f32 %v2921, %v3317
      %v3420 = vadd.f32 %v2922, %v3320
      %v3421 = vadd.f32 %v2923, %v3325
      %v3422 = vadd.f32 %v2924, %v3328
      %v3423 = vadd.f32 %v2925, %v3333
      %v3424 = vadd.f32 %v2926, %v3336
      %v3425 = vadd.f32 %v2927, %v3341
      %v3426 = vadd.f32 %v2928, %v3344
      %v3427 = vadd.f32 %v2929, %v3349
      %v3428 = vadd.f32 %v2930, %v3352
      %v3429 = vadd.f32 %v2931, %v3357
      %v3430 = vadd.f32 %v2932, %v3360
      %v3431 = vadd.f32 %v2933, %v3365
      %v3432 = vadd.f32 %v2934, %v3368
      %v3433 = vadd.f32 %v2935, %v3373
      %v3434 = vadd.f32 %v2936, %v3376
      %v3435 = vadd.f32 %v2937, %v3381
      %v3436 = vadd.f32 %v2938, %v3384
      %v3437 = vadd.f32 %v2939, %v3389
      %v3438 = vadd.f32 %v2940, %v3392
      %v3439 = vadd.f32 %v2941, %v3397
      %v3440 = vadd.f32 %v2942, %v3400
      %v3441 = vadd.f32 %v2943, %v3405
      %v3442 = vadd.f32 %v2944, %v3408
      %s3443 = scalar_lea.vmem %s261, 24
      %v3444 = vld [vmem:[%s3443] sm:$0xf]
      %v3445 = vld [vmem:[%s3443 + $0x4] sm:$0xf]
      %v3446 = vld [vmem:[%s3443 + $0xc] sm:$0xf]
      %v3447 = vld [vmem:[%s3443 + $0x10] sm:$0xf]
      %v3448 = vld [vmem:[%s3443 + $0x18] sm:$0xf]
      %v3449 = vld [vmem:[%s3443 + $0x1c] sm:$0xf]
      %v3450 = vld [vmem:[%s3443 + $0x24] sm:$0xf]
      %v3451 = vld [vmem:[%s3443 + $0x28] sm:$0xf]
      %v3452 = vld [vmem:[%s3443 + $0x30] sm:$0xf]
      %v3453 = vld [vmem:[%s3443 + $0x34] sm:$0xf]
      %v3454 = vld [vmem:[%s3443 + $0x3c] sm:$0xf]
      %v3455 = vld [vmem:[%s3443 + $0x40] sm:$0xf]
      %v3456 = vld [vmem:[%s3443 + $0x48] sm:$0xf]
      %v3457 = vld [vmem:[%s3443 + $0x4c] sm:$0xf]
      %v3458 = vld [vmem:[%s3443 + $0x54] sm:$0xf]
      %v3459 = vld [vmem:[%s3443 + $0x58] sm:$0xf]
      %v3460 = vld [vmem:[%s3443 + $0x60] sm:$0xf]
      %v3461 = vld [vmem:[%s3443 + $0x64] sm:$0xf]
      %v3462 = vld [vmem:[%s3443 + $0x6c] sm:$0xf]
      %v3463 = vld [vmem:[%s3443 + $0x70] sm:$0xf]
      %v3464 = vld [vmem:[%s3443 + $0x78] sm:$0xf]
      %v3465 = vld [vmem:[%s3443 + $0x7c] sm:$0xf]
      %v3466 = vld [vmem:[%s3443 + $0x84] sm:$0xf]
      %v3467 = vld [vmem:[%s3443 + $0x88] sm:$0xf]
      %v3468 = vld [vmem:[%s3443 + $0x90] sm:$0xf]
      %v3469 = vld [vmem:[%s3443 + $0x94] sm:$0xf]
      %v3470 = vld [vmem:[%s3443 + $0x9c] sm:$0xf]
      %v3471 = vld [vmem:[%s3443 + $0xa0] sm:$0xf]
      %v3472 = vld [vmem:[%s3443 + $0xa8] sm:$0xf]
      %v3473 = vld [vmem:[%s3443 + $0xac] sm:$0xf]
      %v3474 = vld [vmem:[%s3443 + $0xb4] sm:$0xf]
      %v3475 = vld [vmem:[%s3443 + $0xb8] sm:$0xf]
      %s3476 = scalar_lea.vmem %s1, 384
      %v3477 = vld [vmem:[%s3476] sm:$0xf]
      %v3478 = vld [vmem:[%s3476 + $0x4] sm:$0xf]
      %v3479 = vld [vmem:[%s3476 + $0x8] sm:$0xf]
      %v3480 = vld [vmem:[%s3476 + $0xc] sm:$0xf]
      %v3481 = vld [vmem:[%s3476 + $0x10] sm:$0xf]
      %v3482 = vld [vmem:[%s3476 + $0x14] sm:$0xf]
      %v3483 = vld [vmem:[%s3476 + $0x18] sm:$0xf]
      %v3484 = vld [vmem:[%s3476 + $0x1c] sm:$0xf]
      %v3485 = vld [vmem:[%s3476 + $0x20] sm:$0xf]
      %v3486 = vld [vmem:[%s3476 + $0x24] sm:$0xf]
      %v3487 = vld [vmem:[%s3476 + $0x28] sm:$0xf]
      %v3488 = vld [vmem:[%s3476 + $0x2c] sm:$0xf]
      %v3489 = vld [vmem:[%s3476 + $0x30] sm:$0xf]
      %v3490 = vld [vmem:[%s3476 + $0x34] sm:$0xf]
      %v3491 = vld [vmem:[%s3476 + $0x38] sm:$0xf]
      %v3492 = vld [vmem:[%s3476 + $0x3c] sm:$0xf]
      %v3525 = vunpack.c.l.b16 %v3444
      %v3526 = vunpack.c.l.b16 %v3445
      %v3527 = vunpack.c.l.b16 %v3446
      %v3528 = vunpack.c.l.b16 %v3447
      %v3529 = vunpack.c.l.b16 %v3448
      %v3530 = vunpack.c.l.b16 %v3449
      %v3531 = vunpack.c.l.b16 %v3450
      %v3532 = vunpack.c.l.b16 %v3451
      %v3533 = vunpack.c.l.b16 %v3452
      %v3534 = vunpack.c.l.b16 %v3453
      %v3535 = vunpack.c.l.b16 %v3454
      %v3536 = vunpack.c.l.b16 %v3455
      %v3537 = vunpack.c.l.b16 %v3456
      %v3538 = vunpack.c.l.b16 %v3457
      %v3539 = vunpack.c.l.b16 %v3458
      %v3540 = vunpack.c.l.b16 %v3459
      %v3541 = vunpack.c.l.b16 %v3460
      %v3542 = vunpack.c.l.b16 %v3461
      %v3543 = vunpack.c.l.b16 %v3462
      %v3544 = vunpack.c.l.b16 %v3463
      %v3545 = vunpack.c.l.b16 %v3464
      %v3546 = vunpack.c.l.b16 %v3465
      %v3547 = vunpack.c.l.b16 %v3466
      %v3548 = vunpack.c.l.b16 %v3467
      %v3549 = vunpack.c.l.b16 %v3468
      %v3550 = vunpack.c.l.b16 %v3469
      %v3551 = vunpack.c.l.b16 %v3470
      %v3552 = vunpack.c.l.b16 %v3471
      %v3553 = vunpack.c.l.b16 %v3472
      %v3554 = vunpack.c.l.b16 %v3473
      %v3555 = vunpack.c.l.b16 %v3474
      %v3556 = vunpack.c.l.b16 %v3475
      %v3557 = vpack.c.b16 %v3526, %v3525
      %v3558 = vpack.c.b16 %v3528, %v3527
      %v3559 = vpack.c.b16 %v3530, %v3529
      %v3560 = vpack.c.b16 %v3532, %v3531
      %v3561 = vpack.c.b16 %v3534, %v3533
      %v3562 = vpack.c.b16 %v3536, %v3535
      %v3563 = vpack.c.b16 %v3538, %v3537
      %v3564 = vpack.c.b16 %v3540, %v3539
      %v3565 = vpack.c.b16 %v3542, %v3541
      %v3566 = vpack.c.b16 %v3544, %v3543
      %v3567 = vpack.c.b16 %v3546, %v3545
      %v3568 = vpack.c.b16 %v3548, %v3547
      %v3569 = vpack.c.b16 %v3550, %v3549
      %v3570 = vpack.c.b16 %v3552, %v3551
      %v3571 = vpack.c.b16 %v3554, %v3553
      %v3572 = vpack.c.b16 %v3556, %v3555
      %v3605 = vunpack.c.l.b16 %v3477
      %v3606 = vunpack.c.l.b16 %v3478
      %v3607 = vunpack.c.l.b16 %v3479
      %v3608 = vunpack.c.l.b16 %v3480
      %v3609 = vunpack.c.l.b16 %v3481
      %v3610 = vunpack.c.l.b16 %v3482
      %v3611 = vunpack.c.l.b16 %v3483
      %v3612 = vunpack.c.l.b16 %v3484
      %v3613 = vunpack.c.l.b16 %v3485
      %v3614 = vunpack.c.l.b16 %v3486
      %v3615 = vunpack.c.l.b16 %v3487
      %v3616 = vunpack.c.l.b16 %v3488
      %v3617 = vunpack.c.l.b16 %v3489
      %v3618 = vunpack.c.l.b16 %v3490
      %v3619 = vunpack.c.l.b16 %v3491
      %v3620 = vunpack.c.l.b16 %v3492
      %v3621 = vpack.c.b16 %v3606, %v3605
      %v3622 = vpack.c.b16 %v3608, %v3607
      %v3623 = vpack.c.b16 %v3610, %v3609
      %v3624 = vpack.c.b16 %v3612, %v3611
      %v3625 = vpack.c.b16 %v3614, %v3613
      %v3626 = vpack.c.b16 %v3616, %v3615
      %v3627 = vpack.c.b16 %v3618, %v3617
      %v3628 = vpack.c.b16 %v3620, %v3619
      %3637 = vmatprep.subr.bf16.mxu0 0
      %3638 = vmatpush1.bf16.msra.mxu0 %v3628
      %3639 = vmatprep.subr.bf16.mxu0 0
      %3640 = vmatpush1.bf16.msra.mxu0 %v3627
      %3641 = vmatprep.subr.bf16.mxu0 0
      %3642 = vmatpush1.bf16.msra.mxu0 %v3626
      %3643 = vmatprep.subr.bf16.mxu0 0
      %3644 = vmatpush1.bf16.msra.mxu0 %v3625
      %3645 = vmatprep.subr.bf16.mxu0 0
      %3646 = vmatpush1.bf16.msra.mxu0 %v3624
      %3647 = vmatprep.subr.bf16.mxu0 0
      %3648 = vmatpush1.bf16.msra.mxu0 %v3623
      %3649 = vmatprep.subr.bf16.mxu0 0
      %3650 = vmatpush1.bf16.msra.mxu0 %v3622
      %3651 = vmatprep.subr.bf16.mxu0 0
      %3652 = vmatpush1.bf16.msra.mxu0 %v3621
      %3653 = vmatprep.subr.bf16.mxu0 0
      %3654 = vmatpush2.bf16.msra.mxu0 0
      %3655 = vmatprep.subr.bf16.mxu0 0
      %3656 = vmatpush2.bf16.msra.mxu0 0
      %3657 = vmatprep.subr.bf16.mxu0 0
      %3658 = vmatpush2.bf16.msra.mxu0 0
      %3659 = vmatprep.subr.bf16.mxu0 0
      %3660 = vmatpush2.bf16.msra.mxu0 0
      %3661 = vmatprep.subr.bf16.mxu0 0
      %3662 = vmatpush2.bf16.msra.mxu0 0
      %3663 = vmatprep.subr.bf16.mxu0 0
      %3664 = vmatpush2.bf16.msra.mxu0 0
      %3665 = vmatprep.subr.bf16.mxu0 0
      %3666 = vmatpush2.bf16.msra.mxu0 0
      %3667 = vmatprep.subr.bf16.mxu0 0
      %3668 = vmatpush2.bf16.msra.mxu0 0
      %3669 = vmatprep.mubr.bf16.mxu0 0
      %3670 = vmatmul.mubr.bf16.gmra.mxu0 %v3557
      %v3671 = vpop.f32.mrf.mxu0
      %v3672 = vadd.f32 0.0, %v3671
      %v3673 = vpop.f32.mrf.mxu0
      %v3674 = vpop.f32.mrf.mxu0
      %v3675 = vadd.f32 0.0, %v3674
      %v3676 = vpop.f32.mrf.mxu0
      %3677 = vmatprep.mubr.bf16.mxu0 0
      %3678 = vmatmul.mubr.bf16.gmra.mxu0 %v3558
      %v3679 = vpop.f32.mrf.mxu0
      %v3680 = vadd.f32 0.0, %v3679
      %v3681 = vpop.f32.mrf.mxu0
      %v3682 = vpop.f32.mrf.mxu0
      %v3683 = vadd.f32 0.0, %v3682
      %v3684 = vpop.f32.mrf.mxu0
      %3685 = vmatprep.mubr.bf16.mxu0 0
      %3686 = vmatmul.mubr.bf16.gmra.mxu0 %v3559
      %v3687 = vpop.f32.mrf.mxu0
      %v3688 = vadd.f32 0.0, %v3687
      %v3689 = vpop.f32.mrf.mxu0
      %v3690 = vpop.f32.mrf.mxu0
      %v3691 = vadd.f32 0.0, %v3690
      %v3692 = vpop.f32.mrf.mxu0
      %3693 = vmatprep.mubr.bf16.mxu0 0
      %3694 = vmatmul.mubr.bf16.gmra.mxu0 %v3560
      %v3695 = vpop.f32.mrf.mxu0
      %v3696 = vadd.f32 0.0, %v3695
      %v3697 = vpop.f32.mrf.mxu0
      %v3698 = vpop.f32.mrf.mxu0
      %v3699 = vadd.f32 0.0, %v3698
      %v3700 = vpop.f32.mrf.mxu0
      %3701 = vmatprep.mubr.bf16.mxu0 0
      %3702 = vmatmul.mubr.bf16.gmra.mxu0 %v3561
      %v3703 = vpop.f32.mrf.mxu0
      %v3704 = vadd.f32 0.0, %v3703
      %v3705 = vpop.f32.mrf.mxu0
      %v3706 = vpop.f32.mrf.mxu0
      %v3707 = vadd.f32 0.0, %v3706
      %v3708 = vpop.f32.mrf.mxu0
      %3709 = vmatprep.mubr.bf16.mxu0 0
      %3710 = vmatmul.mubr.bf16.gmra.mxu0 %v3562
      %v3711 = vpop.f32.mrf.mxu0
      %v3712 = vadd.f32 0.0, %v3711
      %v3713 = vpop.f32.mrf.mxu0
      %v3714 = vpop.f32.mrf.mxu0
      %v3715 = vadd.f32 0.0, %v3714
      %v3716 = vpop.f32.mrf.mxu0
      %3717 = vmatprep.mubr.bf16.mxu0 0
      %3718 = vmatmul.mubr.bf16.gmra.mxu0 %v3563
      %v3719 = vpop.f32.mrf.mxu0
      %v3720 = vadd.f32 0.0, %v3719
      %v3721 = vpop.f32.mrf.mxu0
      %v3722 = vpop.f32.mrf.mxu0
      %v3723 = vadd.f32 0.0, %v3722
      %v3724 = vpop.f32.mrf.mxu0
      %3725 = vmatprep.mubr.bf16.mxu0 0
      %3726 = vmatmul.mubr.bf16.gmra.mxu0 %v3564
      %v3727 = vpop.f32.mrf.mxu0
      %v3728 = vadd.f32 0.0, %v3727
      %v3729 = vpop.f32.mrf.mxu0
      %v3730 = vpop.f32.mrf.mxu0
      %v3731 = vadd.f32 0.0, %v3730
      %v3732 = vpop.f32.mrf.mxu0
      %3733 = vmatprep.mubr.bf16.mxu0 0
      %3734 = vmatmul.mubr.bf16.gmra.mxu0 %v3565
      %v3735 = vpop.f32.mrf.mxu0
      %v3736 = vadd.f32 0.0, %v3735
      %v3737 = vpop.f32.mrf.mxu0
      %v3738 = vpop.f32.mrf.mxu0
      %v3739 = vadd.f32 0.0, %v3738
      %v3740 = vpop.f32.mrf.mxu0
      %3741 = vmatprep.mubr.bf16.mxu0 0
      %3742 = vmatmul.mubr.bf16.gmra.mxu0 %v3566
      %v3743 = vpop.f32.mrf.mxu0
      %v3744 = vadd.f32 0.0, %v3743
      %v3745 = vpop.f32.mrf.mxu0
      %v3746 = vpop.f32.mrf.mxu0
      %v3747 = vadd.f32 0.0, %v3746
      %v3748 = vpop.f32.mrf.mxu0
      %3749 = vmatprep.mubr.bf16.mxu0 0
      %3750 = vmatmul.mubr.bf16.gmra.mxu0 %v3567
      %v3751 = vpop.f32.mrf.mxu0
      %v3752 = vadd.f32 0.0, %v3751
      %v3753 = vpop.f32.mrf.mxu0
      %v3754 = vpop.f32.mrf.mxu0
      %v3755 = vadd.f32 0.0, %v3754
      %v3756 = vpop.f32.mrf.mxu0
      %3757 = vmatprep.mubr.bf16.mxu0 0
      %3758 = vmatmul.mubr.bf16.gmra.mxu0 %v3568
      %v3759 = vpop.f32.mrf.mxu0
      %v3760 = vadd.f32 0.0, %v3759
      %v3761 = vpop.f32.mrf.mxu0
      %v3762 = vpop.f32.mrf.mxu0
      %v3763 = vadd.f32 0.0, %v3762
      %v3764 = vpop.f32.mrf.mxu0
      %3765 = vmatprep.mubr.bf16.mxu0 0
      %3766 = vmatmul.mubr.bf16.gmra.mxu0 %v3569
      %v3767 = vpop.f32.mrf.mxu0
      %v3768 = vadd.f32 0.0, %v3767
      %v3769 = vpop.f32.mrf.mxu0
      %v3770 = vpop.f32.mrf.mxu0
      %v3771 = vadd.f32 0.0, %v3770
      %v3772 = vpop.f32.mrf.mxu0
      %3773 = vmatprep.mubr.bf16.mxu0 0
      %3774 = vmatmul.mubr.bf16.gmra.mxu0 %v3570
      %v3775 = vpop.f32.mrf.mxu0
      %v3776 = vadd.f32 0.0, %v3775
      %v3777 = vpop.f32.mrf.mxu0
      %v3778 = vpop.f32.mrf.mxu0
      %v3779 = vadd.f32 0.0, %v3778
      %v3780 = vpop.f32.mrf.mxu0
      %3781 = vmatprep.mubr.bf16.mxu0 0
      %3782 = vmatmul.mubr.bf16.gmra.mxu0 %v3571
      %v3783 = vpop.f32.mrf.mxu0
      %v3784 = vadd.f32 0.0, %v3783
      %v3785 = vpop.f32.mrf.mxu0
      %v3786 = vpop.f32.mrf.mxu0
      %v3787 = vadd.f32 0.0, %v3786
      %v3788 = vpop.f32.mrf.mxu0
      %3789 = vmatprep.mubr.bf16.mxu0 0
      %3790 = vmatmul.mubr.bf16.gmra.mxu0 %v3572
      %v3791 = vpop.f32.mrf.mxu0
      %v3792 = vadd.f32 0.0, %v3791
      %v3793 = vpop.f32.mrf.mxu0
      %v3794 = vpop.f32.mrf.mxu0
      %v3795 = vadd.f32 0.0, %v3794
      %v3796 = vpop.f32.mrf.mxu0
      %3797 = vdwg.mxu0
      %v3798 = vadd.f32 %v3411, %v3672
      %v3799 = vadd.f32 %v3412, %v3675
      %v3800 = vadd.f32 %v3413, %v3680
      %v3801 = vadd.f32 %v3414, %v3683
      %v3802 = vadd.f32 %v3415, %v3688
      %v3803 = vadd.f32 %v3416, %v3691
      %v3804 = vadd.f32 %v3417, %v3696
      %v3805 = vadd.f32 %v3418, %v3699
      %v3806 = vadd.f32 %v3419, %v3704
      %v3807 = vadd.f32 %v3420, %v3707
      %v3808 = vadd.f32 %v3421, %v3712
      %v3809 = vadd.f32 %v3422, %v3715
      %v3810 = vadd.f32 %v3423, %v3720
      %v3811 = vadd.f32 %v3424, %v3723
      %v3812 = vadd.f32 %v3425, %v3728
      %v3813 = vadd.f32 %v3426, %v3731
      %v3814 = vadd.f32 %v3427, %v3736
      %v3815 = vadd.f32 %v3428, %v3739
      %v3816 = vadd.f32 %v3429, %v3744
      %v3817 = vadd.f32 %v3430, %v3747
      %v3818 = vadd.f32 %v3431, %v3752
      %v3819 = vadd.f32 %v3432, %v3755
      %v3820 = vadd.f32 %v3433, %v3760
      %v3821 = vadd.f32 %v3434, %v3763
      %v3822 = vadd.f32 %v3435, %v3768
      %v3823 = vadd.f32 %v3436, %v3771
      %v3824 = vadd.f32 %v3437, %v3776
      %v3825 = vadd.f32 %v3438, %v3779
      %v3826 = vadd.f32 %v3439, %v3784
      %v3827 = vadd.f32 %v3440, %v3787
      %v3828 = vadd.f32 %v3441, %v3792
      %v3829 = vadd.f32 %v3442, %v3795
      %v3830 = vld [vmem:[%s3443] sm:$0xf]
      %v3831 = vld [vmem:[%s3443 + $0x4] sm:$0xf]
      %v3832 = vld [vmem:[%s3443 + $0x8] sm:$0x1]
      %v3833 = vld [vmem:[%s3443 + $0xc] sm:$0xf]
      %v3834 = vld [vmem:[%s3443 + $0x10] sm:$0xf]
      %v3835 = vld [vmem:[%s3443 + $0x14] sm:$0x1]
      %v3836 = vld [vmem:[%s3443 + $0x18] sm:$0xf]
      %v3837 = vld [vmem:[%s3443 + $0x1c] sm:$0xf]
      %v3838 = vld [vmem:[%s3443 + $0x20] sm:$0x1]
      %v3839 = vld [vmem:[%s3443 + $0x24] sm:$0xf]
      %v3840 = vld [vmem:[%s3443 + $0x28] sm:$0xf]
      %v3841 = vld [vmem:[%s3443 + $0x2c] sm:$0x1]
      %v3842 = vld [vmem:[%s3443 + $0x30] sm:$0xf]
      %v3843 = vld [vmem:[%s3443 + $0x34] sm:$0xf]
      %v3844 = vld [vmem:[%s3443 + $0x38] sm:$0x1]
      %v3845 = vld [vmem:[%s3443 + $0x3c] sm:$0xf]
      %v3846 = vld [vmem:[%s3443 + $0x40] sm:$0xf]
      %v3847 = vld [vmem:[%s3443 + $0x44] sm:$0x1]
      %v3848 = vld [vmem:[%s3443 + $0x48] sm:$0xf]
      %v3849 = vld [vmem:[%s3443 + $0x4c] sm:$0xf]
      %v3850 = vld [vmem:[%s3443 + $0x50] sm:$0x1]
      %v3851 = vld [vmem:[%s3443 + $0x54] sm:$0xf]
      %v3852 = vld [vmem:[%s3443 + $0x58] sm:$0xf]
      %v3853 = vld [vmem:[%s3443 + $0x5c] sm:$0x1]
      %v3854 = vld [vmem:[%s3443 + $0x60] sm:$0xf]
      %v3855 = vld [vmem:[%s3443 + $0x64] sm:$0xf]
      %v3856 = vld [vmem:[%s3443 + $0x68] sm:$0x1]
      %v3857 = vld [vmem:[%s3443 + $0x6c] sm:$0xf]
      %v3858 = vld [vmem:[%s3443 + $0x70] sm:$0xf]
      %v3859 = vld [vmem:[%s3443 + $0x74] sm:$0x1]
      %v3860 = vld [vmem:[%s3443 + $0x78] sm:$0xf]
      %v3861 = vld [vmem:[%s3443 + $0x7c] sm:$0xf]
      %v3862 = vld [vmem:[%s3443 + $0x80] sm:$0x1]
      %v3863 = vld [vmem:[%s3443 + $0x84] sm:$0xf]
      %v3864 = vld [vmem:[%s3443 + $0x88] sm:$0xf]
      %v3865 = vld [vmem:[%s3443 + $0x8c] sm:$0x1]
      %v3866 = vld [vmem:[%s3443 + $0x90] sm:$0xf]
      %v3867 = vld [vmem:[%s3443 + $0x94] sm:$0xf]
      %v3868 = vld [vmem:[%s3443 + $0x98] sm:$0x1]
      %v3869 = vld [vmem:[%s3443 + $0x9c] sm:$0xf]
      %v3870 = vld [vmem:[%s3443 + $0xa0] sm:$0xf]
      %v3871 = vld [vmem:[%s3443 + $0xa4] sm:$0x1]
      %v3872 = vld [vmem:[%s3443 + $0xa8] sm:$0xf]
      %v3873 = vld [vmem:[%s3443 + $0xac] sm:$0xf]
      %v3874 = vld [vmem:[%s3443 + $0xb0] sm:$0x1]
      %v3875 = vld [vmem:[%s3443 + $0xb4] sm:$0xf]
      %v3876 = vld [vmem:[%s3443 + $0xb8] sm:$0xf]
      %v3877 = vld [vmem:[%s3443 + $0xbc] sm:$0x1]
      %v3879 = vshrl.u32 %v3830, 16
      %v3881 = vrot.slane %v3879, 4
      %v3882 = vshll.u32 %v3830, 16
      %v3884 = vrot.slane %v3882, 5
      %v3885 = vor.u32 %v3881, %v3884
      %v3886 = vrot.slane %v3885, 4
      %v3888 = vshll.u32 %v3831, 16
      %v3890 = vrot.slane %v3888, 5
      %v3891 = vsel %vm339, %v3886, %v3890
      %v3892 = vshrl.u32 %v3831, 16
      %v3894 = vrot.slane %v3892, 4
      %v3895 = vor.u32 %v3894, %v3890
      %v3896 = vrot.slane %v3895, 4
      %v3898 = vshll.u32 %v3832, 16
      %v3900 = vrot.slane %v3898, 5
      %v3901 = vsel %vm339, %v3896, %v3900
      %v3903 = vshrl.u32 %v3833, 16
      %v3905 = vrot.slane %v3903, 4
      %v3906 = vshll.u32 %v3833, 16
      %v3908 = vrot.slane %v3906, 5
      %v3909 = vor.u32 %v3905, %v3908
      %v3910 = vrot.slane %v3909, 4
      %v3912 = vshll.u32 %v3834, 16
      %v3914 = vrot.slane %v3912, 5
      %v3915 = vsel %vm339, %v3910, %v3914
      %v3916 = vshrl.u32 %v3834, 16
      %v3918 = vrot.slane %v3916, 4
      %v3919 = vor.u32 %v3918, %v3914
      %v3920 = vrot.slane %v3919, 4
      %v3922 = vshll.u32 %v3835, 16
      %v3924 = vrot.slane %v3922, 5
      %v3925 = vsel %vm339, %v3920, %v3924
      %v3927 = vshrl.u32 %v3836, 16
      %v3929 = vrot.slane %v3927, 4
      %v3930 = vshll.u32 %v3836, 16
      %v3932 = vrot.slane %v3930, 5
      %v3933 = vor.u32 %v3929, %v3932
      %v3934 = vrot.slane %v3933, 4
      %v3936 = vshll.u32 %v3837, 16
      %v3938 = vrot.slane %v3936, 5
      %v3939 = vsel %vm339, %v3934, %v3938
      %v3940 = vshrl.u32 %v3837, 16
      %v3942 = vrot.slane %v3940, 4
      %v3943 = vor.u32 %v3942, %v3938
      %v3944 = vrot.slane %v3943, 4
      %v3946 = vshll.u32 %v3838, 16
      %v3948 = vrot.slane %v3946, 5
      %v3949 = vsel %vm339, %v3944, %v3948
      %v3951 = vshrl.u32 %v3839, 16
      %v3953 = vrot.slane %v3951, 4
      %v3954 = vshll.u32 %v3839, 16
      %v3956 = vrot.slane %v3954, 5
      %v3957 = vor.u32 %v3953, %v3956
      %v3958 = vrot.slane %v3957, 4
      %v3960 = vshll.u32 %v3840, 16
      %v3962 = vrot.slane %v3960, 5
      %v3963 = vsel %vm339, %v3958, %v3962
      %v3964 = vshrl.u32 %v3840, 16
      %v3966 = vrot.slane %v3964, 4
      %v3967 = vor.u32 %v3966, %v3962
      %v3968 = vrot.slane %v3967, 4
      %v3970 = vshll.u32 %v3841, 16
      %v3972 = vrot.slane %v3970, 5
      %v3973 = vsel %vm339, %v3968, %v3972
      %v3975 = vshrl.u32 %v3842, 16
      %v3977 = vrot.slane %v3975, 4
      %v3978 = vshll.u32 %v3842, 16
      %v3980 = vrot.slane %v3978, 5
      %v3981 = vor.u32 %v3977, %v3980
      %v3982 = vrot.slane %v3981, 4
      %v3984 = vshll.u32 %v3843, 16
      %v3986 = vrot.slane %v3984, 5
      %v3987 = vsel %vm339, %v3982, %v3986
      %v3988 = vshrl.u32 %v3843, 16
      %v3990 = vrot.slane %v3988, 4
      %v3991 = vor.u32 %v3990, %v3986
      %v3992 = vrot.slane %v3991, 4
      %v3994 = vshll.u32 %v3844, 16
      %v3996 = vrot.slane %v3994, 5
      %v3997 = vsel %vm339, %v3992, %v3996
      %v3999 = vshrl.u32 %v3845, 16
      %v4001 = vrot.slane %v3999, 4
      %v4002 = vshll.u32 %v3845, 16
      %v4004 = vrot.slane %v4002, 5
      %v4005 = vor.u32 %v4001, %v4004
      %v4006 = vrot.slane %v4005, 4
      %v4008 = vshll.u32 %v3846, 16
      %v4010 = vrot.slane %v4008, 5
      %v4011 = vsel %vm339, %v4006, %v4010
      %v4012 = vshrl.u32 %v3846, 16
      %v4014 = vrot.slane %v4012, 4
      %v4015 = vor.u32 %v4014, %v4010
      %v4016 = vrot.slane %v4015, 4
      %v4018 = vshll.u32 %v3847, 16
      %v4020 = vrot.slane %v4018, 5
      %v4021 = vsel %vm339, %v4016, %v4020
      %v4023 = vshrl.u32 %v3848, 16
      %v4025 = vrot.slane %v4023, 4
      %v4026 = vshll.u32 %v3848, 16
      %v4028 = vrot.slane %v4026, 5
      %v4029 = vor.u32 %v4025, %v4028
      %v4030 = vrot.slane %v4029, 4
      %v4032 = vshll.u32 %v3849, 16
      %v4034 = vrot.slane %v4032, 5
      %v4035 = vsel %vm339, %v4030, %v4034
      %v4036 = vshrl.u32 %v3849, 16
      %v4038 = vrot.slane %v4036, 4
      %v4039 = vor.u32 %v4038, %v4034
      %v4040 = vrot.slane %v4039, 4
      %v4042 = vshll.u32 %v3850, 16
      %v4044 = vrot.slane %v4042, 5
      %v4045 = vsel %vm339, %v4040, %v4044
      %v4047 = vshrl.u32 %v3851, 16
      %v4049 = vrot.slane %v4047, 4
      %v4050 = vshll.u32 %v3851, 16
      %v4052 = vrot.slane %v4050, 5
      %v4053 = vor.u32 %v4049, %v4052
      %v4054 = vrot.slane %v4053, 4
      %v4056 = vshll.u32 %v3852, 16
      %v4058 = vrot.slane %v4056, 5
      %v4059 = vsel %vm339, %v4054, %v4058
      %v4060 = vshrl.u32 %v3852, 16
      %v4062 = vrot.slane %v4060, 4
      %v4063 = vor.u32 %v4062, %v4058
      %v4064 = vrot.slane %v4063, 4
      %v4066 = vshll.u32 %v3853, 16
      %v4068 = vrot.slane %v4066, 5
      %v4069 = vsel %vm339, %v4064, %v4068
      %v4071 = vshrl.u32 %v3854, 16
      %v4073 = vrot.slane %v4071, 4
      %v4074 = vshll.u32 %v3854, 16
      %v4076 = vrot.slane %v4074, 5
      %v4077 = vor.u32 %v4073, %v4076
      %v4078 = vrot.slane %v4077, 4
      %v4080 = vshll.u32 %v3855, 16
      %v4082 = vrot.slane %v4080, 5
      %v4083 = vsel %vm339, %v4078, %v4082
      %v4084 = vshrl.u32 %v3855, 16
      %v4086 = vrot.slane %v4084, 4
      %v4087 = vor.u32 %v4086, %v4082
      %v4088 = vrot.slane %v4087, 4
      %v4090 = vshll.u32 %v3856, 16
      %v4092 = vrot.slane %v4090, 5
      %v4093 = vsel %vm339, %v4088, %v4092
      %v4095 = vshrl.u32 %v3857, 16
      %v4097 = vrot.slane %v4095, 4
      %v4098 = vshll.u32 %v3857, 16
      %v4100 = vrot.slane %v4098, 5
      %v4101 = vor.u32 %v4097, %v4100
      %v4102 = vrot.slane %v4101, 4
      %v4104 = vshll.u32 %v3858, 16
      %v4106 = vrot.slane %v4104, 5
      %v4107 = vsel %vm339, %v4102, %v4106
      %v4108 = vshrl.u32 %v3858, 16
      %v4110 = vrot.slane %v4108, 4
      %v4111 = vor.u32 %v4110, %v4106
      %v4112 = vrot.slane %v4111, 4
      %v4114 = vshll.u32 %v3859, 16
      %v4116 = vrot.slane %v4114, 5
      %v4117 = vsel %vm339, %v4112, %v4116
      %v4119 = vshrl.u32 %v3860, 16
      %v4121 = vrot.slane %v4119, 4
      %v4122 = vshll.u32 %v3860, 16
      %v4124 = vrot.slane %v4122, 5
      %v4125 = vor.u32 %v4121, %v4124
      %v4126 = vrot.slane %v4125, 4
      %v4128 = vshll.u32 %v3861, 16
      %v4130 = vrot.slane %v4128, 5
      %v4131 = vsel %vm339, %v4126, %v4130
      %v4132 = vshrl.u32 %v3861, 16
      %v4134 = vrot.slane %v4132, 4
      %v4135 = vor.u32 %v4134, %v4130
      %v4136 = vrot.slane %v4135, 4
      %v4138 = vshll.u32 %v3862, 16
      %v4140 = vrot.slane %v4138, 5
      %v4141 = vsel %vm339, %v4136, %v4140
      %v4143 = vshrl.u32 %v3863, 16
      %v4145 = vrot.slane %v4143, 4
      %v4146 = vshll.u32 %v3863, 16
      %v4148 = vrot.slane %v4146, 5
      %v4149 = vor.u32 %v4145, %v4148
      %v4150 = vrot.slane %v4149, 4
      %v4152 = vshll.u32 %v3864, 16
      %v4154 = vrot.slane %v4152, 5
      %v4155 = vsel %vm339, %v4150, %v4154
      %v4156 = vshrl.u32 %v3864, 16
      %v4158 = vrot.slane %v4156, 4
      %v4159 = vor.u32 %v4158, %v4154
      %v4160 = vrot.slane %v4159, 4
      %v4162 = vshll.u32 %v3865, 16
      %v4164 = vrot.slane %v4162, 5
      %v4165 = vsel %vm339, %v4160, %v4164
      %v4167 = vshrl.u32 %v3866, 16
      %v4169 = vrot.slane %v4167, 4
      %v4170 = vshll.u32 %v3866, 16
      %v4172 = vrot.slane %v4170, 5
      %v4173 = vor.u32 %v4169, %v4172
      %v4174 = vrot.slane %v4173, 4
      %v4176 = vshll.u32 %v3867, 16
      %v4178 = vrot.slane %v4176, 5
      %v4179 = vsel %vm339, %v4174, %v4178
      %v4180 = vshrl.u32 %v3867, 16
      %v4182 = vrot.slane %v4180, 4
      %v4183 = vor.u32 %v4182, %v4178
      %v4184 = vrot.slane %v4183, 4
      %v4186 = vshll.u32 %v3868, 16
      %v4188 = vrot.slane %v4186, 5
      %v4189 = vsel %vm339, %v4184, %v4188
      %v4191 = vshrl.u32 %v3869, 16
      %v4193 = vrot.slane %v4191, 4
      %v4194 = vshll.u32 %v3869, 16
      %v4196 = vrot.slane %v4194, 5
      %v4197 = vor.u32 %v4193, %v4196
      %v4198 = vrot.slane %v4197, 4
      %v4200 = vshll.u32 %v3870, 16
      %v4202 = vrot.slane %v4200, 5
      %v4203 = vsel %vm339, %v4198, %v4202
      %v4204 = vshrl.u32 %v3870, 16
      %v4206 = vrot.slane %v4204, 4
      %v4207 = vor.u32 %v4206, %v4202
      %v4208 = vrot.slane %v4207, 4
      %v4210 = vshll.u32 %v3871, 16
      %v4212 = vrot.slane %v4210, 5
      %v4213 = vsel %vm339, %v4208, %v4212
      %v4215 = vshrl.u32 %v3872, 16
      %v4217 = vrot.slane %v4215, 4
      %v4218 = vshll.u32 %v3872, 16
      %v4220 = vrot.slane %v4218, 5
      %v4221 = vor.u32 %v4217, %v4220
      %v4222 = vrot.slane %v4221, 4
      %v4224 = vshll.u32 %v3873, 16
      %v4226 = vrot.slane %v4224, 5
      %v4227 = vsel %vm339, %v4222, %v4226
      %v4228 = vshrl.u32 %v3873, 16
      %v4230 = vrot.slane %v4228, 4
      %v4231 = vor.u32 %v4230, %v4226
      %v4232 = vrot.slane %v4231, 4
      %v4234 = vshll.u32 %v3874, 16
      %v4236 = vrot.slane %v4234, 5
      %v4237 = vsel %vm339, %v4232, %v4236
      %v4239 = vshrl.u32 %v3875, 16
      %v4241 = vrot.slane %v4239, 4
      %v4242 = vshll.u32 %v3875, 16
      %v4244 = vrot.slane %v4242, 5
      %v4245 = vor.u32 %v4241, %v4244
      %v4246 = vrot.slane %v4245, 4
      %v4248 = vshll.u32 %v3876, 16
      %v4250 = vrot.slane %v4248, 5
      %v4251 = vsel %vm339, %v4246, %v4250
      %v4252 = vshrl.u32 %v3876, 16
      %v4254 = vrot.slane %v4252, 4
      %v4255 = vor.u32 %v4254, %v4250
      %v4256 = vrot.slane %v4255, 4
      %v4258 = vshll.u32 %v3877, 16
      %v4260 = vrot.slane %v4258, 5
      %v4261 = vsel %vm339, %v4256, %v4260
      %s4262 = scalar_lea.vmem %s1, 448
      %v4263 = vld [vmem:[%s4262] sm:$0xf]
      %v4264 = vld [vmem:[%s4262 + $0x4] sm:$0xf]
      %v4265 = vld [vmem:[%s4262 + $0x8] sm:$0xf]
      %v4266 = vld [vmem:[%s4262 + $0xc] sm:$0xf]
      %v4267 = vld [vmem:[%s4262 + $0x10] sm:$0xf]
      %v4268 = vld [vmem:[%s4262 + $0x14] sm:$0xf]
      %v4269 = vld [vmem:[%s4262 + $0x18] sm:$0xf]
      %v4270 = vld [vmem:[%s4262 + $0x1c] sm:$0xf]
      %v4271 = vld [vmem:[%s4262 + $0x20] sm:$0xf]
      %v4272 = vld [vmem:[%s4262 + $0x24] sm:$0xf]
      %v4273 = vld [vmem:[%s4262 + $0x28] sm:$0xf]
      %v4274 = vld [vmem:[%s4262 + $0x2c] sm:$0xf]
      %v4275 = vld [vmem:[%s4262 + $0x30] sm:$0xf]
      %v4276 = vld [vmem:[%s4262 + $0x34] sm:$0xf]
      %v4277 = vld [vmem:[%s4262 + $0x38] sm:$0xf]
      %v4278 = vld [vmem:[%s4262 + $0x3c] sm:$0xf]
      %v4279 = vunpack.c.l.b16 %v3891
      %v4280 = vunpack.c.l.b16 %v3901
      %v4281 = vunpack.c.l.b16 %v3915
      %v4282 = vunpack.c.l.b16 %v3925
      %v4283 = vunpack.c.l.b16 %v3939
      %v4284 = vunpack.c.l.b16 %v3949
      %v4285 = vunpack.c.l.b16 %v3963
      %v4286 = vunpack.c.l.b16 %v3973
      %v4287 = vunpack.c.l.b16 %v3987
      %v4288 = vunpack.c.l.b16 %v3997
      %v4289 = vunpack.c.l.b16 %v4011
      %v4290 = vunpack.c.l.b16 %v4021
      %v4291 = vunpack.c.l.b16 %v4035
      %v4292 = vunpack.c.l.b16 %v4045
      %v4293 = vunpack.c.l.b16 %v4059
      %v4294 = vunpack.c.l.b16 %v4069
      %v4295 = vunpack.c.l.b16 %v4083
      %v4296 = vunpack.c.l.b16 %v4093
      %v4297 = vunpack.c.l.b16 %v4107
      %v4298 = vunpack.c.l.b16 %v4117
      %v4299 = vunpack.c.l.b16 %v4131
      %v4300 = vunpack.c.l.b16 %v4141
      %v4301 = vunpack.c.l.b16 %v4155
      %v4302 = vunpack.c.l.b16 %v4165
      %v4303 = vunpack.c.l.b16 %v4179
      %v4304 = vunpack.c.l.b16 %v4189
      %v4305 = vunpack.c.l.b16 %v4203
      %v4306 = vunpack.c.l.b16 %v4213
      %v4307 = vunpack.c.l.b16 %v4227
      %v4308 = vunpack.c.l.b16 %v4237
      %v4309 = vunpack.c.l.b16 %v4251
      %v4310 = vunpack.c.l.b16 %v4261
      %v4311 = vpack.c.b16 %v4280, %v4279
      %v4312 = vpack.c.b16 %v4282, %v4281
      %v4313 = vpack.c.b16 %v4284, %v4283
      %v4314 = vpack.c.b16 %v4286, %v4285
      %v4315 = vpack.c.b16 %v4288, %v4287
      %v4316 = vpack.c.b16 %v4290, %v4289
      %v4317 = vpack.c.b16 %v4292, %v4291
      %v4318 = vpack.c.b16 %v4294, %v4293
      %v4319 = vpack.c.b16 %v4296, %v4295
      %v4320 = vpack.c.b16 %v4298, %v4297
      %v4321 = vpack.c.b16 %v4300, %v4299
      %v4322 = vpack.c.b16 %v4302, %v4301
      %v4323 = vpack.c.b16 %v4304, %v4303
      %v4324 = vpack.c.b16 %v4306, %v4305
      %v4325 = vpack.c.b16 %v4308, %v4307
      %v4326 = vpack.c.b16 %v4310, %v4309
      %v4359 = vunpack.c.l.b16 %v4263
      %v4360 = vunpack.c.l.b16 %v4264
      %v4361 = vunpack.c.l.b16 %v4265
      %v4362 = vunpack.c.l.b16 %v4266
      %v4363 = vunpack.c.l.b16 %v4267
      %v4364 = vunpack.c.l.b16 %v4268
      %v4365 = vunpack.c.l.b16 %v4269
      %v4366 = vunpack.c.l.b16 %v4270
      %v4367 = vunpack.c.l.b16 %v4271
      %v4368 = vunpack.c.l.b16 %v4272
      %v4369 = vunpack.c.l.b16 %v4273
      %v4370 = vunpack.c.l.b16 %v4274
      %v4371 = vunpack.c.l.b16 %v4275
      %v4372 = vunpack.c.l.b16 %v4276
      %v4373 = vunpack.c.l.b16 %v4277
      %v4374 = vunpack.c.l.b16 %v4278
      %v4375 = vpack.c.b16 %v4360, %v4359
      %v4376 = vpack.c.b16 %v4362, %v4361
      %v4377 = vpack.c.b16 %v4364, %v4363
      %v4378 = vpack.c.b16 %v4366, %v4365
      %v4379 = vpack.c.b16 %v4368, %v4367
      %v4380 = vpack.c.b16 %v4370, %v4369
      %v4381 = vpack.c.b16 %v4372, %v4371
      %v4382 = vpack.c.b16 %v4374, %v4373
      %4391 = vmatprep.subr.bf16.mxu0 0
      %4392 = vmatpush1.bf16.msra.mxu0 %v4382
      %4393 = vmatprep.subr.bf16.mxu0 0
      %4394 = vmatpush1.bf16.msra.mxu0 %v4381
      %4395 = vmatprep.subr.bf16.mxu0 0
      %4396 = vmatpush1.bf16.msra.mxu0 %v4380
      %4397 = vmatprep.subr.bf16.mxu0 0
      %4398 = vmatpush1.bf16.msra.mxu0 %v4379
      %4399 = vmatprep.subr.bf16.mxu0 0
      %4400 = vmatpush1.bf16.msra.mxu0 %v4378
      %4401 = vmatprep.subr.bf16.mxu0 0
      %4402 = vmatpush1.bf16.msra.mxu0 %v4377
      %4403 = vmatprep.subr.bf16.mxu0 0
      %4404 = vmatpush1.bf16.msra.mxu0 %v4376
      %4405 = vmatprep.subr.bf16.mxu0 0
      %4406 = vmatpush1.bf16.msra.mxu0 %v4375
      %4407 = vmatprep.subr.bf16.mxu0 0
      %4408 = vmatpush2.bf16.msra.mxu0 0
      %4409 = vmatprep.subr.bf16.mxu0 0
      %4410 = vmatpush2.bf16.msra.mxu0 0
      %4411 = vmatprep.subr.bf16.mxu0 0
      %4412 = vmatpush2.bf16.msra.mxu0 0
      %4413 = vmatprep.subr.bf16.mxu0 0
      %4414 = vmatpush2.bf16.msra.mxu0 0
      %4415 = vmatprep.subr.bf16.mxu0 0
      %4416 = vmatpush2.bf16.msra.mxu0 0
      %4417 = vmatprep.subr.bf16.mxu0 0
      %4418 = vmatpush2.bf16.msra.mxu0 0
      %4419 = vmatprep.subr.bf16.mxu0 0
      %4420 = vmatpush2.bf16.msra.mxu0 0
      %4421 = vmatprep.subr.bf16.mxu0 0
      %4422 = vmatpush2.bf16.msra.mxu0 0
      %4423 = vmatprep.mubr.bf16.mxu0 0
      %4424 = vmatmul.mubr.bf16.gmra.mxu0 %v4311
      %v4425 = vpop.f32.mrf.mxu0
      %v4426 = vadd.f32 0.0, %v4425
      %v4427 = vpop.f32.mrf.mxu0
      %v4428 = vpop.f32.mrf.mxu0
      %v4429 = vadd.f32 0.0, %v4428
      %v4430 = vpop.f32.mrf.mxu0
      %4431 = vmatprep.mubr.bf16.mxu0 0
      %4432 = vmatmul.mubr.bf16.gmra.mxu0 %v4312
      %v4433 = vpop.f32.mrf.mxu0
      %v4434 = vadd.f32 0.0, %v4433
      %v4435 = vpop.f32.mrf.mxu0
      %v4436 = vpop.f32.mrf.mxu0
      %v4437 = vadd.f32 0.0, %v4436
      %v4438 = vpop.f32.mrf.mxu0
      %4439 = vmatprep.mubr.bf16.mxu0 0
      %4440 = vmatmul.mubr.bf16.gmra.mxu0 %v4313
      %v4441 = vpop.f32.mrf.mxu0
      %v4442 = vadd.f32 0.0, %v4441
      %v4443 = vpop.f32.mrf.mxu0
      %v4444 = vpop.f32.mrf.mxu0
      %v4445 = vadd.f32 0.0, %v4444
      %v4446 = vpop.f32.mrf.mxu0
      %4447 = vmatprep.mubr.bf16.mxu0 0
      %4448 = vmatmul.mubr.bf16.gmra.mxu0 %v4314
      %v4449 = vpop.f32.mrf.mxu0
      %v4450 = vadd.f32 0.0, %v4449
      %v4451 = vpop.f32.mrf.mxu0
      %v4452 = vpop.f32.mrf.mxu0
      %v4453 = vadd.f32 0.0, %v4452
      %v4454 = vpop.f32.mrf.mxu0
      %4455 = vmatprep.mubr.bf16.mxu0 0
      %4456 = vmatmul.mubr.bf16.gmra.mxu0 %v4315
      %v4457 = vpop.f32.mrf.mxu0
      %v4458 = vadd.f32 0.0, %v4457
      %v4459 = vpop.f32.mrf.mxu0
      %v4460 = vpop.f32.mrf.mxu0
      %v4461 = vadd.f32 0.0, %v4460
      %v4462 = vpop.f32.mrf.mxu0
      %4463 = vmatprep.mubr.bf16.mxu0 0
      %4464 = vmatmul.mubr.bf16.gmra.mxu0 %v4316
      %v4465 = vpop.f32.mrf.mxu0
      %v4466 = vadd.f32 0.0, %v4465
      %v4467 = vpop.f32.mrf.mxu0
      %v4468 = vpop.f32.mrf.mxu0
      %v4469 = vadd.f32 0.0, %v4468
      %v4470 = vpop.f32.mrf.mxu0
      %4471 = vmatprep.mubr.bf16.mxu0 0
      %4472 = vmatmul.mubr.bf16.gmra.mxu0 %v4317
      %v4473 = vpop.f32.mrf.mxu0
      %v4474 = vadd.f32 0.0, %v4473
      %v4475 = vpop.f32.mrf.mxu0
      %v4476 = vpop.f32.mrf.mxu0
      %v4477 = vadd.f32 0.0, %v4476
      %v4478 = vpop.f32.mrf.mxu0
      %4479 = vmatprep.mubr.bf16.mxu0 0
      %4480 = vmatmul.mubr.bf16.gmra.mxu0 %v4318
      %v4481 = vpop.f32.mrf.mxu0
      %v4482 = vadd.f32 0.0, %v4481
      %v4483 = vpop.f32.mrf.mxu0
      %v4484 = vpop.f32.mrf.mxu0
      %v4485 = vadd.f32 0.0, %v4484
      %v4486 = vpop.f32.mrf.mxu0
      %4487 = vmatprep.mubr.bf16.mxu0 0
      %4488 = vmatmul.mubr.bf16.gmra.mxu0 %v4319
      %v4489 = vpop.f32.mrf.mxu0
      %v4490 = vadd.f32 0.0, %v4489
      %v4491 = vpop.f32.mrf.mxu0
      %v4492 = vpop.f32.mrf.mxu0
      %v4493 = vadd.f32 0.0, %v4492
      %v4494 = vpop.f32.mrf.mxu0
      %4495 = vmatprep.mubr.bf16.mxu0 0
      %4496 = vmatmul.mubr.bf16.gmra.mxu0 %v4320
      %v4497 = vpop.f32.mrf.mxu0
      %v4498 = vadd.f32 0.0, %v4497
      %v4499 = vpop.f32.mrf.mxu0
      %v4500 = vpop.f32.mrf.mxu0
      %v4501 = vadd.f32 0.0, %v4500
      %v4502 = vpop.f32.mrf.mxu0
      %4503 = vmatprep.mubr.bf16.mxu0 0
      %4504 = vmatmul.mubr.bf16.gmra.mxu0 %v4321
      %v4505 = vpop.f32.mrf.mxu0
      %v4506 = vadd.f32 0.0, %v4505
      %v4507 = vpop.f32.mrf.mxu0
      %v4508 = vpop.f32.mrf.mxu0
      %v4509 = vadd.f32 0.0, %v4508
      %v4510 = vpop.f32.mrf.mxu0
      %4511 = vmatprep.mubr.bf16.mxu0 0
      %4512 = vmatmul.mubr.bf16.gmra.mxu0 %v4322
      %v4513 = vpop.f32.mrf.mxu0
      %v4514 = vadd.f32 0.0, %v4513
      %v4515 = vpop.f32.mrf.mxu0
      %v4516 = vpop.f32.mrf.mxu0
      %v4517 = vadd.f32 0.0, %v4516
      %v4518 = vpop.f32.mrf.mxu0
      %4519 = vmatprep.mubr.bf16.mxu0 0
      %4520 = vmatmul.mubr.bf16.gmra.mxu0 %v4323
      %v4521 = vpop.f32.mrf.mxu0
      %v4522 = vadd.f32 0.0, %v4521
      %v4523 = vpop.f32.mrf.mxu0
      %v4524 = vpop.f32.mrf.mxu0
      %v4525 = vadd.f32 0.0, %v4524
      %v4526 = vpop.f32.mrf.mxu0
      %4527 = vmatprep.mubr.bf16.mxu0 0
      %4528 = vmatmul.mubr.bf16.gmra.mxu0 %v4324
      %v4529 = vpop.f32.mrf.mxu0
      %v4530 = vadd.f32 0.0, %v4529
      %v4531 = vpop.f32.mrf.mxu0
      %v4532 = vpop.f32.mrf.mxu0
      %v4533 = vadd.f32 0.0, %v4532
      %v4534 = vpop.f32.mrf.mxu0
      %4535 = vmatprep.mubr.bf16.mxu0 0
      %4536 = vmatmul.mubr.bf16.gmra.mxu0 %v4325
      %v4537 = vpop.f32.mrf.mxu0
      %v4538 = vadd.f32 0.0, %v4537
      %v4539 = vpop.f32.mrf.mxu0
      %v4540 = vpop.f32.mrf.mxu0
      %v4541 = vadd.f32 0.0, %v4540
      %v4542 = vpop.f32.mrf.mxu0
      %4543 = vmatprep.mubr.bf16.mxu0 0
      %4544 = vmatmul.mubr.bf16.gmra.mxu0 %v4326
      %v4545 = vpop.f32.mrf.mxu0
      %v4546 = vadd.f32 0.0, %v4545
      %v4547 = vpop.f32.mrf.mxu0
      %v4548 = vpop.f32.mrf.mxu0
      %v4549 = vadd.f32 0.0, %v4548
      %v4550 = vpop.f32.mrf.mxu0
      %4551 = vdwg.mxu0
      %v4552 = vadd.f32 %v3798, %v4426
      %v4553 = vadd.f32 %v3799, %v4429
      %v4554 = vadd.f32 %v3800, %v4434
      %v4555 = vadd.f32 %v3801, %v4437
      %v4556 = vadd.f32 %v3802, %v4442
      %v4557 = vadd.f32 %v3803, %v4445
      %v4558 = vadd.f32 %v3804, %v4450
      %v4559 = vadd.f32 %v3805, %v4453
      %v4560 = vadd.f32 %v3806, %v4458
      %v4561 = vadd.f32 %v3807, %v4461
      %v4562 = vadd.f32 %v3808, %v4466
      %v4563 = vadd.f32 %v3809, %v4469
      %v4564 = vadd.f32 %v3810, %v4474
      %v4565 = vadd.f32 %v3811, %v4477
      %v4566 = vadd.f32 %v3812, %v4482
      %v4567 = vadd.f32 %v3813, %v4485
      %v4568 = vadd.f32 %v3814, %v4490
      %v4569 = vadd.f32 %v3815, %v4493
      %v4570 = vadd.f32 %v3816, %v4498
      %v4571 = vadd.f32 %v3817, %v4501
      %v4572 = vadd.f32 %v3818, %v4506
      %v4573 = vadd.f32 %v3819, %v4509
      %v4574 = vadd.f32 %v3820, %v4514
      %v4575 = vadd.f32 %v3821, %v4517
      %v4576 = vadd.f32 %v3822, %v4522
      %v4577 = vadd.f32 %v3823, %v4525
      %v4578 = vadd.f32 %v3824, %v4530
      %v4579 = vadd.f32 %v3825, %v4533
      %v4580 = vadd.f32 %v3826, %v4538
      %v4581 = vadd.f32 %v3827, %v4541
      %v4582 = vadd.f32 %v3828, %v4546
      %v4583 = vadd.f32 %v3829, %v4549
      %v4584 = vld [vmem:[%s3443] sm:$0xe]
      %v4585 = vld [vmem:[%s3443 + $0xc] sm:$0xe]
      %v4586 = vld [vmem:[%s3443 + $0x18] sm:$0xe]
      %v4587 = vld [vmem:[%s3443 + $0x24] sm:$0xe]
      %v4588 = vld [vmem:[%s3443 + $0x30] sm:$0xe]
      %v4589 = vld [vmem:[%s3443 + $0x3c] sm:$0xe]
      %v4590 = vld [vmem:[%s3443 + $0x48] sm:$0xe]
      %v4591 = vld [vmem:[%s3443 + $0x54] sm:$0xe]
      %v4592 = vld [vmem:[%s3443 + $0x60] sm:$0xe]
      %v4593 = vld [vmem:[%s3443 + $0x6c] sm:$0xe]
      %v4594 = vld [vmem:[%s3443 + $0x78] sm:$0xe]
      %v4595 = vld [vmem:[%s3443 + $0x84] sm:$0xe]
      %v4596 = vld [vmem:[%s3443 + $0x90] sm:$0xe]
      %v4597 = vld [vmem:[%s3443 + $0x9c] sm:$0xe]
      %v4598 = vld [vmem:[%s3443 + $0xa8] sm:$0xe]
      %v4599 = vld [vmem:[%s3443 + $0xb4] sm:$0xe]
      %v4648 = vrot.slane %v4584, 5
      %v4649 = vrot.slane %v4648, 4
      %v4650 = vrot.slane %v3831, 5
      %v4651 = vsel %vm1369, %v4649, %v4650
      %v4652 = vrot.slane %v4650, 4
      %v4653 = vrot.slane %v3832, 5
      %v4654 = vsel %vm1369, %v4652, %v4653
      %v4655 = vrot.slane %v4585, 5
      %v4656 = vrot.slane %v4655, 4
      %v4657 = vrot.slane %v3834, 5
      %v4658 = vsel %vm1369, %v4656, %v4657
      %v4659 = vrot.slane %v4657, 4
      %v4660 = vrot.slane %v3835, 5
      %v4661 = vsel %vm1369, %v4659, %v4660
      %v4662 = vrot.slane %v4586, 5
      %v4663 = vrot.slane %v4662, 4
      %v4664 = vrot.slane %v3837, 5
      %v4665 = vsel %vm1369, %v4663, %v4664
      %v4666 = vrot.slane %v4664, 4
      %v4667 = vrot.slane %v3838, 5
      %v4668 = vsel %vm1369, %v4666, %v4667
      %v4669 = vrot.slane %v4587, 5
      %v4670 = vrot.slane %v4669, 4
      %v4671 = vrot.slane %v3840, 5
      %v4672 = vsel %vm1369, %v4670, %v4671
      %v4673 = vrot.slane %v4671, 4
      %v4674 = vrot.slane %v3841, 5
      %v4675 = vsel %vm1369, %v4673, %v4674
      %v4676 = vrot.slane %v4588, 5
      %v4677 = vrot.slane %v4676, 4
      %v4678 = vrot.slane %v3843, 5
      %v4679 = vsel %vm1369, %v4677, %v4678
      %v4680 = vrot.slane %v4678, 4
      %v4681 = vrot.slane %v3844, 5
      %v4682 = vsel %vm1369, %v4680, %v4681
      %v4683 = vrot.slane %v4589, 5
      %v4684 = vrot.slane %v4683, 4
      %v4685 = vrot.slane %v3846, 5
      %v4686 = vsel %vm1369, %v4684, %v4685
      %v4687 = vrot.slane %v4685, 4
      %v4688 = vrot.slane %v3847, 5
      %v4689 = vsel %vm1369, %v4687, %v4688
      %v4690 = vrot.slane %v4590, 5
      %v4691 = vrot.slane %v4690, 4
      %v4692 = vrot.slane %v3849, 5
      %v4693 = vsel %vm1369, %v4691, %v4692
      %v4694 = vrot.slane %v4692, 4
      %v4695 = vrot.slane %v3850, 5
      %v4696 = vsel %vm1369, %v4694, %v4695
      %v4697 = vrot.slane %v4591, 5
      %v4698 = vrot.slane %v4697, 4
      %v4699 = vrot.slane %v3852, 5
      %v4700 = vsel %vm1369, %v4698, %v4699
      %v4701 = vrot.slane %v4699, 4
      %v4702 = vrot.slane %v3853, 5
      %v4703 = vsel %vm1369, %v4701, %v4702
      %v4704 = vrot.slane %v4592, 5
      %v4705 = vrot.slane %v4704, 4
      %v4706 = vrot.slane %v3855, 5
      %v4707 = vsel %vm1369, %v4705, %v4706
      %v4708 = vrot.slane %v4706, 4
      %v4709 = vrot.slane %v3856, 5
      %v4710 = vsel %vm1369, %v4708, %v4709
      %v4711 = vrot.slane %v4593, 5
      %v4712 = vrot.slane %v4711, 4
      %v4713 = vrot.slane %v3858, 5
      %v4714 = vsel %vm1369, %v4712, %v4713
      %v4715 = vrot.slane %v4713, 4
      %v4716 = vrot.slane %v3859, 5
      %v4717 = vsel %vm1369, %v4715, %v4716
      %v4718 = vrot.slane %v4594, 5
      %v4719 = vrot.slane %v4718, 4
      %v4720 = vrot.slane %v3861, 5
      %v4721 = vsel %vm1369, %v4719, %v4720
      %v4722 = vrot.slane %v4720, 4
      %v4723 = vrot.slane %v3862, 5
      %v4724 = vsel %vm1369, %v4722, %v4723
      %v4725 = vrot.slane %v4595, 5
      %v4726 = vrot.slane %v4725, 4
      %v4727 = vrot.slane %v3864, 5
      %v4728 = vsel %vm1369, %v4726, %v4727
      %v4729 = vrot.slane %v4727, 4
      %v4730 = vrot.slane %v3865, 5
      %v4731 = vsel %vm1369, %v4729, %v4730
      %v4732 = vrot.slane %v4596, 5
      %v4733 = vrot.slane %v4732, 4
      %v4734 = vrot.slane %v3867, 5
      %v4735 = vsel %vm1369, %v4733, %v4734
      %v4736 = vrot.slane %v4734, 4
      %v4737 = vrot.slane %v3868, 5
      %v4738 = vsel %vm1369, %v4736, %v4737
      %v4739 = vrot.slane %v4597, 5
      %v4740 = vrot.slane %v4739, 4
      %v4741 = vrot.slane %v3870, 5
      %v4742 = vsel %vm1369, %v4740, %v4741
      %v4743 = vrot.slane %v4741, 4
      %v4744 = vrot.slane %v3871, 5
      %v4745 = vsel %vm1369, %v4743, %v4744
      %v4746 = vrot.slane %v4598, 5
      %v4747 = vrot.slane %v4746, 4
      %v4748 = vrot.slane %v3873, 5
      %v4749 = vsel %vm1369, %v4747, %v4748
      %v4750 = vrot.slane %v4748, 4
      %v4751 = vrot.slane %v3874, 5
      %v4752 = vsel %vm1369, %v4750, %v4751
      %v4753 = vrot.slane %v4599, 5
      %v4754 = vrot.slane %v4753, 4
      %v4755 = vrot.slane %v3876, 5
      %v4756 = vsel %vm1369, %v4754, %v4755
      %v4757 = vrot.slane %v4755, 4
      %v4758 = vrot.slane %v3877, 5
      %v4759 = vsel %vm1369, %v4757, %v4758
      %s4760 = scalar_lea.vmem %s1, 512
      %v4761 = vld [vmem:[%s4760] sm:$0xf]
      %v4762 = vld [vmem:[%s4760 + $0x4] sm:$0xf]
      %v4763 = vld [vmem:[%s4760 + $0x8] sm:$0xf]
      %v4764 = vld [vmem:[%s4760 + $0xc] sm:$0xf]
      %v4765 = vld [vmem:[%s4760 + $0x10] sm:$0xf]
      %v4766 = vld [vmem:[%s4760 + $0x14] sm:$0xf]
      %v4767 = vld [vmem:[%s4760 + $0x18] sm:$0xf]
      %v4768 = vld [vmem:[%s4760 + $0x1c] sm:$0xf]
      %v4769 = vld [vmem:[%s4760 + $0x20] sm:$0xf]
      %v4770 = vld [vmem:[%s4760 + $0x24] sm:$0xf]
      %v4771 = vld [vmem:[%s4760 + $0x28] sm:$0xf]
      %v4772 = vld [vmem:[%s4760 + $0x2c] sm:$0xf]
      %v4773 = vld [vmem:[%s4760 + $0x30] sm:$0xf]
      %v4774 = vld [vmem:[%s4760 + $0x34] sm:$0xf]
      %v4775 = vld [vmem:[%s4760 + $0x38] sm:$0xf]
      %v4776 = vld [vmem:[%s4760 + $0x3c] sm:$0xf]
      %v4777 = vunpack.c.l.b16 %v4651
      %v4778 = vunpack.c.l.b16 %v4654
      %v4779 = vunpack.c.l.b16 %v4658
      %v4780 = vunpack.c.l.b16 %v4661
      %v4781 = vunpack.c.l.b16 %v4665
      %v4782 = vunpack.c.l.b16 %v4668
      %v4783 = vunpack.c.l.b16 %v4672
      %v4784 = vunpack.c.l.b16 %v4675
      %v4785 = vunpack.c.l.b16 %v4679
      %v4786 = vunpack.c.l.b16 %v4682
      %v4787 = vunpack.c.l.b16 %v4686
      %v4788 = vunpack.c.l.b16 %v4689
      %v4789 = vunpack.c.l.b16 %v4693
      %v4790 = vunpack.c.l.b16 %v4696
      %v4791 = vunpack.c.l.b16 %v4700
      %v4792 = vunpack.c.l.b16 %v4703
      %v4793 = vunpack.c.l.b16 %v4707
      %v4794 = vunpack.c.l.b16 %v4710
      %v4795 = vunpack.c.l.b16 %v4714
      %v4796 = vunpack.c.l.b16 %v4717
      %v4797 = vunpack.c.l.b16 %v4721
      %v4798 = vunpack.c.l.b16 %v4724
      %v4799 = vunpack.c.l.b16 %v4728
      %v4800 = vunpack.c.l.b16 %v4731
      %v4801 = vunpack.c.l.b16 %v4735
      %v4802 = vunpack.c.l.b16 %v4738
      %v4803 = vunpack.c.l.b16 %v4742
      %v4804 = vunpack.c.l.b16 %v4745
      %v4805 = vunpack.c.l.b16 %v4749
      %v4806 = vunpack.c.l.b16 %v4752
      %v4807 = vunpack.c.l.b16 %v4756
      %v4808 = vunpack.c.l.b16 %v4759
      %v4809 = vpack.c.b16 %v4778, %v4777
      %v4810 = vpack.c.b16 %v4780, %v4779
      %v4811 = vpack.c.b16 %v4782, %v4781
      %v4812 = vpack.c.b16 %v4784, %v4783
      %v4813 = vpack.c.b16 %v4786, %v4785
      %v4814 = vpack.c.b16 %v4788, %v4787
      %v4815 = vpack.c.b16 %v4790, %v4789
      %v4816 = vpack.c.b16 %v4792, %v4791
      %v4817 = vpack.c.b16 %v4794, %v4793
      %v4818 = vpack.c.b16 %v4796, %v4795
      %v4819 = vpack.c.b16 %v4798, %v4797
      %v4820 = vpack.c.b16 %v4800, %v4799
      %v4821 = vpack.c.b16 %v4802, %v4801
      %v4822 = vpack.c.b16 %v4804, %v4803
      %v4823 = vpack.c.b16 %v4806, %v4805
      %v4824 = vpack.c.b16 %v4808, %v4807
      %v4857 = vunpack.c.l.b16 %v4761
      %v4858 = vunpack.c.l.b16 %v4762
      %v4859 = vunpack.c.l.b16 %v4763
      %v4860 = vunpack.c.l.b16 %v4764
      %v4861 = vunpack.c.l.b16 %v4765
      %v4862 = vunpack.c.l.b16 %v4766
      %v4863 = vunpack.c.l.b16 %v4767
      %v4864 = vunpack.c.l.b16 %v4768
      %v4865 = vunpack.c.l.b16 %v4769
      %v4866 = vunpack.c.l.b16 %v4770
      %v4867 = vunpack.c.l.b16 %v4771
      %v4868 = vunpack.c.l.b16 %v4772
      %v4869 = vunpack.c.l.b16 %v4773
      %v4870 = vunpack.c.l.b16 %v4774
      %v4871 = vunpack.c.l.b16 %v4775
      %v4872 = vunpack.c.l.b16 %v4776
      %v4873 = vpack.c.b16 %v4858, %v4857
      %v4874 = vpack.c.b16 %v4860, %v4859
      %v4875 = vpack.c.b16 %v4862, %v4861
      %v4876 = vpack.c.b16 %v4864, %v4863
      %v4877 = vpack.c.b16 %v4866, %v4865
      %v4878 = vpack.c.b16 %v4868, %v4867
      %v4879 = vpack.c.b16 %v4870, %v4869
      %v4880 = vpack.c.b16 %v4872, %v4871
      %4889 = vmatprep.subr.bf16.mxu0 0
      %4890 = vmatpush1.bf16.msra.mxu0 %v4880
      %4891 = vmatprep.subr.bf16.mxu0 0
      %4892 = vmatpush1.bf16.msra.mxu0 %v4879
      %4893 = vmatprep.subr.bf16.mxu0 0
      %4894 = vmatpush1.bf16.msra.mxu0 %v4878
      %4895 = vmatprep.subr.bf16.mxu0 0
      %4896 = vmatpush1.bf16.msra.mxu0 %v4877
      %4897 = vmatprep.subr.bf16.mxu0 0
      %4898 = vmatpush1.bf16.msra.mxu0 %v4876
      %4899 = vmatprep.subr.bf16.mxu0 0
      %4900 = vmatpush1.bf16.msra.mxu0 %v4875
      %4901 = vmatprep.subr.bf16.mxu0 0
      %4902 = vmatpush1.bf16.msra.mxu0 %v4874
      %4903 = vmatprep.subr.bf16.mxu0 0
      %4904 = vmatpush1.bf16.msra.mxu0 %v4873
      %4905 = vmatprep.subr.bf16.mxu0 0
      %4906 = vmatpush2.bf16.msra.mxu0 0
      %4907 = vmatprep.subr.bf16.mxu0 0
      %4908 = vmatpush2.bf16.msra.mxu0 0
      %4909 = vmatprep.subr.bf16.mxu0 0
      %4910 = vmatpush2.bf16.msra.mxu0 0
      %4911 = vmatprep.subr.bf16.mxu0 0
      %4912 = vmatpush2.bf16.msra.mxu0 0
      %4913 = vmatprep.subr.bf16.mxu0 0
      %4914 = vmatpush2.bf16.msra.mxu0 0
      %4915 = vmatprep.subr.bf16.mxu0 0
      %4916 = vmatpush2.bf16.msra.mxu0 0
      %4917 = vmatprep.subr.bf16.mxu0 0
      %4918 = vmatpush2.bf16.msra.mxu0 0
      %4919 = vmatprep.subr.bf16.mxu0 0
      %4920 = vmatpush2.bf16.msra.mxu0 0
      %4921 = vmatprep.mubr.bf16.mxu0 0
      %4922 = vmatmul.mubr.bf16.gmra.mxu0 %v4809
      %v4923 = vpop.f32.mrf.mxu0
      %v4924 = vadd.f32 0.0, %v4923
      %v4925 = vpop.f32.mrf.mxu0
      %v4926 = vpop.f32.mrf.mxu0
      %v4927 = vadd.f32 0.0, %v4926
      %v4928 = vpop.f32.mrf.mxu0
      %4929 = vmatprep.mubr.bf16.mxu0 0
      %4930 = vmatmul.mubr.bf16.gmra.mxu0 %v4810
      %v4931 = vpop.f32.mrf.mxu0
      %v4932 = vadd.f32 0.0, %v4931
      %v4933 = vpop.f32.mrf.mxu0
      %v4934 = vpop.f32.mrf.mxu0
      %v4935 = vadd.f32 0.0, %v4934
      %v4936 = vpop.f32.mrf.mxu0
      %4937 = vmatprep.mubr.bf16.mxu0 0
      %4938 = vmatmul.mubr.bf16.gmra.mxu0 %v4811
      %v4939 = vpop.f32.mrf.mxu0
      %v4940 = vadd.f32 0.0, %v4939
      %v4941 = vpop.f32.mrf.mxu0
      %v4942 = vpop.f32.mrf.mxu0
      %v4943 = vadd.f32 0.0, %v4942
      %v4944 = vpop.f32.mrf.mxu0
      %4945 = vmatprep.mubr.bf16.mxu0 0
      %4946 = vmatmul.mubr.bf16.gmra.mxu0 %v4812
      %v4947 = vpop.f32.mrf.mxu0
      %v4948 = vadd.f32 0.0, %v4947
      %v4949 = vpop.f32.mrf.mxu0
      %v4950 = vpop.f32.mrf.mxu0
      %v4951 = vadd.f32 0.0, %v4950
      %v4952 = vpop.f32.mrf.mxu0
      %4953 = vmatprep.mubr.bf16.mxu0 0
      %4954 = vmatmul.mubr.bf16.gmra.mxu0 %v4813
      %v4955 = vpop.f32.mrf.mxu0
      %v4956 = vadd.f32 0.0, %v4955
      %v4957 = vpop.f32.mrf.mxu0
      %v4958 = vpop.f32.mrf.mxu0
      %v4959 = vadd.f32 0.0, %v4958
      %v4960 = vpop.f32.mrf.mxu0
      %4961 = vmatprep.mubr.bf16.mxu0 0
      %4962 = vmatmul.mubr.bf16.gmra.mxu0 %v4814
      %v4963 = vpop.f32.mrf.mxu0
      %v4964 = vadd.f32 0.0, %v4963
      %v4965 = vpop.f32.mrf.mxu0
      %v4966 = vpop.f32.mrf.mxu0
      %v4967 = vadd.f32 0.0, %v4966
      %v4968 = vpop.f32.mrf.mxu0
      %4969 = vmatprep.mubr.bf16.mxu0 0
      %4970 = vmatmul.mubr.bf16.gmra.mxu0 %v4815
      %v4971 = vpop.f32.mrf.mxu0
      %v4972 = vadd.f32 0.0, %v4971
      %v4973 = vpop.f32.mrf.mxu0
      %v4974 = vpop.f32.mrf.mxu0
      %v4975 = vadd.f32 0.0, %v4974
      %v4976 = vpop.f32.mrf.mxu0
      %4977 = vmatprep.mubr.bf16.mxu0 0
      %4978 = vmatmul.mubr.bf16.gmra.mxu0 %v4816
      %v4979 = vpop.f32.mrf.mxu0
      %v4980 = vadd.f32 0.0, %v4979
      %v4981 = vpop.f32.mrf.mxu0
      %v4982 = vpop.f32.mrf.mxu0
      %v4983 = vadd.f32 0.0, %v4982
      %v4984 = vpop.f32.mrf.mxu0
      %4985 = vmatprep.mubr.bf16.mxu0 0
      %4986 = vmatmul.mubr.bf16.gmra.mxu0 %v4817
      %v4987 = vpop.f32.mrf.mxu0
      %v4988 = vadd.f32 0.0, %v4987
      %v4989 = vpop.f32.mrf.mxu0
      %v4990 = vpop.f32.mrf.mxu0
      %v4991 = vadd.f32 0.0, %v4990
      %v4992 = vpop.f32.mrf.mxu0
      %4993 = vmatprep.mubr.bf16.mxu0 0
      %4994 = vmatmul.mubr.bf16.gmra.mxu0 %v4818
      %v4995 = vpop.f32.mrf.mxu0
      %v4996 = vadd.f32 0.0, %v4995
      %v4997 = vpop.f32.mrf.mxu0
      %v4998 = vpop.f32.mrf.mxu0
      %v4999 = vadd.f32 0.0, %v4998
      %v5000 = vpop.f32.mrf.mxu0
      %5001 = vmatprep.mubr.bf16.mxu0 0
      %5002 = vmatmul.mubr.bf16.gmra.mxu0 %v4819
      %v5003 = vpop.f32.mrf.mxu0
      %v5004 = vadd.f32 0.0, %v5003
      %v5005 = vpop.f32.mrf.mxu0
      %v5006 = vpop.f32.mrf.mxu0
      %v5007 = vadd.f32 0.0, %v5006
      %v5008 = vpop.f32.mrf.mxu0
      %5009 = vmatprep.mubr.bf16.mxu0 0
      %5010 = vmatmul.mubr.bf16.gmra.mxu0 %v4820
      %v5011 = vpop.f32.mrf.mxu0
      %v5012 = vadd.f32 0.0, %v5011
      %v5013 = vpop.f32.mrf.mxu0
      %v5014 = vpop.f32.mrf.mxu0
      %v5015 = vadd.f32 0.0, %v5014
      %v5016 = vpop.f32.mrf.mxu0
      %5017 = vmatprep.mubr.bf16.mxu0 0
      %5018 = vmatmul.mubr.bf16.gmra.mxu0 %v4821
      %v5019 = vpop.f32.mrf.mxu0
      %v5020 = vadd.f32 0.0, %v5019
      %v5021 = vpop.f32.mrf.mxu0
      %v5022 = vpop.f32.mrf.mxu0
      %v5023 = vadd.f32 0.0, %v5022
      %v5024 = vpop.f32.mrf.mxu0
      %5025 = vmatprep.mubr.bf16.mxu0 0
      %5026 = vmatmul.mubr.bf16.gmra.mxu0 %v4822
      %v5027 = vpop.f32.mrf.mxu0
      %v5028 = vadd.f32 0.0, %v5027
      %v5029 = vpop.f32.mrf.mxu0
      %v5030 = vpop.f32.mrf.mxu0
      %v5031 = vadd.f32 0.0, %v5030
      %v5032 = vpop.f32.mrf.mxu0
      %5033 = vmatprep.mubr.bf16.mxu0 0
      %5034 = vmatmul.mubr.bf16.gmra.mxu0 %v4823
      %v5035 = vpop.f32.mrf.mxu0
      %v5036 = vadd.f32 0.0, %v5035
      %v5037 = vpop.f32.mrf.mxu0
      %v5038 = vpop.f32.mrf.mxu0
      %v5039 = vadd.f32 0.0, %v5038
      %v5040 = vpop.f32.mrf.mxu0
      %5041 = vmatprep.mubr.bf16.mxu0 0
      %5042 = vmatmul.mubr.bf16.gmra.mxu0 %v4824
      %v5043 = vpop.f32.mrf.mxu0
      %v5044 = vadd.f32 0.0, %v5043
      %v5045 = vpop.f32.mrf.mxu0
      %v5046 = vpop.f32.mrf.mxu0
      %v5047 = vadd.f32 0.0, %v5046
      %v5048 = vpop.f32.mrf.mxu0
      %5049 = vdwg.mxu0
      %v5050 = vadd.f32 %v4552, %v4924
      %v5051 = vadd.f32 %v4553, %v4927
      %v5052 = vadd.f32 %v4554, %v4932
      %v5053 = vadd.f32 %v4555, %v4935
      %v5054 = vadd.f32 %v4556, %v4940
      %v5055 = vadd.f32 %v4557, %v4943
      %v5056 = vadd.f32 %v4558, %v4948
      %v5057 = vadd.f32 %v4559, %v4951
      %v5058 = vadd.f32 %v4560, %v4956
      %v5059 = vadd.f32 %v4561, %v4959
      %v5060 = vadd.f32 %v4562, %v4964
      %v5061 = vadd.f32 %v4563, %v4967
      %v5062 = vadd.f32 %v4564, %v4972
      %v5063 = vadd.f32 %v4565, %v4975
      %v5064 = vadd.f32 %v4566, %v4980
      %v5065 = vadd.f32 %v4567, %v4983
      %v5066 = vadd.f32 %v4568, %v4988
      %v5067 = vadd.f32 %v4569, %v4991
      %v5068 = vadd.f32 %v4570, %v4996
      %v5069 = vadd.f32 %v4571, %v4999
      %v5070 = vadd.f32 %v4572, %v5004
      %v5071 = vadd.f32 %v4573, %v5007
      %v5072 = vadd.f32 %v4574, %v5012
      %v5073 = vadd.f32 %v4575, %v5015
      %v5074 = vadd.f32 %v4576, %v5020
      %v5075 = vadd.f32 %v4577, %v5023
      %v5076 = vadd.f32 %v4578, %v5028
      %v5077 = vadd.f32 %v4579, %v5031
      %v5078 = vadd.f32 %v4580, %v5036
      %v5079 = vadd.f32 %v4581, %v5039
      %v5080 = vadd.f32 %v4582, %v5044
      %v5081 = vadd.f32 %v4583, %v5047
      %v5082 = vld [vmem:[%s3] sm:$0x1]
      %v5084 = vlaneseq
      %v5085 = vshrl.u32 %v5084, 7
      %v5086 = vsub.s32 0, %v5085
      %v5087 = vrot.slane %v5082, %v5086
      %v5089 = vadd.f32 %v5050, %v5087
      %v5090 = vadd.f32 %v5051, %v5087
      %v5091 = vadd.f32 %v5052, %v5087
      %v5092 = vadd.f32 %v5053, %v5087
      %v5093 = vadd.f32 %v5054, %v5087
      %v5094 = vadd.f32 %v5055, %v5087
      %v5095 = vadd.f32 %v5056, %v5087
      %v5096 = vadd.f32 %v5057, %v5087
      %v5097 = vadd.f32 %v5058, %v5087
      %v5098 = vadd.f32 %v5059, %v5087
      %v5099 = vadd.f32 %v5060, %v5087
      %v5100 = vadd.f32 %v5061, %v5087
      %v5101 = vadd.f32 %v5062, %v5087
      %v5102 = vadd.f32 %v5063, %v5087
      %v5103 = vadd.f32 %v5064, %v5087
      %v5104 = vadd.f32 %v5065, %v5087
      %v5105 = vadd.f32 %v5066, %v5087
      %v5106 = vadd.f32 %v5067, %v5087
      %v5107 = vadd.f32 %v5068, %v5087
      %v5108 = vadd.f32 %v5069, %v5087
      %v5109 = vadd.f32 %v5070, %v5087
      %v5110 = vadd.f32 %v5071, %v5087
      %v5111 = vadd.f32 %v5072, %v5087
      %v5112 = vadd.f32 %v5073, %v5087
      %v5113 = vadd.f32 %v5074, %v5087
      %v5114 = vadd.f32 %v5075, %v5087
      %v5115 = vadd.f32 %v5076, %v5087
      %v5116 = vadd.f32 %v5077, %v5087
      %v5117 = vadd.f32 %v5078, %v5087
      %v5118 = vadd.f32 %v5079, %v5087
      %v5119 = vadd.f32 %v5080, %v5087
      %v5120 = vadd.f32 %v5081, %v5087
      %v5121 = vmax.f32 %v5089, 0.0
      %v5122 = vmax.f32 %v5090, 0.0
      %v5123 = vmax.f32 %v5091, 0.0
      %v5124 = vmax.f32 %v5092, 0.0
      %v5125 = vmax.f32 %v5093, 0.0
      %v5126 = vmax.f32 %v5094, 0.0
      %v5127 = vmax.f32 %v5095, 0.0
      %v5128 = vmax.f32 %v5096, 0.0
      %v5129 = vmax.f32 %v5097, 0.0
      %v5130 = vmax.f32 %v5098, 0.0
      %v5131 = vmax.f32 %v5099, 0.0
      %v5132 = vmax.f32 %v5100, 0.0
      %v5133 = vmax.f32 %v5101, 0.0
      %v5134 = vmax.f32 %v5102, 0.0
      %v5135 = vmax.f32 %v5103, 0.0
      %v5136 = vmax.f32 %v5104, 0.0
      %v5137 = vmax.f32 %v5105, 0.0
      %v5138 = vmax.f32 %v5106, 0.0
      %v5139 = vmax.f32 %v5107, 0.0
      %v5140 = vmax.f32 %v5108, 0.0
      %v5141 = vmax.f32 %v5109, 0.0
      %v5142 = vmax.f32 %v5110, 0.0
      %v5143 = vmax.f32 %v5111, 0.0
      %v5144 = vmax.f32 %v5112, 0.0
      %v5145 = vmax.f32 %v5113, 0.0
      %v5146 = vmax.f32 %v5114, 0.0
      %v5147 = vmax.f32 %v5115, 0.0
      %v5148 = vmax.f32 %v5116, 0.0
      %v5149 = vmax.f32 %v5117, 0.0
      %v5150 = vmax.f32 %v5118, 0.0
      %v5151 = vmax.f32 %v5119, 0.0
      %v5152 = vmax.f32 %v5120, 0.0
      %5153 = vst [vmem:[#allocation2] sm:$0xf] 0
      %5154 = vst [vmem:[#allocation2 + $0x4] sm:$0xf] 0
      %5155 = vst [vmem:[#allocation2 + $0x8] sm:$0x1] 0
      %5156 = vst [vmem:[#allocation2 + $0xc] sm:$0xf] 0
      %5157 = vst [vmem:[#allocation2 + $0x10] sm:$0xf] 0
      %5158 = vst [vmem:[#allocation2 + $0x14] sm:$0x1] 0
      %5159 = vst [vmem:[#allocation2 + $0x18] sm:$0xf] 0
      %5160 = vst [vmem:[#allocation2 + $0x1c] sm:$0xf] 0
      %5161 = vst [vmem:[#allocation2 + $0x20] sm:$0x1] 0
      %5162 = vst [vmem:[#allocation2 + $0x24] sm:$0xf] 0
      %5163 = vst [vmem:[#allocation2 + $0x28] sm:$0xf] 0
      %5164 = vst [vmem:[#allocation2 + $0x2c] sm:$0x1] 0
      %5165 = vst [vmem:[#allocation2 + $0x30] sm:$0xf] 0
      %5166 = vst [vmem:[#allocation2 + $0x34] sm:$0xf] 0
      %5167 = vst [vmem:[#allocation2 + $0x38] sm:$0x1] 0
      %5168 = vst [vmem:[#allocation2 + $0x3c] sm:$0xf] 0
      %5169 = vst [vmem:[#allocation2 + $0x40] sm:$0xf] 0
      %5170 = vst [vmem:[#allocation2 + $0x44] sm:$0x1] 0
      %5171 = vst [vmem:[#allocation2 + $0x48] sm:$0xf] 0
      %5172 = vst [vmem:[#allocation2 + $0x4c] sm:$0xf] 0
      %5173 = vst [vmem:[#allocation2 + $0x50] sm:$0x1] 0
      %5174 = vst [vmem:[#allocation2 + $0x54] sm:$0xf] 0
      %5175 = vst [vmem:[#allocation2 + $0x58] sm:$0xf] 0
      %5176 = vst [vmem:[#allocation2 + $0x5c] sm:$0x1] 0
      %5177 = vst [vmem:[#allocation2 + $0x60] sm:$0xf] 0
      %5178 = vst [vmem:[#allocation2 + $0x64] sm:$0xf] 0
      %5179 = vst [vmem:[#allocation2 + $0x68] sm:$0x1] 0
      %5180 = vst [vmem:[#allocation2 + $0x6c] sm:$0xf] 0
      %5181 = vst [vmem:[#allocation2 + $0x70] sm:$0xf] 0
      %5182 = vst [vmem:[#allocation2 + $0x74] sm:$0x1] 0
      %5183 = vst [vmem:[#allocation2 + $0x78] sm:$0xf] 0
      %5184 = vst [vmem:[#allocation2 + $0x7c] sm:$0xf] 0
      %5185 = vst [vmem:[#allocation2 + $0x80] sm:$0x1] 0
      %5186 = vst [vmem:[#allocation2 + $0x84] sm:$0xf] 0
      %5187 = vst [vmem:[#allocation2 + $0x88] sm:$0xf] 0
      %5188 = vst [vmem:[#allocation2 + $0x8c] sm:$0x1] 0
      %5189 = vst [vmem:[#allocation2 + $0x90] sm:$0xf] 0
      %5190 = vst [vmem:[#allocation2 + $0x94] sm:$0xf] 0
      %5191 = vst [vmem:[#allocation2 + $0x98] sm:$0x1] 0
      %5192 = vst [vmem:[#allocation2 + $0x9c] sm:$0xf] 0
      %5193 = vst [vmem:[#allocation2 + $0xa0] sm:$0xf] 0
      %5194 = vst [vmem:[#allocation2 + $0xa4] sm:$0x1] 0
      %5195 = vst [vmem:[#allocation2 + $0xa8] sm:$0xf] 0
      %5196 = vst [vmem:[#allocation2 + $0xac] sm:$0xf] 0
      %5197 = vst [vmem:[#allocation2 + $0xb0] sm:$0x1] 0
      %5198 = vst [vmem:[#allocation2 + $0xb4] sm:$0xf] 0
      %5199 = vst [vmem:[#allocation2 + $0xb8] sm:$0xf] 0
      %5200 = vst [vmem:[#allocation2 + $0xbc] sm:$0x1] 0
      %5201 = vst [vmem:[#allocation2 + $0xc0] sm:$0xf] 0
      %5202 = vst [vmem:[#allocation2 + $0xc4] sm:$0xf] 0
      %5203 = vst [vmem:[#allocation2 + $0xc8] sm:$0x1] 0
      %5204 = vst [vmem:[#allocation2 + $0xcc] sm:$0xf] 0
      %5205 = vst [vmem:[#allocation2 + $0xd0] sm:$0xf] 0
      %5206 = vst [vmem:[#allocation2 + $0xd4] sm:$0x1] 0
      %v5207 = vpack.c.bf16 %v5122, %v5121
      %v5208 = vpack.c.bf16 %v5124, %v5123
      %v5209 = vpack.c.bf16 %v5126, %v5125
      %v5210 = vpack.c.bf16 %v5128, %v5127
      %v5211 = vpack.c.bf16 %v5130, %v5129
      %v5212 = vpack.c.bf16 %v5132, %v5131
      %v5213 = vpack.c.bf16 %v5134, %v5133
      %v5214 = vpack.c.bf16 %v5136, %v5135
      %v5215 = vpack.c.bf16 %v5138, %v5137
      %v5216 = vpack.c.bf16 %v5140, %v5139
      %v5217 = vpack.c.bf16 %v5142, %v5141
      %v5218 = vpack.c.bf16 %v5144, %v5143
      %v5219 = vpack.c.bf16 %v5146, %v5145
      %v5220 = vpack.c.bf16 %v5148, %v5147
      %v5221 = vpack.c.bf16 %v5150, %v5149
      %v5222 = vpack.c.bf16 %v5152, %v5151
      %v5239 = vunpack.c.l.b16 %v5207
      %v5240 = vunpack.c.h.b16 %v5207
      %v5241 = vunpack.c.l.b16 %v5208
      %v5242 = vunpack.c.h.b16 %v5208
      %v5243 = vunpack.c.l.b16 %v5209
      %v5244 = vunpack.c.h.b16 %v5209
      %v5245 = vunpack.c.l.b16 %v5210
      %v5246 = vunpack.c.h.b16 %v5210
      %v5247 = vunpack.c.l.b16 %v5211
      %v5248 = vunpack.c.h.b16 %v5211
      %v5249 = vunpack.c.l.b16 %v5212
      %v5250 = vunpack.c.h.b16 %v5212
      %v5251 = vunpack.c.l.b16 %v5213
      %v5252 = vunpack.c.h.b16 %v5213
      %v5253 = vunpack.c.l.b16 %v5214
      %v5254 = vunpack.c.h.b16 %v5214
      %v5255 = vunpack.c.l.b16 %v5215
      %v5256 = vunpack.c.h.b16 %v5215
      %v5257 = vunpack.c.l.b16 %v5216
      %v5258 = vunpack.c.h.b16 %v5216
      %v5259 = vunpack.c.l.b16 %v5217
      %v5260 = vunpack.c.h.b16 %v5217
      %v5261 = vunpack.c.l.b16 %v5218
      %v5262 = vunpack.c.h.b16 %v5218
      %v5263 = vunpack.c.l.b16 %v5219
      %v5264 = vunpack.c.h.b16 %v5219
      %v5265 = vunpack.c.l.b16 %v5220
      %v5266 = vunpack.c.h.b16 %v5220
      %v5267 = vunpack.c.l.b16 %v5221
      %v5268 = vunpack.c.h.b16 %v5221
      %v5269 = vunpack.c.l.b16 %v5222
      %v5270 = vunpack.c.h.b16 %v5222
      %v5271 = vpack.c.b16 %v5239, %v5239
      %v5272 = vpack.c.b16 %v5240, %v5240
      %v5273 = vpack.c.b16 %v5241, %v5241
      %v5274 = vpack.c.b16 %v5242, %v5242
      %v5275 = vpack.c.b16 %v5243, %v5243
      %v5276 = vpack.c.b16 %v5244, %v5244
      %v5277 = vpack.c.b16 %v5245, %v5245
      %v5278 = vpack.c.b16 %v5246, %v5246
      %v5279 = vpack.c.b16 %v5247, %v5247
      %v5280 = vpack.c.b16 %v5248, %v5248
      %v5281 = vpack.c.b16 %v5249, %v5249
      %v5282 = vpack.c.b16 %v5250, %v5250
      %v5283 = vpack.c.b16 %v5251, %v5251
      %v5284 = vpack.c.b16 %v5252, %v5252
      %v5285 = vpack.c.b16 %v5253, %v5253
      %v5286 = vpack.c.b16 %v5254, %v5254
      %v5287 = vpack.c.b16 %v5255, %v5255
      %v5288 = vpack.c.b16 %v5256, %v5256
      %v5289 = vpack.c.b16 %v5257, %v5257
      %v5290 = vpack.c.b16 %v5258, %v5258
      %v5291 = vpack.c.b16 %v5259, %v5259
      %v5292 = vpack.c.b16 %v5260, %v5260
      %v5293 = vpack.c.b16 %v5261, %v5261
      %v5294 = vpack.c.b16 %v5262, %v5262
      %v5295 = vpack.c.b16 %v5263, %v5263
      %v5296 = vpack.c.b16 %v5264, %v5264
      %v5297 = vpack.c.b16 %v5265, %v5265
      %v5298 = vpack.c.b16 %v5266, %v5266
      %v5299 = vpack.c.b16 %v5267, %v5267
      %v5300 = vpack.c.b16 %v5268, %v5268
      %v5301 = vpack.c.b16 %v5269, %v5269
      %v5302 = vpack.c.b16 %v5270, %v5270
      %vm5303 = vsmask.f32 256
      %vm5304 = vsmask.f32 4368
      %vm5305 = vmor %vm5303, %vm5304
      %v5307 = vshrl.u32 %v5271, 16
      %v5309 = vrot.slane %v5307, 7
      %v5310 = vshll.u32 %v5271, 16
      %v5312 = vor.u32 %v5309, %v5310
      %v5313 = vrot.slane %v5309, 4
      %v5315 = vshrl.u32 %v5272, 16
      %v5317 = vrot.slane %v5315, 7
      %v5318 = vshll.u32 %v5272, 16
      %v5320 = vor.u32 %v5317, %v5318
      %v5321 = vsel %vm5305, %v5313, %v5320
      %v5322 = vrot.slane %v5317, 4
      %v5324 = vshrl.u32 %v5273, 16
      %v5326 = vrot.slane %v5324, 7
      %v5327 = vshll.u32 %v5273, 16
      %v5329 = vor.u32 %v5326, %v5327
      %v5330 = vrot.slane %v5326, 4
      %v5332 = vshrl.u32 %v5274, 16
      %v5334 = vrot.slane %v5332, 7
      %v5335 = vshll.u32 %v5274, 16
      %v5337 = vor.u32 %v5334, %v5335
      %v5338 = vsel %vm5305, %v5330, %v5337
      %v5339 = vrot.slane %v5334, 4
      %v5341 = vshrl.u32 %v5275, 16
      %v5343 = vrot.slane %v5341, 7
      %v5344 = vshll.u32 %v5275, 16
      %v5346 = vor.u32 %v5343, %v5344
      %v5347 = vrot.slane %v5343, 4
      %v5349 = vshrl.u32 %v5276, 16
      %v5351 = vrot.slane %v5349, 7
      %v5352 = vshll.u32 %v5276, 16
      %v5354 = vor.u32 %v5351, %v5352
      %v5355 = vsel %vm5305, %v5347, %v5354
      %v5356 = vrot.slane %v5351, 4
      %v5358 = vshrl.u32 %v5277, 16
      %v5360 = vrot.slane %v5358, 7
      %v5361 = vshll.u32 %v5277, 16
      %v5363 = vor.u32 %v5360, %v5361
      %v5364 = vrot.slane %v5360, 4
      %v5366 = vshrl.u32 %v5278, 16
      %v5368 = vrot.slane %v5366, 7
      %v5369 = vshll.u32 %v5278, 16
      %v5371 = vor.u32 %v5368, %v5369
      %v5372 = vsel %vm5305, %v5364, %v5371
      %v5373 = vrot.slane %v5368, 4
      %v5375 = vshrl.u32 %v5279, 16
      %v5377 = vrot.slane %v5375, 7
      %v5378 = vshll.u32 %v5279, 16
      %v5380 = vor.u32 %v5377, %v5378
      %v5381 = vrot.slane %v5377, 4
      %v5383 = vshrl.u32 %v5280, 16
      %v5385 = vrot.slane %v5383, 7
      %v5386 = vshll.u32 %v5280, 16
      %v5388 = vor.u32 %v5385, %v5386
      %v5389 = vsel %vm5305, %v5381, %v5388
      %v5390 = vrot.slane %v5385, 4
      %v5392 = vshrl.u32 %v5281, 16
      %v5394 = vrot.slane %v5392, 7
      %v5395 = vshll.u32 %v5281, 16
      %v5397 = vor.u32 %v5394, %v5395
      %v5398 = vrot.slane %v5394, 4
      %v5400 = vshrl.u32 %v5282, 16
      %v5402 = vrot.slane %v5400, 7
      %v5403 = vshll.u32 %v5282, 16
      %v5405 = vor.u32 %v5402, %v5403
      %v5406 = vsel %vm5305, %v5398, %v5405
      %v5407 = vrot.slane %v5402, 4
      %v5409 = vshrl.u32 %v5283, 16
      %v5411 = vrot.slane %v5409, 7
      %v5412 = vshll.u32 %v5283, 16
      %v5414 = vor.u32 %v5411, %v5412
      %v5415 = vrot.slane %v5411, 4
      %v5417 = vshrl.u32 %v5284, 16
      %v5419 = vrot.slane %v5417, 7
      %v5420 = vshll.u32 %v5284, 16
      %v5422 = vor.u32 %v5419, %v5420
      %v5423 = vsel %vm5305, %v5415, %v5422
      %v5424 = vrot.slane %v5419, 4
      %v5426 = vshrl.u32 %v5285, 16
      %v5428 = vrot.slane %v5426, 7
      %v5429 = vshll.u32 %v5285, 16
      %v5431 = vor.u32 %v5428, %v5429
      %v5432 = vrot.slane %v5428, 4
      %v5434 = vshrl.u32 %v5286, 16
      %v5436 = vrot.slane %v5434, 7
      %v5437 = vshll.u32 %v5286, 16
      %v5439 = vor.u32 %v5436, %v5437
      %v5440 = vsel %vm5305, %v5432, %v5439
      %v5441 = vrot.slane %v5436, 4
      %v5443 = vshrl.u32 %v5287, 16
      %v5445 = vrot.slane %v5443, 7
      %v5446 = vshll.u32 %v5287, 16
      %v5448 = vor.u32 %v5445, %v5446
      %v5449 = vrot.slane %v5445, 4
      %v5451 = vshrl.u32 %v5288, 16
      %v5453 = vrot.slane %v5451, 7
      %v5454 = vshll.u32 %v5288, 16
      %v5456 = vor.u32 %v5453, %v5454
      %v5457 = vsel %vm5305, %v5449, %v5456
      %v5458 = vrot.slane %v5453, 4
      %v5460 = vshrl.u32 %v5289, 16
      %v5462 = vrot.slane %v5460, 7
      %v5463 = vshll.u32 %v5289, 16
      %v5465 = vor.u32 %v5462, %v5463
      %v5466 = vrot.slane %v5462, 4
      %v5468 = vshrl.u32 %v5290, 16
      %v5470 = vrot.slane %v5468, 7
      %v5471 = vshll.u32 %v5290, 16
      %v5473 = vor.u32 %v5470, %v5471
      %v5474 = vsel %vm5305, %v5466, %v5473
      %v5475 = vrot.slane %v5470, 4
      %v5477 = vshrl.u32 %v5291, 16
      %v5479 = vrot.slane %v5477, 7
      %v5480 = vshll.u32 %v5291, 16
      %v5482 = vor.u32 %v5479, %v5480
      %v5483 = vrot.slane %v5479, 4
      %v5485 = vshrl.u32 %v5292, 16
      %v5487 = vrot.slane %v5485, 7
      %v5488 = vshll.u32 %v5292, 16
      %v5490 = vor.u32 %v5487, %v5488
      %v5491 = vsel %vm5305, %v5483, %v5490
      %v5492 = vrot.slane %v5487, 4
      %v5494 = vshrl.u32 %v5293, 16
      %v5496 = vrot.slane %v5494, 7
      %v5497 = vshll.u32 %v5293, 16
      %v5499 = vor.u32 %v5496, %v5497
      %v5500 = vrot.slane %v5496, 4
      %v5502 = vshrl.u32 %v5294, 16
      %v5504 = vrot.slane %v5502, 7
      %v5505 = vshll.u32 %v5294, 16
      %v5507 = vor.u32 %v5504, %v5505
      %v5508 = vsel %vm5305, %v5500, %v5507
      %v5509 = vrot.slane %v5504, 4
      %v5511 = vshrl.u32 %v5295, 16
      %v5513 = vrot.slane %v5511, 7
      %v5514 = vshll.u32 %v5295, 16
      %v5516 = vor.u32 %v5513, %v5514
      %v5517 = vrot.slane %v5513, 4
      %v5519 = vshrl.u32 %v5296, 16
      %v5521 = vrot.slane %v5519, 7
      %v5522 = vshll.u32 %v5296, 16
      %v5524 = vor.u32 %v5521, %v5522
      %v5525 = vsel %vm5305, %v5517, %v5524
      %v5526 = vrot.slane %v5521, 4
      %v5528 = vshrl.u32 %v5297, 16
      %v5530 = vrot.slane %v5528, 7
      %v5531 = vshll.u32 %v5297, 16
      %v5533 = vor.u32 %v5530, %v5531
      %v5534 = vrot.slane %v5530, 4
      %v5536 = vshrl.u32 %v5298, 16
      %v5538 = vrot.slane %v5536, 7
      %v5539 = vshll.u32 %v5298, 16
      %v5541 = vor.u32 %v5538, %v5539
      %v5542 = vsel %vm5305, %v5534, %v5541
      %v5543 = vrot.slane %v5538, 4
      %v5545 = vshrl.u32 %v5299, 16
      %v5547 = vrot.slane %v5545, 7
      %v5548 = vshll.u32 %v5299, 16
      %v5550 = vor.u32 %v5547, %v5548
      %v5551 = vrot.slane %v5547, 4
      %v5553 = vshrl.u32 %v5300, 16
      %v5555 = vrot.slane %v5553, 7
      %v5556 = vshll.u32 %v5300, 16
      %v5558 = vor.u32 %v5555, %v5556
      %v5559 = vsel %vm5305, %v5551, %v5558
      %v5560 = vrot.slane %v5555, 4
      %v5562 = vshrl.u32 %v5301, 16
      %v5564 = vrot.slane %v5562, 7
      %v5565 = vshll.u32 %v5301, 16
      %v5567 = vor.u32 %v5564, %v5565
      %v5568 = vrot.slane %v5564, 4
      %v5570 = vshrl.u32 %v5302, 16
      %v5572 = vrot.slane %v5570, 7
      %v5573 = vshll.u32 %v5302, 16
      %v5575 = vor.u32 %v5572, %v5573
      %v5576 = vsel %vm5305, %v5568, %v5575
      %v5577 = vrot.slane %v5572, 4
      %s5626 = scalar_lea.vmem [#allocation2], 12
      %vm5627 = vcmask 1043456
      %vm5628 = vsmask.f32 7938
      %vm5629 = vmand %vm5627, %vm5628
      %v5630 = vld [vmem:[%s5626] sm:$0xf]
      %v5631 = vsel %vm5629, %v5312, %v5630
      %5632 = vst [vmem:[%s5626] sm:$0xf] %v5631
      %5633 = vst [vmem:[%s5626 + $0x4] sm:$0xf] %v5321
      %vm5634 = vcmask 1040384
      %vm5635 = vmand %vm5634, %vm5303
      %v5636 = vld [vmem:[%s5626 + $0x8] sm:$0x1]
      %v5637 = vsel %vm5635, %v5322, %v5636
      %5638 = vst [vmem:[%s5626 + $0x8] sm:$0x1] %v5637
      %v5639 = vld [vmem:[%s5626 + $0xc] sm:$0xf]
      %v5640 = vsel %vm5629, %v5329, %v5639
      %5641 = vst [vmem:[%s5626 + $0xc] sm:$0xf] %v5640
      %5642 = vst [vmem:[%s5626 + $0x10] sm:$0xf] %v5338
      %v5643 = vld [vmem:[%s5626 + $0x14] sm:$0x1]
      %v5644 = vsel %vm5635, %v5339, %v5643
      %5645 = vst [vmem:[%s5626 + $0x14] sm:$0x1] %v5644
      %v5646 = vld [vmem:[%s5626 + $0x18] sm:$0xf]
      %v5647 = vsel %vm5629, %v5346, %v5646
      %5648 = vst [vmem:[%s5626 + $0x18] sm:$0xf] %v5647
      %5649 = vst [vmem:[%s5626 + $0x1c] sm:$0xf] %v5355
      %v5650 = vld [vmem:[%s5626 + $0x20] sm:$0x1]
      %v5651 = vsel %vm5635, %v5356, %v5650
      %5652 = vst [vmem:[%s5626 + $0x20] sm:$0x1] %v5651
      %v5653 = vld [vmem:[%s5626 + $0x24] sm:$0xf]
      %v5654 = vsel %vm5629, %v5363, %v5653
      %5655 = vst [vmem:[%s5626 + $0x24] sm:$0xf] %v5654
      %5656 = vst [vmem:[%s5626 + $0x28] sm:$0xf] %v5372
      %v5657 = vld [vmem:[%s5626 + $0x2c] sm:$0x1]
      %v5658 = vsel %vm5635, %v5373, %v5657
      %5659 = vst [vmem:[%s5626 + $0x2c] sm:$0x1] %v5658
      %v5660 = vld [vmem:[%s5626 + $0x30] sm:$0xf]
      %v5661 = vsel %vm5629, %v5380, %v5660
      %5662 = vst [vmem:[%s5626 + $0x30] sm:$0xf] %v5661
      %5663 = vst [vmem:[%s5626 + $0x34] sm:$0xf] %v5389
      %v5664 = vld [vmem:[%s5626 + $0x38] sm:$0x1]
      %v5665 = vsel %vm5635, %v5390, %v5664
      %5666 = vst [vmem:[%s5626 + $0x38] sm:$0x1] %v5665
      %v5667 = vld [vmem:[%s5626 + $0x3c] sm:$0xf]
      %v5668 = vsel %vm5629, %v5397, %v5667
      %5669 = vst [vmem:[%s5626 + $0x3c] sm:$0xf] %v5668
      %5670 = vst [vmem:[%s5626 + $0x40] sm:$0xf] %v5406
      %v5671 = vld [vmem:[%s5626 + $0x44] sm:$0x1]
      %v5672 = vsel %vm5635, %v5407, %v5671
      %5673 = vst [vmem:[%s5626 + $0x44] sm:$0x1] %v5672
      %v5674 = vld [vmem:[%s5626 + $0x48] sm:$0xf]
      %v5675 = vsel %vm5629, %v5414, %v5674
      %5676 = vst [vmem:[%s5626 + $0x48] sm:$0xf] %v5675
      %5677 = vst [vmem:[%s5626 + $0x4c] sm:$0xf] %v5423
      %v5678 = vld [vmem:[%s5626 + $0x50] sm:$0x1]
      %v5679 = vsel %vm5635, %v5424, %v5678
      %5680 = vst [vmem:[%s5626 + $0x50] sm:$0x1] %v5679
      %v5681 = vld [vmem:[%s5626 + $0x54] sm:$0xf]
      %v5682 = vsel %vm5629, %v5431, %v5681
      %5683 = vst [vmem:[%s5626 + $0x54] sm:$0xf] %v5682
      %5684 = vst [vmem:[%s5626 + $0x58] sm:$0xf] %v5440
      %v5685 = vld [vmem:[%s5626 + $0x5c] sm:$0x1]
      %v5686 = vsel %vm5635, %v5441, %v5685
      %5687 = vst [vmem:[%s5626 + $0x5c] sm:$0x1] %v5686
      %v5688 = vld [vmem:[%s5626 + $0x60] sm:$0xf]
      %v5689 = vsel %vm5629, %v5448, %v5688
      %5690 = vst [vmem:[%s5626 + $0x60] sm:$0xf] %v5689
      %5691 = vst [vmem:[%s5626 + $0x64] sm:$0xf] %v5457
      %v5692 = vld [vmem:[%s5626 + $0x68] sm:$0x1]
      %v5693 = vsel %vm5635, %v5458, %v5692
      %5694 = vst [vmem:[%s5626 + $0x68] sm:$0x1] %v5693
      %v5695 = vld [vmem:[%s5626 + $0x6c] sm:$0xf]
      %v5696 = vsel %vm5629, %v5465, %v5695
      %5697 = vst [vmem:[%s5626 + $0x6c] sm:$0xf] %v5696
      %5698 = vst [vmem:[%s5626 + $0x70] sm:$0xf] %v5474
      %v5699 = vld [vmem:[%s5626 + $0x74] sm:$0x1]
      %v5700 = vsel %vm5635, %v5475, %v5699
      %5701 = vst [vmem:[%s5626 + $0x74] sm:$0x1] %v5700
      %v5702 = vld [vmem:[%s5626 + $0x78] sm:$0xf]
      %v5703 = vsel %vm5629, %v5482, %v5702
      %5704 = vst [vmem:[%s5626 + $0x78] sm:$0xf] %v5703
      %5705 = vst [vmem:[%s5626 + $0x7c] sm:$0xf] %v5491
      %v5706 = vld [vmem:[%s5626 + $0x80] sm:$0x1]
      %v5707 = vsel %vm5635, %v5492, %v5706
      %5708 = vst [vmem:[%s5626 + $0x80] sm:$0x1] %v5707
      %v5709 = vld [vmem:[%s5626 + $0x84] sm:$0xf]
      %v5710 = vsel %vm5629, %v5499, %v5709
      %5711 = vst [vmem:[%s5626 + $0x84] sm:$0xf] %v5710
      %5712 = vst [vmem:[%s5626 + $0x88] sm:$0xf] %v5508
      %v5713 = vld [vmem:[%s5626 + $0x8c] sm:$0x1]
      %v5714 = vsel %vm5635, %v5509, %v5713
      %5715 = vst [vmem:[%s5626 + $0x8c] sm:$0x1] %v5714
      %v5716 = vld [vmem:[%s5626 + $0x90] sm:$0xf]
      %v5717 = vsel %vm5629, %v5516, %v5716
      %5718 = vst [vmem:[%s5626 + $0x90] sm:$0xf] %v5717
      %5719 = vst [vmem:[%s5626 + $0x94] sm:$0xf] %v5525
      %v5720 = vld [vmem:[%s5626 + $0x98] sm:$0x1]
      %v5721 = vsel %vm5635, %v5526, %v5720
      %5722 = vst [vmem:[%s5626 + $0x98] sm:$0x1] %v5721
      %v5723 = vld [vmem:[%s5626 + $0x9c] sm:$0xf]
      %v5724 = vsel %vm5629, %v5533, %v5723
      %5725 = vst [vmem:[%s5626 + $0x9c] sm:$0xf] %v5724
      %5726 = vst [vmem:[%s5626 + $0xa0] sm:$0xf] %v5542
      %v5727 = vld [vmem:[%s5626 + $0xa4] sm:$0x1]
      %v5728 = vsel %vm5635, %v5543, %v5727
      %5729 = vst [vmem:[%s5626 + $0xa4] sm:$0x1] %v5728
      %v5730 = vld [vmem:[%s5626 + $0xa8] sm:$0xf]
      %v5731 = vsel %vm5629, %v5550, %v5730
      %5732 = vst [vmem:[%s5626 + $0xa8] sm:$0xf] %v5731
      %5733 = vst [vmem:[%s5626 + $0xac] sm:$0xf] %v5559
      %v5734 = vld [vmem:[%s5626 + $0xb0] sm:$0x1]
      %v5735 = vsel %vm5635, %v5560, %v5734
      %5736 = vst [vmem:[%s5626 + $0xb0] sm:$0x1] %v5735
      %v5737 = vld [vmem:[%s5626 + $0xb4] sm:$0xf]
      %v5738 = vsel %vm5629, %v5567, %v5737
      %5739 = vst [vmem:[%s5626 + $0xb4] sm:$0xf] %v5738
      %5740 = vst [vmem:[%s5626 + $0xb8] sm:$0xf] %v5576
      %v5741 = vld [vmem:[%s5626 + $0xbc] sm:$0x1]
      %v5742 = vsel %vm5635, %v5577, %v5741
      %5743 = vst [vmem:[%s5626 + $0xbc] sm:$0x1] %v5742
      %v5744 = vld [vmem:[#allocation2] sm:$0xf]
      %v5745 = vld [vmem:[#allocation2 + $0x4] sm:$0xf]
      %v5746 = vld [vmem:[#allocation2 + $0xc] sm:$0xf]
      %v5747 = vld [vmem:[#allocation2 + $0x10] sm:$0xf]
      %v5748 = vld [vmem:[#allocation2 + $0x18] sm:$0xf]
      %v5749 = vld [vmem:[#allocation2 + $0x1c] sm:$0xf]
      %v5750 = vld [vmem:[#allocation2 + $0x24] sm:$0xf]
      %v5751 = vld [vmem:[#allocation2 + $0x28] sm:$0xf]
      %v5752 = vld [vmem:[#allocation2 + $0x30] sm:$0xf]
      %v5753 = vld [vmem:[#allocation2 + $0x34] sm:$0xf]
      %v5754 = vld [vmem:[#allocation2 + $0x3c] sm:$0xf]
      %v5755 = vld [vmem:[#allocation2 + $0x40] sm:$0xf]
      %v5756 = vld [vmem:[#allocation2 + $0x48] sm:$0xf]
      %v5757 = vld [vmem:[#allocation2 + $0x4c] sm:$0xf]
      %v5758 = vld [vmem:[#allocation2 + $0x54] sm:$0xf]
      %v5759 = vld [vmem:[#allocation2 + $0x58] sm:$0xf]
      %v5760 = vld [vmem:[#allocation2 + $0x60] sm:$0xf]
      %v5761 = vld [vmem:[#allocation2 + $0x64] sm:$0xf]
      %v5762 = vld [vmem:[#allocation2 + $0x6c] sm:$0xf]
      %v5763 = vld [vmem:[#allocation2 + $0x70] sm:$0xf]
      %v5764 = vld [vmem:[#allocation2 + $0x78] sm:$0xf]
      %v5765 = vld [vmem:[#allocation2 + $0x7c] sm:$0xf]
      %v5766 = vld [vmem:[#allocation2 + $0x84] sm:$0xf]
      %v5767 = vld [vmem:[#allocation2 + $0x88] sm:$0xf]
      %v5768 = vld [vmem:[#allocation2 + $0x90] sm:$0xf]
      %v5769 = vld [vmem:[#allocation2 + $0x94] sm:$0xf]
      %v5770 = vld [vmem:[#allocation2 + $0x9c] sm:$0xf]
      %v5771 = vld [vmem:[#allocation2 + $0xa0] sm:$0xf]
      %v5772 = vld [vmem:[#allocation2 + $0xa8] sm:$0xf]
      %v5773 = vld [vmem:[#allocation2 + $0xac] sm:$0xf]
      %v5774 = vld [vmem:[#allocation2 + $0xb4] sm:$0xf]
      %v5775 = vld [vmem:[#allocation2 + $0xb8] sm:$0xf]
      %v5776 = vld [vmem:[%s2] sm:$0xf]
      %v5777 = vld [vmem:[%s2 + $0x4] sm:$0xf]
      %v5778 = vld [vmem:[%s2 + $0x8] sm:$0xf]
      %v5779 = vld [vmem:[%s2 + $0xc] sm:$0xf]
      %v5780 = vld [vmem:[%s2 + $0x10] sm:$0xf]
      %v5781 = vld [vmem:[%s2 + $0x14] sm:$0xf]
      %v5782 = vld [vmem:[%s2 + $0x18] sm:$0xf]
      %v5783 = vld [vmem:[%s2 + $0x1c] sm:$0xf]
      %v5784 = vld [vmem:[%s2 + $0x20] sm:$0xf]
      %v5785 = vld [vmem:[%s2 + $0x24] sm:$0xf]
      %v5786 = vld [vmem:[%s2 + $0x28] sm:$0xf]
      %v5787 = vld [vmem:[%s2 + $0x2c] sm:$0xf]
      %v5788 = vld [vmem:[%s2 + $0x30] sm:$0xf]
      %v5789 = vld [vmem:[%s2 + $0x34] sm:$0xf]
      %v5790 = vld [vmem:[%s2 + $0x38] sm:$0xf]
      %v5791 = vld [vmem:[%s2 + $0x3c] sm:$0xf]
      %v5792 = vld [vmem:[#allocation2 + $0x8] sm:$0x1]
      %v5793 = vld [vmem:[#allocation2 + $0x14] sm:$0x1]
      %v5794 = vld [vmem:[#allocation2 + $0x20] sm:$0x1]
      %v5795 = vld [vmem:[#allocation2 + $0x2c] sm:$0x1]
      %v5796 = vld [vmem:[#allocation2 + $0x38] sm:$0x1]
      %v5797 = vld [vmem:[#allocation2 + $0x44] sm:$0x1]
      %v5798 = vld [vmem:[#allocation2 + $0x50] sm:$0x1]
      %v5799 = vld [vmem:[#allocation2 + $0x5c] sm:$0x1]
      %v5800 = vld [vmem:[#allocation2 + $0x68] sm:$0x1]
      %v5801 = vld [vmem:[#allocation2 + $0x74] sm:$0x1]
      %v5802 = vld [vmem:[#allocation2 + $0x80] sm:$0x1]
      %v5803 = vld [vmem:[#allocation2 + $0x8c] sm:$0x1]
      %v5804 = vld [vmem:[#allocation2 + $0x98] sm:$0x1]
      %v5805 = vld [vmem:[#allocation2 + $0xa4] sm:$0x1]
      %v5806 = vld [vmem:[#allocation2 + $0xb0] sm:$0x1]
      %v5807 = vld [vmem:[#allocation2 + $0xbc] sm:$0x1]
      %v5809 = vshrl.u32 %v5744, 16
      %v5811 = vrot.slane %v5809, 4
      %v5812 = vshll.u32 %v5744, 16
      %v5814 = vrot.slane %v5812, 5
      %v5815 = vor.u32 %v5811, %v5814
      %v5816 = vrot.slane %v5815, 4
      %v5818 = vshll.u32 %v5745, 16
      %v5820 = vrot.slane %v5818, 5
      %v5821 = vsel %vm339, %v5816, %v5820
      %v5822 = vshrl.u32 %v5745, 16
      %v5824 = vrot.slane %v5822, 4
      %v5825 = vor.u32 %v5824, %v5820
      %v5826 = vrot.slane %v5825, 4
      %v5828 = vshll.u32 %v5792, 16
      %v5830 = vrot.slane %v5828, 5
      %v5831 = vsel %vm339, %v5826, %v5830
      %v5833 = vshrl.u32 %v5746, 16
      %v5835 = vrot.slane %v5833, 4
      %v5836 = vshll.u32 %v5746, 16
      %v5838 = vrot.slane %v5836, 5
      %v5839 = vor.u32 %v5835, %v5838
      %v5840 = vrot.slane %v5839, 4
      %v5842 = vshll.u32 %v5747, 16
      %v5844 = vrot.slane %v5842, 5
      %v5845 = vsel %vm339, %v5840, %v5844
      %v5846 = vshrl.u32 %v5747, 16
      %v5848 = vrot.slane %v5846, 4
      %v5849 = vor.u32 %v5848, %v5844
      %v5850 = vrot.slane %v5849, 4
      %v5852 = vshll.u32 %v5793, 16
      %v5854 = vrot.slane %v5852, 5
      %v5855 = vsel %vm339, %v5850, %v5854
      %v5857 = vshrl.u32 %v5748, 16
      %v5859 = vrot.slane %v5857, 4
      %v5860 = vshll.u32 %v5748, 16
      %v5862 = vrot.slane %v5860, 5
      %v5863 = vor.u32 %v5859, %v5862
      %v5864 = vrot.slane %v5863, 4
      %v5866 = vshll.u32 %v5749, 16
      %v5868 = vrot.slane %v5866, 5
      %v5869 = vsel %vm339, %v5864, %v5868
      %v5870 = vshrl.u32 %v5749, 16
      %v5872 = vrot.slane %v5870, 4
      %v5873 = vor.u32 %v5872, %v5868
      %v5874 = vrot.slane %v5873, 4
      %v5876 = vshll.u32 %v5794, 16
      %v5878 = vrot.slane %v5876, 5
      %v5879 = vsel %vm339, %v5874, %v5878
      %v5881 = vshrl.u32 %v5750, 16
      %v5883 = vrot.slane %v5881, 4
      %v5884 = vshll.u32 %v5750, 16
      %v5886 = vrot.slane %v5884, 5
      %v5887 = vor.u32 %v5883, %v5886
      %v5888 = vrot.slane %v5887, 4
      %v5890 = vshll.u32 %v5751, 16
      %v5892 = vrot.slane %v5890, 5
      %v5893 = vsel %vm339, %v5888, %v5892
      %v5894 = vshrl.u32 %v5751, 16
      %v5896 = vrot.slane %v5894, 4
      %v5897 = vor.u32 %v5896, %v5892
      %v5898 = vrot.slane %v5897, 4
      %v5900 = vshll.u32 %v5795, 16
      %v5902 = vrot.slane %v5900, 5
      %v5903 = vsel %vm339, %v5898, %v5902
      %v5905 = vshrl.u32 %v5752, 16
      %v5907 = vrot.slane %v5905, 4
      %v5908 = vshll.u32 %v5752, 16
      %v5910 = vrot.slane %v5908, 5
      %v5911 = vor.u32 %v5907, %v5910
      %v5912 = vrot.slane %v5911, 4
      %v5914 = vshll.u32 %v5753, 16
      %v5916 = vrot.slane %v5914, 5
      %v5917 = vsel %vm339, %v5912, %v5916
      %v5918 = vshrl.u32 %v5753, 16
      %v5920 = vrot.slane %v5918, 4
      %v5921 = vor.u32 %v5920, %v5916
      %v5922 = vrot.slane %v5921, 4
      %v5924 = vshll.u32 %v5796, 16
      %v5926 = vrot.slane %v5924, 5
      %v5927 = vsel %vm339, %v5922, %v5926
      %v5929 = vshrl.u32 %v5754, 16
      %v5931 = vrot.slane %v5929, 4
      %v5932 = vshll.u32 %v5754, 16
      %v5934 = vrot.slane %v5932, 5
      %v5935 = vor.u32 %v5931, %v5934
      %v5936 = vrot.slane %v5935, 4
      %v5938 = vshll.u32 %v5755, 16
      %v5940 = vrot.slane %v5938, 5
      %v5941 = vsel %vm339, %v5936, %v5940
      %v5942 = vshrl.u32 %v5755, 16
      %v5944 = vrot.slane %v5942, 4
      %v5945 = vor.u32 %v5944, %v5940
      %v5946 = vrot.slane %v5945, 4
      %v5948 = vshll.u32 %v5797, 16
      %v5950 = vrot.slane %v5948, 5
      %v5951 = vsel %vm339, %v5946, %v5950
      %v5953 = vshrl.u32 %v5756, 16
      %v5955 = vrot.slane %v5953, 4
      %v5956 = vshll.u32 %v5756, 16
      %v5958 = vrot.slane %v5956, 5
      %v5959 = vor.u32 %v5955, %v5958
      %v5960 = vrot.slane %v5959, 4
      %v5962 = vshll.u32 %v5757, 16
      %v5964 = vrot.slane %v5962, 5
      %v5965 = vsel %vm339, %v5960, %v5964
      %v5966 = vshrl.u32 %v5757, 16
      %v5968 = vrot.slane %v5966, 4
      %v5969 = vor.u32 %v5968, %v5964
      %v5970 = vrot.slane %v5969, 4
      %v5972 = vshll.u32 %v5798, 16
      %v5974 = vrot.slane %v5972, 5
      %v5975 = vsel %vm339, %v5970, %v5974
      %v5977 = vshrl.u32 %v5758, 16
      %v5979 = vrot.slane %v5977, 4
      %v5980 = vshll.u32 %v5758, 16
      %v5982 = vrot.slane %v5980, 5
      %v5983 = vor.u32 %v5979, %v5982
      %v5984 = vrot.slane %v5983, 4
      %v5986 = vshll.u32 %v5759, 16
      %v5988 = vrot.slane %v5986, 5
      %v5989 = vsel %vm339, %v5984, %v5988
      %v5990 = vshrl.u32 %v5759, 16
      %v5992 = vrot.slane %v5990, 4
      %v5993 = vor.u32 %v5992, %v5988
      %v5994 = vrot.slane %v5993, 4
      %v5996 = vshll.u32 %v5799, 16
      %v5998 = vrot.slane %v5996, 5
      %v5999 = vsel %vm339, %v5994, %v5998
      %v6001 = vshrl.u32 %v5760, 16
      %v6003 = vrot.slane %v6001, 4
      %v6004 = vshll.u32 %v5760, 16
      %v6006 = vrot.slane %v6004, 5
      %v6007 = vor.u32 %v6003, %v6006
      %v6008 = vrot.slane %v6007, 4
      %v6010 = vshll.u32 %v5761, 16
      %v6012 = vrot.slane %v6010, 5
      %v6013 = vsel %vm339, %v6008, %v6012
      %v6014 = vshrl.u32 %v5761, 16
      %v6016 = vrot.slane %v6014, 4
      %v6017 = vor.u32 %v6016, %v6012
      %v6018 = vrot.slane %v6017, 4
      %v6020 = vshll.u32 %v5800, 16
      %v6022 = vrot.slane %v6020, 5
      %v6023 = vsel %vm339, %v6018, %v6022
      %v6025 = vshrl.u32 %v5762, 16
      %v6027 = vrot.slane %v6025, 4
      %v6028 = vshll.u32 %v5762, 16
      %v6030 = vrot.slane %v6028, 5
      %v6031 = vor.u32 %v6027, %v6030
      %v6032 = vrot.slane %v6031, 4
      %v6034 = vshll.u32 %v5763, 16
      %v6036 = vrot.slane %v6034, 5
      %v6037 = vsel %vm339, %v6032, %v6036
      %v6038 = vshrl.u32 %v5763, 16
      %v6040 = vrot.slane %v6038, 4
      %v6041 = vor.u32 %v6040, %v6036
      %v6042 = vrot.slane %v6041, 4
      %v6044 = vshll.u32 %v5801, 16
      %v6046 = vrot.slane %v6044, 5
      %v6047 = vsel %vm339, %v6042, %v6046
      %v6049 = vshrl.u32 %v5764, 16
      %v6051 = vrot.slane %v6049, 4
      %v6052 = vshll.u32 %v5764, 16
      %v6054 = vrot.slane %v6052, 5
      %v6055 = vor.u32 %v6051, %v6054
      %v6056 = vrot.slane %v6055, 4
      %v6058 = vshll.u32 %v5765, 16
      %v6060 = vrot.slane %v6058, 5
      %v6061 = vsel %vm339, %v6056, %v6060
      %v6062 = vshrl.u32 %v5765, 16
      %v6064 = vrot.slane %v6062, 4
      %v6065 = vor.u32 %v6064, %v6060
      %v6066 = vrot.slane %v6065, 4
      %v6068 = vshll.u32 %v5802, 16
      %v6070 = vrot.slane %v6068, 5
      %v6071 = vsel %vm339, %v6066, %v6070
      %v6073 = vshrl.u32 %v5766, 16
      %v6075 = vrot.slane %v6073, 4
      %v6076 = vshll.u32 %v5766, 16
      %v6078 = vrot.slane %v6076, 5
      %v6079 = vor.u32 %v6075, %v6078
      %v6080 = vrot.slane %v6079, 4
      %v6082 = vshll.u32 %v5767, 16
      %v6084 = vrot.slane %v6082, 5
      %v6085 = vsel %vm339, %v6080, %v6084
      %v6086 = vshrl.u32 %v5767, 16
      %v6088 = vrot.slane %v6086, 4
      %v6089 = vor.u32 %v6088, %v6084
      %v6090 = vrot.slane %v6089, 4
      %v6092 = vshll.u32 %v5803, 16
      %v6094 = vrot.slane %v6092, 5
      %v6095 = vsel %vm339, %v6090, %v6094
      %v6097 = vshrl.u32 %v5768, 16
      %v6099 = vrot.slane %v6097, 4
      %v6100 = vshll.u32 %v5768, 16
      %v6102 = vrot.slane %v6100, 5
      %v6103 = vor.u32 %v6099, %v6102
      %v6104 = vrot.slane %v6103, 4
      %v6106 = vshll.u32 %v5769, 16
      %v6108 = vrot.slane %v6106, 5
      %v6109 = vsel %vm339, %v6104, %v6108
      %v6110 = vshrl.u32 %v5769, 16
      %v6112 = vrot.slane %v6110, 4
      %v6113 = vor.u32 %v6112, %v6108
      %v6114 = vrot.slane %v6113, 4
      %v6116 = vshll.u32 %v5804, 16
      %v6118 = vrot.slane %v6116, 5
      %v6119 = vsel %vm339, %v6114, %v6118
      %v6121 = vshrl.u32 %v5770, 16
      %v6123 = vrot.slane %v6121, 4
      %v6124 = vshll.u32 %v5770, 16
      %v6126 = vrot.slane %v6124, 5
      %v6127 = vor.u32 %v6123, %v6126
      %v6128 = vrot.slane %v6127, 4
      %v6130 = vshll.u32 %v5771, 16
      %v6132 = vrot.slane %v6130, 5
      %v6133 = vsel %vm339, %v6128, %v6132
      %v6134 = vshrl.u32 %v5771, 16
      %v6136 = vrot.slane %v6134, 4
      %v6137 = vor.u32 %v6136, %v6132
      %v6138 = vrot.slane %v6137, 4
      %v6140 = vshll.u32 %v5805, 16
      %v6142 = vrot.slane %v6140, 5
      %v6143 = vsel %vm339, %v6138, %v6142
      %v6145 = vshrl.u32 %v5772, 16
      %v6147 = vrot.slane %v6145, 4
      %v6148 = vshll.u32 %v5772, 16
      %v6150 = vrot.slane %v6148, 5
      %v6151 = vor.u32 %v6147, %v6150
      %v6152 = vrot.slane %v6151, 4
      %v6154 = vshll.u32 %v5773, 16
      %v6156 = vrot.slane %v6154, 5
      %v6157 = vsel %vm339, %v6152, %v6156
      %v6158 = vshrl.u32 %v5773, 16
      %v6160 = vrot.slane %v6158, 4
      %v6161 = vor.u32 %v6160, %v6156
      %v6162 = vrot.slane %v6161, 4
      %v6164 = vshll.u32 %v5806, 16
      %v6166 = vrot.slane %v6164, 5
      %v6167 = vsel %vm339, %v6162, %v6166
      %v6169 = vshrl.u32 %v5774, 16
      %v6171 = vrot.slane %v6169, 4
      %v6172 = vshll.u32 %v5774, 16
      %v6174 = vrot.slane %v6172, 5
      %v6175 = vor.u32 %v6171, %v6174
      %v6176 = vrot.slane %v6175, 4
      %v6178 = vshll.u32 %v5775, 16
      %v6180 = vrot.slane %v6178, 5
      %v6181 = vsel %vm339, %v6176, %v6180
      %v6182 = vshrl.u32 %v5775, 16
      %v6184 = vrot.slane %v6182, 4
      %v6185 = vor.u32 %v6184, %v6180
      %v6186 = vrot.slane %v6185, 4
      %v6188 = vshll.u32 %v5807, 16
      %v6190 = vrot.slane %v6188, 5
      %v6191 = vsel %vm339, %v6186, %v6190
      %s6192 = scalar_lea.vmem %s2, 64
      %v6193 = vld [vmem:[%s6192] sm:$0xf]
      %v6194 = vld [vmem:[%s6192 + $0x4] sm:$0xf]
      %v6195 = vld [vmem:[%s6192 + $0x8] sm:$0xf]
      %v6196 = vld [vmem:[%s6192 + $0xc] sm:$0xf]
      %v6197 = vld [vmem:[%s6192 + $0x10] sm:$0xf]
      %v6198 = vld [vmem:[%s6192 + $0x14] sm:$0xf]
      %v6199 = vld [vmem:[%s6192 + $0x18] sm:$0xf]
      %v6200 = vld [vmem:[%s6192 + $0x1c] sm:$0xf]
      %v6201 = vld [vmem:[%s6192 + $0x20] sm:$0xf]
      %v6202 = vld [vmem:[%s6192 + $0x24] sm:$0xf]
      %v6203 = vld [vmem:[%s6192 + $0x28] sm:$0xf]
      %v6204 = vld [vmem:[%s6192 + $0x2c] sm:$0xf]
      %v6205 = vld [vmem:[%s6192 + $0x30] sm:$0xf]
      %v6206 = vld [vmem:[%s6192 + $0x34] sm:$0xf]
      %v6207 = vld [vmem:[%s6192 + $0x38] sm:$0xf]
      %v6208 = vld [vmem:[%s6192 + $0x3c] sm:$0xf]
      %v6209 = vunpack.c.l.b16 %v5821
      %v6210 = vunpack.c.l.b16 %v5831
      %v6211 = vunpack.c.l.b16 %v5845
      %v6212 = vunpack.c.l.b16 %v5855
      %v6213 = vunpack.c.l.b16 %v5869
      %v6214 = vunpack.c.l.b16 %v5879
      %v6215 = vunpack.c.l.b16 %v5893
      %v6216 = vunpack.c.l.b16 %v5903
      %v6217 = vunpack.c.l.b16 %v5917
      %v6218 = vunpack.c.l.b16 %v5927
      %v6219 = vunpack.c.l.b16 %v5941
      %v6220 = vunpack.c.l.b16 %v5951
      %v6221 = vunpack.c.l.b16 %v5965
      %v6222 = vunpack.c.l.b16 %v5975
      %v6223 = vunpack.c.l.b16 %v5989
      %v6224 = vunpack.c.l.b16 %v5999
      %v6225 = vunpack.c.l.b16 %v6013
      %v6226 = vunpack.c.l.b16 %v6023
      %v6227 = vunpack.c.l.b16 %v6037
      %v6228 = vunpack.c.l.b16 %v6047
      %v6229 = vunpack.c.l.b16 %v6061
      %v6230 = vunpack.c.l.b16 %v6071
      %v6231 = vunpack.c.l.b16 %v6085
      %v6232 = vunpack.c.l.b16 %v6095
      %v6233 = vunpack.c.l.b16 %v6109
      %v6234 = vunpack.c.l.b16 %v6119
      %v6235 = vunpack.c.l.b16 %v6133
      %v6236 = vunpack.c.l.b16 %v6143
      %v6237 = vunpack.c.l.b16 %v6157
      %v6238 = vunpack.c.l.b16 %v6167
      %v6239 = vunpack.c.l.b16 %v6181
      %v6240 = vunpack.c.l.b16 %v6191
      %v6241 = vpack.c.b16 %v6210, %v6209
      %v6242 = vpack.c.b16 %v6212, %v6211
      %v6243 = vpack.c.b16 %v6214, %v6213
      %v6244 = vpack.c.b16 %v6216, %v6215
      %v6245 = vpack.c.b16 %v6218, %v6217
      %v6246 = vpack.c.b16 %v6220, %v6219
      %v6247 = vpack.c.b16 %v6222, %v6221
      %v6248 = vpack.c.b16 %v6224, %v6223
      %v6249 = vpack.c.b16 %v6226, %v6225
      %v6250 = vpack.c.b16 %v6228, %v6227
      %v6251 = vpack.c.b16 %v6230, %v6229
      %v6252 = vpack.c.b16 %v6232, %v6231
      %v6253 = vpack.c.b16 %v6234, %v6233
      %v6254 = vpack.c.b16 %v6236, %v6235
      %v6255 = vpack.c.b16 %v6238, %v6237
      %v6256 = vpack.c.b16 %v6240, %v6239
      %v6289 = vunpack.c.l.b16 %v6193
      %v6290 = vunpack.c.l.b16 %v6194
      %v6291 = vunpack.c.l.b16 %v6195
      %v6292 = vunpack.c.l.b16 %v6196
      %v6293 = vunpack.c.l.b16 %v6197
      %v6294 = vunpack.c.l.b16 %v6198
      %v6295 = vunpack.c.l.b16 %v6199
      %v6296 = vunpack.c.l.b16 %v6200
      %v6297 = vunpack.c.l.b16 %v6201
      %v6298 = vunpack.c.l.b16 %v6202
      %v6299 = vunpack.c.l.b16 %v6203
      %v6300 = vunpack.c.l.b16 %v6204
      %v6301 = vunpack.c.l.b16 %v6205
      %v6302 = vunpack.c.l.b16 %v6206
      %v6303 = vunpack.c.l.b16 %v6207
      %v6304 = vunpack.c.l.b16 %v6208
      %v6305 = vpack.c.b16 %v6290, %v6289
      %v6306 = vpack.c.b16 %v6292, %v6291
      %v6307 = vpack.c.b16 %v6294, %v6293
      %v6308 = vpack.c.b16 %v6296, %v6295
      %v6309 = vpack.c.b16 %v6298, %v6297
      %v6310 = vpack.c.b16 %v6300, %v6299
      %v6311 = vpack.c.b16 %v6302, %v6301
      %v6312 = vpack.c.b16 %v6304, %v6303
      %6321 = vmatprep.subr.bf16.mxu0 0
      %6322 = vmatpush1.bf16.msra.mxu0 %v6312
      %6323 = vmatprep.subr.bf16.mxu0 0
      %6324 = vmatpush1.bf16.msra.mxu0 %v6311
      %6325 = vmatprep.subr.bf16.mxu0 0
      %6326 = vmatpush1.bf16.msra.mxu0 %v6310
      %6327 = vmatprep.subr.bf16.mxu0 0
      %6328 = vmatpush1.bf16.msra.mxu0 %v6309
      %6329 = vmatprep.subr.bf16.mxu0 0
      %6330 = vmatpush1.bf16.msra.mxu0 %v6308
      %6331 = vmatprep.subr.bf16.mxu0 0
      %6332 = vmatpush1.bf16.msra.mxu0 %v6307
      %6333 = vmatprep.subr.bf16.mxu0 0
      %6334 = vmatpush1.bf16.msra.mxu0 %v6306
      %6335 = vmatprep.subr.bf16.mxu0 0
      %6336 = vmatpush1.bf16.msra.mxu0 %v6305
      %6337 = vmatprep.subr.bf16.mxu0 0
      %6338 = vmatpush2.bf16.msra.mxu0 0
      %6339 = vmatprep.subr.bf16.mxu0 0
      %6340 = vmatpush2.bf16.msra.mxu0 0
      %6341 = vmatprep.subr.bf16.mxu0 0
      %6342 = vmatpush2.bf16.msra.mxu0 0
      %6343 = vmatprep.subr.bf16.mxu0 0
      %6344 = vmatpush2.bf16.msra.mxu0 0
      %6345 = vmatprep.subr.bf16.mxu0 0
      %6346 = vmatpush2.bf16.msra.mxu0 0
      %6347 = vmatprep.subr.bf16.mxu0 0
      %6348 = vmatpush2.bf16.msra.mxu0 0
      %6349 = vmatprep.subr.bf16.mxu0 0
      %6350 = vmatpush2.bf16.msra.mxu0 0
      %6351 = vmatprep.subr.bf16.mxu0 0
      %6352 = vmatpush2.bf16.msra.mxu0 0
      %6353 = vmatprep.mubr.bf16.mxu0 0
      %6354 = vmatmul.mubr.bf16.gmra.mxu0 %v6241
      %v6355 = vpop.f32.mrf.mxu0
      %v6356 = vadd.f32 0.0, %v6355
      %v6357 = vpop.f32.mrf.mxu0
      %v6358 = vpop.f32.mrf.mxu0
      %v6359 = vadd.f32 0.0, %v6358
      %v6360 = vpop.f32.mrf.mxu0
      %6361 = vmatprep.mubr.bf16.mxu0 0
      %6362 = vmatmul.mubr.bf16.gmra.mxu0 %v6242
      %v6363 = vpop.f32.mrf.mxu0
      %v6364 = vadd.f32 0.0, %v6363
      %v6365 = vpop.f32.mrf.mxu0
      %v6366 = vpop.f32.mrf.mxu0
      %v6367 = vadd.f32 0.0, %v6366
      %v6368 = vpop.f32.mrf.mxu0
      %6369 = vmatprep.mubr.bf16.mxu0 0
      %6370 = vmatmul.mubr.bf16.gmra.mxu0 %v6243
      %v6371 = vpop.f32.mrf.mxu0
      %v6372 = vadd.f32 0.0, %v6371
      %v6373 = vpop.f32.mrf.mxu0
      %v6374 = vpop.f32.mrf.mxu0
      %v6375 = vadd.f32 0.0, %v6374
      %v6376 = vpop.f32.mrf.mxu0
      %6377 = vmatprep.mubr.bf16.mxu0 0
      %6378 = vmatmul.mubr.bf16.gmra.mxu0 %v6244
      %v6379 = vpop.f32.mrf.mxu0
      %v6380 = vadd.f32 0.0, %v6379
      %v6381 = vpop.f32.mrf.mxu0
      %v6382 = vpop.f32.mrf.mxu0
      %v6383 = vadd.f32 0.0, %v6382
      %v6384 = vpop.f32.mrf.mxu0
      %6385 = vmatprep.mubr.bf16.mxu0 0
      %6386 = vmatmul.mubr.bf16.gmra.mxu0 %v6245
      %v6387 = vpop.f32.mrf.mxu0
      %v6388 = vadd.f32 0.0, %v6387
      %v6389 = vpop.f32.mrf.mxu0
      %v6390 = vpop.f32.mrf.mxu0
      %v6391 = vadd.f32 0.0, %v6390
      %v6392 = vpop.f32.mrf.mxu0
      %6393 = vmatprep.mubr.bf16.mxu0 0
      %6394 = vmatmul.mubr.bf16.gmra.mxu0 %v6246
      %v6395 = vpop.f32.mrf.mxu0
      %v6396 = vadd.f32 0.0, %v6395
      %v6397 = vpop.f32.mrf.mxu0
      %v6398 = vpop.f32.mrf.mxu0
      %v6399 = vadd.f32 0.0, %v6398
      %v6400 = vpop.f32.mrf.mxu0
      %6401 = vmatprep.mubr.bf16.mxu0 0
      %6402 = vmatmul.mubr.bf16.gmra.mxu0 %v6247
      %v6403 = vpop.f32.mrf.mxu0
      %v6404 = vadd.f32 0.0, %v6403
      %v6405 = vpop.f32.mrf.mxu0
      %v6406 = vpop.f32.mrf.mxu0
      %v6407 = vadd.f32 0.0, %v6406
      %v6408 = vpop.f32.mrf.mxu0
      %6409 = vmatprep.mubr.bf16.mxu0 0
      %6410 = vmatmul.mubr.bf16.gmra.mxu0 %v6248
      %v6411 = vpop.f32.mrf.mxu0
      %v6412 = vadd.f32 0.0, %v6411
      %v6413 = vpop.f32.mrf.mxu0
      %v6414 = vpop.f32.mrf.mxu0
      %v6415 = vadd.f32 0.0, %v6414
      %v6416 = vpop.f32.mrf.mxu0
      %6417 = vmatprep.mubr.bf16.mxu0 0
      %6418 = vmatmul.mubr.bf16.gmra.mxu0 %v6249
      %v6419 = vpop.f32.mrf.mxu0
      %v6420 = vadd.f32 0.0, %v6419
      %v6421 = vpop.f32.mrf.mxu0
      %v6422 = vpop.f32.mrf.mxu0
      %v6423 = vadd.f32 0.0, %v6422
      %v6424 = vpop.f32.mrf.mxu0
      %6425 = vmatprep.mubr.bf16.mxu0 0
      %6426 = vmatmul.mubr.bf16.gmra.mxu0 %v6250
      %v6427 = vpop.f32.mrf.mxu0
      %v6428 = vadd.f32 0.0, %v6427
      %v6429 = vpop.f32.mrf.mxu0
      %v6430 = vpop.f32.mrf.mxu0
      %v6431 = vadd.f32 0.0, %v6430
      %v6432 = vpop.f32.mrf.mxu0
      %6433 = vmatprep.mubr.bf16.mxu0 0
      %6434 = vmatmul.mubr.bf16.gmra.mxu0 %v6251
      %v6435 = vpop.f32.mrf.mxu0
      %v6436 = vadd.f32 0.0, %v6435
      %v6437 = vpop.f32.mrf.mxu0
      %v6438 = vpop.f32.mrf.mxu0
      %v6439 = vadd.f32 0.0, %v6438
      %v6440 = vpop.f32.mrf.mxu0
      %6441 = vmatprep.mubr.bf16.mxu0 0
      %6442 = vmatmul.mubr.bf16.gmra.mxu0 %v6252
      %v6443 = vpop.f32.mrf.mxu0
      %v6444 = vadd.f32 0.0, %v6443
      %v6445 = vpop.f32.mrf.mxu0
      %v6446 = vpop.f32.mrf.mxu0
      %v6447 = vadd.f32 0.0, %v6446
      %v6448 = vpop.f32.mrf.mxu0
      %6449 = vmatprep.mubr.bf16.mxu0 0
      %6450 = vmatmul.mubr.bf16.gmra.mxu0 %v6253
      %v6451 = vpop.f32.mrf.mxu0
      %v6452 = vadd.f32 0.0, %v6451
      %v6453 = vpop.f32.mrf.mxu0
      %v6454 = vpop.f32.mrf.mxu0
      %v6455 = vadd.f32 0.0, %v6454
      %v6456 = vpop.f32.mrf.mxu0
      %6457 = vmatprep.mubr.bf16.mxu0 0
      %6458 = vmatmul.mubr.bf16.gmra.mxu0 %v6254
      %v6459 = vpop.f32.mrf.mxu0
      %v6460 = vadd.f32 0.0, %v6459
      %v6461 = vpop.f32.mrf.mxu0
      %v6462 = vpop.f32.mrf.mxu0
      %v6463 = vadd.f32 0.0, %v6462
      %v6464 = vpop.f32.mrf.mxu0
      %6465 = vmatprep.mubr.bf16.mxu0 0
      %6466 = vmatmul.mubr.bf16.gmra.mxu0 %v6255
      %v6467 = vpop.f32.mrf.mxu0
      %v6468 = vadd.f32 0.0, %v6467
      %v6469 = vpop.f32.mrf.mxu0
      %v6470 = vpop.f32.mrf.mxu0
      %v6471 = vadd.f32 0.0, %v6470
      %v6472 = vpop.f32.mrf.mxu0
      %6473 = vmatprep.mubr.bf16.mxu0 0
      %6474 = vmatmul.mubr.bf16.gmra.mxu0 %v6256
      %v6475 = vpop.f32.mrf.mxu0
      %v6476 = vadd.f32 0.0, %v6475
      %v6477 = vpop.f32.mrf.mxu0
      %v6478 = vpop.f32.mrf.mxu0
      %v6479 = vadd.f32 0.0, %v6478
      %v6480 = vpop.f32.mrf.mxu0
      %6481 = vdwg.mxu0
      %v6514 = vunpack.c.l.b16 %v5744
      %v6515 = vunpack.c.l.b16 %v5745
      %v6516 = vunpack.c.l.b16 %v5746
      %v6517 = vunpack.c.l.b16 %v5747
      %v6518 = vunpack.c.l.b16 %v5748
      %v6519 = vunpack.c.l.b16 %v5749
      %v6520 = vunpack.c.l.b16 %v5750
      %v6521 = vunpack.c.l.b16 %v5751
      %v6522 = vunpack.c.l.b16 %v5752
      %v6523 = vunpack.c.l.b16 %v5753
      %v6524 = vunpack.c.l.b16 %v5754
      %v6525 = vunpack.c.l.b16 %v5755
      %v6526 = vunpack.c.l.b16 %v5756
      %v6527 = vunpack.c.l.b16 %v5757
      %v6528 = vunpack.c.l.b16 %v5758
      %v6529 = vunpack.c.l.b16 %v5759
      %v6530 = vunpack.c.l.b16 %v5760
      %v6531 = vunpack.c.l.b16 %v5761
      %v6532 = vunpack.c.l.b16 %v5762
      %v6533 = vunpack.c.l.b16 %v5763
      %v6534 = vunpack.c.l.b16 %v5764
      %v6535 = vunpack.c.l.b16 %v5765
      %v6536 = vunpack.c.l.b16 %v5766
      %v6537 = vunpack.c.l.b16 %v5767
      %v6538 = vunpack.c.l.b16 %v5768
      %v6539 = vunpack.c.l.b16 %v5769
      %v6540 = vunpack.c.l.b16 %v5770
      %v6541 = vunpack.c.l.b16 %v5771
      %v6542 = vunpack.c.l.b16 %v5772
      %v6543 = vunpack.c.l.b16 %v5773
      %v6544 = vunpack.c.l.b16 %v5774
      %v6545 = vunpack.c.l.b16 %v5775
      %v6546 = vpack.c.b16 %v6515, %v6514
      %v6547 = vpack.c.b16 %v6517, %v6516
      %v6548 = vpack.c.b16 %v6519, %v6518
      %v6549 = vpack.c.b16 %v6521, %v6520
      %v6550 = vpack.c.b16 %v6523, %v6522
      %v6551 = vpack.c.b16 %v6525, %v6524
      %v6552 = vpack.c.b16 %v6527, %v6526
      %v6553 = vpack.c.b16 %v6529, %v6528
      %v6554 = vpack.c.b16 %v6531, %v6530
      %v6555 = vpack.c.b16 %v6533, %v6532
      %v6556 = vpack.c.b16 %v6535, %v6534
      %v6557 = vpack.c.b16 %v6537, %v6536
      %v6558 = vpack.c.b16 %v6539, %v6538
      %v6559 = vpack.c.b16 %v6541, %v6540
      %v6560 = vpack.c.b16 %v6543, %v6542
      %v6561 = vpack.c.b16 %v6545, %v6544
      %v6594 = vunpack.c.l.b16 %v5776
      %v6595 = vunpack.c.l.b16 %v5777
      %v6596 = vunpack.c.l.b16 %v5778
      %v6597 = vunpack.c.l.b16 %v5779
      %v6598 = vunpack.c.l.b16 %v5780
      %v6599 = vunpack.c.l.b16 %v5781
      %v6600 = vunpack.c.l.b16 %v5782
      %v6601 = vunpack.c.l.b16 %v5783
      %v6602 = vunpack.c.l.b16 %v5784
      %v6603 = vunpack.c.l.b16 %v5785
      %v6604 = vunpack.c.l.b16 %v5786
      %v6605 = vunpack.c.l.b16 %v5787
      %v6606 = vunpack.c.l.b16 %v5788
      %v6607 = vunpack.c.l.b16 %v5789
      %v6608 = vunpack.c.l.b16 %v5790
      %v6609 = vunpack.c.l.b16 %v5791
      %v6610 = vpack.c.b16 %v6595, %v6594
      %v6611 = vpack.c.b16 %v6597, %v6596
      %v6612 = vpack.c.b16 %v6599, %v6598
      %v6613 = vpack.c.b16 %v6601, %v6600
      %v6614 = vpack.c.b16 %v6603, %v6602
      %v6615 = vpack.c.b16 %v6605, %v6604
      %v6616 = vpack.c.b16 %v6607, %v6606
      %v6617 = vpack.c.b16 %v6609, %v6608
      %6626 = vmatprep.subr.bf16.mxu0 0
      %6627 = vmatpush1.bf16.msra.mxu0 %v6617
      %6628 = vmatprep.subr.bf16.mxu0 0
      %6629 = vmatpush1.bf16.msra.mxu0 %v6616
      %6630 = vmatprep.subr.bf16.mxu0 0
      %6631 = vmatpush1.bf16.msra.mxu0 %v6615
      %6632 = vmatprep.subr.bf16.mxu0 0
      %6633 = vmatpush1.bf16.msra.mxu0 %v6614
      %6634 = vmatprep.subr.bf16.mxu0 0
      %6635 = vmatpush1.bf16.msra.mxu0 %v6613
      %6636 = vmatprep.subr.bf16.mxu0 0
      %6637 = vmatpush1.bf16.msra.mxu0 %v6612
      %6638 = vmatprep.subr.bf16.mxu0 0
      %6639 = vmatpush1.bf16.msra.mxu0 %v6611
      %6640 = vmatprep.subr.bf16.mxu0 0
      %6641 = vmatpush1.bf16.msra.mxu0 %v6610
      %6642 = vmatprep.subr.bf16.mxu0 0
      %6643 = vmatpush2.bf16.msra.mxu0 0
      %6644 = vmatprep.subr.bf16.mxu0 0
      %6645 = vmatpush2.bf16.msra.mxu0 0
      %6646 = vmatprep.subr.bf16.mxu0 0
      %6647 = vmatpush2.bf16.msra.mxu0 0
      %6648 = vmatprep.subr.bf16.mxu0 0
      %6649 = vmatpush2.bf16.msra.mxu0 0
      %6650 = vmatprep.subr.bf16.mxu0 0
      %6651 = vmatpush2.bf16.msra.mxu0 0
      %6652 = vmatprep.subr.bf16.mxu0 0
      %6653 = vmatpush2.bf16.msra.mxu0 0
      %6654 = vmatprep.subr.bf16.mxu0 0
      %6655 = vmatpush2.bf16.msra.mxu0 0
      %6656 = vmatprep.subr.bf16.mxu0 0
      %6657 = vmatpush2.bf16.msra.mxu0 0
      %6658 = vmatprep.mubr.bf16.mxu0 0
      %6659 = vmatmul.mubr.bf16.gmra.mxu0 %v6546
      %v6660 = vpop.f32.mrf.mxu0
      %v6661 = vadd.f32 %v6356, %v6660
      %v6662 = vpop.f32.mrf.mxu0
      %v6663 = vpop.f32.mrf.mxu0
      %v6664 = vadd.f32 %v6359, %v6663
      %v6665 = vpop.f32.mrf.mxu0
      %6666 = vmatprep.mubr.bf16.mxu0 0
      %6667 = vmatmul.mubr.bf16.gmra.mxu0 %v6547
      %v6668 = vpop.f32.mrf.mxu0
      %v6669 = vadd.f32 %v6364, %v6668
      %v6670 = vpop.f32.mrf.mxu0
      %v6671 = vpop.f32.mrf.mxu0
      %v6672 = vadd.f32 %v6367, %v6671
      %v6673 = vpop.f32.mrf.mxu0
      %6674 = vmatprep.mubr.bf16.mxu0 0
      %6675 = vmatmul.mubr.bf16.gmra.mxu0 %v6548
      %v6676 = vpop.f32.mrf.mxu0
      %v6677 = vadd.f32 %v6372, %v6676
      %v6678 = vpop.f32.mrf.mxu0
      %v6679 = vpop.f32.mrf.mxu0
      %v6680 = vadd.f32 %v6375, %v6679
      %v6681 = vpop.f32.mrf.mxu0
      %6682 = vmatprep.mubr.bf16.mxu0 0
      %6683 = vmatmul.mubr.bf16.gmra.mxu0 %v6549
      %v6684 = vpop.f32.mrf.mxu0
      %v6685 = vadd.f32 %v6380, %v6684
      %v6686 = vpop.f32.mrf.mxu0
      %v6687 = vpop.f32.mrf.mxu0
      %v6688 = vadd.f32 %v6383, %v6687
      %v6689 = vpop.f32.mrf.mxu0
      %6690 = vmatprep.mubr.bf16.mxu0 0
      %6691 = vmatmul.mubr.bf16.gmra.mxu0 %v6550
      %v6692 = vpop.f32.mrf.mxu0
      %v6693 = vadd.f32 %v6388, %v6692
      %v6694 = vpop.f32.mrf.mxu0
      %v6695 = vpop.f32.mrf.mxu0
      %v6696 = vadd.f32 %v6391, %v6695
      %v6697 = vpop.f32.mrf.mxu0
      %6698 = vmatprep.mubr.bf16.mxu0 0
      %6699 = vmatmul.mubr.bf16.gmra.mxu0 %v6551
      %v6700 = vpop.f32.mrf.mxu0
      %v6701 = vadd.f32 %v6396, %v6700
      %v6702 = vpop.f32.mrf.mxu0
      %v6703 = vpop.f32.mrf.mxu0
      %v6704 = vadd.f32 %v6399, %v6703
      %v6705 = vpop.f32.mrf.mxu0
      %6706 = vmatprep.mubr.bf16.mxu0 0
      %6707 = vmatmul.mubr.bf16.gmra.mxu0 %v6552
      %v6708 = vpop.f32.mrf.mxu0
      %v6709 = vadd.f32 %v6404, %v6708
      %v6710 = vpop.f32.mrf.mxu0
      %v6711 = vpop.f32.mrf.mxu0
      %v6712 = vadd.f32 %v6407, %v6711
      %v6713 = vpop.f32.mrf.mxu0
      %6714 = vmatprep.mubr.bf16.mxu0 0
      %6715 = vmatmul.mubr.bf16.gmra.mxu0 %v6553
      %v6716 = vpop.f32.mrf.mxu0
      %v6717 = vadd.f32 %v6412, %v6716
      %v6718 = vpop.f32.mrf.mxu0
      %v6719 = vpop.f32.mrf.mxu0
      %v6720 = vadd.f32 %v6415, %v6719
      %v6721 = vpop.f32.mrf.mxu0
      %6722 = vmatprep.mubr.bf16.mxu0 0
      %6723 = vmatmul.mubr.bf16.gmra.mxu0 %v6554
      %v6724 = vpop.f32.mrf.mxu0
      %v6725 = vadd.f32 %v6420, %v6724
      %v6726 = vpop.f32.mrf.mxu0
      %v6727 = vpop.f32.mrf.mxu0
      %v6728 = vadd.f32 %v6423, %v6727
      %v6729 = vpop.f32.mrf.mxu0
      %6730 = vmatprep.mubr.bf16.mxu0 0
      %6731 = vmatmul.mubr.bf16.gmra.mxu0 %v6555
      %v6732 = vpop.f32.mrf.mxu0
      %v6733 = vadd.f32 %v6428, %v6732
      %v6734 = vpop.f32.mrf.mxu0
      %v6735 = vpop.f32.mrf.mxu0
      %v6736 = vadd.f32 %v6431, %v6735
      %v6737 = vpop.f32.mrf.mxu0
      %6738 = vmatprep.mubr.bf16.mxu0 0
      %6739 = vmatmul.mubr.bf16.gmra.mxu0 %v6556
      %v6740 = vpop.f32.mrf.mxu0
      %v6741 = vadd.f32 %v6436, %v6740
      %v6742 = vpop.f32.mrf.mxu0
      %v6743 = vpop.f32.mrf.mxu0
      %v6744 = vadd.f32 %v6439, %v6743
      %v6745 = vpop.f32.mrf.mxu0
      %6746 = vmatprep.mubr.bf16.mxu0 0
      %6747 = vmatmul.mubr.bf16.gmra.mxu0 %v6557
      %v6748 = vpop.f32.mrf.mxu0
      %v6749 = vadd.f32 %v6444, %v6748
      %v6750 = vpop.f32.mrf.mxu0
      %v6751 = vpop.f32.mrf.mxu0
      %v6752 = vadd.f32 %v6447, %v6751
      %v6753 = vpop.f32.mrf.mxu0
      %6754 = vmatprep.mubr.bf16.mxu0 0
      %6755 = vmatmul.mubr.bf16.gmra.mxu0 %v6558
      %v6756 = vpop.f32.mrf.mxu0
      %v6757 = vadd.f32 %v6452, %v6756
      %v6758 = vpop.f32.mrf.mxu0
      %v6759 = vpop.f32.mrf.mxu0
      %v6760 = vadd.f32 %v6455, %v6759
      %v6761 = vpop.f32.mrf.mxu0
      %6762 = vmatprep.mubr.bf16.mxu0 0
      %6763 = vmatmul.mubr.bf16.gmra.mxu0 %v6559
      %v6764 = vpop.f32.mrf.mxu0
      %v6765 = vadd.f32 %v6460, %v6764
      %v6766 = vpop.f32.mrf.mxu0
      %v6767 = vpop.f32.mrf.mxu0
      %v6768 = vadd.f32 %v6463, %v6767
      %v6769 = vpop.f32.mrf.mxu0
      %6770 = vmatprep.mubr.bf16.mxu0 0
      %6771 = vmatmul.mubr.bf16.gmra.mxu0 %v6560
      %v6772 = vpop.f32.mrf.mxu0
      %v6773 = vadd.f32 %v6468, %v6772
      %v6774 = vpop.f32.mrf.mxu0
      %v6775 = vpop.f32.mrf.mxu0
      %v6776 = vadd.f32 %v6471, %v6775
      %v6777 = vpop.f32.mrf.mxu0
      %6778 = vmatprep.mubr.bf16.mxu0 0
      %6779 = vmatmul.mubr.bf16.gmra.mxu0 %v6561
      %v6780 = vpop.f32.mrf.mxu0
      %v6781 = vadd.f32 %v6476, %v6780
      %v6782 = vpop.f32.mrf.mxu0
      %v6783 = vpop.f32.mrf.mxu0
      %v6784 = vadd.f32 %v6479, %v6783
      %v6785 = vpop.f32.mrf.mxu0
      %6786 = vdwg.mxu0
      %v6787 = vld [vmem:[#allocation2] sm:$0xe]
      %v6788 = vld [vmem:[#allocation2 + $0xc] sm:$0xe]
      %v6789 = vld [vmem:[#allocation2 + $0x18] sm:$0xe]
      %v6790 = vld [vmem:[#allocation2 + $0x24] sm:$0xe]
      %v6791 = vld [vmem:[#allocation2 + $0x30] sm:$0xe]
      %v6792 = vld [vmem:[#allocation2 + $0x3c] sm:$0xe]
      %v6793 = vld [vmem:[#allocation2 + $0x48] sm:$0xe]
      %v6794 = vld [vmem:[#allocation2 + $0x54] sm:$0xe]
      %v6795 = vld [vmem:[#allocation2 + $0x60] sm:$0xe]
      %v6796 = vld [vmem:[#allocation2 + $0x6c] sm:$0xe]
      %v6797 = vld [vmem:[#allocation2 + $0x78] sm:$0xe]
      %v6798 = vld [vmem:[#allocation2 + $0x84] sm:$0xe]
      %v6799 = vld [vmem:[#allocation2 + $0x90] sm:$0xe]
      %v6800 = vld [vmem:[#allocation2 + $0x9c] sm:$0xe]
      %v6801 = vld [vmem:[#allocation2 + $0xa8] sm:$0xe]
      %v6802 = vld [vmem:[#allocation2 + $0xb4] sm:$0xe]
      %v6835 = vrot.slane %v6787, 5
      %v6836 = vrot.slane %v6835, 4
      %v6837 = vrot.slane %v5745, 5
      %v6838 = vsel %vm1369, %v6836, %v6837
      %v6839 = vrot.slane %v6837, 4
      %v6840 = vrot.slane %v5792, 5
      %v6841 = vsel %vm1369, %v6839, %v6840
      %v6842 = vrot.slane %v6788, 5
      %v6843 = vrot.slane %v6842, 4
      %v6844 = vrot.slane %v5747, 5
      %v6845 = vsel %vm1369, %v6843, %v6844
      %v6846 = vrot.slane %v6844, 4
      %v6847 = vrot.slane %v5793, 5
      %v6848 = vsel %vm1369, %v6846, %v6847
      %v6849 = vrot.slane %v6789, 5
      %v6850 = vrot.slane %v6849, 4
      %v6851 = vrot.slane %v5749, 5
      %v6852 = vsel %vm1369, %v6850, %v6851
      %v6853 = vrot.slane %v6851, 4
      %v6854 = vrot.slane %v5794, 5
      %v6855 = vsel %vm1369, %v6853, %v6854
      %v6856 = vrot.slane %v6790, 5
      %v6857 = vrot.slane %v6856, 4
      %v6858 = vrot.slane %v5751, 5
      %v6859 = vsel %vm1369, %v6857, %v6858
      %v6860 = vrot.slane %v6858, 4
      %v6861 = vrot.slane %v5795, 5
      %v6862 = vsel %vm1369, %v6860, %v6861
      %v6863 = vrot.slane %v6791, 5
      %v6864 = vrot.slane %v6863, 4
      %v6865 = vrot.slane %v5753, 5
      %v6866 = vsel %vm1369, %v6864, %v6865
      %v6867 = vrot.slane %v6865, 4
      %v6868 = vrot.slane %v5796, 5
      %v6869 = vsel %vm1369, %v6867, %v6868
      %v6870 = vrot.slane %v6792, 5
      %v6871 = vrot.slane %v6870, 4
      %v6872 = vrot.slane %v5755, 5
      %v6873 = vsel %vm1369, %v6871, %v6872
      %v6874 = vrot.slane %v6872, 4
      %v6875 = vrot.slane %v5797, 5
      %v6876 = vsel %vm1369, %v6874, %v6875
      %v6877 = vrot.slane %v6793, 5
      %v6878 = vrot.slane %v6877, 4
      %v6879 = vrot.slane %v5757, 5
      %v6880 = vsel %vm1369, %v6878, %v6879
      %v6881 = vrot.slane %v6879, 4
      %v6882 = vrot.slane %v5798, 5
      %v6883 = vsel %vm1369, %v6881, %v6882
      %v6884 = vrot.slane %v6794, 5
      %v6885 = vrot.slane %v6884, 4
      %v6886 = vrot.slane %v5759, 5
      %v6887 = vsel %vm1369, %v6885, %v6886
      %v6888 = vrot.slane %v6886, 4
      %v6889 = vrot.slane %v5799, 5
      %v6890 = vsel %vm1369, %v6888, %v6889
      %v6891 = vrot.slane %v6795, 5
      %v6892 = vrot.slane %v6891, 4
      %v6893 = vrot.slane %v5761, 5
      %v6894 = vsel %vm1369, %v6892, %v6893
      %v6895 = vrot.slane %v6893, 4
      %v6896 = vrot.slane %v5800, 5
      %v6897 = vsel %vm1369, %v6895, %v6896
      %v6898 = vrot.slane %v6796, 5
      %v6899 = vrot.slane %v6898, 4
      %v6900 = vrot.slane %v5763, 5
      %v6901 = vsel %vm1369, %v6899, %v6900
      %v6902 = vrot.slane %v6900, 4
      %v6903 = vrot.slane %v5801, 5
      %v6904 = vsel %vm1369, %v6902, %v6903
      %v6905 = vrot.slane %v6797, 5
      %v6906 = vrot.slane %v6905, 4
      %v6907 = vrot.slane %v5765, 5
      %v6908 = vsel %vm1369, %v6906, %v6907
      %v6909 = vrot.slane %v6907, 4
      %v6910 = vrot.slane %v5802, 5
      %v6911 = vsel %vm1369, %v6909, %v6910
      %v6912 = vrot.slane %v6798, 5
      %v6913 = vrot.slane %v6912, 4
      %v6914 = vrot.slane %v5767, 5
      %v6915 = vsel %vm1369, %v6913, %v6914
      %v6916 = vrot.slane %v6914, 4
      %v6917 = vrot.slane %v5803, 5
      %v6918 = vsel %vm1369, %v6916, %v6917
      %v6919 = vrot.slane %v6799, 5
      %v6920 = vrot.slane %v6919, 4
      %v6921 = vrot.slane %v5769, 5
      %v6922 = vsel %vm1369, %v6920, %v6921
      %v6923 = vrot.slane %v6921, 4
      %v6924 = vrot.slane %v5804, 5
      %v6925 = vsel %vm1369, %v6923, %v6924
      %v6926 = vrot.slane %v6800, 5
      %v6927 = vrot.slane %v6926, 4
      %v6928 = vrot.slane %v5771, 5
      %v6929 = vsel %vm1369, %v6927, %v6928
      %v6930 = vrot.slane %v6928, 4
      %v6931 = vrot.slane %v5805, 5
      %v6932 = vsel %vm1369, %v6930, %v6931
      %v6933 = vrot.slane %v6801, 5
      %v6934 = vrot.slane %v6933, 4
      %v6935 = vrot.slane %v5773, 5
      %v6936 = vsel %vm1369, %v6934, %v6935
      %v6937 = vrot.slane %v6935, 4
      %v6938 = vrot.slane %v5806, 5
      %v6939 = vsel %vm1369, %v6937, %v6938
      %v6940 = vrot.slane %v6802, 5
      %v6941 = vrot.slane %v6940, 4
      %v6942 = vrot.slane %v5775, 5
      %v6943 = vsel %vm1369, %v6941, %v6942
      %v6944 = vrot.slane %v6942, 4
      %v6945 = vrot.slane %v5807, 5
      %v6946 = vsel %vm1369, %v6944, %v6945
      %s6947 = scalar_lea.vmem %s2, 128
      %v6948 = vld [vmem:[%s6947] sm:$0xf]
      %v6949 = vld [vmem:[%s6947 + $0x4] sm:$0xf]
      %v6950 = vld [vmem:[%s6947 + $0x8] sm:$0xf]
      %v6951 = vld [vmem:[%s6947 + $0xc] sm:$0xf]
      %v6952 = vld [vmem:[%s6947 + $0x10] sm:$0xf]
      %v6953 = vld [vmem:[%s6947 + $0x14] sm:$0xf]
      %v6954 = vld [vmem:[%s6947 + $0x18] sm:$0xf]
      %v6955 = vld [vmem:[%s6947 + $0x1c] sm:$0xf]
      %v6956 = vld [vmem:[%s6947 + $0x20] sm:$0xf]
      %v6957 = vld [vmem:[%s6947 + $0x24] sm:$0xf]
      %v6958 = vld [vmem:[%s6947 + $0x28] sm:$0xf]
      %v6959 = vld [vmem:[%s6947 + $0x2c] sm:$0xf]
      %v6960 = vld [vmem:[%s6947 + $0x30] sm:$0xf]
      %v6961 = vld [vmem:[%s6947 + $0x34] sm:$0xf]
      %v6962 = vld [vmem:[%s6947 + $0x38] sm:$0xf]
      %v6963 = vld [vmem:[%s6947 + $0x3c] sm:$0xf]
      %v6964 = vunpack.c.l.b16 %v6838
      %v6965 = vunpack.c.l.b16 %v6841
      %v6966 = vunpack.c.l.b16 %v6845
      %v6967 = vunpack.c.l.b16 %v6848
      %v6968 = vunpack.c.l.b16 %v6852
      %v6969 = vunpack.c.l.b16 %v6855
      %v6970 = vunpack.c.l.b16 %v6859
      %v6971 = vunpack.c.l.b16 %v6862
      %v6972 = vunpack.c.l.b16 %v6866
      %v6973 = vunpack.c.l.b16 %v6869
      %v6974 = vunpack.c.l.b16 %v6873
      %v6975 = vunpack.c.l.b16 %v6876
      %v6976 = vunpack.c.l.b16 %v6880
      %v6977 = vunpack.c.l.b16 %v6883
      %v6978 = vunpack.c.l.b16 %v6887
      %v6979 = vunpack.c.l.b16 %v6890
      %v6980 = vunpack.c.l.b16 %v6894
      %v6981 = vunpack.c.l.b16 %v6897
      %v6982 = vunpack.c.l.b16 %v6901
      %v6983 = vunpack.c.l.b16 %v6904
      %v6984 = vunpack.c.l.b16 %v6908
      %v6985 = vunpack.c.l.b16 %v6911
      %v6986 = vunpack.c.l.b16 %v6915
      %v6987 = vunpack.c.l.b16 %v6918
      %v6988 = vunpack.c.l.b16 %v6922
      %v6989 = vunpack.c.l.b16 %v6925
      %v6990 = vunpack.c.l.b16 %v6929
      %v6991 = vunpack.c.l.b16 %v6932
      %v6992 = vunpack.c.l.b16 %v6936
      %v6993 = vunpack.c.l.b16 %v6939
      %v6994 = vunpack.c.l.b16 %v6943
      %v6995 = vunpack.c.l.b16 %v6946
      %v6996 = vpack.c.b16 %v6965, %v6964
      %v6997 = vpack.c.b16 %v6967, %v6966
      %v6998 = vpack.c.b16 %v6969, %v6968
      %v6999 = vpack.c.b16 %v6971, %v6970
      %v7000 = vpack.c.b16 %v6973, %v6972
      %v7001 = vpack.c.b16 %v6975, %v6974
      %v7002 = vpack.c.b16 %v6977, %v6976
      %v7003 = vpack.c.b16 %v6979, %v6978
      %v7004 = vpack.c.b16 %v6981, %v6980
      %v7005 = vpack.c.b16 %v6983, %v6982
      %v7006 = vpack.c.b16 %v6985, %v6984
      %v7007 = vpack.c.b16 %v6987, %v6986
      %v7008 = vpack.c.b16 %v6989, %v6988
      %v7009 = vpack.c.b16 %v6991, %v6990
      %v7010 = vpack.c.b16 %v6993, %v6992
      %v7011 = vpack.c.b16 %v6995, %v6994
      %v7044 = vunpack.c.l.b16 %v6948
      %v7045 = vunpack.c.l.b16 %v6949
      %v7046 = vunpack.c.l.b16 %v6950
      %v7047 = vunpack.c.l.b16 %v6951
      %v7048 = vunpack.c.l.b16 %v6952
      %v7049 = vunpack.c.l.b16 %v6953
      %v7050 = vunpack.c.l.b16 %v6954
      %v7051 = vunpack.c.l.b16 %v6955
      %v7052 = vunpack.c.l.b16 %v6956
      %v7053 = vunpack.c.l.b16 %v6957
      %v7054 = vunpack.c.l.b16 %v6958
      %v7055 = vunpack.c.l.b16 %v6959
      %v7056 = vunpack.c.l.b16 %v6960
      %v7057 = vunpack.c.l.b16 %v6961
      %v7058 = vunpack.c.l.b16 %v6962
      %v7059 = vunpack.c.l.b16 %v6963
      %v7060 = vpack.c.b16 %v7045, %v7044
      %v7061 = vpack.c.b16 %v7047, %v7046
      %v7062 = vpack.c.b16 %v7049, %v7048
      %v7063 = vpack.c.b16 %v7051, %v7050
      %v7064 = vpack.c.b16 %v7053, %v7052
      %v7065 = vpack.c.b16 %v7055, %v7054
      %v7066 = vpack.c.b16 %v7057, %v7056
      %v7067 = vpack.c.b16 %v7059, %v7058
      %7076 = vmatprep.subr.bf16.mxu0 0
      %7077 = vmatpush1.bf16.msra.mxu0 %v7067
      %7078 = vmatprep.subr.bf16.mxu0 0
      %7079 = vmatpush1.bf16.msra.mxu0 %v7066
      %7080 = vmatprep.subr.bf16.mxu0 0
      %7081 = vmatpush1.bf16.msra.mxu0 %v7065
      %7082 = vmatprep.subr.bf16.mxu0 0
      %7083 = vmatpush1.bf16.msra.mxu0 %v7064
      %7084 = vmatprep.subr.bf16.mxu0 0
      %7085 = vmatpush1.bf16.msra.mxu0 %v7063
      %7086 = vmatprep.subr.bf16.mxu0 0
      %7087 = vmatpush1.bf16.msra.mxu0 %v7062
      %7088 = vmatprep.subr.bf16.mxu0 0
      %7089 = vmatpush1.bf16.msra.mxu0 %v7061
      %7090 = vmatprep.subr.bf16.mxu0 0
      %7091 = vmatpush1.bf16.msra.mxu0 %v7060
      %7092 = vmatprep.subr.bf16.mxu0 0
      %7093 = vmatpush2.bf16.msra.mxu0 0
      %7094 = vmatprep.subr.bf16.mxu0 0
      %7095 = vmatpush2.bf16.msra.mxu0 0
      %7096 = vmatprep.subr.bf16.mxu0 0
      %7097 = vmatpush2.bf16.msra.mxu0 0
      %7098 = vmatprep.subr.bf16.mxu0 0
      %7099 = vmatpush2.bf16.msra.mxu0 0
      %7100 = vmatprep.subr.bf16.mxu0 0
      %7101 = vmatpush2.bf16.msra.mxu0 0
      %7102 = vmatprep.subr.bf16.mxu0 0
      %7103 = vmatpush2.bf16.msra.mxu0 0
      %7104 = vmatprep.subr.bf16.mxu0 0
      %7105 = vmatpush2.bf16.msra.mxu0 0
      %7106 = vmatprep.subr.bf16.mxu0 0
      %7107 = vmatpush2.bf16.msra.mxu0 0
      %7108 = vmatprep.mubr.bf16.mxu0 0
      %7109 = vmatmul.mubr.bf16.gmra.mxu0 %v6996
      %v7110 = vpop.f32.mrf.mxu0
      %v7111 = vadd.f32 0.0, %v7110
      %v7112 = vpop.f32.mrf.mxu0
      %v7113 = vpop.f32.mrf.mxu0
      %v7114 = vadd.f32 0.0, %v7113
      %v7115 = vpop.f32.mrf.mxu0
      %7116 = vmatprep.mubr.bf16.mxu0 0
      %7117 = vmatmul.mubr.bf16.gmra.mxu0 %v6997
      %v7118 = vpop.f32.mrf.mxu0
      %v7119 = vadd.f32 0.0, %v7118
      %v7120 = vpop.f32.mrf.mxu0
      %v7121 = vpop.f32.mrf.mxu0
      %v7122 = vadd.f32 0.0, %v7121
      %v7123 = vpop.f32.mrf.mxu0
      %7124 = vmatprep.mubr.bf16.mxu0 0
      %7125 = vmatmul.mubr.bf16.gmra.mxu0 %v6998
      %v7126 = vpop.f32.mrf.mxu0
      %v7127 = vadd.f32 0.0, %v7126
      %v7128 = vpop.f32.mrf.mxu0
      %v7129 = vpop.f32.mrf.mxu0
      %v7130 = vadd.f32 0.0, %v7129
      %v7131 = vpop.f32.mrf.mxu0
      %7132 = vmatprep.mubr.bf16.mxu0 0
      %7133 = vmatmul.mubr.bf16.gmra.mxu0 %v6999
      %v7134 = vpop.f32.mrf.mxu0
      %v7135 = vadd.f32 0.0, %v7134
      %v7136 = vpop.f32.mrf.mxu0
      %v7137 = vpop.f32.mrf.mxu0
      %v7138 = vadd.f32 0.0, %v7137
      %v7139 = vpop.f32.mrf.mxu0
      %7140 = vmatprep.mubr.bf16.mxu0 0
      %7141 = vmatmul.mubr.bf16.gmra.mxu0 %v7000
      %v7142 = vpop.f32.mrf.mxu0
      %v7143 = vadd.f32 0.0, %v7142
      %v7144 = vpop.f32.mrf.mxu0
      %v7145 = vpop.f32.mrf.mxu0
      %v7146 = vadd.f32 0.0, %v7145
      %v7147 = vpop.f32.mrf.mxu0
      %7148 = vmatprep.mubr.bf16.mxu0 0
      %7149 = vmatmul.mubr.bf16.gmra.mxu0 %v7001
      %v7150 = vpop.f32.mrf.mxu0
      %v7151 = vadd.f32 0.0, %v7150
      %v7152 = vpop.f32.mrf.mxu0
      %v7153 = vpop.f32.mrf.mxu0
      %v7154 = vadd.f32 0.0, %v7153
      %v7155 = vpop.f32.mrf.mxu0
      %7156 = vmatprep.mubr.bf16.mxu0 0
      %7157 = vmatmul.mubr.bf16.gmra.mxu0 %v7002
      %v7158 = vpop.f32.mrf.mxu0
      %v7159 = vadd.f32 0.0, %v7158
      %v7160 = vpop.f32.mrf.mxu0
      %v7161 = vpop.f32.mrf.mxu0
      %v7162 = vadd.f32 0.0, %v7161
      %v7163 = vpop.f32.mrf.mxu0
      %7164 = vmatprep.mubr.bf16.mxu0 0
      %7165 = vmatmul.mubr.bf16.gmra.mxu0 %v7003
      %v7166 = vpop.f32.mrf.mxu0
      %v7167 = vadd.f32 0.0, %v7166
      %v7168 = vpop.f32.mrf.mxu0
      %v7169 = vpop.f32.mrf.mxu0
      %v7170 = vadd.f32 0.0, %v7169
      %v7171 = vpop.f32.mrf.mxu0
      %7172 = vmatprep.mubr.bf16.mxu0 0
      %7173 = vmatmul.mubr.bf16.gmra.mxu0 %v7004
      %v7174 = vpop.f32.mrf.mxu0
      %v7175 = vadd.f32 0.0, %v7174
      %v7176 = vpop.f32.mrf.mxu0
      %v7177 = vpop.f32.mrf.mxu0
      %v7178 = vadd.f32 0.0, %v7177
      %v7179 = vpop.f32.mrf.mxu0
      %7180 = vmatprep.mubr.bf16.mxu0 0
      %7181 = vmatmul.mubr.bf16.gmra.mxu0 %v7005
      %v7182 = vpop.f32.mrf.mxu0
      %v7183 = vadd.f32 0.0, %v7182
      %v7184 = vpop.f32.mrf.mxu0
      %v7185 = vpop.f32.mrf.mxu0
      %v7186 = vadd.f32 0.0, %v7185
      %v7187 = vpop.f32.mrf.mxu0
      %7188 = vmatprep.mubr.bf16.mxu0 0
      %7189 = vmatmul.mubr.bf16.gmra.mxu0 %v7006
      %v7190 = vpop.f32.mrf.mxu0
      %v7191 = vadd.f32 0.0, %v7190
      %v7192 = vpop.f32.mrf.mxu0
      %v7193 = vpop.f32.mrf.mxu0
      %v7194 = vadd.f32 0.0, %v7193
      %v7195 = vpop.f32.mrf.mxu0
      %7196 = vmatprep.mubr.bf16.mxu0 0
      %7197 = vmatmul.mubr.bf16.gmra.mxu0 %v7007
      %v7198 = vpop.f32.mrf.mxu0
      %v7199 = vadd.f32 0.0, %v7198
      %v7200 = vpop.f32.mrf.mxu0
      %v7201 = vpop.f32.mrf.mxu0
      %v7202 = vadd.f32 0.0, %v7201
      %v7203 = vpop.f32.mrf.mxu0
      %7204 = vmatprep.mubr.bf16.mxu0 0
      %7205 = vmatmul.mubr.bf16.gmra.mxu0 %v7008
      %v7206 = vpop.f32.mrf.mxu0
      %v7207 = vadd.f32 0.0, %v7206
      %v7208 = vpop.f32.mrf.mxu0
      %v7209 = vpop.f32.mrf.mxu0
      %v7210 = vadd.f32 0.0, %v7209
      %v7211 = vpop.f32.mrf.mxu0
      %7212 = vmatprep.mubr.bf16.mxu0 0
      %7213 = vmatmul.mubr.bf16.gmra.mxu0 %v7009
      %v7214 = vpop.f32.mrf.mxu0
      %v7215 = vadd.f32 0.0, %v7214
      %v7216 = vpop.f32.mrf.mxu0
      %v7217 = vpop.f32.mrf.mxu0
      %v7218 = vadd.f32 0.0, %v7217
      %v7219 = vpop.f32.mrf.mxu0
      %7220 = vmatprep.mubr.bf16.mxu0 0
      %7221 = vmatmul.mubr.bf16.gmra.mxu0 %v7010
      %v7222 = vpop.f32.mrf.mxu0
      %v7223 = vadd.f32 0.0, %v7222
      %v7224 = vpop.f32.mrf.mxu0
      %v7225 = vpop.f32.mrf.mxu0
      %v7226 = vadd.f32 0.0, %v7225
      %v7227 = vpop.f32.mrf.mxu0
      %7228 = vmatprep.mubr.bf16.mxu0 0
      %7229 = vmatmul.mubr.bf16.gmra.mxu0 %v7011
      %v7230 = vpop.f32.mrf.mxu0
      %v7231 = vadd.f32 0.0, %v7230
      %v7232 = vpop.f32.mrf.mxu0
      %v7233 = vpop.f32.mrf.mxu0
      %v7234 = vadd.f32 0.0, %v7233
      %v7235 = vpop.f32.mrf.mxu0
      %7236 = vdwg.mxu0
      %v7237 = vadd.f32 %v6661, %v7111
      %v7238 = vadd.f32 %v6664, %v7114
      %v7239 = vadd.f32 %v6669, %v7119
      %v7240 = vadd.f32 %v6672, %v7122
      %v7241 = vadd.f32 %v6677, %v7127
      %v7242 = vadd.f32 %v6680, %v7130
      %v7243 = vadd.f32 %v6685, %v7135
      %v7244 = vadd.f32 %v6688, %v7138
      %v7245 = vadd.f32 %v6693, %v7143
      %v7246 = vadd.f32 %v6696, %v7146
      %v7247 = vadd.f32 %v6701, %v7151
      %v7248 = vadd.f32 %v6704, %v7154
      %v7249 = vadd.f32 %v6709, %v7159
      %v7250 = vadd.f32 %v6712, %v7162
      %v7251 = vadd.f32 %v6717, %v7167
      %v7252 = vadd.f32 %v6720, %v7170
      %v7253 = vadd.f32 %v6725, %v7175
      %v7254 = vadd.f32 %v6728, %v7178
      %v7255 = vadd.f32 %v6733, %v7183
      %v7256 = vadd.f32 %v6736, %v7186
      %v7257 = vadd.f32 %v6741, %v7191
      %v7258 = vadd.f32 %v6744, %v7194
      %v7259 = vadd.f32 %v6749, %v7199
      %v7260 = vadd.f32 %v6752, %v7202
      %v7261 = vadd.f32 %v6757, %v7207
      %v7262 = vadd.f32 %v6760, %v7210
      %v7263 = vadd.f32 %v6765, %v7215
      %v7264 = vadd.f32 %v6768, %v7218
      %v7265 = vadd.f32 %v6773, %v7223
      %v7266 = vadd.f32 %v6776, %v7226
      %v7267 = vadd.f32 %v6781, %v7231
      %v7268 = vadd.f32 %v6784, %v7234
      %v7269 = vld [vmem:[%s5626] sm:$0xf]
      %v7270 = vld [vmem:[%s5626 + $0x4] sm:$0xf]
      %v7271 = vld [vmem:[%s5626 + $0xc] sm:$0xf]
      %v7272 = vld [vmem:[%s5626 + $0x10] sm:$0xf]
      %v7273 = vld [vmem:[%s5626 + $0x18] sm:$0xf]
      %v7274 = vld [vmem:[%s5626 + $0x1c] sm:$0xf]
      %v7275 = vld [vmem:[%s5626 + $0x24] sm:$0xf]
      %v7276 = vld [vmem:[%s5626 + $0x28] sm:$0xf]
      %v7277 = vld [vmem:[%s5626 + $0x30] sm:$0xf]
      %v7278 = vld [vmem:[%s5626 + $0x34] sm:$0xf]
      %v7279 = vld [vmem:[%s5626 + $0x3c] sm:$0xf]
      %v7280 = vld [vmem:[%s5626 + $0x40] sm:$0xf]
      %v7281 = vld [vmem:[%s5626 + $0x48] sm:$0xf]
      %v7282 = vld [vmem:[%s5626 + $0x4c] sm:$0xf]
      %v7283 = vld [vmem:[%s5626 + $0x54] sm:$0xf]
      %v7284 = vld [vmem:[%s5626 + $0x58] sm:$0xf]
      %v7285 = vld [vmem:[%s5626 + $0x60] sm:$0xf]
      %v7286 = vld [vmem:[%s5626 + $0x64] sm:$0xf]
      %v7287 = vld [vmem:[%s5626 + $0x6c] sm:$0xf]
      %v7288 = vld [vmem:[%s5626 + $0x70] sm:$0xf]
      %v7289 = vld [vmem:[%s5626 + $0x78] sm:$0xf]
      %v7290 = vld [vmem:[%s5626 + $0x7c] sm:$0xf]
      %v7291 = vld [vmem:[%s5626 + $0x84] sm:$0xf]
      %v7292 = vld [vmem:[%s5626 + $0x88] sm:$0xf]
      %v7293 = vld [vmem:[%s5626 + $0x90] sm:$0xf]
      %v7294 = vld [vmem:[%s5626 + $0x94] sm:$0xf]
      %v7295 = vld [vmem:[%s5626 + $0x9c] sm:$0xf]
      %v7296 = vld [vmem:[%s5626 + $0xa0] sm:$0xf]
      %v7297 = vld [vmem:[%s5626 + $0xa8] sm:$0xf]
      %v7298 = vld [vmem:[%s5626 + $0xac] sm:$0xf]
      %v7299 = vld [vmem:[%s5626 + $0xb4] sm:$0xf]
      %v7300 = vld [vmem:[%s5626 + $0xb8] sm:$0xf]
      %s7301 = scalar_lea.vmem %s2, 192
      %v7302 = vld [vmem:[%s7301] sm:$0xf]
      %v7303 = vld [vmem:[%s7301 + $0x4] sm:$0xf]
      %v7304 = vld [vmem:[%s7301 + $0x8] sm:$0xf]
      %v7305 = vld [vmem:[%s7301 + $0xc] sm:$0xf]
      %v7306 = vld [vmem:[%s7301 + $0x10] sm:$0xf]
      %v7307 = vld [vmem:[%s7301 + $0x14] sm:$0xf]
      %v7308 = vld [vmem:[%s7301 + $0x18] sm:$0xf]
      %v7309 = vld [vmem:[%s7301 + $0x1c] sm:$0xf]
      %v7310 = vld [vmem:[%s7301 + $0x20] sm:$0xf]
      %v7311 = vld [vmem:[%s7301 + $0x24] sm:$0xf]
      %v7312 = vld [vmem:[%s7301 + $0x28] sm:$0xf]
      %v7313 = vld [vmem:[%s7301 + $0x2c] sm:$0xf]
      %v7314 = vld [vmem:[%s7301 + $0x30] sm:$0xf]
      %v7315 = vld [vmem:[%s7301 + $0x34] sm:$0xf]
      %v7316 = vld [vmem:[%s7301 + $0x38] sm:$0xf]
      %v7317 = vld [vmem:[%s7301 + $0x3c] sm:$0xf]
      %v7350 = vunpack.c.l.b16 %v7269
      %v7351 = vunpack.c.l.b16 %v7270
      %v7352 = vunpack.c.l.b16 %v7271
      %v7353 = vunpack.c.l.b16 %v7272
      %v7354 = vunpack.c.l.b16 %v7273
      %v7355 = vunpack.c.l.b16 %v7274
      %v7356 = vunpack.c.l.b16 %v7275
      %v7357 = vunpack.c.l.b16 %v7276
      %v7358 = vunpack.c.l.b16 %v7277
      %v7359 = vunpack.c.l.b16 %v7278
      %v7360 = vunpack.c.l.b16 %v7279
      %v7361 = vunpack.c.l.b16 %v7280
      %v7362 = vunpack.c.l.b16 %v7281
      %v7363 = vunpack.c.l.b16 %v7282
      %v7364 = vunpack.c.l.b16 %v7283
      %v7365 = vunpack.c.l.b16 %v7284
      %v7366 = vunpack.c.l.b16 %v7285
      %v7367 = vunpack.c.l.b16 %v7286
      %v7368 = vunpack.c.l.b16 %v7287
      %v7369 = vunpack.c.l.b16 %v7288
      %v7370 = vunpack.c.l.b16 %v7289
      %v7371 = vunpack.c.l.b16 %v7290
      %v7372 = vunpack.c.l.b16 %v7291
      %v7373 = vunpack.c.l.b16 %v7292
      %v7374 = vunpack.c.l.b16 %v7293
      %v7375 = vunpack.c.l.b16 %v7294
      %v7376 = vunpack.c.l.b16 %v7295
      %v7377 = vunpack.c.l.b16 %v7296
      %v7378 = vunpack.c.l.b16 %v7297
      %v7379 = vunpack.c.l.b16 %v7298
      %v7380 = vunpack.c.l.b16 %v7299
      %v7381 = vunpack.c.l.b16 %v7300
      %v7382 = vpack.c.b16 %v7351, %v7350
      %v7383 = vpack.c.b16 %v7353, %v7352
      %v7384 = vpack.c.b16 %v7355, %v7354
      %v7385 = vpack.c.b16 %v7357, %v7356
      %v7386 = vpack.c.b16 %v7359, %v7358
      %v7387 = vpack.c.b16 %v7361, %v7360
      %v7388 = vpack.c.b16 %v7363, %v7362
      %v7389 = vpack.c.b16 %v7365, %v7364
      %v7390 = vpack.c.b16 %v7367, %v7366
      %v7391 = vpack.c.b16 %v7369, %v7368
      %v7392 = vpack.c.b16 %v7371, %v7370
      %v7393 = vpack.c.b16 %v7373, %v7372
      %v7394 = vpack.c.b16 %v7375, %v7374
      %v7395 = vpack.c.b16 %v7377, %v7376
      %v7396 = vpack.c.b16 %v7379, %v7378
      %v7397 = vpack.c.b16 %v7381, %v7380
      %v7430 = vunpack.c.l.b16 %v7302
      %v7431 = vunpack.c.l.b16 %v7303
      %v7432 = vunpack.c.l.b16 %v7304
      %v7433 = vunpack.c.l.b16 %v7305
      %v7434 = vunpack.c.l.b16 %v7306
      %v7435 = vunpack.c.l.b16 %v7307
      %v7436 = vunpack.c.l.b16 %v7308
      %v7437 = vunpack.c.l.b16 %v7309
      %v7438 = vunpack.c.l.b16 %v7310
      %v7439 = vunpack.c.l.b16 %v7311
      %v7440 = vunpack.c.l.b16 %v7312
      %v7441 = vunpack.c.l.b16 %v7313
      %v7442 = vunpack.c.l.b16 %v7314
      %v7443 = vunpack.c.l.b16 %v7315
      %v7444 = vunpack.c.l.b16 %v7316
      %v7445 = vunpack.c.l.b16 %v7317
      %v7446 = vpack.c.b16 %v7431, %v7430
      %v7447 = vpack.c.b16 %v7433, %v7432
      %v7448 = vpack.c.b16 %v7435, %v7434
      %v7449 = vpack.c.b16 %v7437, %v7436
      %v7450 = vpack.c.b16 %v7439, %v7438
      %v7451 = vpack.c.b16 %v7441, %v7440
      %v7452 = vpack.c.b16 %v7443, %v7442
      %v7453 = vpack.c.b16 %v7445, %v7444
      %7462 = vmatprep.subr.bf16.mxu0 0
      %7463 = vmatpush1.bf16.msra.mxu0 %v7453
      %7464 = vmatprep.subr.bf16.mxu0 0
      %7465 = vmatpush1.bf16.msra.mxu0 %v7452
      %7466 = vmatprep.subr.bf16.mxu0 0
      %7467 = vmatpush1.bf16.msra.mxu0 %v7451
      %7468 = vmatprep.subr.bf16.mxu0 0
      %7469 = vmatpush1.bf16.msra.mxu0 %v7450
      %7470 = vmatprep.subr.bf16.mxu0 0
      %7471 = vmatpush1.bf16.msra.mxu0 %v7449
      %7472 = vmatprep.subr.bf16.mxu0 0
      %7473 = vmatpush1.bf16.msra.mxu0 %v7448
      %7474 = vmatprep.subr.bf16.mxu0 0
      %7475 = vmatpush1.bf16.msra.mxu0 %v7447
      %7476 = vmatprep.subr.bf16.mxu0 0
      %7477 = vmatpush1.bf16.msra.mxu0 %v7446
      %7478 = vmatprep.subr.bf16.mxu0 0
      %7479 = vmatpush2.bf16.msra.mxu0 0
      %7480 = vmatprep.subr.bf16.mxu0 0
      %7481 = vmatpush2.bf16.msra.mxu0 0
      %7482 = vmatprep.subr.bf16.mxu0 0
      %7483 = vmatpush2.bf16.msra.mxu0 0
      %7484 = vmatprep.subr.bf16.mxu0 0
      %7485 = vmatpush2.bf16.msra.mxu0 0
      %7486 = vmatprep.subr.bf16.mxu0 0
      %7487 = vmatpush2.bf16.msra.mxu0 0
      %7488 = vmatprep.subr.bf16.mxu0 0
      %7489 = vmatpush2.bf16.msra.mxu0 0
      %7490 = vmatprep.subr.bf16.mxu0 0
      %7491 = vmatpush2.bf16.msra.mxu0 0
      %7492 = vmatprep.subr.bf16.mxu0 0
      %7493 = vmatpush2.bf16.msra.mxu0 0
      %7494 = vmatprep.mubr.bf16.mxu0 0
      %7495 = vmatmul.mubr.bf16.gmra.mxu0 %v7382
      %v7496 = vpop.f32.mrf.mxu0
      %v7497 = vadd.f32 0.0, %v7496
      %v7498 = vpop.f32.mrf.mxu0
      %v7499 = vpop.f32.mrf.mxu0
      %v7500 = vadd.f32 0.0, %v7499
      %v7501 = vpop.f32.mrf.mxu0
      %7502 = vmatprep.mubr.bf16.mxu0 0
      %7503 = vmatmul.mubr.bf16.gmra.mxu0 %v7383
      %v7504 = vpop.f32.mrf.mxu0
      %v7505 = vadd.f32 0.0, %v7504
      %v7506 = vpop.f32.mrf.mxu0
      %v7507 = vpop.f32.mrf.mxu0
      %v7508 = vadd.f32 0.0, %v7507
      %v7509 = vpop.f32.mrf.mxu0
      %7510 = vmatprep.mubr.bf16.mxu0 0
      %7511 = vmatmul.mubr.bf16.gmra.mxu0 %v7384
      %v7512 = vpop.f32.mrf.mxu0
      %v7513 = vadd.f32 0.0, %v7512
      %v7514 = vpop.f32.mrf.mxu0
      %v7515 = vpop.f32.mrf.mxu0
      %v7516 = vadd.f32 0.0, %v7515
      %v7517 = vpop.f32.mrf.mxu0
      %7518 = vmatprep.mubr.bf16.mxu0 0
      %7519 = vmatmul.mubr.bf16.gmra.mxu0 %v7385
      %v7520 = vpop.f32.mrf.mxu0
      %v7521 = vadd.f32 0.0, %v7520
      %v7522 = vpop.f32.mrf.mxu0
      %v7523 = vpop.f32.mrf.mxu0
      %v7524 = vadd.f32 0.0, %v7523
      %v7525 = vpop.f32.mrf.mxu0
      %7526 = vmatprep.mubr.bf16.mxu0 0
      %7527 = vmatmul.mubr.bf16.gmra.mxu0 %v7386
      %v7528 = vpop.f32.mrf.mxu0
      %v7529 = vadd.f32 0.0, %v7528
      %v7530 = vpop.f32.mrf.mxu0
      %v7531 = vpop.f32.mrf.mxu0
      %v7532 = vadd.f32 0.0, %v7531
      %v7533 = vpop.f32.mrf.mxu0
      %7534 = vmatprep.mubr.bf16.mxu0 0
      %7535 = vmatmul.mubr.bf16.gmra.mxu0 %v7387
      %v7536 = vpop.f32.mrf.mxu0
      %v7537 = vadd.f32 0.0, %v7536
      %v7538 = vpop.f32.mrf.mxu0
      %v7539 = vpop.f32.mrf.mxu0
      %v7540 = vadd.f32 0.0, %v7539
      %v7541 = vpop.f32.mrf.mxu0
      %7542 = vmatprep.mubr.bf16.mxu0 0
      %7543 = vmatmul.mubr.bf16.gmra.mxu0 %v7388
      %v7544 = vpop.f32.mrf.mxu0
      %v7545 = vadd.f32 0.0, %v7544
      %v7546 = vpop.f32.mrf.mxu0
      %v7547 = vpop.f32.mrf.mxu0
      %v7548 = vadd.f32 0.0, %v7547
      %v7549 = vpop.f32.mrf.mxu0
      %7550 = vmatprep.mubr.bf16.mxu0 0
      %7551 = vmatmul.mubr.bf16.gmra.mxu0 %v7389
      %v7552 = vpop.f32.mrf.mxu0
      %v7553 = vadd.f32 0.0, %v7552
      %v7554 = vpop.f32.mrf.mxu0
      %v7555 = vpop.f32.mrf.mxu0
      %v7556 = vadd.f32 0.0, %v7555
      %v7557 = vpop.f32.mrf.mxu0
      %7558 = vmatprep.mubr.bf16.mxu0 0
      %7559 = vmatmul.mubr.bf16.gmra.mxu0 %v7390
      %v7560 = vpop.f32.mrf.mxu0
      %v7561 = vadd.f32 0.0, %v7560
      %v7562 = vpop.f32.mrf.mxu0
      %v7563 = vpop.f32.mrf.mxu0
      %v7564 = vadd.f32 0.0, %v7563
      %v7565 = vpop.f32.mrf.mxu0
      %7566 = vmatprep.mubr.bf16.mxu0 0
      %7567 = vmatmul.mubr.bf16.gmra.mxu0 %v7391
      %v7568 = vpop.f32.mrf.mxu0
      %v7569 = vadd.f32 0.0, %v7568
      %v7570 = vpop.f32.mrf.mxu0
      %v7571 = vpop.f32.mrf.mxu0
      %v7572 = vadd.f32 0.0, %v7571
      %v7573 = vpop.f32.mrf.mxu0
      %7574 = vmatprep.mubr.bf16.mxu0 0
      %7575 = vmatmul.mubr.bf16.gmra.mxu0 %v7392
      %v7576 = vpop.f32.mrf.mxu0
      %v7577 = vadd.f32 0.0, %v7576
      %v7578 = vpop.f32.mrf.mxu0
      %v7579 = vpop.f32.mrf.mxu0
      %v7580 = vadd.f32 0.0, %v7579
      %v7581 = vpop.f32.mrf.mxu0
      %7582 = vmatprep.mubr.bf16.mxu0 0
      %7583 = vmatmul.mubr.bf16.gmra.mxu0 %v7393
      %v7584 = vpop.f32.mrf.mxu0
      %v7585 = vadd.f32 0.0, %v7584
      %v7586 = vpop.f32.mrf.mxu0
      %v7587 = vpop.f32.mrf.mxu0
      %v7588 = vadd.f32 0.0, %v7587
      %v7589 = vpop.f32.mrf.mxu0
      %7590 = vmatprep.mubr.bf16.mxu0 0
      %7591 = vmatmul.mubr.bf16.gmra.mxu0 %v7394
      %v7592 = vpop.f32.mrf.mxu0
      %v7593 = vadd.f32 0.0, %v7592
      %v7594 = vpop.f32.mrf.mxu0
      %v7595 = vpop.f32.mrf.mxu0
      %v7596 = vadd.f32 0.0, %v7595
      %v7597 = vpop.f32.mrf.mxu0
      %7598 = vmatprep.mubr.bf16.mxu0 0
      %7599 = vmatmul.mubr.bf16.gmra.mxu0 %v7395
      %v7600 = vpop.f32.mrf.mxu0
      %v7601 = vadd.f32 0.0, %v7600
      %v7602 = vpop.f32.mrf.mxu0
      %v7603 = vpop.f32.mrf.mxu0
      %v7604 = vadd.f32 0.0, %v7603
      %v7605 = vpop.f32.mrf.mxu0
      %7606 = vmatprep.mubr.bf16.mxu0 0
      %7607 = vmatmul.mubr.bf16.gmra.mxu0 %v7396
      %v7608 = vpop.f32.mrf.mxu0
      %v7609 = vadd.f32 0.0, %v7608
      %v7610 = vpop.f32.mrf.mxu0
      %v7611 = vpop.f32.mrf.mxu0
      %v7612 = vadd.f32 0.0, %v7611
      %v7613 = vpop.f32.mrf.mxu0
      %7614 = vmatprep.mubr.bf16.mxu0 0
      %7615 = vmatmul.mubr.bf16.gmra.mxu0 %v7397
      %v7616 = vpop.f32.mrf.mxu0
      %v7617 = vadd.f32 0.0, %v7616
      %v7618 = vpop.f32.mrf.mxu0
      %v7619 = vpop.f32.mrf.mxu0
      %v7620 = vadd.f32 0.0, %v7619
      %v7621 = vpop.f32.mrf.mxu0
      %7622 = vdwg.mxu0
      %v7623 = vadd.f32 %v7237, %v7497
      %v7624 = vadd.f32 %v7238, %v7500
      %v7625 = vadd.f32 %v7239, %v7505
      %v7626 = vadd.f32 %v7240, %v7508
      %v7627 = vadd.f32 %v7241, %v7513
      %v7628 = vadd.f32 %v7242, %v7516
      %v7629 = vadd.f32 %v7243, %v7521
      %v7630 = vadd.f32 %v7244, %v7524
      %v7631 = vadd.f32 %v7245, %v7529
      %v7632 = vadd.f32 %v7246, %v7532
      %v7633 = vadd.f32 %v7247, %v7537
      %v7634 = vadd.f32 %v7248, %v7540
      %v7635 = vadd.f32 %v7249, %v7545
      %v7636 = vadd.f32 %v7250, %v7548
      %v7637 = vadd.f32 %v7251, %v7553
      %v7638 = vadd.f32 %v7252, %v7556
      %v7639 = vadd.f32 %v7253, %v7561
      %v7640 = vadd.f32 %v7254, %v7564
      %v7641 = vadd.f32 %v7255, %v7569
      %v7642 = vadd.f32 %v7256, %v7572
      %v7643 = vadd.f32 %v7257, %v7577
      %v7644 = vadd.f32 %v7258, %v7580
      %v7645 = vadd.f32 %v7259, %v7585
      %v7646 = vadd.f32 %v7260, %v7588
      %v7647 = vadd.f32 %v7261, %v7593
      %v7648 = vadd.f32 %v7262, %v7596
      %v7649 = vadd.f32 %v7263, %v7601
      %v7650 = vadd.f32 %v7264, %v7604
      %v7651 = vadd.f32 %v7265, %v7609
      %v7652 = vadd.f32 %v7266, %v7612
      %v7653 = vadd.f32 %v7267, %v7617
      %v7654 = vadd.f32 %v7268, %v7620
      %v7655 = vld [vmem:[%s5626] sm:$0xf]
      %v7656 = vld [vmem:[%s5626 + $0x4] sm:$0xf]
      %v7657 = vld [vmem:[%s5626 + $0x8] sm:$0x1]
      %v7658 = vld [vmem:[%s5626 + $0xc] sm:$0xf]
      %v7659 = vld [vmem:[%s5626 + $0x10] sm:$0xf]
      %v7660 = vld [vmem:[%s5626 + $0x14] sm:$0x1]
      %v7661 = vld [vmem:[%s5626 + $0x18] sm:$0xf]
      %v7662 = vld [vmem:[%s5626 + $0x1c] sm:$0xf]
      %v7663 = vld [vmem:[%s5626 + $0x20] sm:$0x1]
      %v7664 = vld [vmem:[%s5626 + $0x24] sm:$0xf]
      %v7665 = vld [vmem:[%s5626 + $0x28] sm:$0xf]
      %v7666 = vld [vmem:[%s5626 + $0x2c] sm:$0x1]
      %v7667 = vld [vmem:[%s5626 + $0x30] sm:$0xf]
      %v7668 = vld [vmem:[%s5626 + $0x34] sm:$0xf]
      %v7669 = vld [vmem:[%s5626 + $0x38] sm:$0x1]
      %v7670 = vld [vmem:[%s5626 + $0x3c] sm:$0xf]
      %v7671 = vld [vmem:[%s5626 + $0x40] sm:$0xf]
      %v7672 = vld [vmem:[%s5626 + $0x44] sm:$0x1]
      %v7673 = vld [vmem:[%s5626 + $0x48] sm:$0xf]
      %v7674 = vld [vmem:[%s5626 + $0x4c] sm:$0xf]
      %v7675 = vld [vmem:[%s5626 + $0x50] sm:$0x1]
      %v7676 = vld [vmem:[%s5626 + $0x54] sm:$0xf]
      %v7677 = vld [vmem:[%s5626 + $0x58] sm:$0xf]
      %v7678 = vld [vmem:[%s5626 + $0x5c] sm:$0x1]
      %v7679 = vld [vmem:[%s5626 + $0x60] sm:$0xf]
      %v7680 = vld [vmem:[%s5626 + $0x64] sm:$0xf]
      %v7681 = vld [vmem:[%s5626 + $0x68] sm:$0x1]
      %v7682 = vld [vmem:[%s5626 + $0x6c] sm:$0xf]
      %v7683 = vld [vmem:[%s5626 + $0x70] sm:$0xf]
      %v7684 = vld [vmem:[%s5626 + $0x74] sm:$0x1]
      %v7685 = vld [vmem:[%s5626 + $0x78] sm:$0xf]
      %v7686 = vld [vmem:[%s5626 + $0x7c] sm:$0xf]
      %v7687 = vld [vmem:[%s5626 + $0x80] sm:$0x1]
      %v7688 = vld [vmem:[%s5626 + $0x84] sm:$0xf]
      %v7689 = vld [vmem:[%s5626 + $0x88] sm:$0xf]
      %v7690 = vld [vmem:[%s5626 + $0x8c] sm:$0x1]
      %v7691 = vld [vmem:[%s5626 + $0x90] sm:$0xf]
      %v7692 = vld [vmem:[%s5626 + $0x94] sm:$0xf]
      %v7693 = vld [vmem:[%s5626 + $0x98] sm:$0x1]
      %v7694 = vld [vmem:[%s5626 + $0x9c] sm:$0xf]
      %v7695 = vld [vmem:[%s5626 + $0xa0] sm:$0xf]
      %v7696 = vld [vmem:[%s5626 + $0xa4] sm:$0x1]
      %v7697 = vld [vmem:[%s5626 + $0xa8] sm:$0xf]
      %v7698 = vld [vmem:[%s5626 + $0xac] sm:$0xf]
      %v7699 = vld [vmem:[%s5626 + $0xb0] sm:$0x1]
      %v7700 = vld [vmem:[%s5626 + $0xb4] sm:$0xf]
      %v7701 = vld [vmem:[%s5626 + $0xb8] sm:$0xf]
      %v7702 = vld [vmem:[%s5626 + $0xbc] sm:$0x1]
      %v7704 = vshrl.u32 %v7655, 16
      %v7706 = vrot.slane %v7704, 4
      %v7707 = vshll.u32 %v7655, 16
      %v7709 = vrot.slane %v7707, 5
      %v7710 = vor.u32 %v7706, %v7709
      %v7711 = vrot.slane %v7710, 4
      %v7713 = vshll.u32 %v7656, 16
      %v7715 = vrot.slane %v7713, 5
      %v7716 = vsel %vm339, %v7711, %v7715
      %v7717 = vshrl.u32 %v7656, 16
      %v7719 = vrot.slane %v7717, 4
      %v7720 = vor.u32 %v7719, %v7715
      %v7721 = vrot.slane %v7720, 4
      %v7723 = vshll.u32 %v7657, 16
      %v7725 = vrot.slane %v7723, 5
      %v7726 = vsel %vm339, %v7721, %v7725
      %v7728 = vshrl.u32 %v7658, 16
      %v7730 = vrot.slane %v7728, 4
      %v7731 = vshll.u32 %v7658, 16
      %v7733 = vrot.slane %v7731, 5
      %v7734 = vor.u32 %v7730, %v7733
      %v7735 = vrot.slane %v7734, 4
      %v7737 = vshll.u32 %v7659, 16
      %v7739 = vrot.slane %v7737, 5
      %v7740 = vsel %vm339, %v7735, %v7739
      %v7741 = vshrl.u32 %v7659, 16
      %v7743 = vrot.slane %v7741, 4
      %v7744 = vor.u32 %v7743, %v7739
      %v7745 = vrot.slane %v7744, 4
      %v7747 = vshll.u32 %v7660, 16
      %v7749 = vrot.slane %v7747, 5
      %v7750 = vsel %vm339, %v7745, %v7749
      %v7752 = vshrl.u32 %v7661, 16
      %v7754 = vrot.slane %v7752, 4
      %v7755 = vshll.u32 %v7661, 16
      %v7757 = vrot.slane %v7755, 5
      %v7758 = vor.u32 %v7754, %v7757
      %v7759 = vrot.slane %v7758, 4
      %v7761 = vshll.u32 %v7662, 16
      %v7763 = vrot.slane %v7761, 5
      %v7764 = vsel %vm339, %v7759, %v7763
      %v7765 = vshrl.u32 %v7662, 16
      %v7767 = vrot.slane %v7765, 4
      %v7768 = vor.u32 %v7767, %v7763
      %v7769 = vrot.slane %v7768, 4
      %v7771 = vshll.u32 %v7663, 16
      %v7773 = vrot.slane %v7771, 5
      %v7774 = vsel %vm339, %v7769, %v7773
      %v7776 = vshrl.u32 %v7664, 16
      %v7778 = vrot.slane %v7776, 4
      %v7779 = vshll.u32 %v7664, 16
      %v7781 = vrot.slane %v7779, 5
      %v7782 = vor.u32 %v7778, %v7781
      %v7783 = vrot.slane %v7782, 4
      %v7785 = vshll.u32 %v7665, 16
      %v7787 = vrot.slane %v7785, 5
      %v7788 = vsel %vm339, %v7783, %v7787
      %v7789 = vshrl.u32 %v7665, 16
      %v7791 = vrot.slane %v7789, 4
      %v7792 = vor.u32 %v7791, %v7787
      %v7793 = vrot.slane %v7792, 4
      %v7795 = vshll.u32 %v7666, 16
      %v7797 = vrot.slane %v7795, 5
      %v7798 = vsel %vm339, %v7793, %v7797
      %v7800 = vshrl.u32 %v7667, 16
      %v7802 = vrot.slane %v7800, 4
      %v7803 = vshll.u32 %v7667, 16
      %v7805 = vrot.slane %v7803, 5
      %v7806 = vor.u32 %v7802, %v7805
      %v7807 = vrot.slane %v7806, 4
      %v7809 = vshll.u32 %v7668, 16
      %v7811 = vrot.slane %v7809, 5
      %v7812 = vsel %vm339, %v7807, %v7811
      %v7813 = vshrl.u32 %v7668, 16
      %v7815 = vrot.slane %v7813, 4
      %v7816 = vor.u32 %v7815, %v7811
      %v7817 = vrot.slane %v7816, 4
      %v7819 = vshll.u32 %v7669, 16
      %v7821 = vrot.slane %v7819, 5
      %v7822 = vsel %vm339, %v7817, %v7821
      %v7824 = vshrl.u32 %v7670, 16
      %v7826 = vrot.slane %v7824, 4
      %v7827 = vshll.u32 %v7670, 16
      %v7829 = vrot.slane %v7827, 5
      %v7830 = vor.u32 %v7826, %v7829
      %v7831 = vrot.slane %v7830, 4
      %v7833 = vshll.u32 %v7671, 16
      %v7835 = vrot.slane %v7833, 5
      %v7836 = vsel %vm339, %v7831, %v7835
      %v7837 = vshrl.u32 %v7671, 16
      %v7839 = vrot.slane %v7837, 4
      %v7840 = vor.u32 %v7839, %v7835
      %v7841 = vrot.slane %v7840, 4
      %v7843 = vshll.u32 %v7672, 16
      %v7845 = vrot.slane %v7843, 5
      %v7846 = vsel %vm339, %v7841, %v7845
      %v7848 = vshrl.u32 %v7673, 16
      %v7850 = vrot.slane %v7848, 4
      %v7851 = vshll.u32 %v7673, 16
      %v7853 = vrot.slane %v7851, 5
      %v7854 = vor.u32 %v7850, %v7853
      %v7855 = vrot.slane %v7854, 4
      %v7857 = vshll.u32 %v7674, 16
      %v7859 = vrot.slane %v7857, 5
      %v7860 = vsel %vm339, %v7855, %v7859
      %v7861 = vshrl.u32 %v7674, 16
      %v7863 = vrot.slane %v7861, 4
      %v7864 = vor.u32 %v7863, %v7859
      %v7865 = vrot.slane %v7864, 4
      %v7867 = vshll.u32 %v7675, 16
      %v7869 = vrot.slane %v7867, 5
      %v7870 = vsel %vm339, %v7865, %v7869
      %v7872 = vshrl.u32 %v7676, 16
      %v7874 = vrot.slane %v7872, 4
      %v7875 = vshll.u32 %v7676, 16
      %v7877 = vrot.slane %v7875, 5
      %v7878 = vor.u32 %v7874, %v7877
      %v7879 = vrot.slane %v7878, 4
      %v7881 = vshll.u32 %v7677, 16
      %v7883 = vrot.slane %v7881, 5
      %v7884 = vsel %vm339, %v7879, %v7883
      %v7885 = vshrl.u32 %v7677, 16
      %v7887 = vrot.slane %v7885, 4
      %v7888 = vor.u32 %v7887, %v7883
      %v7889 = vrot.slane %v7888, 4
      %v7891 = vshll.u32 %v7678, 16
      %v7893 = vrot.slane %v7891, 5
      %v7894 = vsel %vm339, %v7889, %v7893
      %v7896 = vshrl.u32 %v7679, 16
      %v7898 = vrot.slane %v7896, 4
      %v7899 = vshll.u32 %v7679, 16
      %v7901 = vrot.slane %v7899, 5
      %v7902 = vor.u32 %v7898, %v7901
      %v7903 = vrot.slane %v7902, 4
      %v7905 = vshll.u32 %v7680, 16
      %v7907 = vrot.slane %v7905, 5
      %v7908 = vsel %vm339, %v7903, %v7907
      %v7909 = vshrl.u32 %v7680, 16
      %v7911 = vrot.slane %v7909, 4
      %v7912 = vor.u32 %v7911, %v7907
      %v7913 = vrot.slane %v7912, 4
      %v7915 = vshll.u32 %v7681, 16
      %v7917 = vrot.slane %v7915, 5
      %v7918 = vsel %vm339, %v7913, %v7917
      %v7920 = vshrl.u32 %v7682, 16
      %v7922 = vrot.slane %v7920, 4
      %v7923 = vshll.u32 %v7682, 16
      %v7925 = vrot.slane %v7923, 5
      %v7926 = vor.u32 %v7922, %v7925
      %v7927 = vrot.slane %v7926, 4
      %v7929 = vshll.u32 %v7683, 16
      %v7931 = vrot.slane %v7929, 5
      %v7932 = vsel %vm339, %v7927, %v7931
      %v7933 = vshrl.u32 %v7683, 16
      %v7935 = vrot.slane %v7933, 4
      %v7936 = vor.u32 %v7935, %v7931
      %v7937 = vrot.slane %v7936, 4
      %v7939 = vshll.u32 %v7684, 16
      %v7941 = vrot.slane %v7939, 5
      %v7942 = vsel %vm339, %v7937, %v7941
      %v7944 = vshrl.u32 %v7685, 16
      %v7946 = vrot.slane %v7944, 4
      %v7947 = vshll.u32 %v7685, 16
      %v7949 = vrot.slane %v7947, 5
      %v7950 = vor.u32 %v7946, %v7949
      %v7951 = vrot.slane %v7950, 4
      %v7953 = vshll.u32 %v7686, 16
      %v7955 = vrot.slane %v7953, 5
      %v7956 = vsel %vm339, %v7951, %v7955
      %v7957 = vshrl.u32 %v7686, 16
      %v7959 = vrot.slane %v7957, 4
      %v7960 = vor.u32 %v7959, %v7955
      %v7961 = vrot.slane %v7960, 4
      %v7963 = vshll.u32 %v7687, 16
      %v7965 = vrot.slane %v7963, 5
      %v7966 = vsel %vm339, %v7961, %v7965
      %v7968 = vshrl.u32 %v7688, 16
      %v7970 = vrot.slane %v7968, 4
      %v7971 = vshll.u32 %v7688, 16
      %v7973 = vrot.slane %v7971, 5
      %v7974 = vor.u32 %v7970, %v7973
      %v7975 = vrot.slane %v7974, 4
      %v7977 = vshll.u32 %v7689, 16
      %v7979 = vrot.slane %v7977, 5
      %v7980 = vsel %vm339, %v7975, %v7979
      %v7981 = vshrl.u32 %v7689, 16
      %v7983 = vrot.slane %v7981, 4
      %v7984 = vor.u32 %v7983, %v7979
      %v7985 = vrot.slane %v7984, 4
      %v7987 = vshll.u32 %v7690, 16
      %v7989 = vrot.slane %v7987, 5
      %v7990 = vsel %vm339, %v7985, %v7989
      %v7992 = vshrl.u32 %v7691, 16
      %v7994 = vrot.slane %v7992, 4
      %v7995 = vshll.u32 %v7691, 16
      %v7997 = vrot.slane %v7995, 5
      %v7998 = vor.u32 %v7994, %v7997
      %v7999 = vrot.slane %v7998, 4
      %v8001 = vshll.u32 %v7692, 16
      %v8003 = vrot.slane %v8001, 5
      %v8004 = vsel %vm339, %v7999, %v8003
      %v8005 = vshrl.u32 %v7692, 16
      %v8007 = vrot.slane %v8005, 4
      %v8008 = vor.u32 %v8007, %v8003
      %v8009 = vrot.slane %v8008, 4
      %v8011 = vshll.u32 %v7693, 16
      %v8013 = vrot.slane %v8011, 5
      %v8014 = vsel %vm339, %v8009, %v8013
      %v8016 = vshrl.u32 %v7694, 16
      %v8018 = vrot.slane %v8016, 4
      %v8019 = vshll.u32 %v7694, 16
      %v8021 = vrot.slane %v8019, 5
      %v8022 = vor.u32 %v8018, %v8021
      %v8023 = vrot.slane %v8022, 4
      %v8025 = vshll.u32 %v7695, 16
      %v8027 = vrot.slane %v8025, 5
      %v8028 = vsel %vm339, %v8023, %v8027
      %v8029 = vshrl.u32 %v7695, 16
      %v8031 = vrot.slane %v8029, 4
      %v8032 = vor.u32 %v8031, %v8027
      %v8033 = vrot.slane %v8032, 4
      %v8035 = vshll.u32 %v7696, 16
      %v8037 = vrot.slane %v8035, 5
      %v8038 = vsel %vm339, %v8033, %v8037
      %v8040 = vshrl.u32 %v7697, 16
      %v8042 = vrot.slane %v8040, 4
      %v8043 = vshll.u32 %v7697, 16
      %v8045 = vrot.slane %v8043, 5
      %v8046 = vor.u32 %v8042, %v8045
      %v8047 = vrot.slane %v8046, 4
      %v8049 = vshll.u32 %v7698, 16
      %v8051 = vrot.slane %v8049, 5
      %v8052 = vsel %vm339, %v8047, %v8051
      %v8053 = vshrl.u32 %v7698, 16
      %v8055 = vrot.slane %v8053, 4
      %v8056 = vor.u32 %v8055, %v8051
      %v8057 = vrot.slane %v8056, 4
      %v8059 = vshll.u32 %v7699, 16
      %v8061 = vrot.slane %v8059, 5
      %v8062 = vsel %vm339, %v8057, %v8061
      %v8064 = vshrl.u32 %v7700, 16
      %v8066 = vrot.slane %v8064, 4
      %v8067 = vshll.u32 %v7700, 16
      %v8069 = vrot.slane %v8067, 5
      %v8070 = vor.u32 %v8066, %v8069
      %v8071 = vrot.slane %v8070, 4
      %v8073 = vshll.u32 %v7701, 16
      %v8075 = vrot.slane %v8073, 5
      %v8076 = vsel %vm339, %v8071, %v8075
      %v8077 = vshrl.u32 %v7701, 16
      %v8079 = vrot.slane %v8077, 4
      %v8080 = vor.u32 %v8079, %v8075
      %v8081 = vrot.slane %v8080, 4
      %v8083 = vshll.u32 %v7702, 16
      %v8085 = vrot.slane %v8083, 5
      %v8086 = vsel %vm339, %v8081, %v8085
      %s8087 = scalar_lea.vmem %s2, 256
      %v8088 = vld [vmem:[%s8087] sm:$0xf]
      %v8089 = vld [vmem:[%s8087 + $0x4] sm:$0xf]
      %v8090 = vld [vmem:[%s8087 + $0x8] sm:$0xf]
      %v8091 = vld [vmem:[%s8087 + $0xc] sm:$0xf]
      %v8092 = vld [vmem:[%s8087 + $0x10] sm:$0xf]
      %v8093 = vld [vmem:[%s8087 + $0x14] sm:$0xf]
      %v8094 = vld [vmem:[%s8087 + $0x18] sm:$0xf]
      %v8095 = vld [vmem:[%s8087 + $0x1c] sm:$0xf]
      %v8096 = vld [vmem:[%s8087 + $0x20] sm:$0xf]
      %v8097 = vld [vmem:[%s8087 + $0x24] sm:$0xf]
      %v8098 = vld [vmem:[%s8087 + $0x28] sm:$0xf]
      %v8099 = vld [vmem:[%s8087 + $0x2c] sm:$0xf]
      %v8100 = vld [vmem:[%s8087 + $0x30] sm:$0xf]
      %v8101 = vld [vmem:[%s8087 + $0x34] sm:$0xf]
      %v8102 = vld [vmem:[%s8087 + $0x38] sm:$0xf]
      %v8103 = vld [vmem:[%s8087 + $0x3c] sm:$0xf]
      %v8104 = vunpack.c.l.b16 %v7716
      %v8105 = vunpack.c.l.b16 %v7726
      %v8106 = vunpack.c.l.b16 %v7740
      %v8107 = vunpack.c.l.b16 %v7750
      %v8108 = vunpack.c.l.b16 %v7764
      %v8109 = vunpack.c.l.b16 %v7774
      %v8110 = vunpack.c.l.b16 %v7788
      %v8111 = vunpack.c.l.b16 %v7798
      %v8112 = vunpack.c.l.b16 %v7812
      %v8113 = vunpack.c.l.b16 %v7822
      %v8114 = vunpack.c.l.b16 %v7836
      %v8115 = vunpack.c.l.b16 %v7846
      %v8116 = vunpack.c.l.b16 %v7860
      %v8117 = vunpack.c.l.b16 %v7870
      %v8118 = vunpack.c.l.b16 %v7884
      %v8119 = vunpack.c.l.b16 %v7894
      %v8120 = vunpack.c.l.b16 %v7908
      %v8121 = vunpack.c.l.b16 %v7918
      %v8122 = vunpack.c.l.b16 %v7932
      %v8123 = vunpack.c.l.b16 %v7942
      %v8124 = vunpack.c.l.b16 %v7956
      %v8125 = vunpack.c.l.b16 %v7966
      %v8126 = vunpack.c.l.b16 %v7980
      %v8127 = vunpack.c.l.b16 %v7990
      %v8128 = vunpack.c.l.b16 %v8004
      %v8129 = vunpack.c.l.b16 %v8014
      %v8130 = vunpack.c.l.b16 %v8028
      %v8131 = vunpack.c.l.b16 %v8038
      %v8132 = vunpack.c.l.b16 %v8052
      %v8133 = vunpack.c.l.b16 %v8062
      %v8134 = vunpack.c.l.b16 %v8076
      %v8135 = vunpack.c.l.b16 %v8086
      %v8136 = vpack.c.b16 %v8105, %v8104
      %v8137 = vpack.c.b16 %v8107, %v8106
      %v8138 = vpack.c.b16 %v8109, %v8108
      %v8139 = vpack.c.b16 %v8111, %v8110
      %v8140 = vpack.c.b16 %v8113, %v8112
      %v8141 = vpack.c.b16 %v8115, %v8114
      %v8142 = vpack.c.b16 %v8117, %v8116
      %v8143 = vpack.c.b16 %v8119, %v8118
      %v8144 = vpack.c.b16 %v8121, %v8120
      %v8145 = vpack.c.b16 %v8123, %v8122
      %v8146 = vpack.c.b16 %v8125, %v8124
      %v8147 = vpack.c.b16 %v8127, %v8126
      %v8148 = vpack.c.b16 %v8129, %v8128
      %v8149 = vpack.c.b16 %v8131, %v8130
      %v8150 = vpack.c.b16 %v8133, %v8132
      %v8151 = vpack.c.b16 %v8135, %v8134
      %v8184 = vunpack.c.l.b16 %v8088
      %v8185 = vunpack.c.l.b16 %v8089
      %v8186 = vunpack.c.l.b16 %v8090
      %v8187 = vunpack.c.l.b16 %v8091
      %v8188 = vunpack.c.l.b16 %v8092
      %v8189 = vunpack.c.l.b16 %v8093
      %v8190 = vunpack.c.l.b16 %v8094
      %v8191 = vunpack.c.l.b16 %v8095
      %v8192 = vunpack.c.l.b16 %v8096
      %v8193 = vunpack.c.l.b16 %v8097
      %v8194 = vunpack.c.l.b16 %v8098
      %v8195 = vunpack.c.l.b16 %v8099
      %v8196 = vunpack.c.l.b16 %v8100
      %v8197 = vunpack.c.l.b16 %v8101
      %v8198 = vunpack.c.l.b16 %v8102
      %v8199 = vunpack.c.l.b16 %v8103
      %v8200 = vpack.c.b16 %v8185, %v8184
      %v8201 = vpack.c.b16 %v8187, %v8186
      %v8202 = vpack.c.b16 %v8189, %v8188
      %v8203 = vpack.c.b16 %v8191, %v8190
      %v8204 = vpack.c.b16 %v8193, %v8192
      %v8205 = vpack.c.b16 %v8195, %v8194
      %v8206 = vpack.c.b16 %v8197, %v8196
      %v8207 = vpack.c.b16 %v8199, %v8198
      %8216 = vmatprep.subr.bf16.mxu0 0
      %8217 = vmatpush1.bf16.msra.mxu0 %v8207
      %8218 = vmatprep.subr.bf16.mxu0 0
      %8219 = vmatpush1.bf16.msra.mxu0 %v8206
      %8220 = vmatprep.subr.bf16.mxu0 0
      %8221 = vmatpush1.bf16.msra.mxu0 %v8205
      %8222 = vmatprep.subr.bf16.mxu0 0
      %8223 = vmatpush1.bf16.msra.mxu0 %v8204
      %8224 = vmatprep.subr.bf16.mxu0 0
      %8225 = vmatpush1.bf16.msra.mxu0 %v8203
      %8226 = vmatprep.subr.bf16.mxu0 0
      %8227 = vmatpush1.bf16.msra.mxu0 %v8202
      %8228 = vmatprep.subr.bf16.mxu0 0
      %8229 = vmatpush1.bf16.msra.mxu0 %v8201
      %8230 = vmatprep.subr.bf16.mxu0 0
      %8231 = vmatpush1.bf16.msra.mxu0 %v8200
      %8232 = vmatprep.subr.bf16.mxu0 0
      %8233 = vmatpush2.bf16.msra.mxu0 0
      %8234 = vmatprep.subr.bf16.mxu0 0
      %8235 = vmatpush2.bf16.msra.mxu0 0
      %8236 = vmatprep.subr.bf16.mxu0 0
      %8237 = vmatpush2.bf16.msra.mxu0 0
      %8238 = vmatprep.subr.bf16.mxu0 0
      %8239 = vmatpush2.bf16.msra.mxu0 0
      %8240 = vmatprep.subr.bf16.mxu0 0
      %8241 = vmatpush2.bf16.msra.mxu0 0
      %8242 = vmatprep.subr.bf16.mxu0 0
      %8243 = vmatpush2.bf16.msra.mxu0 0
      %8244 = vmatprep.subr.bf16.mxu0 0
      %8245 = vmatpush2.bf16.msra.mxu0 0
      %8246 = vmatprep.subr.bf16.mxu0 0
      %8247 = vmatpush2.bf16.msra.mxu0 0
      %8248 = vmatprep.mubr.bf16.mxu0 0
      %8249 = vmatmul.mubr.bf16.gmra.mxu0 %v8136
      %v8250 = vpop.f32.mrf.mxu0
      %v8251 = vadd.f32 0.0, %v8250
      %v8252 = vpop.f32.mrf.mxu0
      %v8253 = vpop.f32.mrf.mxu0
      %v8254 = vadd.f32 0.0, %v8253
      %v8255 = vpop.f32.mrf.mxu0
      %8256 = vmatprep.mubr.bf16.mxu0 0
      %8257 = vmatmul.mubr.bf16.gmra.mxu0 %v8137
      %v8258 = vpop.f32.mrf.mxu0
      %v8259 = vadd.f32 0.0, %v8258
      %v8260 = vpop.f32.mrf.mxu0
      %v8261 = vpop.f32.mrf.mxu0
      %v8262 = vadd.f32 0.0, %v8261
      %v8263 = vpop.f32.mrf.mxu0
      %8264 = vmatprep.mubr.bf16.mxu0 0
      %8265 = vmatmul.mubr.bf16.gmra.mxu0 %v8138
      %v8266 = vpop.f32.mrf.mxu0
      %v8267 = vadd.f32 0.0, %v8266
      %v8268 = vpop.f32.mrf.mxu0
      %v8269 = vpop.f32.mrf.mxu0
      %v8270 = vadd.f32 0.0, %v8269
      %v8271 = vpop.f32.mrf.mxu0
      %8272 = vmatprep.mubr.bf16.mxu0 0
      %8273 = vmatmul.mubr.bf16.gmra.mxu0 %v8139
      %v8274 = vpop.f32.mrf.mxu0
      %v8275 = vadd.f32 0.0, %v8274
      %v8276 = vpop.f32.mrf.mxu0
      %v8277 = vpop.f32.mrf.mxu0
      %v8278 = vadd.f32 0.0, %v8277
      %v8279 = vpop.f32.mrf.mxu0
      %8280 = vmatprep.mubr.bf16.mxu0 0
      %8281 = vmatmul.mubr.bf16.gmra.mxu0 %v8140
      %v8282 = vpop.f32.mrf.mxu0
      %v8283 = vadd.f32 0.0, %v8282
      %v8284 = vpop.f32.mrf.mxu0
      %v8285 = vpop.f32.mrf.mxu0
      %v8286 = vadd.f32 0.0, %v8285
      %v8287 = vpop.f32.mrf.mxu0
      %8288 = vmatprep.mubr.bf16.mxu0 0
      %8289 = vmatmul.mubr.bf16.gmra.mxu0 %v8141
      %v8290 = vpop.f32.mrf.mxu0
      %v8291 = vadd.f32 0.0, %v8290
      %v8292 = vpop.f32.mrf.mxu0
      %v8293 = vpop.f32.mrf.mxu0
      %v8294 = vadd.f32 0.0, %v8293
      %v8295 = vpop.f32.mrf.mxu0
      %8296 = vmatprep.mubr.bf16.mxu0 0
      %8297 = vmatmul.mubr.bf16.gmra.mxu0 %v8142
      %v8298 = vpop.f32.mrf.mxu0
      %v8299 = vadd.f32 0.0, %v8298
      %v8300 = vpop.f32.mrf.mxu0
      %v8301 = vpop.f32.mrf.mxu0
      %v8302 = vadd.f32 0.0, %v8301
      %v8303 = vpop.f32.mrf.mxu0
      %8304 = vmatprep.mubr.bf16.mxu0 0
      %8305 = vmatmul.mubr.bf16.gmra.mxu0 %v8143
      %v8306 = vpop.f32.mrf.mxu0
      %v8307 = vadd.f32 0.0, %v8306
      %v8308 = vpop.f32.mrf.mxu0
      %v8309 = vpop.f32.mrf.mxu0
      %v8310 = vadd.f32 0.0, %v8309
      %v8311 = vpop.f32.mrf.mxu0
      %8312 = vmatprep.mubr.bf16.mxu0 0
      %8313 = vmatmul.mubr.bf16.gmra.mxu0 %v8144
      %v8314 = vpop.f32.mrf.mxu0
      %v8315 = vadd.f32 0.0, %v8314
      %v8316 = vpop.f32.mrf.mxu0
      %v8317 = vpop.f32.mrf.mxu0
      %v8318 = vadd.f32 0.0, %v8317
      %v8319 = vpop.f32.mrf.mxu0
      %8320 = vmatprep.mubr.bf16.mxu0 0
      %8321 = vmatmul.mubr.bf16.gmra.mxu0 %v8145
      %v8322 = vpop.f32.mrf.mxu0
      %v8323 = vadd.f32 0.0, %v8322
      %v8324 = vpop.f32.mrf.mxu0
      %v8325 = vpop.f32.mrf.mxu0
      %v8326 = vadd.f32 0.0, %v8325
      %v8327 = vpop.f32.mrf.mxu0
      %8328 = vmatprep.mubr.bf16.mxu0 0
      %8329 = vmatmul.mubr.bf16.gmra.mxu0 %v8146
      %v8330 = vpop.f32.mrf.mxu0
      %v8331 = vadd.f32 0.0, %v8330
      %v8332 = vpop.f32.mrf.mxu0
      %v8333 = vpop.f32.mrf.mxu0
      %v8334 = vadd.f32 0.0, %v8333
      %v8335 = vpop.f32.mrf.mxu0
      %8336 = vmatprep.mubr.bf16.mxu0 0
      %8337 = vmatmul.mubr.bf16.gmra.mxu0 %v8147
      %v8338 = vpop.f32.mrf.mxu0
      %v8339 = vadd.f32 0.0, %v8338
      %v8340 = vpop.f32.mrf.mxu0
      %v8341 = vpop.f32.mrf.mxu0
      %v8342 = vadd.f32 0.0, %v8341
      %v8343 = vpop.f32.mrf.mxu0
      %8344 = vmatprep.mubr.bf16.mxu0 0
      %8345 = vmatmul.mubr.bf16.gmra.mxu0 %v8148
      %v8346 = vpop.f32.mrf.mxu0
      %v8347 = vadd.f32 0.0, %v8346
      %v8348 = vpop.f32.mrf.mxu0
      %v8349 = vpop.f32.mrf.mxu0
      %v8350 = vadd.f32 0.0, %v8349
      %v8351 = vpop.f32.mrf.mxu0
      %8352 = vmatprep.mubr.bf16.mxu0 0
      %8353 = vmatmul.mubr.bf16.gmra.mxu0 %v8149
      %v8354 = vpop.f32.mrf.mxu0
      %v8355 = vadd.f32 0.0, %v8354
      %v8356 = vpop.f32.mrf.mxu0
      %v8357 = vpop.f32.mrf.mxu0
      %v8358 = vadd.f32 0.0, %v8357
      %v8359 = vpop.f32.mrf.mxu0
      %8360 = vmatprep.mubr.bf16.mxu0 0
      %8361 = vmatmul.mubr.bf16.gmra.mxu0 %v8150
      %v8362 = vpop.f32.mrf.mxu0
      %v8363 = vadd.f32 0.0, %v8362
      %v8364 = vpop.f32.mrf.mxu0
      %v8365 = vpop.f32.mrf.mxu0
      %v8366 = vadd.f32 0.0, %v8365
      %v8367 = vpop.f32.mrf.mxu0
      %8368 = vmatprep.mubr.bf16.mxu0 0
      %8369 = vmatmul.mubr.bf16.gmra.mxu0 %v8151
      %v8370 = vpop.f32.mrf.mxu0
      %v8371 = vadd.f32 0.0, %v8370
      %v8372 = vpop.f32.mrf.mxu0
      %v8373 = vpop.f32.mrf.mxu0
      %v8374 = vadd.f32 0.0, %v8373
      %v8375 = vpop.f32.mrf.mxu0
      %8376 = vdwg.mxu0
      %v8377 = vadd.f32 %v7623, %v8251
      %v8378 = vadd.f32 %v7624, %v8254
      %v8379 = vadd.f32 %v7625, %v8259
      %v8380 = vadd.f32 %v7626, %v8262
      %v8381 = vadd.f32 %v7627, %v8267
      %v8382 = vadd.f32 %v7628, %v8270
      %v8383 = vadd.f32 %v7629, %v8275
      %v8384 = vadd.f32 %v7630, %v8278
      %v8385 = vadd.f32 %v7631, %v8283
      %v8386 = vadd.f32 %v7632, %v8286
      %v8387 = vadd.f32 %v7633, %v8291
      %v8388 = vadd.f32 %v7634, %v8294
      %v8389 = vadd.f32 %v7635, %v8299
      %v8390 = vadd.f32 %v7636, %v8302
      %v8391 = vadd.f32 %v7637, %v8307
      %v8392 = vadd.f32 %v7638, %v8310
      %v8393 = vadd.f32 %v7639, %v8315
      %v8394 = vadd.f32 %v7640, %v8318
      %v8395 = vadd.f32 %v7641, %v8323
      %v8396 = vadd.f32 %v7642, %v8326
      %v8397 = vadd.f32 %v7643, %v8331
      %v8398 = vadd.f32 %v7644, %v8334
      %v8399 = vadd.f32 %v7645, %v8339
      %v8400 = vadd.f32 %v7646, %v8342
      %v8401 = vadd.f32 %v7647, %v8347
      %v8402 = vadd.f32 %v7648, %v8350
      %v8403 = vadd.f32 %v7649, %v8355
      %v8404 = vadd.f32 %v7650, %v8358
      %v8405 = vadd.f32 %v7651, %v8363
      %v8406 = vadd.f32 %v7652, %v8366
      %v8407 = vadd.f32 %v7653, %v8371
      %v8408 = vadd.f32 %v7654, %v8374
      %v8409 = vld [vmem:[%s5626] sm:$0xe]
      %v8410 = vld [vmem:[%s5626 + $0xc] sm:$0xe]
      %v8411 = vld [vmem:[%s5626 + $0x18] sm:$0xe]
      %v8412 = vld [vmem:[%s5626 + $0x24] sm:$0xe]
      %v8413 = vld [vmem:[%s5626 + $0x30] sm:$0xe]
      %v8414 = vld [vmem:[%s5626 + $0x3c] sm:$0xe]
      %v8415 = vld [vmem:[%s5626 + $0x48] sm:$0xe]
      %v8416 = vld [vmem:[%s5626 + $0x54] sm:$0xe]
      %v8417 = vld [vmem:[%s5626 + $0x60] sm:$0xe]
      %v8418 = vld [vmem:[%s5626 + $0x6c] sm:$0xe]
      %v8419 = vld [vmem:[%s5626 + $0x78] sm:$0xe]
      %v8420 = vld [vmem:[%s5626 + $0x84] sm:$0xe]
      %v8421 = vld [vmem:[%s5626 + $0x90] sm:$0xe]
      %v8422 = vld [vmem:[%s5626 + $0x9c] sm:$0xe]
      %v8423 = vld [vmem:[%s5626 + $0xa8] sm:$0xe]
      %v8424 = vld [vmem:[%s5626 + $0xb4] sm:$0xe]
      %v8473 = vrot.slane %v8409, 5
      %v8474 = vrot.slane %v8473, 4
      %v8475 = vrot.slane %v7656, 5
      %v8476 = vsel %vm1369, %v8474, %v8475
      %v8477 = vrot.slane %v8475, 4
      %v8478 = vrot.slane %v7657, 5
      %v8479 = vsel %vm1369, %v8477, %v8478
      %v8480 = vrot.slane %v8410, 5
      %v8481 = vrot.slane %v8480, 4
      %v8482 = vrot.slane %v7659, 5
      %v8483 = vsel %vm1369, %v8481, %v8482
      %v8484 = vrot.slane %v8482, 4
      %v8485 = vrot.slane %v7660, 5
      %v8486 = vsel %vm1369, %v8484, %v8485
      %v8487 = vrot.slane %v8411, 5
      %v8488 = vrot.slane %v8487, 4
      %v8489 = vrot.slane %v7662, 5
      %v8490 = vsel %vm1369, %v8488, %v8489
      %v8491 = vrot.slane %v8489, 4
      %v8492 = vrot.slane %v7663, 5
      %v8493 = vsel %vm1369, %v8491, %v8492
      %v8494 = vrot.slane %v8412, 5
      %v8495 = vrot.slane %v8494, 4
      %v8496 = vrot.slane %v7665, 5
      %v8497 = vsel %vm1369, %v8495, %v8496
      %v8498 = vrot.slane %v8496, 4
      %v8499 = vrot.slane %v7666, 5
      %v8500 = vsel %vm1369, %v8498, %v8499
      %v8501 = vrot.slane %v8413, 5
      %v8502 = vrot.slane %v8501, 4
      %v8503 = vrot.slane %v7668, 5
      %v8504 = vsel %vm1369, %v8502, %v8503
      %v8505 = vrot.slane %v8503, 4
      %v8506 = vrot.slane %v7669, 5
      %v8507 = vsel %vm1369, %v8505, %v8506
      %v8508 = vrot.slane %v8414, 5
      %v8509 = vrot.slane %v8508, 4
      %v8510 = vrot.slane %v7671, 5
      %v8511 = vsel %vm1369, %v8509, %v8510
      %v8512 = vrot.slane %v8510, 4
      %v8513 = vrot.slane %v7672, 5
      %v8514 = vsel %vm1369, %v8512, %v8513
      %v8515 = vrot.slane %v8415, 5
      %v8516 = vrot.slane %v8515, 4
      %v8517 = vrot.slane %v7674, 5
      %v8518 = vsel %vm1369, %v8516, %v8517
      %v8519 = vrot.slane %v8517, 4
      %v8520 = vrot.slane %v7675, 5
      %v8521 = vsel %vm1369, %v8519, %v8520
      %v8522 = vrot.slane %v8416, 5
      %v8523 = vrot.slane %v8522, 4
      %v8524 = vrot.slane %v7677, 5
      %v8525 = vsel %vm1369, %v8523, %v8524
      %v8526 = vrot.slane %v8524, 4
      %v8527 = vrot.slane %v7678, 5
      %v8528 = vsel %vm1369, %v8526, %v8527
      %v8529 = vrot.slane %v8417, 5
      %v8530 = vrot.slane %v8529, 4
      %v8531 = vrot.slane %v7680, 5
      %v8532 = vsel %vm1369, %v8530, %v8531
      %v8533 = vrot.slane %v8531, 4
      %v8534 = vrot.slane %v7681, 5
      %v8535 = vsel %vm1369, %v8533, %v8534
      %v8536 = vrot.slane %v8418, 5
      %v8537 = vrot.slane %v8536, 4
      %v8538 = vrot.slane %v7683, 5
      %v8539 = vsel %vm1369, %v8537, %v8538
      %v8540 = vrot.slane %v8538, 4
      %v8541 = vrot.slane %v7684, 5
      %v8542 = vsel %vm1369, %v8540, %v8541
      %v8543 = vrot.slane %v8419, 5
      %v8544 = vrot.slane %v8543, 4
      %v8545 = vrot.slane %v7686, 5
      %v8546 = vsel %vm1369, %v8544, %v8545
      %v8547 = vrot.slane %v8545, 4
      %v8548 = vrot.slane %v7687, 5
      %v8549 = vsel %vm1369, %v8547, %v8548
      %v8550 = vrot.slane %v8420, 5
      %v8551 = vrot.slane %v8550, 4
      %v8552 = vrot.slane %v7689, 5
      %v8553 = vsel %vm1369, %v8551, %v8552
      %v8554 = vrot.slane %v8552, 4
      %v8555 = vrot.slane %v7690, 5
      %v8556 = vsel %vm1369, %v8554, %v8555
      %v8557 = vrot.slane %v8421, 5
      %v8558 = vrot.slane %v8557, 4
      %v8559 = vrot.slane %v7692, 5
      %v8560 = vsel %vm1369, %v8558, %v8559
      %v8561 = vrot.slane %v8559, 4
      %v8562 = vrot.slane %v7693, 5
      %v8563 = vsel %vm1369, %v8561, %v8562
      %v8564 = vrot.slane %v8422, 5
      %v8565 = vrot.slane %v8564, 4
      %v8566 = vrot.slane %v7695, 5
      %v8567 = vsel %vm1369, %v8565, %v8566
      %v8568 = vrot.slane %v8566, 4
      %v8569 = vrot.slane %v7696, 5
      %v8570 = vsel %vm1369, %v8568, %v8569
      %v8571 = vrot.slane %v8423, 5
      %v8572 = vrot.slane %v8571, 4
      %v8573 = vrot.slane %v7698, 5
      %v8574 = vsel %vm1369, %v8572, %v8573
      %v8575 = vrot.slane %v8573, 4
      %v8576 = vrot.slane %v7699, 5
      %v8577 = vsel %vm1369, %v8575, %v8576
      %v8578 = vrot.slane %v8424, 5
      %v8579 = vrot.slane %v8578, 4
      %v8580 = vrot.slane %v7701, 5
      %v8581 = vsel %vm1369, %v8579, %v8580
      %v8582 = vrot.slane %v8580, 4
      %v8583 = vrot.slane %v7702, 5
      %v8584 = vsel %vm1369, %v8582, %v8583
      %s8585 = scalar_lea.vmem %s2, 320
      %v8586 = vld [vmem:[%s8585] sm:$0xf]
      %v8587 = vld [vmem:[%s8585 + $0x4] sm:$0xf]
      %v8588 = vld [vmem:[%s8585 + $0x8] sm:$0xf]
      %v8589 = vld [vmem:[%s8585 + $0xc] sm:$0xf]
      %v8590 = vld [vmem:[%s8585 + $0x10] sm:$0xf]
      %v8591 = vld [vmem:[%s8585 + $0x14] sm:$0xf]
      %v8592 = vld [vmem:[%s8585 + $0x18] sm:$0xf]
      %v8593 = vld [vmem:[%s8585 + $0x1c] sm:$0xf]
      %v8594 = vld [vmem:[%s8585 + $0x20] sm:$0xf]
      %v8595 = vld [vmem:[%s8585 + $0x24] sm:$0xf]
      %v8596 = vld [vmem:[%s8585 + $0x28] sm:$0xf]
      %v8597 = vld [vmem:[%s8585 + $0x2c] sm:$0xf]
      %v8598 = vld [vmem:[%s8585 + $0x30] sm:$0xf]
      %v8599 = vld [vmem:[%s8585 + $0x34] sm:$0xf]
      %v8600 = vld [vmem:[%s8585 + $0x38] sm:$0xf]
      %v8601 = vld [vmem:[%s8585 + $0x3c] sm:$0xf]
      %v8602 = vunpack.c.l.b16 %v8476
      %v8603 = vunpack.c.l.b16 %v8479
      %v8604 = vunpack.c.l.b16 %v8483
      %v8605 = vunpack.c.l.b16 %v8486
      %v8606 = vunpack.c.l.b16 %v8490
      %v8607 = vunpack.c.l.b16 %v8493
      %v8608 = vunpack.c.l.b16 %v8497
      %v8609 = vunpack.c.l.b16 %v8500
      %v8610 = vunpack.c.l.b16 %v8504
      %v8611 = vunpack.c.l.b16 %v8507
      %v8612 = vunpack.c.l.b16 %v8511
      %v8613 = vunpack.c.l.b16 %v8514
      %v8614 = vunpack.c.l.b16 %v8518
      %v8615 = vunpack.c.l.b16 %v8521
      %v8616 = vunpack.c.l.b16 %v8525
      %v8617 = vunpack.c.l.b16 %v8528
      %v8618 = vunpack.c.l.b16 %v8532
      %v8619 = vunpack.c.l.b16 %v8535
      %v8620 = vunpack.c.l.b16 %v8539
      %v8621 = vunpack.c.l.b16 %v8542
      %v8622 = vunpack.c.l.b16 %v8546
      %v8623 = vunpack.c.l.b16 %v8549
      %v8624 = vunpack.c.l.b16 %v8553
      %v8625 = vunpack.c.l.b16 %v8556
      %v8626 = vunpack.c.l.b16 %v8560
      %v8627 = vunpack.c.l.b16 %v8563
      %v8628 = vunpack.c.l.b16 %v8567
      %v8629 = vunpack.c.l.b16 %v8570
      %v8630 = vunpack.c.l.b16 %v8574
      %v8631 = vunpack.c.l.b16 %v8577
      %v8632 = vunpack.c.l.b16 %v8581
      %v8633 = vunpack.c.l.b16 %v8584
      %v8634 = vpack.c.b16 %v8603, %v8602
      %v8635 = vpack.c.b16 %v8605, %v8604
      %v8636 = vpack.c.b16 %v8607, %v8606
      %v8637 = vpack.c.b16 %v8609, %v8608
      %v8638 = vpack.c.b16 %v8611, %v8610
      %v8639 = vpack.c.b16 %v8613, %v8612
      %v8640 = vpack.c.b16 %v8615, %v8614
      %v8641 = vpack.c.b16 %v8617, %v8616
      %v8642 = vpack.c.b16 %v8619, %v8618
      %v8643 = vpack.c.b16 %v8621, %v8620
      %v8644 = vpack.c.b16 %v8623, %v8622
      %v8645 = vpack.c.b16 %v8625, %v8624
      %v8646 = vpack.c.b16 %v8627, %v8626
      %v8647 = vpack.c.b16 %v8629, %v8628
      %v8648 = vpack.c.b16 %v8631, %v8630
      %v8649 = vpack.c.b16 %v8633, %v8632
      %v8682 = vunpack.c.l.b16 %v8586
      %v8683 = vunpack.c.l.b16 %v8587
      %v8684 = vunpack.c.l.b16 %v8588
      %v8685 = vunpack.c.l.b16 %v8589
      %v8686 = vunpack.c.l.b16 %v8590
      %v8687 = vunpack.c.l.b16 %v8591
      %v8688 = vunpack.c.l.b16 %v8592
      %v8689 = vunpack.c.l.b16 %v8593
      %v8690 = vunpack.c.l.b16 %v8594
      %v8691 = vunpack.c.l.b16 %v8595
      %v8692 = vunpack.c.l.b16 %v8596
      %v8693 = vunpack.c.l.b16 %v8597
      %v8694 = vunpack.c.l.b16 %v8598
      %v8695 = vunpack.c.l.b16 %v8599
      %v8696 = vunpack.c.l.b16 %v8600
      %v8697 = vunpack.c.l.b16 %v8601
      %v8698 = vpack.c.b16 %v8683, %v8682
      %v8699 = vpack.c.b16 %v8685, %v8684
      %v8700 = vpack.c.b16 %v8687, %v8686
      %v8701 = vpack.c.b16 %v8689, %v8688
      %v8702 = vpack.c.b16 %v8691, %v8690
      %v8703 = vpack.c.b16 %v8693, %v8692
      %v8704 = vpack.c.b16 %v8695, %v8694
      %v8705 = vpack.c.b16 %v8697, %v8696
      %8714 = vmatprep.subr.bf16.mxu0 0
      %8715 = vmatpush1.bf16.msra.mxu0 %v8705
      %8716 = vmatprep.subr.bf16.mxu0 0
      %8717 = vmatpush1.bf16.msra.mxu0 %v8704
      %8718 = vmatprep.subr.bf16.mxu0 0
      %8719 = vmatpush1.bf16.msra.mxu0 %v8703
      %8720 = vmatprep.subr.bf16.mxu0 0
      %8721 = vmatpush1.bf16.msra.mxu0 %v8702
      %8722 = vmatprep.subr.bf16.mxu0 0
      %8723 = vmatpush1.bf16.msra.mxu0 %v8701
      %8724 = vmatprep.subr.bf16.mxu0 0
      %8725 = vmatpush1.bf16.msra.mxu0 %v8700
      %8726 = vmatprep.subr.bf16.mxu0 0
      %8727 = vmatpush1.bf16.msra.mxu0 %v8699
      %8728 = vmatprep.subr.bf16.mxu0 0
      %8729 = vmatpush1.bf16.msra.mxu0 %v8698
      %8730 = vmatprep.subr.bf16.mxu0 0
      %8731 = vmatpush2.bf16.msra.mxu0 0
      %8732 = vmatprep.subr.bf16.mxu0 0
      %8733 = vmatpush2.bf16.msra.mxu0 0
      %8734 = vmatprep.subr.bf16.mxu0 0
      %8735 = vmatpush2.bf16.msra.mxu0 0
      %8736 = vmatprep.subr.bf16.mxu0 0
      %8737 = vmatpush2.bf16.msra.mxu0 0
      %8738 = vmatprep.subr.bf16.mxu0 0
      %8739 = vmatpush2.bf16.msra.mxu0 0
      %8740 = vmatprep.subr.bf16.mxu0 0
      %8741 = vmatpush2.bf16.msra.mxu0 0
      %8742 = vmatprep.subr.bf16.mxu0 0
      %8743 = vmatpush2.bf16.msra.mxu0 0
      %8744 = vmatprep.subr.bf16.mxu0 0
      %8745 = vmatpush2.bf16.msra.mxu0 0
      %8746 = vmatprep.mubr.bf16.mxu0 0
      %8747 = vmatmul.mubr.bf16.gmra.mxu0 %v8634
      %v8748 = vpop.f32.mrf.mxu0
      %v8749 = vadd.f32 0.0, %v8748
      %v8750 = vpop.f32.mrf.mxu0
      %v8751 = vpop.f32.mrf.mxu0
      %v8752 = vadd.f32 0.0, %v8751
      %v8753 = vpop.f32.mrf.mxu0
      %8754 = vmatprep.mubr.bf16.mxu0 0
      %8755 = vmatmul.mubr.bf16.gmra.mxu0 %v8635
      %v8756 = vpop.f32.mrf.mxu0
      %v8757 = vadd.f32 0.0, %v8756
      %v8758 = vpop.f32.mrf.mxu0
      %v8759 = vpop.f32.mrf.mxu0
      %v8760 = vadd.f32 0.0, %v8759
      %v8761 = vpop.f32.mrf.mxu0
      %8762 = vmatprep.mubr.bf16.mxu0 0
      %8763 = vmatmul.mubr.bf16.gmra.mxu0 %v8636
      %v8764 = vpop.f32.mrf.mxu0
      %v8765 = vadd.f32 0.0, %v8764
      %v8766 = vpop.f32.mrf.mxu0
      %v8767 = vpop.f32.mrf.mxu0
      %v8768 = vadd.f32 0.0, %v8767
      %v8769 = vpop.f32.mrf.mxu0
      %8770 = vmatprep.mubr.bf16.mxu0 0
      %8771 = vmatmul.mubr.bf16.gmra.mxu0 %v8637
      %v8772 = vpop.f32.mrf.mxu0
      %v8773 = vadd.f32 0.0, %v8772
      %v8774 = vpop.f32.mrf.mxu0
      %v8775 = vpop.f32.mrf.mxu0
      %v8776 = vadd.f32 0.0, %v8775
      %v8777 = vpop.f32.mrf.mxu0
      %8778 = vmatprep.mubr.bf16.mxu0 0
      %8779 = vmatmul.mubr.bf16.gmra.mxu0 %v8638
      %v8780 = vpop.f32.mrf.mxu0
      %v8781 = vadd.f32 0.0, %v8780
      %v8782 = vpop.f32.mrf.mxu0
      %v8783 = vpop.f32.mrf.mxu0
      %v8784 = vadd.f32 0.0, %v8783
      %v8785 = vpop.f32.mrf.mxu0
      %8786 = vmatprep.mubr.bf16.mxu0 0
      %8787 = vmatmul.mubr.bf16.gmra.mxu0 %v8639
      %v8788 = vpop.f32.mrf.mxu0
      %v8789 = vadd.f32 0.0, %v8788
      %v8790 = vpop.f32.mrf.mxu0
      %v8791 = vpop.f32.mrf.mxu0
      %v8792 = vadd.f32 0.0, %v8791
      %v8793 = vpop.f32.mrf.mxu0
      %8794 = vmatprep.mubr.bf16.mxu0 0
      %8795 = vmatmul.mubr.bf16.gmra.mxu0 %v8640
      %v8796 = vpop.f32.mrf.mxu0
      %v8797 = vadd.f32 0.0, %v8796
      %v8798 = vpop.f32.mrf.mxu0
      %v8799 = vpop.f32.mrf.mxu0
      %v8800 = vadd.f32 0.0, %v8799
      %v8801 = vpop.f32.mrf.mxu0
      %8802 = vmatprep.mubr.bf16.mxu0 0
      %8803 = vmatmul.mubr.bf16.gmra.mxu0 %v8641
      %v8804 = vpop.f32.mrf.mxu0
      %v8805 = vadd.f32 0.0, %v8804
      %v8806 = vpop.f32.mrf.mxu0
      %v8807 = vpop.f32.mrf.mxu0
      %v8808 = vadd.f32 0.0, %v8807
      %v8809 = vpop.f32.mrf.mxu0
      %8810 = vmatprep.mubr.bf16.mxu0 0
      %8811 = vmatmul.mubr.bf16.gmra.mxu0 %v8642
      %v8812 = vpop.f32.mrf.mxu0
      %v8813 = vadd.f32 0.0, %v8812
      %v8814 = vpop.f32.mrf.mxu0
      %v8815 = vpop.f32.mrf.mxu0
      %v8816 = vadd.f32 0.0, %v8815
      %v8817 = vpop.f32.mrf.mxu0
      %8818 = vmatprep.mubr.bf16.mxu0 0
      %8819 = vmatmul.mubr.bf16.gmra.mxu0 %v8643
      %v8820 = vpop.f32.mrf.mxu0
      %v8821 = vadd.f32 0.0, %v8820
      %v8822 = vpop.f32.mrf.mxu0
      %v8823 = vpop.f32.mrf.mxu0
      %v8824 = vadd.f32 0.0, %v8823
      %v8825 = vpop.f32.mrf.mxu0
      %8826 = vmatprep.mubr.bf16.mxu0 0
      %8827 = vmatmul.mubr.bf16.gmra.mxu0 %v8644
      %v8828 = vpop.f32.mrf.mxu0
      %v8829 = vadd.f32 0.0, %v8828
      %v8830 = vpop.f32.mrf.mxu0
      %v8831 = vpop.f32.mrf.mxu0
      %v8832 = vadd.f32 0.0, %v8831
      %v8833 = vpop.f32.mrf.mxu0
      %8834 = vmatprep.mubr.bf16.mxu0 0
      %8835 = vmatmul.mubr.bf16.gmra.mxu0 %v8645
      %v8836 = vpop.f32.mrf.mxu0
      %v8837 = vadd.f32 0.0, %v8836
      %v8838 = vpop.f32.mrf.mxu0
      %v8839 = vpop.f32.mrf.mxu0
      %v8840 = vadd.f32 0.0, %v8839
      %v8841 = vpop.f32.mrf.mxu0
      %8842 = vmatprep.mubr.bf16.mxu0 0
      %8843 = vmatmul.mubr.bf16.gmra.mxu0 %v8646
      %v8844 = vpop.f32.mrf.mxu0
      %v8845 = vadd.f32 0.0, %v8844
      %v8846 = vpop.f32.mrf.mxu0
      %v8847 = vpop.f32.mrf.mxu0
      %v8848 = vadd.f32 0.0, %v8847
      %v8849 = vpop.f32.mrf.mxu0
      %8850 = vmatprep.mubr.bf16.mxu0 0
      %8851 = vmatmul.mubr.bf16.gmra.mxu0 %v8647
      %v8852 = vpop.f32.mrf.mxu0
      %v8853 = vadd.f32 0.0, %v8852
      %v8854 = vpop.f32.mrf.mxu0
      %v8855 = vpop.f32.mrf.mxu0
      %v8856 = vadd.f32 0.0, %v8855
      %v8857 = vpop.f32.mrf.mxu0
      %8858 = vmatprep.mubr.bf16.mxu0 0
      %8859 = vmatmul.mubr.bf16.gmra.mxu0 %v8648
      %v8860 = vpop.f32.mrf.mxu0
      %v8861 = vadd.f32 0.0, %v8860
      %v8862 = vpop.f32.mrf.mxu0
      %v8863 = vpop.f32.mrf.mxu0
      %v8864 = vadd.f32 0.0, %v8863
      %v8865 = vpop.f32.mrf.mxu0
      %8866 = vmatprep.mubr.bf16.mxu0 0
      %8867 = vmatmul.mubr.bf16.gmra.mxu0 %v8649
      %v8868 = vpop.f32.mrf.mxu0
      %v8869 = vadd.f32 0.0, %v8868
      %v8870 = vpop.f32.mrf.mxu0
      %v8871 = vpop.f32.mrf.mxu0
      %v8872 = vadd.f32 0.0, %v8871
      %v8873 = vpop.f32.mrf.mxu0
      %8874 = vdwg.mxu0
      %v8875 = vadd.f32 %v8377, %v8749
      %v8876 = vadd.f32 %v8378, %v8752
      %v8877 = vadd.f32 %v8379, %v8757
      %v8878 = vadd.f32 %v8380, %v8760
      %v8879 = vadd.f32 %v8381, %v8765
      %v8880 = vadd.f32 %v8382, %v8768
      %v8881 = vadd.f32 %v8383, %v8773
      %v8882 = vadd.f32 %v8384, %v8776
      %v8883 = vadd.f32 %v8385, %v8781
      %v8884 = vadd.f32 %v8386, %v8784
      %v8885 = vadd.f32 %v8387, %v8789
      %v8886 = vadd.f32 %v8388, %v8792
      %v8887 = vadd.f32 %v8389, %v8797
      %v8888 = vadd.f32 %v8390, %v8800
      %v8889 = vadd.f32 %v8391, %v8805
      %v8890 = vadd.f32 %v8392, %v8808
      %v8891 = vadd.f32 %v8393, %v8813
      %v8892 = vadd.f32 %v8394, %v8816
      %v8893 = vadd.f32 %v8395, %v8821
      %v8894 = vadd.f32 %v8396, %v8824
      %v8895 = vadd.f32 %v8397, %v8829
      %v8896 = vadd.f32 %v8398, %v8832
      %v8897 = vadd.f32 %v8399, %v8837
      %v8898 = vadd.f32 %v8400, %v8840
      %v8899 = vadd.f32 %v8401, %v8845
      %v8900 = vadd.f32 %v8402, %v8848
      %v8901 = vadd.f32 %v8403, %v8853
      %v8902 = vadd.f32 %v8404, %v8856
      %v8903 = vadd.f32 %v8405, %v8861
      %v8904 = vadd.f32 %v8406, %v8864
      %v8905 = vadd.f32 %v8407, %v8869
      %v8906 = vadd.f32 %v8408, %v8872
      %s8907 = scalar_lea.vmem [#allocation2], 24
      %v8908 = vld [vmem:[%s8907] sm:$0xf]
      %v8909 = vld [vmem:[%s8907 + $0x4] sm:$0xf]
      %v8910 = vld [vmem:[%s8907 + $0xc] sm:$0xf]
      %v8911 = vld [vmem:[%s8907 + $0x10] sm:$0xf]
      %v8912 = vld [vmem:[%s8907 + $0x18] sm:$0xf]
      %v8913 = vld [vmem:[%s8907 + $0x1c] sm:$0xf]
      %v8914 = vld [vmem:[%s8907 + $0x24] sm:$0xf]
      %v8915 = vld [vmem:[%s8907 + $0x28] sm:$0xf]
      %v8916 = vld [vmem:[%s8907 + $0x30] sm:$0xf]
      %v8917 = vld [vmem:[%s8907 + $0x34] sm:$0xf]
      %v8918 = vld [vmem:[%s8907 + $0x3c] sm:$0xf]
      %v8919 = vld [vmem:[%s8907 + $0x40] sm:$0xf]
      %v8920 = vld [vmem:[%s8907 + $0x48] sm:$0xf]
      %v8921 = vld [vmem:[%s8907 + $0x4c] sm:$0xf]
      %v8922 = vld [vmem:[%s8907 + $0x54] sm:$0xf]
      %v8923 = vld [vmem:[%s8907 + $0x58] sm:$0xf]
      %v8924 = vld [vmem:[%s8907 + $0x60] sm:$0xf]
      %v8925 = vld [vmem:[%s8907 + $0x64] sm:$0xf]
      %v8926 = vld [vmem:[%s8907 + $0x6c] sm:$0xf]
      %v8927 = vld [vmem:[%s8907 + $0x70] sm:$0xf]
      %v8928 = vld [vmem:[%s8907 + $0x78] sm:$0xf]
      %v8929 = vld [vmem:[%s8907 + $0x7c] sm:$0xf]
      %v8930 = vld [vmem:[%s8907 + $0x84] sm:$0xf]
      %v8931 = vld [vmem:[%s8907 + $0x88] sm:$0xf]
      %v8932 = vld [vmem:[%s8907 + $0x90] sm:$0xf]
      %v8933 = vld [vmem:[%s8907 + $0x94] sm:$0xf]
      %v8934 = vld [vmem:[%s8907 + $0x9c] sm:$0xf]
      %v8935 = vld [vmem:[%s8907 + $0xa0] sm:$0xf]
      %v8936 = vld [vmem:[%s8907 + $0xa8] sm:$0xf]
      %v8937 = vld [vmem:[%s8907 + $0xac] sm:$0xf]
      %v8938 = vld [vmem:[%s8907 + $0xb4] sm:$0xf]
      %v8939 = vld [vmem:[%s8907 + $0xb8] sm:$0xf]
      %s8940 = scalar_lea.vmem %s2, 384
      %v8941 = vld [vmem:[%s8940] sm:$0xf]
      %v8942 = vld [vmem:[%s8940 + $0x4] sm:$0xf]
      %v8943 = vld [vmem:[%s8940 + $0x8] sm:$0xf]
      %v8944 = vld [vmem:[%s8940 + $0xc] sm:$0xf]
      %v8945 = vld [vmem:[%s8940 + $0x10] sm:$0xf]
      %v8946 = vld [vmem:[%s8940 + $0x14] sm:$0xf]
      %v8947 = vld [vmem:[%s8940 + $0x18] sm:$0xf]
      %v8948 = vld [vmem:[%s8940 + $0x1c] sm:$0xf]
      %v8949 = vld [vmem:[%s8940 + $0x20] sm:$0xf]
      %v8950 = vld [vmem:[%s8940 + $0x24] sm:$0xf]
      %v8951 = vld [vmem:[%s8940 + $0x28] sm:$0xf]
      %v8952 = vld [vmem:[%s8940 + $0x2c] sm:$0xf]
      %v8953 = vld [vmem:[%s8940 + $0x30] sm:$0xf]
      %v8954 = vld [vmem:[%s8940 + $0x34] sm:$0xf]
      %v8955 = vld [vmem:[%s8940 + $0x38] sm:$0xf]
      %v8956 = vld [vmem:[%s8940 + $0x3c] sm:$0xf]
      %v8989 = vunpack.c.l.b16 %v8908
      %v8990 = vunpack.c.l.b16 %v8909
      %v8991 = vunpack.c.l.b16 %v8910
      %v8992 = vunpack.c.l.b16 %v8911
      %v8993 = vunpack.c.l.b16 %v8912
      %v8994 = vunpack.c.l.b16 %v8913
      %v8995 = vunpack.c.l.b16 %v8914
      %v8996 = vunpack.c.l.b16 %v8915
      %v8997 = vunpack.c.l.b16 %v8916
      %v8998 = vunpack.c.l.b16 %v8917
      %v8999 = vunpack.c.l.b16 %v8918
      %v9000 = vunpack.c.l.b16 %v8919
      %v9001 = vunpack.c.l.b16 %v8920
      %v9002 = vunpack.c.l.b16 %v8921
      %v9003 = vunpack.c.l.b16 %v8922
      %v9004 = vunpack.c.l.b16 %v8923
      %v9005 = vunpack.c.l.b16 %v8924
      %v9006 = vunpack.c.l.b16 %v8925
      %v9007 = vunpack.c.l.b16 %v8926
      %v9008 = vunpack.c.l.b16 %v8927
      %v9009 = vunpack.c.l.b16 %v8928
      %v9010 = vunpack.c.l.b16 %v8929
      %v9011 = vunpack.c.l.b16 %v8930
      %v9012 = vunpack.c.l.b16 %v8931
      %v9013 = vunpack.c.l.b16 %v8932
      %v9014 = vunpack.c.l.b16 %v8933
      %v9015 = vunpack.c.l.b16 %v8934
      %v9016 = vunpack.c.l.b16 %v8935
      %v9017 = vunpack.c.l.b16 %v8936
      %v9018 = vunpack.c.l.b16 %v8937
      %v9019 = vunpack.c.l.b16 %v8938
      %v9020 = vunpack.c.l.b16 %v8939
      %v9021 = vpack.c.b16 %v8990, %v8989
      %v9022 = vpack.c.b16 %v8992, %v8991
      %v9023 = vpack.c.b16 %v8994, %v8993
      %v9024 = vpack.c.b16 %v8996, %v8995
      %v9025 = vpack.c.b16 %v8998, %v8997
      %v9026 = vpack.c.b16 %v9000, %v8999
      %v9027 = vpack.c.b16 %v9002, %v9001
      %v9028 = vpack.c.b16 %v9004, %v9003
      %v9029 = vpack.c.b16 %v9006, %v9005
      %v9030 = vpack.c.b16 %v9008, %v9007
      %v9031 = vpack.c.b16 %v9010, %v9009
      %v9032 = vpack.c.b16 %v9012, %v9011
      %v9033 = vpack.c.b16 %v9014, %v9013
      %v9034 = vpack.c.b16 %v9016, %v9015
      %v9035 = vpack.c.b16 %v9018, %v9017
      %v9036 = vpack.c.b16 %v9020, %v9019
      %v9069 = vunpack.c.l.b16 %v8941
      %v9070 = vunpack.c.l.b16 %v8942
      %v9071 = vunpack.c.l.b16 %v8943
      %v9072 = vunpack.c.l.b16 %v8944
      %v9073 = vunpack.c.l.b16 %v8945
      %v9074 = vunpack.c.l.b16 %v8946
      %v9075 = vunpack.c.l.b16 %v8947
      %v9076 = vunpack.c.l.b16 %v8948
      %v9077 = vunpack.c.l.b16 %v8949
      %v9078 = vunpack.c.l.b16 %v8950
      %v9079 = vunpack.c.l.b16 %v8951
      %v9080 = vunpack.c.l.b16 %v8952
      %v9081 = vunpack.c.l.b16 %v8953
      %v9082 = vunpack.c.l.b16 %v8954
      %v9083 = vunpack.c.l.b16 %v8955
      %v9084 = vunpack.c.l.b16 %v8956
      %v9085 = vpack.c.b16 %v9070, %v9069
      %v9086 = vpack.c.b16 %v9072, %v9071
      %v9087 = vpack.c.b16 %v9074, %v9073
      %v9088 = vpack.c.b16 %v9076, %v9075
      %v9089 = vpack.c.b16 %v9078, %v9077
      %v9090 = vpack.c.b16 %v9080, %v9079
      %v9091 = vpack.c.b16 %v9082, %v9081
      %v9092 = vpack.c.b16 %v9084, %v9083
      %9101 = vmatprep.subr.bf16.mxu0 0
      %9102 = vmatpush1.bf16.msra.mxu0 %v9092
      %9103 = vmatprep.subr.bf16.mxu0 0
      %9104 = vmatpush1.bf16.msra.mxu0 %v9091
      %9105 = vmatprep.subr.bf16.mxu0 0
      %9106 = vmatpush1.bf16.msra.mxu0 %v9090
      %9107 = vmatprep.subr.bf16.mxu0 0
      %9108 = vmatpush1.bf16.msra.mxu0 %v9089
      %9109 = vmatprep.subr.bf16.mxu0 0
      %9110 = vmatpush1.bf16.msra.mxu0 %v9088
      %9111 = vmatprep.subr.bf16.mxu0 0
      %9112 = vmatpush1.bf16.msra.mxu0 %v9087
      %9113 = vmatprep.subr.bf16.mxu0 0
      %9114 = vmatpush1.bf16.msra.mxu0 %v9086
      %9115 = vmatprep.subr.bf16.mxu0 0
      %9116 = vmatpush1.bf16.msra.mxu0 %v9085
      %9117 = vmatprep.subr.bf16.mxu0 0
      %9118 = vmatpush2.bf16.msra.mxu0 0
      %9119 = vmatprep.subr.bf16.mxu0 0
      %9120 = vmatpush2.bf16.msra.mxu0 0
      %9121 = vmatprep.subr.bf16.mxu0 0
      %9122 = vmatpush2.bf16.msra.mxu0 0
      %9123 = vmatprep.subr.bf16.mxu0 0
      %9124 = vmatpush2.bf16.msra.mxu0 0
      %9125 = vmatprep.subr.bf16.mxu0 0
      %9126 = vmatpush2.bf16.msra.mxu0 0
      %9127 = vmatprep.subr.bf16.mxu0 0
      %9128 = vmatpush2.bf16.msra.mxu0 0
      %9129 = vmatprep.subr.bf16.mxu0 0
      %9130 = vmatpush2.bf16.msra.mxu0 0
      %9131 = vmatprep.subr.bf16.mxu0 0
      %9132 = vmatpush2.bf16.msra.mxu0 0
      %9133 = vmatprep.mubr.bf16.mxu0 0
      %9134 = vmatmul.mubr.bf16.gmra.mxu0 %v9021
      %v9135 = vpop.f32.mrf.mxu0
      %v9136 = vadd.f32 0.0, %v9135
      %v9137 = vpop.f32.mrf.mxu0
      %v9138 = vpop.f32.mrf.mxu0
      %v9139 = vadd.f32 0.0, %v9138
      %v9140 = vpop.f32.mrf.mxu0
      %9141 = vmatprep.mubr.bf16.mxu0 0
      %9142 = vmatmul.mubr.bf16.gmra.mxu0 %v9022
      %v9143 = vpop.f32.mrf.mxu0
      %v9144 = vadd.f32 0.0, %v9143
      %v9145 = vpop.f32.mrf.mxu0
      %v9146 = vpop.f32.mrf.mxu0
      %v9147 = vadd.f32 0.0, %v9146
      %v9148 = vpop.f32.mrf.mxu0
      %9149 = vmatprep.mubr.bf16.mxu0 0
      %9150 = vmatmul.mubr.bf16.gmra.mxu0 %v9023
      %v9151 = vpop.f32.mrf.mxu0
      %v9152 = vadd.f32 0.0, %v9151
      %v9153 = vpop.f32.mrf.mxu0
      %v9154 = vpop.f32.mrf.mxu0
      %v9155 = vadd.f32 0.0, %v9154
      %v9156 = vpop.f32.mrf.mxu0
      %9157 = vmatprep.mubr.bf16.mxu0 0
      %9158 = vmatmul.mubr.bf16.gmra.mxu0 %v9024
      %v9159 = vpop.f32.mrf.mxu0
      %v9160 = vadd.f32 0.0, %v9159
      %v9161 = vpop.f32.mrf.mxu0
      %v9162 = vpop.f32.mrf.mxu0
      %v9163 = vadd.f32 0.0, %v9162
      %v9164 = vpop.f32.mrf.mxu0
      %9165 = vmatprep.mubr.bf16.mxu0 0
      %9166 = vmatmul.mubr.bf16.gmra.mxu0 %v9025
      %v9167 = vpop.f32.mrf.mxu0
      %v9168 = vadd.f32 0.0, %v9167
      %v9169 = vpop.f32.mrf.mxu0
      %v9170 = vpop.f32.mrf.mxu0
      %v9171 = vadd.f32 0.0, %v9170
      %v9172 = vpop.f32.mrf.mxu0
      %9173 = vmatprep.mubr.bf16.mxu0 0
      %9174 = vmatmul.mubr.bf16.gmra.mxu0 %v9026
      %v9175 = vpop.f32.mrf.mxu0
      %v9176 = vadd.f32 0.0, %v9175
      %v9177 = vpop.f32.mrf.mxu0
      %v9178 = vpop.f32.mrf.mxu0
      %v9179 = vadd.f32 0.0, %v9178
      %v9180 = vpop.f32.mrf.mxu0
      %9181 = vmatprep.mubr.bf16.mxu0 0
      %9182 = vmatmul.mubr.bf16.gmra.mxu0 %v9027
      %v9183 = vpop.f32.mrf.mxu0
      %v9184 = vadd.f32 0.0, %v9183
      %v9185 = vpop.f32.mrf.mxu0
      %v9186 = vpop.f32.mrf.mxu0
      %v9187 = vadd.f32 0.0, %v9186
      %v9188 = vpop.f32.mrf.mxu0
      %9189 = vmatprep.mubr.bf16.mxu0 0
      %9190 = vmatmul.mubr.bf16.gmra.mxu0 %v9028
      %v9191 = vpop.f32.mrf.mxu0
      %v9192 = vadd.f32 0.0, %v9191
      %v9193 = vpop.f32.mrf.mxu0
      %v9194 = vpop.f32.mrf.mxu0
      %v9195 = vadd.f32 0.0, %v9194
      %v9196 = vpop.f32.mrf.mxu0
      %9197 = vmatprep.mubr.bf16.mxu0 0
      %9198 = vmatmul.mubr.bf16.gmra.mxu0 %v9029
      %v9199 = vpop.f32.mrf.mxu0
      %v9200 = vadd.f32 0.0, %v9199
      %v9201 = vpop.f32.mrf.mxu0
      %v9202 = vpop.f32.mrf.mxu0
      %v9203 = vadd.f32 0.0, %v9202
      %v9204 = vpop.f32.mrf.mxu0
      %9205 = vmatprep.mubr.bf16.mxu0 0
      %9206 = vmatmul.mubr.bf16.gmra.mxu0 %v9030
      %v9207 = vpop.f32.mrf.mxu0
      %v9208 = vadd.f32 0.0, %v9207
      %v9209 = vpop.f32.mrf.mxu0
      %v9210 = vpop.f32.mrf.mxu0
      %v9211 = vadd.f32 0.0, %v9210
      %v9212 = vpop.f32.mrf.mxu0
      %9213 = vmatprep.mubr.bf16.mxu0 0
      %9214 = vmatmul.mubr.bf16.gmra.mxu0 %v9031
      %v9215 = vpop.f32.mrf.mxu0
      %v9216 = vadd.f32 0.0, %v9215
      %v9217 = vpop.f32.mrf.mxu0
      %v9218 = vpop.f32.mrf.mxu0
      %v9219 = vadd.f32 0.0, %v9218
      %v9220 = vpop.f32.mrf.mxu0
      %9221 = vmatprep.mubr.bf16.mxu0 0
      %9222 = vmatmul.mubr.bf16.gmra.mxu0 %v9032
      %v9223 = vpop.f32.mrf.mxu0
      %v9224 = vadd.f32 0.0, %v9223
      %v9225 = vpop.f32.mrf.mxu0
      %v9226 = vpop.f32.mrf.mxu0
      %v9227 = vadd.f32 0.0, %v9226
      %v9228 = vpop.f32.mrf.mxu0
      %9229 = vmatprep.mubr.bf16.mxu0 0
      %9230 = vmatmul.mubr.bf16.gmra.mxu0 %v9033
      %v9231 = vpop.f32.mrf.mxu0
      %v9232 = vadd.f32 0.0, %v9231
      %v9233 = vpop.f32.mrf.mxu0
      %v9234 = vpop.f32.mrf.mxu0
      %v9235 = vadd.f32 0.0, %v9234
      %v9236 = vpop.f32.mrf.mxu0
      %9237 = vmatprep.mubr.bf16.mxu0 0
      %9238 = vmatmul.mubr.bf16.gmra.mxu0 %v9034
      %v9239 = vpop.f32.mrf.mxu0
      %v9240 = vadd.f32 0.0, %v9239
      %v9241 = vpop.f32.mrf.mxu0
      %v9242 = vpop.f32.mrf.mxu0
      %v9243 = vadd.f32 0.0, %v9242
      %v9244 = vpop.f32.mrf.mxu0
      %9245 = vmatprep.mubr.bf16.mxu0 0
      %9246 = vmatmul.mubr.bf16.gmra.mxu0 %v9035
      %v9247 = vpop.f32.mrf.mxu0
      %v9248 = vadd.f32 0.0, %v9247
      %v9249 = vpop.f32.mrf.mxu0
      %v9250 = vpop.f32.mrf.mxu0
      %v9251 = vadd.f32 0.0, %v9250
      %v9252 = vpop.f32.mrf.mxu0
      %9253 = vmatprep.mubr.bf16.mxu0 0
      %9254 = vmatmul.mubr.bf16.gmra.mxu0 %v9036
      %v9255 = vpop.f32.mrf.mxu0
      %v9256 = vadd.f32 0.0, %v9255
      %v9257 = vpop.f32.mrf.mxu0
      %v9258 = vpop.f32.mrf.mxu0
      %v9259 = vadd.f32 0.0, %v9258
      %v9260 = vpop.f32.mrf.mxu0
      %9261 = vdwg.mxu0
      %v9262 = vadd.f32 %v8875, %v9136
      %v9263 = vadd.f32 %v8876, %v9139
      %v9264 = vadd.f32 %v8877, %v9144
      %v9265 = vadd.f32 %v8878, %v9147
      %v9266 = vadd.f32 %v8879, %v9152
      %v9267 = vadd.f32 %v8880, %v9155
      %v9268 = vadd.f32 %v8881, %v9160
      %v9269 = vadd.f32 %v8882, %v9163
      %v9270 = vadd.f32 %v8883, %v9168
      %v9271 = vadd.f32 %v8884, %v9171
      %v9272 = vadd.f32 %v8885, %v9176
      %v9273 = vadd.f32 %v8886, %v9179
      %v9274 = vadd.f32 %v8887, %v9184
      %v9275 = vadd.f32 %v8888, %v9187
      %v9276 = vadd.f32 %v8889, %v9192
      %v9277 = vadd.f32 %v8890, %v9195
      %v9278 = vadd.f32 %v8891, %v9200
      %v9279 = vadd.f32 %v8892, %v9203
      %v9280 = vadd.f32 %v8893, %v9208
      %v9281 = vadd.f32 %v8894, %v9211
      %v9282 = vadd.f32 %v8895, %v9216
      %v9283 = vadd.f32 %v8896, %v9219
      %v9284 = vadd.f32 %v8897, %v9224
      %v9285 = vadd.f32 %v8898, %v9227
      %v9286 = vadd.f32 %v8899, %v9232
      %v9287 = vadd.f32 %v8900, %v9235
      %v9288 = vadd.f32 %v8901, %v9240
      %v9289 = vadd.f32 %v8902, %v9243
      %v9290 = vadd.f32 %v8903, %v9248
      %v9291 = vadd.f32 %v8904, %v9251
      %v9292 = vadd.f32 %v8905, %v9256
      %v9293 = vadd.f32 %v8906, %v9259
      %v9294 = vld [vmem:[%s8907] sm:$0xf]
      %v9295 = vld [vmem:[%s8907 + $0x4] sm:$0xf]
      %v9296 = vld [vmem:[%s8907 + $0x8] sm:$0x1]
      %v9297 = vld [vmem:[%s8907 + $0xc] sm:$0xf]
      %v9298 = vld [vmem:[%s8907 + $0x10] sm:$0xf]
      %v9299 = vld [vmem:[%s8907 + $0x14] sm:$0x1]
      %v9300 = vld [vmem:[%s8907 + $0x18] sm:$0xf]
      %v9301 = vld [vmem:[%s8907 + $0x1c] sm:$0xf]
      %v9302 = vld [vmem:[%s8907 + $0x20] sm:$0x1]
      %v9303 = vld [vmem:[%s8907 + $0x24] sm:$0xf]
      %v9304 = vld [vmem:[%s8907 + $0x28] sm:$0xf]
      %v9305 = vld [vmem:[%s8907 + $0x2c] sm:$0x1]
      %v9306 = vld [vmem:[%s8907 + $0x30] sm:$0xf]
      %v9307 = vld [vmem:[%s8907 + $0x34] sm:$0xf]
      %v9308 = vld [vmem:[%s8907 + $0x38] sm:$0x1]
      %v9309 = vld [vmem:[%s8907 + $0x3c] sm:$0xf]
      %v9310 = vld [vmem:[%s8907 + $0x40] sm:$0xf]
      %v9311 = vld [vmem:[%s8907 + $0x44] sm:$0x1]
      %v9312 = vld [vmem:[%s8907 + $0x48] sm:$0xf]
      %v9313 = vld [vmem:[%s8907 + $0x4c] sm:$0xf]
      %v9314 = vld [vmem:[%s8907 + $0x50] sm:$0x1]
      %v9315 = vld [vmem:[%s8907 + $0x54] sm:$0xf]
      %v9316 = vld [vmem:[%s8907 + $0x58] sm:$0xf]
      %v9317 = vld [vmem:[%s8907 + $0x5c] sm:$0x1]
      %v9318 = vld [vmem:[%s8907 + $0x60] sm:$0xf]
      %v9319 = vld [vmem:[%s8907 + $0x64] sm:$0xf]
      %v9320 = vld [vmem:[%s8907 + $0x68] sm:$0x1]
      %v9321 = vld [vmem:[%s8907 + $0x6c] sm:$0xf]
      %v9322 = vld [vmem:[%s8907 + $0x70] sm:$0xf]
      %v9323 = vld [vmem:[%s8907 + $0x74] sm:$0x1]
      %v9324 = vld [vmem:[%s8907 + $0x78] sm:$0xf]
      %v9325 = vld [vmem:[%s8907 + $0x7c] sm:$0xf]
      %v9326 = vld [vmem:[%s8907 + $0x80] sm:$0x1]
      %v9327 = vld [vmem:[%s8907 + $0x84] sm:$0xf]
      %v9328 = vld [vmem:[%s8907 + $0x88] sm:$0xf]
      %v9329 = vld [vmem:[%s8907 + $0x8c] sm:$0x1]
      %v9330 = vld [vmem:[%s8907 + $0x90] sm:$0xf]
      %v9331 = vld [vmem:[%s8907 + $0x94] sm:$0xf]
      %v9332 = vld [vmem:[%s8907 + $0x98] sm:$0x1]
      %v9333 = vld [vmem:[%s8907 + $0x9c] sm:$0xf]
      %v9334 = vld [vmem:[%s8907 + $0xa0] sm:$0xf]
      %v9335 = vld [vmem:[%s8907 + $0xa4] sm:$0x1]
      %v9336 = vld [vmem:[%s8907 + $0xa8] sm:$0xf]
      %v9337 = vld [vmem:[%s8907 + $0xac] sm:$0xf]
      %v9338 = vld [vmem:[%s8907 + $0xb0] sm:$0x1]
      %v9339 = vld [vmem:[%s8907 + $0xb4] sm:$0xf]
      %v9340 = vld [vmem:[%s8907 + $0xb8] sm:$0xf]
      %v9341 = vld [vmem:[%s8907 + $0xbc] sm:$0x1]
      %v9343 = vshrl.u32 %v9294, 16
      %v9345 = vrot.slane %v9343, 4
      %v9346 = vshll.u32 %v9294, 16
      %v9348 = vrot.slane %v9346, 5
      %v9349 = vor.u32 %v9345, %v9348
      %v9350 = vrot.slane %v9349, 4
      %v9352 = vshll.u32 %v9295, 16
      %v9354 = vrot.slane %v9352, 5
      %v9355 = vsel %vm339, %v9350, %v9354
      %v9356 = vshrl.u32 %v9295, 16
      %v9358 = vrot.slane %v9356, 4
      %v9359 = vor.u32 %v9358, %v9354
      %v9360 = vrot.slane %v9359, 4
      %v9362 = vshll.u32 %v9296, 16
      %v9364 = vrot.slane %v9362, 5
      %v9365 = vsel %vm339, %v9360, %v9364
      %v9367 = vshrl.u32 %v9297, 16
      %v9369 = vrot.slane %v9367, 4
      %v9370 = vshll.u32 %v9297, 16
      %v9372 = vrot.slane %v9370, 5
      %v9373 = vor.u32 %v9369, %v9372
      %v9374 = vrot.slane %v9373, 4
      %v9376 = vshll.u32 %v9298, 16
      %v9378 = vrot.slane %v9376, 5
      %v9379 = vsel %vm339, %v9374, %v9378
      %v9380 = vshrl.u32 %v9298, 16
      %v9382 = vrot.slane %v9380, 4
      %v9383 = vor.u32 %v9382, %v9378
      %v9384 = vrot.slane %v9383, 4
      %v9386 = vshll.u32 %v9299, 16
      %v9388 = vrot.slane %v9386, 5
      %v9389 = vsel %vm339, %v9384, %v9388
      %v9391 = vshrl.u32 %v9300, 16
      %v9393 = vrot.slane %v9391, 4
      %v9394 = vshll.u32 %v9300, 16
      %v9396 = vrot.slane %v9394, 5
      %v9397 = vor.u32 %v9393, %v9396
      %v9398 = vrot.slane %v9397, 4
      %v9400 = vshll.u32 %v9301, 16
      %v9402 = vrot.slane %v9400, 5
      %v9403 = vsel %vm339, %v9398, %v9402
      %v9404 = vshrl.u32 %v9301, 16
      %v9406 = vrot.slane %v9404, 4
      %v9407 = vor.u32 %v9406, %v9402
      %v9408 = vrot.slane %v9407, 4
      %v9410 = vshll.u32 %v9302, 16
      %v9412 = vrot.slane %v9410, 5
      %v9413 = vsel %vm339, %v9408, %v9412
      %v9415 = vshrl.u32 %v9303, 16
      %v9417 = vrot.slane %v9415, 4
      %v9418 = vshll.u32 %v9303, 16
      %v9420 = vrot.slane %v9418, 5
      %v9421 = vor.u32 %v9417, %v9420
      %v9422 = vrot.slane %v9421, 4
      %v9424 = vshll.u32 %v9304, 16
      %v9426 = vrot.slane %v9424, 5
      %v9427 = vsel %vm339, %v9422, %v9426
      %v9428 = vshrl.u32 %v9304, 16
      %v9430 = vrot.slane %v9428, 4
      %v9431 = vor.u32 %v9430, %v9426
      %v9432 = vrot.slane %v9431, 4
      %v9434 = vshll.u32 %v9305, 16
      %v9436 = vrot.slane %v9434, 5
      %v9437 = vsel %vm339, %v9432, %v9436
      %v9439 = vshrl.u32 %v9306, 16
      %v9441 = vrot.slane %v9439, 4
      %v9442 = vshll.u32 %v9306, 16
      %v9444 = vrot.slane %v9442, 5
      %v9445 = vor.u32 %v9441, %v9444
      %v9446 = vrot.slane %v9445, 4
      %v9448 = vshll.u32 %v9307, 16
      %v9450 = vrot.slane %v9448, 5
      %v9451 = vsel %vm339, %v9446, %v9450
      %v9452 = vshrl.u32 %v9307, 16
      %v9454 = vrot.slane %v9452, 4
      %v9455 = vor.u32 %v9454, %v9450
      %v9456 = vrot.slane %v9455, 4
      %v9458 = vshll.u32 %v9308, 16
      %v9460 = vrot.slane %v9458, 5
      %v9461 = vsel %vm339, %v9456, %v9460
      %v9463 = vshrl.u32 %v9309, 16
      %v9465 = vrot.slane %v9463, 4
      %v9466 = vshll.u32 %v9309, 16
      %v9468 = vrot.slane %v9466, 5
      %v9469 = vor.u32 %v9465, %v9468
      %v9470 = vrot.slane %v9469, 4
      %v9472 = vshll.u32 %v9310, 16
      %v9474 = vrot.slane %v9472, 5
      %v9475 = vsel %vm339, %v9470, %v9474
      %v9476 = vshrl.u32 %v9310, 16
      %v9478 = vrot.slane %v9476, 4
      %v9479 = vor.u32 %v9478, %v9474
      %v9480 = vrot.slane %v9479, 4
      %v9482 = vshll.u32 %v9311, 16
      %v9484 = vrot.slane %v9482, 5
      %v9485 = vsel %vm339, %v9480, %v9484
      %v9487 = vshrl.u32 %v9312, 16
      %v9489 = vrot.slane %v9487, 4
      %v9490 = vshll.u32 %v9312, 16
      %v9492 = vrot.slane %v9490, 5
      %v9493 = vor.u32 %v9489, %v9492
      %v9494 = vrot.slane %v9493, 4
      %v9496 = vshll.u32 %v9313, 16
      %v9498 = vrot.slane %v9496, 5
      %v9499 = vsel %vm339, %v9494, %v9498
      %v9500 = vshrl.u32 %v9313, 16
      %v9502 = vrot.slane %v9500, 4
      %v9503 = vor.u32 %v9502, %v9498
      %v9504 = vrot.slane %v9503, 4
      %v9506 = vshll.u32 %v9314, 16
      %v9508 = vrot.slane %v9506, 5
      %v9509 = vsel %vm339, %v9504, %v9508
      %v9511 = vshrl.u32 %v9315, 16
      %v9513 = vrot.slane %v9511, 4
      %v9514 = vshll.u32 %v9315, 16
      %v9516 = vrot.slane %v9514, 5
      %v9517 = vor.u32 %v9513, %v9516
      %v9518 = vrot.slane %v9517, 4
      %v9520 = vshll.u32 %v9316, 16
      %v9522 = vrot.slane %v9520, 5
      %v9523 = vsel %vm339, %v9518, %v9522
      %v9524 = vshrl.u32 %v9316, 16
      %v9526 = vrot.slane %v9524, 4
      %v9527 = vor.u32 %v9526, %v9522
      %v9528 = vrot.slane %v9527, 4
      %v9530 = vshll.u32 %v9317, 16
      %v9532 = vrot.slane %v9530, 5
      %v9533 = vsel %vm339, %v9528, %v9532
      %v9535 = vshrl.u32 %v9318, 16
      %v9537 = vrot.slane %v9535, 4
      %v9538 = vshll.u32 %v9318, 16
      %v9540 = vrot.slane %v9538, 5
      %v9541 = vor.u32 %v9537, %v9540
      %v9542 = vrot.slane %v9541, 4
      %v9544 = vshll.u32 %v9319, 16
      %v9546 = vrot.slane %v9544, 5
      %v9547 = vsel %vm339, %v9542, %v9546
      %v9548 = vshrl.u32 %v9319, 16
      %v9550 = vrot.slane %v9548, 4
      %v9551 = vor.u32 %v9550, %v9546
      %v9552 = vrot.slane %v9551, 4
      %v9554 = vshll.u32 %v9320, 16
      %v9556 = vrot.slane %v9554, 5
      %v9557 = vsel %vm339, %v9552, %v9556
      %v9559 = vshrl.u32 %v9321, 16
      %v9561 = vrot.slane %v9559, 4
      %v9562 = vshll.u32 %v9321, 16
      %v9564 = vrot.slane %v9562, 5
      %v9565 = vor.u32 %v9561, %v9564
      %v9566 = vrot.slane %v9565, 4
      %v9568 = vshll.u32 %v9322, 16
      %v9570 = vrot.slane %v9568, 5
      %v9571 = vsel %vm339, %v9566, %v9570
      %v9572 = vshrl.u32 %v9322, 16
      %v9574 = vrot.slane %v9572, 4
      %v9575 = vor.u32 %v9574, %v9570
      %v9576 = vrot.slane %v9575, 4
      %v9578 = vshll.u32 %v9323, 16
      %v9580 = vrot.slane %v9578, 5
      %v9581 = vsel %vm339, %v9576, %v9580
      %v9583 = vshrl.u32 %v9324, 16
      %v9585 = vrot.slane %v9583, 4
      %v9586 = vshll.u32 %v9324, 16
      %v9588 = vrot.slane %v9586, 5
      %v9589 = vor.u32 %v9585, %v9588
      %v9590 = vrot.slane %v9589, 4
      %v9592 = vshll.u32 %v9325, 16
      %v9594 = vrot.slane %v9592, 5
      %v9595 = vsel %vm339, %v9590, %v9594
      %v9596 = vshrl.u32 %v9325, 16
      %v9598 = vrot.slane %v9596, 4
      %v9599 = vor.u32 %v9598, %v9594
      %v9600 = vrot.slane %v9599, 4
      %v9602 = vshll.u32 %v9326, 16
      %v9604 = vrot.slane %v9602, 5
      %v9605 = vsel %vm339, %v9600, %v9604
      %v9607 = vshrl.u32 %v9327, 16
      %v9609 = vrot.slane %v9607, 4
      %v9610 = vshll.u32 %v9327, 16
      %v9612 = vrot.slane %v9610, 5
      %v9613 = vor.u32 %v9609, %v9612
      %v9614 = vrot.slane %v9613, 4
      %v9616 = vshll.u32 %v9328, 16
      %v9618 = vrot.slane %v9616, 5
      %v9619 = vsel %vm339, %v9614, %v9618
      %v9620 = vshrl.u32 %v9328, 16
      %v9622 = vrot.slane %v9620, 4
      %v9623 = vor.u32 %v9622, %v9618
      %v9624 = vrot.slane %v9623, 4
      %v9626 = vshll.u32 %v9329, 16
      %v9628 = vrot.slane %v9626, 5
      %v9629 = vsel %vm339, %v9624, %v9628
      %v9631 = vshrl.u32 %v9330, 16
      %v9633 = vrot.slane %v9631, 4
      %v9634 = vshll.u32 %v9330, 16
      %v9636 = vrot.slane %v9634, 5
      %v9637 = vor.u32 %v9633, %v9636
      %v9638 = vrot.slane %v9637, 4
      %v9640 = vshll.u32 %v9331, 16
      %v9642 = vrot.slane %v9640, 5
      %v9643 = vsel %vm339, %v9638, %v9642
      %v9644 = vshrl.u32 %v9331, 16
      %v9646 = vrot.slane %v9644, 4
      %v9647 = vor.u32 %v9646, %v9642
      %v9648 = vrot.slane %v9647, 4
      %v9650 = vshll.u32 %v9332, 16
      %v9652 = vrot.slane %v9650, 5
      %v9653 = vsel %vm339, %v9648, %v9652
      %v9655 = vshrl.u32 %v9333, 16
      %v9657 = vrot.slane %v9655, 4
      %v9658 = vshll.u32 %v9333, 16
      %v9660 = vrot.slane %v9658, 5
      %v9661 = vor.u32 %v9657, %v9660
      %v9662 = vrot.slane %v9661, 4
      %v9664 = vshll.u32 %v9334, 16
      %v9666 = vrot.slane %v9664, 5
      %v9667 = vsel %vm339, %v9662, %v9666
      %v9668 = vshrl.u32 %v9334, 16
      %v9670 = vrot.slane %v9668, 4
      %v9671 = vor.u32 %v9670, %v9666
      %v9672 = vrot.slane %v9671, 4
      %v9674 = vshll.u32 %v9335, 16
      %v9676 = vrot.slane %v9674, 5
      %v9677 = vsel %vm339, %v9672, %v9676
      %v9679 = vshrl.u32 %v9336, 16
      %v9681 = vrot.slane %v9679, 4
      %v9682 = vshll.u32 %v9336, 16
      %v9684 = vrot.slane %v9682, 5
      %v9685 = vor.u32 %v9681, %v9684
      %v9686 = vrot.slane %v9685, 4
      %v9688 = vshll.u32 %v9337, 16
      %v9690 = vrot.slane %v9688, 5
      %v9691 = vsel %vm339, %v9686, %v9690
      %v9692 = vshrl.u32 %v9337, 16
      %v9694 = vrot.slane %v9692, 4
      %v9695 = vor.u32 %v9694, %v9690
      %v9696 = vrot.slane %v9695, 4
      %v9698 = vshll.u32 %v9338, 16
      %v9700 = vrot.slane %v9698, 5
      %v9701 = vsel %vm339, %v9696, %v9700
      %v9703 = vshrl.u32 %v9339, 16
      %v9705 = vrot.slane %v9703, 4
      %v9706 = vshll.u32 %v9339, 16
      %v9708 = vrot.slane %v9706, 5
      %v9709 = vor.u32 %v9705, %v9708
      %v9710 = vrot.slane %v9709, 4
      %v9712 = vshll.u32 %v9340, 16
      %v9714 = vrot.slane %v9712, 5
      %v9715 = vsel %vm339, %v9710, %v9714
      %v9716 = vshrl.u32 %v9340, 16
      %v9718 = vrot.slane %v9716, 4
      %v9719 = vor.u32 %v9718, %v9714
      %v9720 = vrot.slane %v9719, 4
      %v9722 = vshll.u32 %v9341, 16
      %v9724 = vrot.slane %v9722, 5
      %v9725 = vsel %vm339, %v9720, %v9724
      %s9726 = scalar_lea.vmem %s2, 448
      %v9727 = vld [vmem:[%s9726] sm:$0xf]
      %v9728 = vld [vmem:[%s9726 + $0x4] sm:$0xf]
      %v9729 = vld [vmem:[%s9726 + $0x8] sm:$0xf]
      %v9730 = vld [vmem:[%s9726 + $0xc] sm:$0xf]
      %v9731 = vld [vmem:[%s9726 + $0x10] sm:$0xf]
      %v9732 = vld [vmem:[%s9726 + $0x14] sm:$0xf]
      %v9733 = vld [vmem:[%s9726 + $0x18] sm:$0xf]
      %v9734 = vld [vmem:[%s9726 + $0x1c] sm:$0xf]
      %v9735 = vld [vmem:[%s9726 + $0x20] sm:$0xf]
      %v9736 = vld [vmem:[%s9726 + $0x24] sm:$0xf]
      %v9737 = vld [vmem:[%s9726 + $0x28] sm:$0xf]
      %v9738 = vld [vmem:[%s9726 + $0x2c] sm:$0xf]
      %v9739 = vld [vmem:[%s9726 + $0x30] sm:$0xf]
      %v9740 = vld [vmem:[%s9726 + $0x34] sm:$0xf]
      %v9741 = vld [vmem:[%s9726 + $0x38] sm:$0xf]
      %v9742 = vld [vmem:[%s9726 + $0x3c] sm:$0xf]
      %v9743 = vunpack.c.l.b16 %v9355
      %v9744 = vunpack.c.l.b16 %v9365
      %v9745 = vunpack.c.l.b16 %v9379
      %v9746 = vunpack.c.l.b16 %v9389
      %v9747 = vunpack.c.l.b16 %v9403
      %v9748 = vunpack.c.l.b16 %v9413
      %v9749 = vunpack.c.l.b16 %v9427
      %v9750 = vunpack.c.l.b16 %v9437
      %v9751 = vunpack.c.l.b16 %v9451
      %v9752 = vunpack.c.l.b16 %v9461
      %v9753 = vunpack.c.l.b16 %v9475
      %v9754 = vunpack.c.l.b16 %v9485
      %v9755 = vunpack.c.l.b16 %v9499
      %v9756 = vunpack.c.l.b16 %v9509
      %v9757 = vunpack.c.l.b16 %v9523
      %v9758 = vunpack.c.l.b16 %v9533
      %v9759 = vunpack.c.l.b16 %v9547
      %v9760 = vunpack.c.l.b16 %v9557
      %v9761 = vunpack.c.l.b16 %v9571
      %v9762 = vunpack.c.l.b16 %v9581
      %v9763 = vunpack.c.l.b16 %v9595
      %v9764 = vunpack.c.l.b16 %v9605
      %v9765 = vunpack.c.l.b16 %v9619
      %v9766 = vunpack.c.l.b16 %v9629
      %v9767 = vunpack.c.l.b16 %v9643
      %v9768 = vunpack.c.l.b16 %v9653
      %v9769 = vunpack.c.l.b16 %v9667
      %v9770 = vunpack.c.l.b16 %v9677
      %v9771 = vunpack.c.l.b16 %v9691
      %v9772 = vunpack.c.l.b16 %v9701
      %v9773 = vunpack.c.l.b16 %v9715
      %v9774 = vunpack.c.l.b16 %v9725
      %v9775 = vpack.c.b16 %v9744, %v9743
      %v9776 = vpack.c.b16 %v9746, %v9745
      %v9777 = vpack.c.b16 %v9748, %v9747
      %v9778 = vpack.c.b16 %v9750, %v9749
      %v9779 = vpack.c.b16 %v9752, %v9751
      %v9780 = vpack.c.b16 %v9754, %v9753
      %v9781 = vpack.c.b16 %v9756, %v9755
      %v9782 = vpack.c.b16 %v9758, %v9757
      %v9783 = vpack.c.b16 %v9760, %v9759
      %v9784 = vpack.c.b16 %v9762, %v9761
      %v9785 = vpack.c.b16 %v9764, %v9763
      %v9786 = vpack.c.b16 %v9766, %v9765
      %v9787 = vpack.c.b16 %v9768, %v9767
      %v9788 = vpack.c.b16 %v9770, %v9769
      %v9789 = vpack.c.b16 %v9772, %v9771
      %v9790 = vpack.c.b16 %v9774, %v9773
      %v9823 = vunpack.c.l.b16 %v9727
      %v9824 = vunpack.c.l.b16 %v9728
      %v9825 = vunpack.c.l.b16 %v9729
      %v9826 = vunpack.c.l.b16 %v9730
      %v9827 = vunpack.c.l.b16 %v9731
      %v9828 = vunpack.c.l.b16 %v9732
      %v9829 = vunpack.c.l.b16 %v9733
      %v9830 = vunpack.c.l.b16 %v9734
      %v9831 = vunpack.c.l.b16 %v9735
      %v9832 = vunpack.c.l.b16 %v9736
      %v9833 = vunpack.c.l.b16 %v9737
      %v9834 = vunpack.c.l.b16 %v9738
      %v9835 = vunpack.c.l.b16 %v9739
      %v9836 = vunpack.c.l.b16 %v9740
      %v9837 = vunpack.c.l.b16 %v9741
      %v9838 = vunpack.c.l.b16 %v9742
      %v9839 = vpack.c.b16 %v9824, %v9823
      %v9840 = vpack.c.b16 %v9826, %v9825
      %v9841 = vpack.c.b16 %v9828, %v9827
      %v9842 = vpack.c.b16 %v9830, %v9829
      %v9843 = vpack.c.b16 %v9832, %v9831
      %v9844 = vpack.c.b16 %v9834, %v9833
      %v9845 = vpack.c.b16 %v9836, %v9835
      %v9846 = vpack.c.b16 %v9838, %v9837
      %9855 = vmatprep.subr.bf16.mxu0 0
      %9856 = vmatpush1.bf16.msra.mxu0 %v9846
      %9857 = vmatprep.subr.bf16.mxu0 0
      %9858 = vmatpush1.bf16.msra.mxu0 %v9845
      %9859 = vmatprep.subr.bf16.mxu0 0
      %9860 = vmatpush1.bf16.msra.mxu0 %v9844
      %9861 = vmatprep.subr.bf16.mxu0 0
      %9862 = vmatpush1.bf16.msra.mxu0 %v9843
      %9863 = vmatprep.subr.bf16.mxu0 0
      %9864 = vmatpush1.bf16.msra.mxu0 %v9842
      %9865 = vmatprep.subr.bf16.mxu0 0
      %9866 = vmatpush1.bf16.msra.mxu0 %v9841
      %9867 = vmatprep.subr.bf16.mxu0 0
      %9868 = vmatpush1.bf16.msra.mxu0 %v9840
      %9869 = vmatprep.subr.bf16.mxu0 0
      %9870 = vmatpush1.bf16.msra.mxu0 %v9839
      %9871 = vmatprep.subr.bf16.mxu0 0
      %9872 = vmatpush2.bf16.msra.mxu0 0
      %9873 = vmatprep.subr.bf16.mxu0 0
      %9874 = vmatpush2.bf16.msra.mxu0 0
      %9875 = vmatprep.subr.bf16.mxu0 0
      %9876 = vmatpush2.bf16.msra.mxu0 0
      %9877 = vmatprep.subr.bf16.mxu0 0
      %9878 = vmatpush2.bf16.msra.mxu0 0
      %9879 = vmatprep.subr.bf16.mxu0 0
      %9880 = vmatpush2.bf16.msra.mxu0 0
      %9881 = vmatprep.subr.bf16.mxu0 0
      %9882 = vmatpush2.bf16.msra.mxu0 0
      %9883 = vmatprep.subr.bf16.mxu0 0
      %9884 = vmatpush2.bf16.msra.mxu0 0
      %9885 = vmatprep.subr.bf16.mxu0 0
      %9886 = vmatpush2.bf16.msra.mxu0 0
      %9887 = vmatprep.mubr.bf16.mxu0 0
      %9888 = vmatmul.mubr.bf16.gmra.mxu0 %v9775
      %v9889 = vpop.f32.mrf.mxu0
      %v9890 = vadd.f32 0.0, %v9889
      %v9891 = vpop.f32.mrf.mxu0
      %v9892 = vpop.f32.mrf.mxu0
      %v9893 = vadd.f32 0.0, %v9892
      %v9894 = vpop.f32.mrf.mxu0
      %9895 = vmatprep.mubr.bf16.mxu0 0
      %9896 = vmatmul.mubr.bf16.gmra.mxu0 %v9776
      %v9897 = vpop.f32.mrf.mxu0
      %v9898 = vadd.f32 0.0, %v9897
      %v9899 = vpop.f32.mrf.mxu0
      %v9900 = vpop.f32.mrf.mxu0
      %v9901 = vadd.f32 0.0, %v9900
      %v9902 = vpop.f32.mrf.mxu0
      %9903 = vmatprep.mubr.bf16.mxu0 0
      %9904 = vmatmul.mubr.bf16.gmra.mxu0 %v9777
      %v9905 = vpop.f32.mrf.mxu0
      %v9906 = vadd.f32 0.0, %v9905
      %v9907 = vpop.f32.mrf.mxu0
      %v9908 = vpop.f32.mrf.mxu0
      %v9909 = vadd.f32 0.0, %v9908
      %v9910 = vpop.f32.mrf.mxu0
      %9911 = vmatprep.mubr.bf16.mxu0 0
      %9912 = vmatmul.mubr.bf16.gmra.mxu0 %v9778
      %v9913 = vpop.f32.mrf.mxu0
      %v9914 = vadd.f32 0.0, %v9913
      %v9915 = vpop.f32.mrf.mxu0
      %v9916 = vpop.f32.mrf.mxu0
      %v9917 = vadd.f32 0.0, %v9916
      %v9918 = vpop.f32.mrf.mxu0
      %9919 = vmatprep.mubr.bf16.mxu0 0
      %9920 = vmatmul.mubr.bf16.gmra.mxu0 %v9779
      %v9921 = vpop.f32.mrf.mxu0
      %v9922 = vadd.f32 0.0, %v9921
      %v9923 = vpop.f32.mrf.mxu0
      %v9924 = vpop.f32.mrf.mxu0
      %v9925 = vadd.f32 0.0, %v9924
      %v9926 = vpop.f32.mrf.mxu0
      %9927 = vmatprep.mubr.bf16.mxu0 0
      %9928 = vmatmul.mubr.bf16.gmra.mxu0 %v9780
      %v9929 = vpop.f32.mrf.mxu0
      %v9930 = vadd.f32 0.0, %v9929
      %v9931 = vpop.f32.mrf.mxu0
      %v9932 = vpop.f32.mrf.mxu0
      %v9933 = vadd.f32 0.0, %v9932
      %v9934 = vpop.f32.mrf.mxu0
      %9935 = vmatprep.mubr.bf16.mxu0 0
      %9936 = vmatmul.mubr.bf16.gmra.mxu0 %v9781
      %v9937 = vpop.f32.mrf.mxu0
      %v9938 = vadd.f32 0.0, %v9937
      %v9939 = vpop.f32.mrf.mxu0
      %v9940 = vpop.f32.mrf.mxu0
      %v9941 = vadd.f32 0.0, %v9940
      %v9942 = vpop.f32.mrf.mxu0
      %9943 = vmatprep.mubr.bf16.mxu0 0
      %9944 = vmatmul.mubr.bf16.gmra.mxu0 %v9782
      %v9945 = vpop.f32.mrf.mxu0
      %v9946 = vadd.f32 0.0, %v9945
      %v9947 = vpop.f32.mrf.mxu0
      %v9948 = vpop.f32.mrf.mxu0
      %v9949 = vadd.f32 0.0, %v9948
      %v9950 = vpop.f32.mrf.mxu0
      %9951 = vmatprep.mubr.bf16.mxu0 0
      %9952 = vmatmul.mubr.bf16.gmra.mxu0 %v9783
      %v9953 = vpop.f32.mrf.mxu0
      %v9954 = vadd.f32 0.0, %v9953
      %v9955 = vpop.f32.mrf.mxu0
      %v9956 = vpop.f32.mrf.mxu0
      %v9957 = vadd.f32 0.0, %v9956
      %v9958 = vpop.f32.mrf.mxu0
      %9959 = vmatprep.mubr.bf16.mxu0 0
      %9960 = vmatmul.mubr.bf16.gmra.mxu0 %v9784
      %v9961 = vpop.f32.mrf.mxu0
      %v9962 = vadd.f32 0.0, %v9961
      %v9963 = vpop.f32.mrf.mxu0
      %v9964 = vpop.f32.mrf.mxu0
      %v9965 = vadd.f32 0.0, %v9964
      %v9966 = vpop.f32.mrf.mxu0
      %9967 = vmatprep.mubr.bf16.mxu0 0
      %9968 = vmatmul.mubr.bf16.gmra.mxu0 %v9785
      %v9969 = vpop.f32.mrf.mxu0
      %v9970 = vadd.f32 0.0, %v9969
      %v9971 = vpop.f32.mrf.mxu0
      %v9972 = vpop.f32.mrf.mxu0
      %v9973 = vadd.f32 0.0, %v9972
      %v9974 = vpop.f32.mrf.mxu0
      %9975 = vmatprep.mubr.bf16.mxu0 0
      %9976 = vmatmul.mubr.bf16.gmra.mxu0 %v9786
      %v9977 = vpop.f32.mrf.mxu0
      %v9978 = vadd.f32 0.0, %v9977
      %v9979 = vpop.f32.mrf.mxu0
      %v9980 = vpop.f32.mrf.mxu0
      %v9981 = vadd.f32 0.0, %v9980
      %v9982 = vpop.f32.mrf.mxu0
      %9983 = vmatprep.mubr.bf16.mxu0 0
      %9984 = vmatmul.mubr.bf16.gmra.mxu0 %v9787
      %v9985 = vpop.f32.mrf.mxu0
      %v9986 = vadd.f32 0.0, %v9985
      %v9987 = vpop.f32.mrf.mxu0
      %v9988 = vpop.f32.mrf.mxu0
      %v9989 = vadd.f32 0.0, %v9988
      %v9990 = vpop.f32.mrf.mxu0
      %9991 = vmatprep.mubr.bf16.mxu0 0
      %9992 = vmatmul.mubr.bf16.gmra.mxu0 %v9788
      %v9993 = vpop.f32.mrf.mxu0
      %v9994 = vadd.f32 0.0, %v9993
      %v9995 = vpop.f32.mrf.mxu0
      %v9996 = vpop.f32.mrf.mxu0
      %v9997 = vadd.f32 0.0, %v9996
      %v9998 = vpop.f32.mrf.mxu0
      %9999 = vmatprep.mubr.bf16.mxu0 0
      %10000 = vmatmul.mubr.bf16.gmra.mxu0 %v9789
      %v10001 = vpop.f32.mrf.mxu0
      %v10002 = vadd.f32 0.0, %v10001
      %v10003 = vpop.f32.mrf.mxu0
      %v10004 = vpop.f32.mrf.mxu0
      %v10005 = vadd.f32 0.0, %v10004
      %v10006 = vpop.f32.mrf.mxu0
      %10007 = vmatprep.mubr.bf16.mxu0 0
      %10008 = vmatmul.mubr.bf16.gmra.mxu0 %v9790
      %v10009 = vpop.f32.mrf.mxu0
      %v10010 = vadd.f32 0.0, %v10009
      %v10011 = vpop.f32.mrf.mxu0
      %v10012 = vpop.f32.mrf.mxu0
      %v10013 = vadd.f32 0.0, %v10012
      %v10014 = vpop.f32.mrf.mxu0
      %10015 = vdwg.mxu0
      %v10016 = vadd.f32 %v9262, %v9890
      %v10017 = vadd.f32 %v9263, %v9893
      %v10018 = vadd.f32 %v9264, %v9898
      %v10019 = vadd.f32 %v9265, %v9901
      %v10020 = vadd.f32 %v9266, %v9906
      %v10021 = vadd.f32 %v9267, %v9909
      %v10022 = vadd.f32 %v9268, %v9914
      %v10023 = vadd.f32 %v9269, %v9917
      %v10024 = vadd.f32 %v9270, %v9922
      %v10025 = vadd.f32 %v9271, %v9925
      %v10026 = vadd.f32 %v9272, %v9930
      %v10027 = vadd.f32 %v9273, %v9933
      %v10028 = vadd.f32 %v9274, %v9938
      %v10029 = vadd.f32 %v9275, %v9941
      %v10030 = vadd.f32 %v9276, %v9946
      %v10031 = vadd.f32 %v9277, %v9949
      %v10032 = vadd.f32 %v9278, %v9954
      %v10033 = vadd.f32 %v9279, %v9957
      %v10034 = vadd.f32 %v9280, %v9962
      %v10035 = vadd.f32 %v9281, %v9965
      %v10036 = vadd.f32 %v9282, %v9970
      %v10037 = vadd.f32 %v9283, %v9973
      %v10038 = vadd.f32 %v9284, %v9978
      %v10039 = vadd.f32 %v9285, %v9981
      %v10040 = vadd.f32 %v9286, %v9986
      %v10041 = vadd.f32 %v9287, %v9989
      %v10042 = vadd.f32 %v9288, %v9994
      %v10043 = vadd.f32 %v9289, %v9997
      %v10044 = vadd.f32 %v9290, %v10002
      %v10045 = vadd.f32 %v9291, %v10005
      %v10046 = vadd.f32 %v9292, %v10010
      %v10047 = vadd.f32 %v9293, %v10013
      %v10048 = vld [vmem:[%s8907] sm:$0xe]
      %v10049 = vld [vmem:[%s8907 + $0xc] sm:$0xe]
      %v10050 = vld [vmem:[%s8907 + $0x18] sm:$0xe]
      %v10051 = vld [vmem:[%s8907 + $0x24] sm:$0xe]
      %v10052 = vld [vmem:[%s8907 + $0x30] sm:$0xe]
      %v10053 = vld [vmem:[%s8907 + $0x3c] sm:$0xe]
      %v10054 = vld [vmem:[%s8907 + $0x48] sm:$0xe]
      %v10055 = vld [vmem:[%s8907 + $0x54] sm:$0xe]
      %v10056 = vld [vmem:[%s8907 + $0x60] sm:$0xe]
      %v10057 = vld [vmem:[%s8907 + $0x6c] sm:$0xe]
      %v10058 = vld [vmem:[%s8907 + $0x78] sm:$0xe]
      %v10059 = vld [vmem:[%s8907 + $0x84] sm:$0xe]
      %v10060 = vld [vmem:[%s8907 + $0x90] sm:$0xe]
      %v10061 = vld [vmem:[%s8907 + $0x9c] sm:$0xe]
      %v10062 = vld [vmem:[%s8907 + $0xa8] sm:$0xe]
      %v10063 = vld [vmem:[%s8907 + $0xb4] sm:$0xe]
      %v10112 = vrot.slane %v10048, 5
      %v10113 = vrot.slane %v10112, 4
      %v10114 = vrot.slane %v9295, 5
      %v10115 = vsel %vm1369, %v10113, %v10114
      %v10116 = vrot.slane %v10114, 4
      %v10117 = vrot.slane %v9296, 5
      %v10118 = vsel %vm1369, %v10116, %v10117
      %v10119 = vrot.slane %v10049, 5
      %v10120 = vrot.slane %v10119, 4
      %v10121 = vrot.slane %v9298, 5
      %v10122 = vsel %vm1369, %v10120, %v10121
      %v10123 = vrot.slane %v10121, 4
      %v10124 = vrot.slane %v9299, 5
      %v10125 = vsel %vm1369, %v10123, %v10124
      %v10126 = vrot.slane %v10050, 5
      %v10127 = vrot.slane %v10126, 4
      %v10128 = vrot.slane %v9301, 5
      %v10129 = vsel %vm1369, %v10127, %v10128
      %v10130 = vrot.slane %v10128, 4
      %v10131 = vrot.slane %v9302, 5
      %v10132 = vsel %vm1369, %v10130, %v10131
      %v10133 = vrot.slane %v10051, 5
      %v10134 = vrot.slane %v10133, 4
      %v10135 = vrot.slane %v9304, 5
      %v10136 = vsel %vm1369, %v10134, %v10135
      %v10137 = vrot.slane %v10135, 4
      %v10138 = vrot.slane %v9305, 5
      %v10139 = vsel %vm1369, %v10137, %v10138
      %v10140 = vrot.slane %v10052, 5
      %v10141 = vrot.slane %v10140, 4
      %v10142 = vrot.slane %v9307, 5
      %v10143 = vsel %vm1369, %v10141, %v10142
      %v10144 = vrot.slane %v10142, 4
      %v10145 = vrot.slane %v9308, 5
      %v10146 = vsel %vm1369, %v10144, %v10145
      %v10147 = vrot.slane %v10053, 5
      %v10148 = vrot.slane %v10147, 4
      %v10149 = vrot.slane %v9310, 5
      %v10150 = vsel %vm1369, %v10148, %v10149
      %v10151 = vrot.slane %v10149, 4
      %v10152 = vrot.slane %v9311, 5
      %v10153 = vsel %vm1369, %v10151, %v10152
      %v10154 = vrot.slane %v10054, 5
      %v10155 = vrot.slane %v10154, 4
      %v10156 = vrot.slane %v9313, 5
      %v10157 = vsel %vm1369, %v10155, %v10156
      %v10158 = vrot.slane %v10156, 4
      %v10159 = vrot.slane %v9314, 5
      %v10160 = vsel %vm1369, %v10158, %v10159
      %v10161 = vrot.slane %v10055, 5
      %v10162 = vrot.slane %v10161, 4
      %v10163 = vrot.slane %v9316, 5
      %v10164 = vsel %vm1369, %v10162, %v10163
      %v10165 = vrot.slane %v10163, 4
      %v10166 = vrot.slane %v9317, 5
      %v10167 = vsel %vm1369, %v10165, %v10166
      %v10168 = vrot.slane %v10056, 5
      %v10169 = vrot.slane %v10168, 4
      %v10170 = vrot.slane %v9319, 5
      %v10171 = vsel %vm1369, %v10169, %v10170
      %v10172 = vrot.slane %v10170, 4
      %v10173 = vrot.slane %v9320, 5
      %v10174 = vsel %vm1369, %v10172, %v10173
      %v10175 = vrot.slane %v10057, 5
      %v10176 = vrot.slane %v10175, 4
      %v10177 = vrot.slane %v9322, 5
      %v10178 = vsel %vm1369, %v10176, %v10177
      %v10179 = vrot.slane %v10177, 4
      %v10180 = vrot.slane %v9323, 5
      %v10181 = vsel %vm1369, %v10179, %v10180
      %v10182 = vrot.slane %v10058, 5
      %v10183 = vrot.slane %v10182, 4
      %v10184 = vrot.slane %v9325, 5
      %v10185 = vsel %vm1369, %v10183, %v10184
      %v10186 = vrot.slane %v10184, 4
      %v10187 = vrot.slane %v9326, 5
      %v10188 = vsel %vm1369, %v10186, %v10187
      %v10189 = vrot.slane %v10059, 5
      %v10190 = vrot.slane %v10189, 4
      %v10191 = vrot.slane %v9328, 5
      %v10192 = vsel %vm1369, %v10190, %v10191
      %v10193 = vrot.slane %v10191, 4
      %v10194 = vrot.slane %v9329, 5
      %v10195 = vsel %vm1369, %v10193, %v10194
      %v10196 = vrot.slane %v10060, 5
      %v10197 = vrot.slane %v10196, 4
      %v10198 = vrot.slane %v9331, 5
      %v10199 = vsel %vm1369, %v10197, %v10198
      %v10200 = vrot.slane %v10198, 4
      %v10201 = vrot.slane %v9332, 5
      %v10202 = vsel %vm1369, %v10200, %v10201
      %v10203 = vrot.slane %v10061, 5
      %v10204 = vrot.slane %v10203, 4
      %v10205 = vrot.slane %v9334, 5
      %v10206 = vsel %vm1369, %v10204, %v10205
      %v10207 = vrot.slane %v10205, 4
      %v10208 = vrot.slane %v9335, 5
      %v10209 = vsel %vm1369, %v10207, %v10208
      %v10210 = vrot.slane %v10062, 5
      %v10211 = vrot.slane %v10210, 4
      %v10212 = vrot.slane %v9337, 5
      %v10213 = vsel %vm1369, %v10211, %v10212
      %v10214 = vrot.slane %v10212, 4
      %v10215 = vrot.slane %v9338, 5
      %v10216 = vsel %vm1369, %v10214, %v10215
      %v10217 = vrot.slane %v10063, 5
      %v10218 = vrot.slane %v10217, 4
      %v10219 = vrot.slane %v9340, 5
      %v10220 = vsel %vm1369, %v10218, %v10219
      %v10221 = vrot.slane %v10219, 4
      %v10222 = vrot.slane %v9341, 5
      %v10223 = vsel %vm1369, %v10221, %v10222
      %s10224 = scalar_lea.vmem %s2, 512
      %v10225 = vld [vmem:[%s10224] sm:$0xf]
      %v10226 = vld [vmem:[%s10224 + $0x4] sm:$0xf]
      %v10227 = vld [vmem:[%s10224 + $0x8] sm:$0xf]
      %v10228 = vld [vmem:[%s10224 + $0xc] sm:$0xf]
      %v10229 = vld [vmem:[%s10224 + $0x10] sm:$0xf]
      %v10230 = vld [vmem:[%s10224 + $0x14] sm:$0xf]
      %v10231 = vld [vmem:[%s10224 + $0x18] sm:$0xf]
      %v10232 = vld [vmem:[%s10224 + $0x1c] sm:$0xf]
      %v10233 = vld [vmem:[%s10224 + $0x20] sm:$0xf]
      %v10234 = vld [vmem:[%s10224 + $0x24] sm:$0xf]
      %v10235 = vld [vmem:[%s10224 + $0x28] sm:$0xf]
      %v10236 = vld [vmem:[%s10224 + $0x2c] sm:$0xf]
      %v10237 = vld [vmem:[%s10224 + $0x30] sm:$0xf]
      %v10238 = vld [vmem:[%s10224 + $0x34] sm:$0xf]
      %v10239 = vld [vmem:[%s10224 + $0x38] sm:$0xf]
      %v10240 = vld [vmem:[%s10224 + $0x3c] sm:$0xf]
      %v10241 = vunpack.c.l.b16 %v10115
      %v10242 = vunpack.c.l.b16 %v10118
      %v10243 = vunpack.c.l.b16 %v10122
      %v10244 = vunpack.c.l.b16 %v10125
      %v10245 = vunpack.c.l.b16 %v10129
      %v10246 = vunpack.c.l.b16 %v10132
      %v10247 = vunpack.c.l.b16 %v10136
      %v10248 = vunpack.c.l.b16 %v10139
      %v10249 = vunpack.c.l.b16 %v10143
      %v10250 = vunpack.c.l.b16 %v10146
      %v10251 = vunpack.c.l.b16 %v10150
      %v10252 = vunpack.c.l.b16 %v10153
      %v10253 = vunpack.c.l.b16 %v10157
      %v10254 = vunpack.c.l.b16 %v10160
      %v10255 = vunpack.c.l.b16 %v10164
      %v10256 = vunpack.c.l.b16 %v10167
      %v10257 = vunpack.c.l.b16 %v10171
      %v10258 = vunpack.c.l.b16 %v10174
      %v10259 = vunpack.c.l.b16 %v10178
      %v10260 = vunpack.c.l.b16 %v10181
      %v10261 = vunpack.c.l.b16 %v10185
      %v10262 = vunpack.c.l.b16 %v10188
      %v10263 = vunpack.c.l.b16 %v10192
      %v10264 = vunpack.c.l.b16 %v10195
      %v10265 = vunpack.c.l.b16 %v10199
      %v10266 = vunpack.c.l.b16 %v10202
      %v10267 = vunpack.c.l.b16 %v10206
      %v10268 = vunpack.c.l.b16 %v10209
      %v10269 = vunpack.c.l.b16 %v10213
      %v10270 = vunpack.c.l.b16 %v10216
      %v10271 = vunpack.c.l.b16 %v10220
      %v10272 = vunpack.c.l.b16 %v10223
      %v10273 = vpack.c.b16 %v10242, %v10241
      %v10274 = vpack.c.b16 %v10244, %v10243
      %v10275 = vpack.c.b16 %v10246, %v10245
      %v10276 = vpack.c.b16 %v10248, %v10247
      %v10277 = vpack.c.b16 %v10250, %v10249
      %v10278 = vpack.c.b16 %v10252, %v10251
      %v10279 = vpack.c.b16 %v10254, %v10253
      %v10280 = vpack.c.b16 %v10256, %v10255
      %v10281 = vpack.c.b16 %v10258, %v10257
      %v10282 = vpack.c.b16 %v10260, %v10259
      %v10283 = vpack.c.b16 %v10262, %v10261
      %v10284 = vpack.c.b16 %v10264, %v10263
      %v10285 = vpack.c.b16 %v10266, %v10265
      %v10286 = vpack.c.b16 %v10268, %v10267
      %v10287 = vpack.c.b16 %v10270, %v10269
      %v10288 = vpack.c.b16 %v10272, %v10271
      %v10321 = vunpack.c.l.b16 %v10225
      %v10322 = vunpack.c.l.b16 %v10226
      %v10323 = vunpack.c.l.b16 %v10227
      %v10324 = vunpack.c.l.b16 %v10228
      %v10325 = vunpack.c.l.b16 %v10229
      %v10326 = vunpack.c.l.b16 %v10230
      %v10327 = vunpack.c.l.b16 %v10231
      %v10328 = vunpack.c.l.b16 %v10232
      %v10329 = vunpack.c.l.b16 %v10233
      %v10330 = vunpack.c.l.b16 %v10234
      %v10331 = vunpack.c.l.b16 %v10235
      %v10332 = vunpack.c.l.b16 %v10236
      %v10333 = vunpack.c.l.b16 %v10237
      %v10334 = vunpack.c.l.b16 %v10238
      %v10335 = vunpack.c.l.b16 %v10239
      %v10336 = vunpack.c.l.b16 %v10240
      %v10337 = vpack.c.b16 %v10322, %v10321
      %v10338 = vpack.c.b16 %v10324, %v10323
      %v10339 = vpack.c.b16 %v10326, %v10325
      %v10340 = vpack.c.b16 %v10328, %v10327
      %v10341 = vpack.c.b16 %v10330, %v10329
      %v10342 = vpack.c.b16 %v10332, %v10331
      %v10343 = vpack.c.b16 %v10334, %v10333
      %v10344 = vpack.c.b16 %v10336, %v10335
      %10353 = vmatprep.subr.bf16.mxu0 0
      %10354 = vmatpush1.bf16.msra.mxu0 %v10344
      %10355 = vmatprep.subr.bf16.mxu0 0
      %10356 = vmatpush1.bf16.msra.mxu0 %v10343
      %10357 = vmatprep.subr.bf16.mxu0 0
      %10358 = vmatpush1.bf16.msra.mxu0 %v10342
      %10359 = vmatprep.subr.bf16.mxu0 0
      %10360 = vmatpush1.bf16.msra.mxu0 %v10341
      %10361 = vmatprep.subr.bf16.mxu0 0
      %10362 = vmatpush1.bf16.msra.mxu0 %v10340
      %10363 = vmatprep.subr.bf16.mxu0 0
      %10364 = vmatpush1.bf16.msra.mxu0 %v10339
      %10365 = vmatprep.subr.bf16.mxu0 0
      %10366 = vmatpush1.bf16.msra.mxu0 %v10338
      %10367 = vmatprep.subr.bf16.mxu0 0
      %10368 = vmatpush1.bf16.msra.mxu0 %v10337
      %10369 = vmatprep.subr.bf16.mxu0 0
      %10370 = vmatpush2.bf16.msra.mxu0 0
      %10371 = vmatprep.subr.bf16.mxu0 0
      %10372 = vmatpush2.bf16.msra.mxu0 0
      %10373 = vmatprep.subr.bf16.mxu0 0
      %10374 = vmatpush2.bf16.msra.mxu0 0
      %10375 = vmatprep.subr.bf16.mxu0 0
      %10376 = vmatpush2.bf16.msra.mxu0 0
      %10377 = vmatprep.subr.bf16.mxu0 0
      %10378 = vmatpush2.bf16.msra.mxu0 0
      %10379 = vmatprep.subr.bf16.mxu0 0
      %10380 = vmatpush2.bf16.msra.mxu0 0
      %10381 = vmatprep.subr.bf16.mxu0 0
      %10382 = vmatpush2.bf16.msra.mxu0 0
      %10383 = vmatprep.subr.bf16.mxu0 0
      %10384 = vmatpush2.bf16.msra.mxu0 0
      %10385 = vmatprep.mubr.bf16.mxu0 0
      %10386 = vmatmul.mubr.bf16.gmra.mxu0 %v10273
      %v10387 = vpop.f32.mrf.mxu0
      %v10388 = vadd.f32 0.0, %v10387
      %v10389 = vpop.f32.mrf.mxu0
      %v10390 = vpop.f32.mrf.mxu0
      %v10391 = vadd.f32 0.0, %v10390
      %v10392 = vpop.f32.mrf.mxu0
      %10393 = vmatprep.mubr.bf16.mxu0 0
      %10394 = vmatmul.mubr.bf16.gmra.mxu0 %v10274
      %v10395 = vpop.f32.mrf.mxu0
      %v10396 = vadd.f32 0.0, %v10395
      %v10397 = vpop.f32.mrf.mxu0
      %v10398 = vpop.f32.mrf.mxu0
      %v10399 = vadd.f32 0.0, %v10398
      %v10400 = vpop.f32.mrf.mxu0
      %10401 = vmatprep.mubr.bf16.mxu0 0
      %10402 = vmatmul.mubr.bf16.gmra.mxu0 %v10275
      %v10403 = vpop.f32.mrf.mxu0
      %v10404 = vadd.f32 0.0, %v10403
      %v10405 = vpop.f32.mrf.mxu0
      %v10406 = vpop.f32.mrf.mxu0
      %v10407 = vadd.f32 0.0, %v10406
      %v10408 = vpop.f32.mrf.mxu0
      %10409 = vmatprep.mubr.bf16.mxu0 0
      %10410 = vmatmul.mubr.bf16.gmra.mxu0 %v10276
      %v10411 = vpop.f32.mrf.mxu0
      %v10412 = vadd.f32 0.0, %v10411
      %v10413 = vpop.f32.mrf.mxu0
      %v10414 = vpop.f32.mrf.mxu0
      %v10415 = vadd.f32 0.0, %v10414
      %v10416 = vpop.f32.mrf.mxu0
      %10417 = vmatprep.mubr.bf16.mxu0 0
      %10418 = vmatmul.mubr.bf16.gmra.mxu0 %v10277
      %v10419 = vpop.f32.mrf.mxu0
      %v10420 = vadd.f32 0.0, %v10419
      %v10421 = vpop.f32.mrf.mxu0
      %v10422 = vpop.f32.mrf.mxu0
      %v10423 = vadd.f32 0.0, %v10422
      %v10424 = vpop.f32.mrf.mxu0
      %10425 = vmatprep.mubr.bf16.mxu0 0
      %10426 = vmatmul.mubr.bf16.gmra.mxu0 %v10278
      %v10427 = vpop.f32.mrf.mxu0
      %v10428 = vadd.f32 0.0, %v10427
      %v10429 = vpop.f32.mrf.mxu0
      %v10430 = vpop.f32.mrf.mxu0
      %v10431 = vadd.f32 0.0, %v10430
      %v10432 = vpop.f32.mrf.mxu0
      %10433 = vmatprep.mubr.bf16.mxu0 0
      %10434 = vmatmul.mubr.bf16.gmra.mxu0 %v10279
      %v10435 = vpop.f32.mrf.mxu0
      %v10436 = vadd.f32 0.0, %v10435
      %v10437 = vpop.f32.mrf.mxu0
      %v10438 = vpop.f32.mrf.mxu0
      %v10439 = vadd.f32 0.0, %v10438
      %v10440 = vpop.f32.mrf.mxu0
      %10441 = vmatprep.mubr.bf16.mxu0 0
      %10442 = vmatmul.mubr.bf16.gmra.mxu0 %v10280
      %v10443 = vpop.f32.mrf.mxu0
      %v10444 = vadd.f32 0.0, %v10443
      %v10445 = vpop.f32.mrf.mxu0
      %v10446 = vpop.f32.mrf.mxu0
      %v10447 = vadd.f32 0.0, %v10446
      %v10448 = vpop.f32.mrf.mxu0
      %10449 = vmatprep.mubr.bf16.mxu0 0
      %10450 = vmatmul.mubr.bf16.gmra.mxu0 %v10281
      %v10451 = vpop.f32.mrf.mxu0
      %v10452 = vadd.f32 0.0, %v10451
      %v10453 = vpop.f32.mrf.mxu0
      %v10454 = vpop.f32.mrf.mxu0
      %v10455 = vadd.f32 0.0, %v10454
      %v10456 = vpop.f32.mrf.mxu0
      %10457 = vmatprep.mubr.bf16.mxu0 0
      %10458 = vmatmul.mubr.bf16.gmra.mxu0 %v10282
      %v10459 = vpop.f32.mrf.mxu0
      %v10460 = vadd.f32 0.0, %v10459
      %v10461 = vpop.f32.mrf.mxu0
      %v10462 = vpop.f32.mrf.mxu0
      %v10463 = vadd.f32 0.0, %v10462
      %v10464 = vpop.f32.mrf.mxu0
      %10465 = vmatprep.mubr.bf16.mxu0 0
      %10466 = vmatmul.mubr.bf16.gmra.mxu0 %v10283
      %v10467 = vpop.f32.mrf.mxu0
      %v10468 = vadd.f32 0.0, %v10467
      %v10469 = vpop.f32.mrf.mxu0
      %v10470 = vpop.f32.mrf.mxu0
      %v10471 = vadd.f32 0.0, %v10470
      %v10472 = vpop.f32.mrf.mxu0
      %10473 = vmatprep.mubr.bf16.mxu0 0
      %10474 = vmatmul.mubr.bf16.gmra.mxu0 %v10284
      %v10475 = vpop.f32.mrf.mxu0
      %v10476 = vadd.f32 0.0, %v10475
      %v10477 = vpop.f32.mrf.mxu0
      %v10478 = vpop.f32.mrf.mxu0
      %v10479 = vadd.f32 0.0, %v10478
      %v10480 = vpop.f32.mrf.mxu0
      %10481 = vmatprep.mubr.bf16.mxu0 0
      %10482 = vmatmul.mubr.bf16.gmra.mxu0 %v10285
      %v10483 = vpop.f32.mrf.mxu0
      %v10484 = vadd.f32 0.0, %v10483
      %v10485 = vpop.f32.mrf.mxu0
      %v10486 = vpop.f32.mrf.mxu0
      %v10487 = vadd.f32 0.0, %v10486
      %v10488 = vpop.f32.mrf.mxu0
      %10489 = vmatprep.mubr.bf16.mxu0 0
      %10490 = vmatmul.mubr.bf16.gmra.mxu0 %v10286
      %v10491 = vpop.f32.mrf.mxu0
      %v10492 = vadd.f32 0.0, %v10491
      %v10493 = vpop.f32.mrf.mxu0
      %v10494 = vpop.f32.mrf.mxu0
      %v10495 = vadd.f32 0.0, %v10494
      %v10496 = vpop.f32.mrf.mxu0
      %10497 = vmatprep.mubr.bf16.mxu0 0
      %10498 = vmatmul.mubr.bf16.gmra.mxu0 %v10287
      %v10499 = vpop.f32.mrf.mxu0
      %v10500 = vadd.f32 0.0, %v10499
      %v10501 = vpop.f32.mrf.mxu0
      %v10502 = vpop.f32.mrf.mxu0
      %v10503 = vadd.f32 0.0, %v10502
      %v10504 = vpop.f32.mrf.mxu0
      %10505 = vmatprep.mubr.bf16.mxu0 0
      %10506 = vmatmul.mubr.bf16.gmra.mxu0 %v10288
      %v10507 = vpop.f32.mrf.mxu0
      %v10508 = vadd.f32 0.0, %v10507
      %v10509 = vpop.f32.mrf.mxu0
      %v10510 = vpop.f32.mrf.mxu0
      %v10511 = vadd.f32 0.0, %v10510
      %v10512 = vpop.f32.mrf.mxu0
      %10513 = vdwg.mxu0
      %v10514 = vadd.f32 %v10016, %v10388
      %v10515 = vadd.f32 %v10017, %v10391
      %v10516 = vadd.f32 %v10018, %v10396
      %v10517 = vadd.f32 %v10019, %v10399
      %v10518 = vadd.f32 %v10020, %v10404
      %v10519 = vadd.f32 %v10021, %v10407
      %v10520 = vadd.f32 %v10022, %v10412
      %v10521 = vadd.f32 %v10023, %v10415
      %v10522 = vadd.f32 %v10024, %v10420
      %v10523 = vadd.f32 %v10025, %v10423
      %v10524 = vadd.f32 %v10026, %v10428
      %v10525 = vadd.f32 %v10027, %v10431
      %v10526 = vadd.f32 %v10028, %v10436
      %v10527 = vadd.f32 %v10029, %v10439
      %v10528 = vadd.f32 %v10030, %v10444
      %v10529 = vadd.f32 %v10031, %v10447
      %v10530 = vadd.f32 %v10032, %v10452
      %v10531 = vadd.f32 %v10033, %v10455
      %v10532 = vadd.f32 %v10034, %v10460
      %v10533 = vadd.f32 %v10035, %v10463
      %v10534 = vadd.f32 %v10036, %v10468
      %v10535 = vadd.f32 %v10037, %v10471
      %v10536 = vadd.f32 %v10038, %v10476
      %v10537 = vadd.f32 %v10039, %v10479
      %v10538 = vadd.f32 %v10040, %v10484
      %v10539 = vadd.f32 %v10041, %v10487
      %v10540 = vadd.f32 %v10042, %v10492
      %v10541 = vadd.f32 %v10043, %v10495
      %v10542 = vadd.f32 %v10044, %v10500
      %v10543 = vadd.f32 %v10045, %v10503
      %v10544 = vadd.f32 %v10046, %v10508
      %v10545 = vadd.f32 %v10047, %v10511
      %v10546 = vld [vmem:[%s4] sm:$0x1]
      %v10548 = vlaneseq
      %v10549 = vshrl.u32 %v10548, 7
      %v10550 = vsub.s32 0, %v10549
      %v10551 = vrot.slane %v10546, %v10550
      %v10553 = vadd.f32 %v10514, %v10551
      %v10554 = vadd.f32 %v10515, %v10551
      %v10555 = vadd.f32 %v10516, %v10551
      %v10556 = vadd.f32 %v10517, %v10551
      %v10557 = vadd.f32 %v10518, %v10551
      %v10558 = vadd.f32 %v10519, %v10551
      %v10559 = vadd.f32 %v10520, %v10551
      %v10560 = vadd.f32 %v10521, %v10551
      %v10561 = vadd.f32 %v10522, %v10551
      %v10562 = vadd.f32 %v10523, %v10551
      %v10563 = vadd.f32 %v10524, %v10551
      %v10564 = vadd.f32 %v10525, %v10551
      %v10565 = vadd.f32 %v10526, %v10551
      %v10566 = vadd.f32 %v10527, %v10551
      %v10567 = vadd.f32 %v10528, %v10551
      %v10568 = vadd.f32 %v10529, %v10551
      %v10569 = vadd.f32 %v10530, %v10551
      %v10570 = vadd.f32 %v10531, %v10551
      %v10571 = vadd.f32 %v10532, %v10551
      %v10572 = vadd.f32 %v10533, %v10551
      %v10573 = vadd.f32 %v10534, %v10551
      %v10574 = vadd.f32 %v10535, %v10551
      %v10575 = vadd.f32 %v10536, %v10551
      %v10576 = vadd.f32 %v10537, %v10551
      %v10577 = vadd.f32 %v10538, %v10551
      %v10578 = vadd.f32 %v10539, %v10551
      %v10579 = vadd.f32 %v10540, %v10551
      %v10580 = vadd.f32 %v10541, %v10551
      %v10581 = vadd.f32 %v10542, %v10551
      %v10582 = vadd.f32 %v10543, %v10551
      %v10583 = vadd.f32 %v10544, %v10551
      %v10584 = vadd.f32 %v10545, %v10551
      %v10585 = vld [vmem:[%s266] sm:$0xff]
      %v10586 = vld [vmem:[%s266 + $0x8] sm:$0xff]
      %v10587 = vld [vmem:[%s266 + $0x10] sm:$0xff]
      %v10588 = vld [vmem:[%s266 + $0x18] sm:$0xff]
      %v10589 = vld [vmem:[%s266 + $0x20] sm:$0xff]
      %v10590 = vld [vmem:[%s266 + $0x28] sm:$0xff]
      %v10591 = vld [vmem:[%s266 + $0x30] sm:$0xff]
      %v10592 = vld [vmem:[%s266 + $0x38] sm:$0xff]
      %v10593 = vld [vmem:[%s266 + $0x40] sm:$0xff]
      %v10594 = vld [vmem:[%s266 + $0x48] sm:$0xff]
      %v10595 = vld [vmem:[%s266 + $0x50] sm:$0xff]
      %v10596 = vld [vmem:[%s266 + $0x58] sm:$0xff]
      %v10597 = vld [vmem:[%s266 + $0x60] sm:$0xff]
      %v10598 = vld [vmem:[%s266 + $0x68] sm:$0xff]
      %v10599 = vld [vmem:[%s266 + $0x70] sm:$0xff]
      %v10600 = vld [vmem:[%s266 + $0x78] sm:$0xff]
      %v10601 = vld [vmem:[%s266 + $0x80] sm:$0xff]
      %v10602 = vld [vmem:[%s266 + $0x88] sm:$0xff]
      %v10603 = vld [vmem:[%s266 + $0x90] sm:$0xff]
      %v10604 = vld [vmem:[%s266 + $0x98] sm:$0xff]
      %v10605 = vld [vmem:[%s266 + $0xa0] sm:$0xff]
      %v10606 = vld [vmem:[%s266 + $0xa8] sm:$0xff]
      %v10607 = vld [vmem:[%s266 + $0xb0] sm:$0xff]
      %v10608 = vld [vmem:[%s266 + $0xb8] sm:$0xff]
      %v10609 = vld [vmem:[%s266 + $0xc0] sm:$0xff]
      %v10610 = vld [vmem:[%s266 + $0xc8] sm:$0xff]
      %v10611 = vld [vmem:[%s266 + $0xd0] sm:$0xff]
      %v10612 = vld [vmem:[%s266 + $0xd8] sm:$0xff]
      %v10613 = vld [vmem:[%s266 + $0xe0] sm:$0xff]
      %v10614 = vld [vmem:[%s266 + $0xe8] sm:$0xff]
      %v10615 = vld [vmem:[%s266 + $0xf0] sm:$0xff]
      %v10616 = vld [vmem:[%s266 + $0xf8] sm:$0xff]
      %v10617 = vadd.f32 %v10553, %v10585
      %v10618 = vadd.f32 %v10554, %v10586
      %v10619 = vadd.f32 %v10555, %v10587
      %v10620 = vadd.f32 %v10556, %v10588
      %v10621 = vadd.f32 %v10557, %v10589
      %v10622 = vadd.f32 %v10558, %v10590
      %v10623 = vadd.f32 %v10559, %v10591
      %v10624 = vadd.f32 %v10560, %v10592
      %v10625 = vadd.f32 %v10561, %v10593
      %v10626 = vadd.f32 %v10562, %v10594
      %v10627 = vadd.f32 %v10563, %v10595
      %v10628 = vadd.f32 %v10564, %v10596
      %v10629 = vadd.f32 %v10565, %v10597
      %v10630 = vadd.f32 %v10566, %v10598
      %v10631 = vadd.f32 %v10567, %v10599
      %v10632 = vadd.f32 %v10568, %v10600
      %v10633 = vadd.f32 %v10569, %v10601
      %v10634 = vadd.f32 %v10570, %v10602
      %v10635 = vadd.f32 %v10571, %v10603
      %v10636 = vadd.f32 %v10572, %v10604
      %v10637 = vadd.f32 %v10573, %v10605
      %v10638 = vadd.f32 %v10574, %v10606
      %v10639 = vadd.f32 %v10575, %v10607
      %v10640 = vadd.f32 %v10576, %v10608
      %v10641 = vadd.f32 %v10577, %v10609
      %v10642 = vadd.f32 %v10578, %v10610
      %v10643 = vadd.f32 %v10579, %v10611
      %v10644 = vadd.f32 %v10580, %v10612
      %v10645 = vadd.f32 %v10581, %v10613
      %v10646 = vadd.f32 %v10582, %v10614
      %v10647 = vadd.f32 %v10583, %v10615
      %v10648 = vadd.f32 %v10584, %v10616
      %v10649 = vmax.f32 %v10617, 0.0
      %v10650 = vmax.f32 %v10618, 0.0
      %v10651 = vmax.f32 %v10619, 0.0
      %v10652 = vmax.f32 %v10620, 0.0
      %v10653 = vmax.f32 %v10621, 0.0
      %v10654 = vmax.f32 %v10622, 0.0
      %v10655 = vmax.f32 %v10623, 0.0
      %v10656 = vmax.f32 %v10624, 0.0
      %v10657 = vmax.f32 %v10625, 0.0
      %v10658 = vmax.f32 %v10626, 0.0
      %v10659 = vmax.f32 %v10627, 0.0
      %v10660 = vmax.f32 %v10628, 0.0
      %v10661 = vmax.f32 %v10629, 0.0
      %v10662 = vmax.f32 %v10630, 0.0
      %v10663 = vmax.f32 %v10631, 0.0
      %v10664 = vmax.f32 %v10632, 0.0
      %v10665 = vmax.f32 %v10633, 0.0
      %v10666 = vmax.f32 %v10634, 0.0
      %v10667 = vmax.f32 %v10635, 0.0
      %v10668 = vmax.f32 %v10636, 0.0
      %v10669 = vmax.f32 %v10637, 0.0
      %v10670 = vmax.f32 %v10638, 0.0
      %v10671 = vmax.f32 %v10639, 0.0
      %v10672 = vmax.f32 %v10640, 0.0
      %v10673 = vmax.f32 %v10641, 0.0
      %v10674 = vmax.f32 %v10642, 0.0
      %v10675 = vmax.f32 %v10643, 0.0
      %v10676 = vmax.f32 %v10644, 0.0
      %v10677 = vmax.f32 %v10645, 0.0
      %v10678 = vmax.f32 %v10646, 0.0
      %v10679 = vmax.f32 %v10647, 0.0
      %v10680 = vmax.f32 %v10648, 0.0
      %10681 = vst [vmem:[%s271] sm:$0xff] %v10649
      %10682 = vst [vmem:[%s271 + $0x8] sm:$0xff] %v10650
      %10683 = vst [vmem:[%s271 + $0x10] sm:$0xff] %v10651
      %10684 = vst [vmem:[%s271 + $0x18] sm:$0xff] %v10652
      %10685 = vst [vmem:[%s271 + $0x20] sm:$0xff] %v10653
      %10686 = vst [vmem:[%s271 + $0x28] sm:$0xff] %v10654
      %10687 = vst [vmem:[%s271 + $0x30] sm:$0xff] %v10655
      %10688 = vst [vmem:[%s271 + $0x38] sm:$0xff] %v10656
      %10689 = vst [vmem:[%s271 + $0x40] sm:$0xff] %v10657
      %10690 = vst [vmem:[%s271 + $0x48] sm:$0xff] %v10658
      %10691 = vst [vmem:[%s271 + $0x50] sm:$0xff] %v10659
      %10692 = vst [vmem:[%s271 + $0x58] sm:$0xff] %v10660
      %10693 = vst [vmem:[%s271 + $0x60] sm:$0xff] %v10661
      %10694 = vst [vmem:[%s271 + $0x68] sm:$0xff] %v10662
      %10695 = vst [vmem:[%s271 + $0x70] sm:$0xff] %v10663
      %10696 = vst [vmem:[%s271 + $0x78] sm:$0xff] %v10664
      %10697 = vst [vmem:[%s271 + $0x80] sm:$0xff] %v10665
      %10698 = vst [vmem:[%s271 + $0x88] sm:$0xff] %v10666
      %10699 = vst [vmem:[%s271 + $0x90] sm:$0xff] %v10667
      %10700 = vst [vmem:[%s271 + $0x98] sm:$0xff] %v10668
      %10701 = vst [vmem:[%s271 + $0xa0] sm:$0xff] %v10669
      %10702 = vst [vmem:[%s271 + $0xa8] sm:$0xff] %v10670
      %10703 = vst [vmem:[%s271 + $0xb0] sm:$0xff] %v10671
      %10704 = vst [vmem:[%s271 + $0xb8] sm:$0xff] %v10672
      %10705 = vst [vmem:[%s271 + $0xc0] sm:$0xff] %v10673
      %10706 = vst [vmem:[%s271 + $0xc8] sm:$0xff] %v10674
      %10707 = vst [vmem:[%s271 + $0xd0] sm:$0xff] %v10675
      %10708 = vst [vmem:[%s271 + $0xd8] sm:$0xff] %v10676
      %10709 = vst [vmem:[%s271 + $0xe0] sm:$0xff] %v10677
      %10710 = vst [vmem:[%s271 + $0xe8] sm:$0xff] %v10678
      %10711 = vst [vmem:[%s271 + $0xf0] sm:$0xff] %v10679
      %10712 = vst [vmem:[%s271 + $0xf8] sm:$0xff] %v10680
      %p10713 = scmp.lt.s32.totalorder %s17, 1
      %s10714 = scalar_select %p10713, %s17, 1
      %s10715 = smul.addr %s10714, 32
      %s10716 = smul.addr %s10715, 8
      %s10717 = scalar_lea.vmem %s6, %s10716
      // Predicated region
      $region45: #{basic_block_forward.1} parent=43 // pred_check
        %p10718 = pneg %p171
      $region46: #{basic_block_forward.1} parent=43 // pred_check_branch
        %10720 = sbr.rel (%p10718) target = $region48
      $region47: #{basic_block_forward.1} parent=43 // pred_region
        _
      $region48: #{basic_block_forward.1} parent=43 // pred_fallthru
        _
    $region44: #{basic_block_forward.1} parent=5 // pred_fallthru
      _
    %p10721 = scmp.le.s32.totalorder 2, %s12
    // Predicated region
    $region49: #{basic_block_forward.1} parent=5 // pred_check
      %p10722 = pneg %p10721
    $region50: #{basic_block_forward.1} parent=5 // pred_check_branch
      %10724 = sbr.rel (%p10722) target = $region52
    $region51: #{basic_block_forward.1} parent=5 // pred_region
      %s10725 = ssub.s32 %s12, 2
      // Predicated region
      $region53: #{basic_block_forward.1} parent=51 // pred_check
        %p10726 = pneg %p177
      $region54: #{basic_block_forward.1} parent=51 // pred_check_branch
        %10728 = sbr.rel (%p10726) target = $region56
      $region55: #{basic_block_forward.1} parent=51 // pred_region
        %p10729 = scmp.lt.s32.totalorder %s18, 1
        %s10730 = scalar_select %p10729, %s18, 1
        %s10731 = smul.addr %s10730, 32
        %s10732 = smul.addr %s10731, 8
        %s10733 = scalar_lea.vmem %s6, %s10732
      $region56: #{basic_block_forward.1} parent=51 // pred_fallthru
        _
    $region52: #{basic_block_forward.1} parent=5 // pred_fallthru
      _
  $region6: #{basic_block_forward.1} parent=0 // loop_footer
    %s16 = sadd.s32 1, %s12
  $region7: #{basic_block_forward.1} parent=0 // loop_footer_branch
    %11 = sbr.rel target = $region3
  $region8: #{basic_block_forward.1} parent=0 // loop_exit
    _

</llo_original>
